<compile_context>
chip_gen: v7x
topology: tpu7x:2x2x1
jax: 0.10.0
libtpu: 0.0.40
codegen_flags: <defaults>
</compile_context>

<pallas_src>
import math
import numpy as np
import jax
import jax.numpy as jnp
from jax import lax
from jax.experimental import pallas as pl
from jax.experimental.pallas import tpu as pltpu

# ---------------- config (small synthetic sizes) ----------------
DIM = 32          # opt['dim']
EMB = 32          # opt['embedding_size']
N_DBPEDIA = 64    # opt['n_dbpedia']
N_CONCEPT = 31    # opt['n_concept'] (table has N_CONCEPT+1 rows, idx 0 = pad)
N_RELATION = 3
NUM_BASES = 2
VOCAB = 40        # len(dictionary) + 4
VOCAB_PAD = 128   # vocab padded to a lane-dense 128 for the logits outputs
N_HEADS = 2
N_LAYERS = 1
FFN = 64
N_POS = 16
PAD_IDX = 0
START_IDX = 1
TOPK = 8                                 # original uses k=50; scaled to synthetic size
MOVIE_ID = list(range(8, 40))            # synthetic stand-in for data/movie_ids.pkl
MENTIONED = [[2, 5, 9], []]              # per-batch mentioned dbpedia entities (static)

F32 = jnp.float32
BF16 = jnp.bfloat16

# The 64-row weight slab packs every weight whose row count is FFN / 2*EMB / 2*DIM.
assert FFN == 2 * EMB == 2 * DIM

# =======================================================================
# single-invocation fused-kernel plumbing (every operand = one full VMEM block)
# =======================================================================

def _full_spec(shape):
    zeros = (0,) * len(shape)
    return pl.BlockSpec(shape, lambda i, _z=zeros: _z)


def fused_call(kernel, inputs, out_defs):
    """Run `kernel` once (grid=(1,)); every operand resident in VMEM as a full block."""
    out_shape = tuple(jax.ShapeDtypeStruct(s, d) for s, d in out_defs)
    out_specs = tuple(_full_spec(s) for s, _ in out_defs)
    return pl.pallas_call(
        kernel,
        out_shape=out_shape,
        grid=(1,),
        in_specs=[_full_spec(x.shape) for x in inputs],
        out_specs=out_specs,
        compiler_params=pltpu.CompilerParams(dimension_semantics=("arbitrary",)),
    )(*inputs)


# ---------------- in-kernel math helpers (2-D only) ----------------

def _mm(a, b):
    # bf16 MXU operands, f32 accumulation.
    return jnp.dot(a.astype(BF16), b.astype(BF16), preferred_element_type=F32)


def _mm_t(a, b):
    # a @ b.T without materializing a transpose.
    return lax.dot_general(a.astype(BF16), b.astype(BF16), (((1,), (1,)), ((), ())),
                           preferred_element_type=F32)


def _ln(x, g, b, eps=1e-5):
    mu = jnp.mean(x, axis=-1, keepdims=True)
    var = jnp.mean((x - mu) ** 2, axis=-1, keepdims=True)
    return (x - mu) * lax.rsqrt(var + eps) * g + b


def _softmax(e, axis):
    e = e - jnp.max(e, axis=axis, keepdims=True)
    p = jnp.exp(e)
    return p * pl.reciprocal(jnp.sum(p, axis=axis, keepdims=True), approx=True)


def _mha(q, k, v, key_mask_row, causal):
    """Multi-head attention core. q:(Tq,E) k/v:(Tk,E), key_mask_row:(1,Tk) (1.0 = attend).

    Q is pre-scaled by 1/sqrt(Dh) at init.  Heads are handled with a tiny static loop of
    lane-offset slices (H=2, Dh=16): at these sizes this is 2 MXU pushes either way and it
    avoids in-kernel (T,E)->(T,H,Dh) reshapes / 3-D transposes for lowering robustness.
    Returns the concatenated head outputs (Tq,E) in f32 (output projection applied by caller).
    """
    Tq, E = q.shape
    Tk = k.shape[0]
    Dh = E // N_HEADS
    keep = jnp.broadcast_to(key_mask_row > 0, (Tq, Tk))
    if causal:
        r = lax.broadcasted_iota(jnp.int32, (Tq, Tk), 0)
        c = lax.broadcasted_iota(jnp.int32, (Tq, Tk), 1)
        keep = jnp.logical_and(keep, r >= c)
    outs = []
    for h in range(N_HEADS):
        sl = slice(h * Dh, (h + 1) * Dh)
        s = _mm_t(q[:, sl], k[:, sl])                         # (Tq, Tk)
        s = jnp.where(keep, s, jnp.float32(-1e30))
        p = _softmax(s, axis=-1)
        outs.append(_mm(p, v[:, sl]))                         # (Tq, Dh)
    return jnp.concatenate(outs, axis=-1)                     # (Tq, E)


# =======================================================================
# weight-slab packer: one wide DMA instead of dozens of tiny ones
# =======================================================================

class _Packer:
    def __init__(self, rows, dtype):
        self.rows, self.dtype = rows, dtype
        self.cols, self.off, self.n = [], {}, 0

    def add(self, name, arr):
        arr = jnp.asarray(arr, self.dtype)
        assert arr.shape[0] == self.rows, (name, arr.shape, self.rows)
        self.off[name] = (self.n, arr.shape[1])
        self.n += arr.shape[1]
        self.cols.append(arr)

    def slab(self):
        return jnp.concatenate(self.cols, axis=1)


# =======================================================================
# Kernel 1: RGCN + GCN + user pooling / fusion + recommendation scores
# =======================================================================

def make_rec_kernel(offW, offB, B, Lm):
    NA = N_RELATION * N_DBPEDIA
    NC = N_CONCEPT + 1

    def kernel(db_slab_ref, w_stack_ref, con_slab_ref, rw_ref, unw_ref, rb_ref,
               dbg_ref, cong_ref,
               db_feat_ref, con_items_ref, users_ref, scores_ref):
        def W(name):
            o, w = offW[name]
            return rw_ref[:, o:o + w]

        def Bv(name):
            o, w = offB[name]
            return rb_ref[:, o:o + w]

        # --- RGCN: all relations fused into one (N, R*N) @ (R*N, D) matmul ---
        a_cat = db_slab_ref[:, :NA]
        root = db_slab_ref[:, NA:].astype(F32)
        db_feat = root + Bv('rgcn_b') + _mm(a_cat, w_stack_ref[...])
        db_feat_ref[...] = db_feat

        # --- GCN on the concept graph ---
        con_adj = con_slab_ref[:, :NC]
        con_tbl = con_slab_ref[:, NC:]
        con_feat = _mm(con_adj, _mm(con_tbl, W('gcn_w'))) + Bv('gcn_b')

        # --- batch-flattened one-hot gather matmuls + attention-pooling scores ---
        dbg = dbg_ref[...]                                    # (B*Lm, N) one-hot (bf16)
        h_all = _mm(dbg, db_feat)                             # (B*Lm, D)
        e_all = _mm(jnp.tanh(_mm(h_all, W('dbsa_a'))), W('dbsa_b'))       # (B*Lm, 1)
        valid = jnp.sum(dbg.astype(F32), axis=-1, keepdims=True)          # 1.0 where row non-empty
        e_all = jnp.where(valid > 0, e_all, jnp.float32(-1e30))

        cong = cong_ref[...]                                  # (B*Lc, NC) one-hot (bf16)
        Lc = cong.shape[0] // B
        hc_all = _mm(cong, con_feat)                          # (B*Lc, D)
        con_items_ref[...] = hc_all
        ec_all = _mm(jnp.tanh(_mm(hc_all, W('consa_a'))), W('consa_b'))   # (B*Lc, 1)
        pad_col = cong[:, 0:1].astype(F32)                    # one-hot col 0 == PAD
        ec_all = ec_all - jnp.float32(1e30) * pad_col

        # per-batch softmax pooling.  Invariant: for an empty mentioned-list the gathered db rows
        # are exactly zero, so the uniform softmax over fully-masked rows still pools to zero
        # (matches the original's torch.zeros fallback).  Do not add any bias to h_all.
        db_rows, con_rows = [], []
        for b in range(B):                                    # static, tiny (B=2)
            e = e_all[b * Lm:(b + 1) * Lm]
            h = h_all[b * Lm:(b + 1) * Lm]
            p = _softmax(e, axis=0)
            db_rows.append(jnp.sum(p * h, axis=0, keepdims=True))
            ec = ec_all[b * Lc:(b + 1) * Lc]
            hc = hc_all[b * Lc:(b + 1) * Lc]
            pc = _softmax(ec, axis=0)
            con_rows.append(jnp.sum(pc * hc, axis=0, keepdims=True))
        user_db = jnp.concatenate(db_rows, axis=0)            # (B, D)
        user_con = jnp.concatenate(con_rows, axis=0)          # (B, D)
        uc_ud = jnp.concatenate([user_con, user_db], axis=-1)  # (B, 2D)
        users_ref[...] = uc_ud

        # --- gated fusion + stacked recommendation scores (one matmul vs db_feat^T) ---
        u = _mm(uc_ud, unw_ref[...]) + Bv('un_b')
        z = _mm(u, W('gate_w')) + Bv('gate_b')
        gate = 1.0 / (1.0 + jnp.exp(-z))
        user_emb = gate * user_db + (1.0 - gate) * user_con
        ucn = _mm(user_con, W('ucn_w')) + Bv('ucn_b')
        stacked = jnp.concatenate([user_emb, ucn], axis=0)    # (2B, D): movie rows then db rows
        sc = _mm_t(stacked, db_feat)                          # (2B, N_DBPEDIA)
        bias2 = jnp.concatenate(
            [jnp.broadcast_to(Bv('smovie_b'), (B, N_DBPEDIA)),
             jnp.broadcast_to(Bv('sdb_b'), (B, N_DBPEDIA))], axis=0)
        scores_ref[...] = sc + bias2

    return kernel


# =======================================================================
# Kernel 2: fused transformer encoder + decoder + copy-network logits
# =======================================================================

def make_gen_kernel(offW, offW64, offB):
    def kernel(xenc_ref, encmaskc_ref, encmaskr_ref, xdec_ref, conit_ref, conmask_ref,
               dbit_ref, dbmask_ref, users_ref,
               gw_ref, gw64_ref, gb_ref, lg_ref,
               voc_ref, sum_ref):
        def W(name):
            o, w = offW[name]
            return gw_ref[:, o:o + w]

        def W64(name):
            o, w = offW64[name]
            return gw64_ref[:, o:o + w]

        def Bv(name):
            o, w = offB[name]
            return gb_ref[:, o:o + w]

        B, Tc = encmaskr_ref.shape
        S = xdec_ref.shape[0] // B
        Lc = conmask_ref.shape[1]
        K = dbmask_ref.shape[1]
        E = EMB

        enc_mask = encmaskr_ref[...]                          # (B, Tc)
        maskc = encmaskc_ref[...]                             # (B*Tc, 1)
        con_mask = conmask_ref[...]                           # (B, Lc)
        db_mask = dbmask_ref[...]                             # (B, K)

        # ---------------- encoder (activations stay in VMEM/vregs end-to-end) ----------------
        x = xenc_ref[...] * maskc                             # (B*Tc, E)
        for l in range(N_LAYERS):
            p = f'enc{l}_'
            qkv = _mm(x, W(p + 'wqkv')) + Bv(p + 'bqkv')      # batch-flattened fused QKV
            rows = []
            for b in range(B):
                qb = qkv[b * Tc:(b + 1) * Tc]
                rows.append(_mha(qb[:, :E], qb[:, E:2 * E], qb[:, 2 * E:],
                                 enc_mask[b:b + 1, :], causal=False))
            a = _mm(jnp.concatenate(rows, axis=0), W(p + 'wo')) + Bv(p + 'bo')
            x = _ln(x + a, Bv(p + 'ln1g'), Bv(p + 'ln1b'))
            hmid = jnp.maximum(_mm(x, W(p + 'w1')) + Bv(p + 'b1'), 0.0)
            f = _mm(hmid, W64(p + 'w2')) + Bv(p + 'b2')
            x = _ln(x + f, Bv(p + 'ln2g'), Bv(p + 'ln2b'))
            x = x * maskc
        enc_out = x                                           # (B*Tc, E), never leaves VMEM

        # ---------------- decoder memory projections (con_norm / db_norm folded in) ----------
        con_mem = _mm(conit_ref[...], W('conn_w')) + Bv('conn_b')       # (B*Lc, E)
        db_mem = _mm(dbit_ref[...], W('dbn_w')) + Bv('dbn_b')           # (B*K, E)

        # ---------------- decoder ----------------
        y = xdec_ref[...]                                     # (B*S, E)
        ones_row = jnp.ones((1, S), F32)

        def cross(yin, mem_flat, Tm, mask_bt, pfx, lg, lb):
            q = _mm(yin, W(pfx + 'wq')) + Bv(pfx + 'bq')
            kv = _mm(mem_flat, W(pfx + 'wkv')) + Bv(pfx + 'bkv')        # fused K/V projection
            rows = []
            for b in range(B):
                qb = q[b * S:(b + 1) * S]
                kvb = kv[b * Tm:(b + 1) * Tm]
                rows.append(_mha(qb, kvb[:, :E], kvb[:, E:], mask_bt[b:b + 1, :], causal=False))
            a = _mm(jnp.concatenate(rows, axis=0), W(pfx + 'wo')) + Bv(pfx + 'bo')
            return _ln(yin + a, lg, lb)

        for l in range(N_LAYERS):
            p = f'dec{l}_'
            # 1) causal self-attention
            qkv = _mm(y, W(p + 'swqkv')) + Bv(p + 'sbqkv')
            rows = []
            for b in range(B):
                qb = qkv[b * S:(b + 1) * S]
                rows.append(_mha(qb[:, :E], qb[:, E:2 * E], qb[:, 2 * E:],
                                 ones_row, causal=True))
            a = _mm(jnp.concatenate(rows, axis=0), W(p + 'swo')) + Bv(p + 'sbo')
            y = _ln(y + a, Bv(p + 'ln1g'), Bv(p + 'ln1b'))
            # 2) cross-attn over encoder states / 3) concept memory / 4) recommended entities
            y = cross(y, enc_out, Tc, enc_mask, p + 'e_', Bv(p + 'ln2g'), Bv(p + 'ln2b'))
            y = cross(y, con_mem, Lc, con_mask, p + 'k_', Bv(p + 'ln3g'), Bv(p + 'ln3b'))
            y = cross(y, db_mem, K, db_mask, p + 'd_', Bv(p + 'ln4g'), Bv(p + 'ln4b'))
            # 5) FFN
            hmid = jnp.maximum(_mm(y, W(p + 'f_w1')) + Bv(p + 'f_b1'), 0.0)
            f = _mm(hmid, W64(p + 'f_w2')) + Bv(p + 'f_b2')
            y = _ln(y + f, Bv(p + 'ln5g'), Bv(p + 'ln5b'))
        latent = y                                            # (B*S, E)

        # ---------------- copy-network logits (lane-dense 128/256-wide) ----------------
        # users: (B, 2*DIM) = [user_con | user_db]; block-diag kgdb_norm gives [kg_lat | db_lat]
        kgdb = _mm(users_ref[...], W64('kgdb_norm')) + Bv('kgdb_b')     # (B, 2E)
        off = _mm(kgdb, W64('copy_kgdb')) + Bv('copy_b')                # (B, E) per-batch offset
        r = _mm(latent, lg_ref[...])                                    # (B*S, 256) one MXU pass:
        voc = r[:, :VOCAB_PAD]                                          #   lanes   0..127 -> vocab
        copy_part = r[:, VOCAB_PAD:VOCAB_PAD + E]                       #   lanes 128..159 -> copy_lat
        off_flat = jnp.concatenate(
            [jnp.broadcast_to(off[b:b + 1, :], (S, E)) for b in range(B)], axis=0)
        copy_lat = copy_part + off_flat
        con = (_mm(copy_lat, W('rep_w_pad')) + Bv('rep_b_pad')) * Bv('mask4_pad')
        voc_ref[...] = voc
        sum_ref[...] = voc + con

    return kernel


# =======================================================================
# synthetic graphs (replace dbpedia.pkl / conceptnet.txt)
# =======================================================================

def build_db_adj_cat(n, R):
    A = np.zeros((R, n, n), np.float32)   # A[r, dst, src]
    for i in range(n):
        A[i % R, (i + 1) % n, i] = 1.0
        A[(i + 1) % R, (i * 3 + 5) % n, i] = 1.0
    for r in range(R):
        deg = A[r].sum(axis=1, keepdims=True)
        A[r] = A[r] / np.maximum(deg, 1.0)
    return jnp.asarray(np.concatenate([A[r] for r in range(R)], axis=1))   # (n, R*n)


def build_con_adj(n):
    A = np.zeros((n, n), np.float32)
    for i in range(n):
        A[i, (i + 2) % n] = 1.0
        A[(i + 2) % n, i] = 1.0
    A = A + np.eye(n, dtype=np.float32)
    dinv = 1.0 / np.sqrt(A.sum(1))
    return jnp.asarray(A * dinv[:, None] * dinv[None, :])


# =======================================================================
# parameters + slab packing
# =======================================================================

class KeyGen:
    def __init__(self, key):
        self.key = key

    def __call__(self):
        self.key, sub = jax.random.split(self.key)
        return sub


def init_model(key):
    kg = KeyGen(key)
    scale = 1.0 / math.sqrt(EMB // N_HEADS)   # 1/sqrt(Dh), folded into every Q projection

    def mat(*shape):
        return jax.random.normal(kg(), shape, F32) * 0.05

    ones = lambda d: jnp.ones((1, d), F32)
    zeros = lambda d: jnp.zeros((1, d), F32)

    gw = _Packer(EMB, BF16)        # all EMB/DIM-row weights of the fused gen kernel
    gw64 = _Packer(2 * EMB, BF16)  # all 64-row weights
    gb = _Packer(1, F32)           # every bias / LayerNorm vector (VPU side stays f32)
    rw = _Packer(DIM, BF16)        # rec-kernel DIM-row weights
    rb = _Packer(1, F32)           # rec-kernel biases

    # ---------- transformer encoder layers ----------
    for l in range(N_LAYERS):
        p = f'enc{l}_'
        gw.add(p + 'wqkv', jnp.concatenate([mat(EMB, EMB) * scale, mat(EMB, EMB), mat(EMB, EMB)], 1))
        gb.add(p + 'bqkv', jnp.concatenate([mat(1, EMB) * scale, mat(1, EMB), mat(1, EMB)], 1))
        gw.add(p + 'wo', mat(EMB, EMB)); gb.add(p + 'bo', mat(1, EMB))
        gb.add(p + 'ln1g', ones(EMB)); gb.add(p + 'ln1b', zeros(EMB))
        gw.add(p + 'w1', mat(EMB, FFN)); gb.add(p + 'b1', mat(1, FFN))
        gw64.add(p + 'w2', mat(FFN, EMB)); gb.add(p + 'b2', mat(1, EMB))
        gb.add(p + 'ln2g', ones(EMB)); gb.add(p + 'ln2b', zeros(EMB))

    # ---------- decoder memory projections (con_norm / db_norm) ----------
    gw.add('conn_w', mat(DIM, EMB)); gb.add('conn_b', mat(1, EMB))
    gw.add('dbn_w', mat(DIM, EMB)); gb.add('dbn_b', mat(1, EMB))

    # ---------- transformer decoder layers ----------
    for l in range(N_LAYERS):
        p = f'dec{l}_'
        gw.add(p + 'swqkv', jnp.concatenate([mat(EMB, EMB) * scale, mat(EMB, EMB), mat(EMB, EMB)], 1))
        gb.add(p + 'sbqkv', jnp.concatenate([mat(1, EMB) * scale, mat(1, EMB), mat(1, EMB)], 1))
        gw.add(p + 'swo', mat(EMB, EMB)); gb.add(p + 'sbo', mat(1, EMB))
        gb.add(p + 'ln1g', ones(EMB)); gb.add(p + 'ln1b', zeros(EMB))
        for name, lnid in (('e_', 'ln2'), ('k_', 'ln3'), ('d_', 'ln4')):
            gw.add(p + name + 'wq', mat(EMB, EMB) * scale)
            gb.add(p + name + 'bq', mat(1, EMB) * scale)
            gw.add(p + name + 'wkv', jnp.concatenate([mat(EMB, EMB), mat(EMB, EMB)], 1))
            gb.add(p + name + 'bkv', jnp.concatenate([mat(1, EMB), mat(1, EMB)], 1))
            gw.add(p + name + 'wo', mat(EMB, EMB)); gb.add(p + name + 'bo', mat(1, EMB))
            gb.add(p + lnid + 'g', ones(EMB)); gb.add(p + lnid + 'b', zeros(EMB))
        gw.add(p + 'f_w1', mat(EMB, FFN)); gb.add(p + 'f_b1', mat(1, FFN))
        gw64.add(p + 'f_w2', mat(FFN, EMB)); gb.add(p + 'f_b2', mat(1, EMB))
        gb.add(p + 'ln5g', ones(EMB)); gb.add(p + 'ln5b', zeros(EMB))

    # ---------- copy network ----------
    kg_w, kg_b = mat(DIM, EMB), mat(1, EMB)
    db_w, db_b = mat(DIM, EMB), mat(1, EMB)
    kgdb_norm = jnp.zeros((2 * DIM, 2 * EMB), F32).at[:DIM, :EMB].set(kg_w).at[DIM:, EMB:].set(db_w)
    gw64.add('kgdb_norm', kgdb_norm)                     # block-diag [kg_attn_norm | db_attn_norm]
    gb.add('kgdb_b', jnp.concatenate([kg_b, db_b], axis=1))
    copy_w_kg, copy_w_db, copy_w_lat = mat(EMB, EMB), mat(EMB, EMB), mat(EMB, EMB)
    gw64.add('copy_kgdb', jnp.concatenate([copy_w_kg, copy_w_db], axis=0))
    gb.add('copy_b', mat(1, EMB))

    emb_table = mat(VOCAB, EMB).at[PAD_IDX].set(0.0)
    rep_w, rep_b = mat(EMB, VOCAB), mat(1, VOCAB)
    gw.add('rep_w_pad', jnp.zeros((EMB, VOCAB_PAD), F32).at[:, :VOCAB].set(rep_w))
    gb.add('rep_b_pad', jnp.zeros((1, VOCAB_PAD), F32).at[:, :VOCAB].set(rep_b))
    vocab_ids = np.arange(VOCAB)
    mask4 = ((vocab_ids % 3 == 0).astype(np.float32)     # synthetic mask4key
             + (vocab_ids % 5 == 0).astype(np.float32))  # synthetic mask4movie
    mask4_pad = np.zeros((1, VOCAB_PAD), np.float32)
    mask4_pad[0, :VOCAB] = mask4
    gb.add('mask4_pad', jnp.asarray(mask4_pad))
    # 256-lane logits slab: [emb^T (padded to 128) | copy_w_lat (padded to 128)]
    lg_slab = (jnp.zeros((EMB, 2 * VOCAB_PAD), F32)
               .at[:, :VOCAB].set(emb_table.T)
               .at[:, VOCAB_PAD:VOCAB_PAD + EMB].set(copy_w_lat)).astype(BF16)

    # ---------- rec kernel: graphs + pooling + fusion ----------
    bases = mat(NUM_BASES, N_DBPEDIA, DIM)
    comp = mat(N_RELATION, NUM_BASES)
    w_stack = jnp.einsum('rb,bnd->rnd', comp, bases).reshape(N_RELATION * N_DBPEDIA, DIM).astype(BF16)
    root = mat(N_DBPEDIA, DIM)
    rb.add('rgcn_b', mat(1, DIM))
    db_slab = jnp.concatenate([build_db_adj_cat(N_DBPEDIA, N_RELATION), root], axis=1).astype(BF16)
    con_emb = mat(N_CONCEPT + 1, DIM).at[0].set(0.0)     # padding_idx=0
    con_slab = jnp.concatenate([build_con_adj(N_CONCEPT + 1), con_emb], axis=1).astype(BF16)
    rw.add('gcn_w', mat(DIM, DIM)); rb.add('gcn_b', mat(1, DIM))
    rw.add('dbsa_a', mat(DIM, DIM)); rw.add('consa_a', mat(DIM, DIM))
    rw.add('ucn_w', mat(DIM, DIM)); rb.add('ucn_b', mat(1, DIM))
    rw.add('dbsa_b', mat(DIM, 1)); rw.add('consa_b', mat(DIM, 1)); rw.add('gate_w', mat(DIM, 1))
    rb.add('un_b', mat(1, DIM)); rb.add('gate_b', mat(1, 1))
    rb.add('smovie_b', mat(1, N_DBPEDIA)); rb.add('sdb_b', mat(1, N_DBPEDIA))
    un_w = mat(2 * DIM, DIM).astype(BF16)

    # static "mentioned entities" one-hot gather (replaces the python list loop)
    B = len(MENTIONED)
    Lm = max(1, max(len(m) for m in MENTIONED))
    db_gather = np.zeros((B * Lm, N_DBPEDIA), np.float32)
    user_mask = np.zeros((B, 1), np.float32)
    for b, m in enumerate(MENTIONED):
        for j, ent in enumerate(m):
            db_gather[b * Lm + j, ent] = 1.0
        if m:
            user_mask[b, 0] = 1.0

    arrays = {
        'db_slab': db_slab, 'w_stack': w_stack, 'con_slab': con_slab,
        'rw': rw.slab(), 'un_w': un_w, 'rb': rb.slab(),
        'db_gather': jnp.asarray(db_gather, BF16),
        'user_mask': jnp.asarray(user_mask),
        'gw': gw.slab(), 'gw64': gw64.slab(), 'gb': gb.slab(), 'lg_slab': lg_slab,
        'embeddings': emb_table, 'pos': mat(N_POS, EMB),
    }
    static = {'rec_w_off': rw.off, 'rec_b_off': rb.off,
              'gen_w_off': gw.off, 'gen_w64_off': gw64.off, 'gen_b_off': gb.off,
              'B': B, 'Lm': Lm}
    return arrays, static


# =======================================================================
# KGSF forward (training path, test=False)
# =======================================================================

def cross_entropy(logits, labels):
    logp = jax.nn.log_softmax(logits, axis=-1)
    return -jnp.take_along_axis(logp, labels[..., None].astype(jnp.int32), axis=-1)[..., 0]


def make_forward(static):
    B = static['B']
    rec_kernel = make_rec_kernel(static['rec_w_off'], static['rec_b_off'], B, static['Lm'])
    gen_kernel = make_gen_kernel(static['gen_w_off'], static['gen_w64_off'], static['gen_b_off'])

    def forward(arrays, concept_mask, dbpedia_label, movies, rec, context, response_mask):
        assert concept_mask.shape[0] == B
        Lc = concept_mask.shape[1]

        # ---- stage 1: graphs + user embeddings + recommendation scores (one fused kernel) ----
        con_gather = jax.nn.one_hot(concept_mask, N_CONCEPT + 1,
                                    dtype=BF16).reshape(B * Lc, N_CONCEPT + 1)
        db_feat, con_items, users, scores2 = fused_call(
            rec_kernel,
            [arrays['db_slab'], arrays['w_stack'], arrays['con_slab'],
             arrays['rw'], arrays['un_w'], arrays['rb'],
             arrays['db_gather'], con_gather],
            [((N_DBPEDIA, DIM), F32), ((B * Lc, DIM), F32),
             ((B, 2 * DIM), F32), ((2 * B, N_DBPEDIA), F32)])
        movie_scores = scores2[:B]
        db_scores = scores2[B:]

        # ---- recommendation losses (tiny scalar reductions: plain XLA) ----
        rec_loss = jnp.sum(cross_entropy(movie_scores, movies) * rec.astype(F32))
        db_l = jnp.sum((db_scores - dbpedia_label.astype(F32)) ** 2, axis=-1)   # (B,)
        # (B,) * (B,1) -> (B,B): intentionally reproduces the PyTorch broadcast in kg_loss.
        rec_db_loss = jnp.mean(db_l * arrays['user_mask'])

        # ---- top-k recommended entities become the decoder's db memory ----
        movie_cols = jnp.asarray(MOVIE_ID, jnp.int32)
        _, top_idx = lax.top_k(movie_scores[:, movie_cols], TOPK)
        # Matches the original literally: dbpedia_features[top_idx] / (top_idx != 0), where
        # top_idx indexes the movie_id-restricted column set (no remap through movie_id).
        rec_db_items = db_feat[top_idx]                        # (B, K, DIM)
        db_mask = (top_idx != 0).astype(F32)                   # (B, K)

        # ---- stages 2-4: encoder + decoder + copy-network logits (one fused kernel) ----
        Tc = context.shape[1]
        S = response_mask.shape[1]
        enc_mask = (context != PAD_IDX).astype(F32)            # (B, Tc)
        x_enc = (arrays['embeddings'][context] + arrays['pos'][:Tc][None]).reshape(B * Tc, EMB)
        start = jnp.full((B, 1), START_IDX, dtype=response_mask.dtype)
        dec_tokens = jnp.concatenate([start, response_mask[:, :-1]], axis=1)
        x_dec = (arrays['embeddings'][dec_tokens] * jnp.sqrt(F32(EMB))
                 + arrays['pos'][:S][None]).reshape(B * S, EMB)
        con_mask = (concept_mask != PAD_IDX).astype(F32)       # (B, Lc)

        # TODO(synk): on v7x the batch could be a grid=(B,) "parallel" axis to use the 2nd
        # TensorCore; kept grid=(1,) with batch-flattened matmuls (best single-core shape here).
        # TODO(synk): at real KGSF sizes (VOCAB~30k) the logits slab must be tiled over a vocab
        # grid axis sized from pltpu.get_tpu_info().vmem_capacity_bytes (64 MiB on v7x).
        voc_flat, sum_flat = fused_call(
            gen_kernel,
            [x_enc, enc_mask.reshape(B * Tc, 1), enc_mask, x_dec,
             con_items, con_mask, rec_db_items.reshape(B * TOPK, DIM), db_mask, users,
             arrays['gw'], arrays['gw64'], arrays['gb'], arrays['lg_slab']],
            [((B * S, VOCAB_PAD), F32), ((B * S, VOCAB_PAD), F32)])

        scores = voc_flat.reshape(B, S, VOCAB_PAD)[..., :VOCAB]          # plain vocab logits
        gen_response = jnp.argmax(sum_flat.reshape(B, S, VOCAB_PAD)[..., :VOCAB], axis=-1)
        res_loss = jnp.mean(cross_entropy(voc_flat[:, :VOCAB], response_mask.reshape(-1)))
        mask_loss = jnp.float32(0.0)
        # TODO(synk): decode_greedy (test=True branch) with dynamic early stopping is not
        # implemented; only the training decode_forced path is executed.
        return scores, gen_response, movie_scores, rec_loss, res_loss, mask_loss, rec_db_loss

    return forward


# =======================================================================
if __name__ == "__main__":
    arrays, static = init_model(jax.random.PRNGKey(0))
    fwd = jax.jit(make_forward(static))

    ik = jax.random.split(jax.random.PRNGKey(0), 4)
    B, Lc, Tctx, S = 2, 6, 8, 8
    concept_mask = jnp.asarray([[3, 5, 0, 7, 2, 0], [1, 0, 0, 4, 6, 9]], jnp.int32)
    dbpedia_label = (jax.random.uniform(ik[0], (B, N_DBPEDIA)) > 0.8).astype(jnp.float32)
    movies = jnp.asarray([10, 20], jnp.int32)
    rec = jnp.asarray([1.0, 1.0], jnp.float32)
    context = jax.random.randint(ik[1], (B, Tctx), 3, VOCAB).astype(jnp.int32)
    context = context.at[:, -2:].set(PAD_IDX)
    response_mask = jax.random.randint(ik[2], (B, S), 3, VOCAB).astype(jnp.int32)
    response_mask = response_mask.at[:, -1].set(2)   # end token
    # (dbpedia_mask / concept_label / entity_label / response are unused by the original forward.)

    outs = fwd(arrays, concept_mask, dbpedia_label, movies, rec, context, response_mask)
    outs = jax.block_until_ready(outs)
    scores, gen_response, movie_scores, rec_loss, res_loss, mask_loss, rec_db_loss = outs

    assert scores.shape == (B, S, VOCAB)
    assert gen_response.shape == (B, S)
    assert movie_scores.shape == (B, N_DBPEDIA)
    assert rec_loss.shape == () and res_loss.shape == () and rec_db_loss.shape == ()
    assert all(bool(jnp.isfinite(x).all())
               for x in (scores, movie_scores, rec_loss, res_loss, rec_db_loss))
    print("KERNEL_OK")
</pallas_src>

<mosaic_0001>
module attributes {stable_mosaic.version = 11 : i64} {
  func.func @kernel(%arg0: i32, %arg1: memref<64x224xbf16, #tpu.memory_space<vmem>>, %arg2: memref<192x32xbf16, #tpu.memory_space<vmem>>, %arg3: memref<32x64xbf16, #tpu.memory_space<vmem>>, %arg4: memref<32x131xbf16, #tpu.memory_space<vmem>>, %arg5: memref<64x32xbf16, #tpu.memory_space<vmem>>, %arg6: memref<1x257xf32, #tpu.memory_space<vmem>>, %arg7: memref<6x64xbf16, #tpu.memory_space<vmem>>, %arg8: memref<12x32xbf16, #tpu.memory_space<vmem>>, %arg9: memref<64x32xf32, #tpu.memory_space<vmem>>, %arg10: memref<12x32xf32, #tpu.memory_space<vmem>>, %arg11: memref<2x64xf32, #tpu.memory_space<vmem>>, %arg12: memref<4x64xf32, #tpu.memory_space<vmem>>) attributes {dimension_semantics = [#tpu.dimension_semantics<arbitrary>], iteration_bounds = array<i64: 1>, scalar_prefetch = 0 : i64, scratch_operands = 0 : i64, tpu.core_type = #tpu.core_type<tc>, window_params = [{pipeline_mode = #tpu.pipeline_mode<synchronous>, transform_indices = @transform_0, window_bounds = array<i64: 64, 224>}, {pipeline_mode = #tpu.pipeline_mode<synchronous>, transform_indices = @transform_1, window_bounds = array<i64: 192, 32>}, {pipeline_mode = #tpu.pipeline_mode<synchronous>, transform_indices = @transform_2, window_bounds = array<i64: 32, 64>}, {pipeline_mode = #tpu.pipeline_mode<synchronous>, transform_indices = @transform_3, window_bounds = array<i64: 32, 131>}, {pipeline_mode = #tpu.pipeline_mode<synchronous>, transform_indices = @transform_4, window_bounds = array<i64: 64, 32>}, {pipeline_mode = #tpu.pipeline_mode<synchronous>, transform_indices = @transform_5, window_bounds = array<i64: 1, 257>}, {pipeline_mode = #tpu.pipeline_mode<synchronous>, transform_indices = @transform_6, window_bounds = array<i64: 6, 64>}, {pipeline_mode = #tpu.pipeline_mode<synchronous>, transform_indices = @transform_7, window_bounds = array<i64: 12, 32>}, {pipeline_mode = #tpu.pipeline_mode<synchronous>, transform_indices = @transform_8, window_bounds = array<i64: 64, 32>}, {pipeline_mode = #tpu.pipeline_mode<synchronous>, transform_indices = @transform_9, window_bounds = array<i64: 12, 32>}, {pipeline_mode = #tpu.pipeline_mode<synchronous>, transform_indices = @transform_10, window_bounds = array<i64: 2, 64>}, {pipeline_mode = #tpu.pipeline_mode<synchronous>, transform_indices = @transform_11, window_bounds = array<i64: 4, 64>}]} {
    %c0 = arith.constant 0 : index
    %c0_0 = arith.constant 0 : index
    %0 = vector.load %arg1[%c0, %c0_0] : memref<64x224xbf16, #tpu.memory_space<vmem>>, vector<64x192xbf16>
    %c0_1 = arith.constant 0 : index
    %c192 = arith.constant 192 : index
    %1 = vector.load %arg1[%c0_1, %c192] : memref<64x224xbf16, #tpu.memory_space<vmem>>, vector<64x32xbf16>
    %2 = arith.extf %1 : vector<64x32xbf16> to vector<64x32xf32>
    %c0_2 = arith.constant 0 : index
    %c0_3 = arith.constant 0 : index
    %3 = vector.load %arg6[%c0_2, %c0_3] : memref<1x257xf32, #tpu.memory_space<vmem>>, vector<1x32xf32>
    %4 = vector.broadcast %3 : vector<1x32xf32> to vector<64x32xf32>
    %5 = arith.addf %2, %4 : vector<64x32xf32>
    %c0_4 = arith.constant 0 : index
    %c0_5 = arith.constant 0 : index
    %6 = vector.load %arg2[%c0_4, %c0_5] : memref<192x32xbf16, #tpu.memory_space<vmem>>, vector<192x32xbf16>
    %cst = arith.constant dense<0.000000e+00> : vector<64x32xf32>
    %7 = tpu.matmul %0, %6, %cst {dimension_numbers = #tpu.dot_dimension_numbers<[1], [0], [0], [1], [0, 0, 1, 1], [], []>} : vector<64x192xbf16>, vector<192x32xbf16>, vector<64x32xf32> -> vector<64x32xf32>
    %8 = arith.addf %5, %7 : vector<64x32xf32>
    %c0_6 = arith.constant 0 : index
    %c0_7 = arith.constant 0 : index
    %9 = vector.load %arg9[%c0_6, %c0_7] : memref<64x32xf32, #tpu.memory_space<vmem>>, vector<64x32xf32>
    tpu.vector_store %arg9[%c0_6, %c0_7], %8 {strides = array<i32>} : memref<64x32xf32, #tpu.memory_space<vmem>>, vector<64x32xf32>,
    %c0_8 = arith.constant 0 : index
    %c0_9 = arith.constant 0 : index
    %10 = vector.load %arg3[%c0_8, %c0_9] : memref<32x64xbf16, #tpu.memory_space<vmem>>, vector<32x32xbf16>
    %c0_10 = arith.constant 0 : index
    %c32 = arith.constant 32 : index
    %11 = vector.load %arg3[%c0_10, %c32] : memref<32x64xbf16, #tpu.memory_space<vmem>>, vector<32x32xbf16>
    %c0_11 = arith.constant 0 : index
    %c0_12 = arith.constant 0 : index
    %12 = vector.load %arg4[%c0_11, %c0_12] : memref<32x131xbf16, #tpu.memory_space<vmem>>, vector<32x32xbf16>
    %cst_13 = arith.constant dense<0.000000e+00> : vector<32x32xf32>
    %13 = tpu.matmul %11, %12, %cst_13 {dimension_numbers = #tpu.dot_dimension_numbers<[1], [0], [0], [1], [0, 0, 1, 1], [], []>} : vector<32x32xbf16>, vector<32x32xbf16>, vector<32x32xf32> -> vector<32x32xf32>
    %14 = arith.truncf %13 : vector<32x32xf32> to vector<32x32xbf16>
    %cst_14 = arith.constant dense<0.000000e+00> : vector<32x32xf32>
    %15 = tpu.matmul %10, %14, %cst_14 {dimension_numbers = #tpu.dot_dimension_numbers<[1], [0], [0], [1], [0, 0, 1, 1], [], []>} : vector<32x32xbf16>, vector<32x32xbf16>, vector<32x32xf32> -> vector<32x32xf32>
    %c0_15 = arith.constant 0 : index
    %c32_16 = arith.constant 32 : index
    %16 = vector.load %arg6[%c0_15, %c32_16] : memref<1x257xf32, #tpu.memory_space<vmem>>, vector<1x32xf32>
    %17 = vector.broadcast %16 : vector<1x32xf32> to vector<32x32xf32>
    %18 = arith.addf %15, %17 : vector<32x32xf32>
    %c0_17 = arith.constant 0 : index
    %c0_18 = arith.constant 0 : index
    %19 = vector.load %arg7[%c0_17, %c0_18] : memref<6x64xbf16, #tpu.memory_space<vmem>>, vector<6x64xbf16>
    %20 = arith.truncf %8 : vector<64x32xf32> to vector<64x32xbf16>
    %cst_19 = arith.constant dense<0.000000e+00> : vector<6x32xf32>
    %21 = tpu.matmul %19, %20, %cst_19 {dimension_numbers = #tpu.dot_dimension_numbers<[1], [0], [0], [1], [0, 0, 1, 1], [], []>} : vector<6x64xbf16>, vector<64x32xbf16>, vector<6x32xf32> -> vector<6x32xf32>
    %c0_20 = arith.constant 0 : index
    %c32_21 = arith.constant 32 : index
    %22 = vector.load %arg4[%c0_20, %c32_21] : memref<32x131xbf16, #tpu.memory_space<vmem>>, vector<32x32xbf16>
    %23 = arith.truncf %21 : vector<6x32xf32> to vector<6x32xbf16>
    %cst_22 = arith.constant dense<0.000000e+00> : vector<6x32xf32>
    %24 = tpu.matmul %23, %22, %cst_22 {dimension_numbers = #tpu.dot_dimension_numbers<[1], [0], [0], [1], [0, 0, 1, 1], [], []>} : vector<6x32xbf16>, vector<32x32xbf16>, vector<6x32xf32> -> vector<6x32xf32>
    %25 = math.tanh %24 : vector<6x32xf32>
    %c0_23 = arith.constant 0 : index
    %c128 = arith.constant 128 : index
    %26 = vector.load %arg4[%c0_23, %c128] : memref<32x131xbf16, #tpu.memory_space<vmem>>, vector<32x1xbf16>
    %27 = arith.truncf %25 : vector<6x32xf32> to vector<6x32xbf16>
    %cst_24 = arith.constant dense<0.000000e+00> : vector<6x1xf32>
    %28 = tpu.matmul %27, %26, %cst_24 {dimension_numbers = #tpu.dot_dimension_numbers<[1], [0], [0], [1], [0, 0, 1, 1], [], []>} : vector<6x32xbf16>, vector<32x1xbf16>, vector<6x1xf32> -> vector<6x1xf32>
    %29 = arith.extf %19 : vector<6x64xbf16> to vector<6x64xf32>
    %cst_25 = arith.constant dense<0.000000e+00> : vector<6xf32>
    %30 = vector.multi_reduction <add>, %29, %cst_25 [1] : vector<6x64xf32> to vector<6xf32>
    %31 = vector.shape_cast %30 : vector<6xf32> to vector<6x1xf32>
    %cst_26 = arith.constant 0.000000e+00 : f32
    %32 = vector.broadcast %cst_26 : f32 to vector<6x1xf32>
    %33 = arith.cmpf ogt, %31, %32 : vector<6x1xf32>
    %cst_27 = arith.constant -1.000000e+30 : f32
    %34 = vector.broadcast %cst_27 : f32 to vector<6x1xf32>
    %35 = arith.select %33, %28, %34 : vector<6x1xi1>, vector<6x1xf32>
    %c0_28 = arith.constant 0 : index
    %c0_29 = arith.constant 0 : index
    %36 = vector.load %arg8[%c0_28, %c0_29] : memref<12x32xbf16, #tpu.memory_space<vmem>>, vector<12x32xbf16>
    %37 = arith.truncf %18 : vector<32x32xf32> to vector<32x32xbf16>
    %cst_30 = arith.constant dense<0.000000e+00> : vector<12x32xf32>
    %38 = tpu.matmul %36, %37, %cst_30 {dimension_numbers = #tpu.dot_dimension_numbers<[1], [0], [0], [1], [0, 0, 1, 1], [], []>} : vector<12x32xbf16>, vector<32x32xbf16>, vector<12x32xf32> -> vector<12x32xf32>
    %c0_31 = arith.constant 0 : index
    %c0_32 = arith.constant 0 : index
    %39 = vector.load %arg10[%c0_31, %c0_32] : memref<12x32xf32, #tpu.memory_space<vmem>>, vector<12x32xf32>
    tpu.vector_store %arg10[%c0_31, %c0_32], %38 {strides = array<i32>} : memref<12x32xf32, #tpu.memory_space<vmem>>, vector<12x32xf32>,
    %c0_33 = arith.constant 0 : index
    %c64 = arith.constant 64 : index
    %40 = vector.load %arg4[%c0_33, %c64] : memref<32x131xbf16, #tpu.memory_space<vmem>>, vector<32x32xbf16>
    %41 = arith.truncf %38 : vector<12x32xf32> to vector<12x32xbf16>
    %cst_34 = arith.constant dense<0.000000e+00> : vector<12x32xf32>
    %42 = tpu.matmul %41, %40, %cst_34 {dimension_numbers = #tpu.dot_dimension_numbers<[1], [0], [0], [1], [0, 0, 1, 1], [], []>} : vector<12x32xbf16>, vector<32x32xbf16>, vector<12x32xf32> -> vector<12x32xf32>
    %43 = math.tanh %42 : vector<12x32xf32>
    %c0_35 = arith.constant 0 : index
    %c129 = arith.constant 129 : index
    %44 = vector.load %arg4[%c0_35, %c129] : memref<32x131xbf16, #tpu.memory_space<vmem>>, vector<32x1xbf16>
    %45 = arith.truncf %43 : vector<12x32xf32> to vector<12x32xbf16>
    %cst_36 = arith.constant dense<0.000000e+00> : vector<12x1xf32>
    %46 = tpu.matmul %45, %44, %cst_36 {dimension_numbers = #tpu.dot_dimension_numbers<[1], [0], [0], [1], [0, 0, 1, 1], [], []>} : vector<12x32xbf16>, vector<32x1xbf16>, vector<12x1xf32> -> vector<12x1xf32>
    %47 = vector.extract_strided_slice %36 {offsets = [0, 0], sizes = [12, 1], strides = [1, 1]} : vector<12x32xbf16> to vector<12x1xbf16>
    %48 = arith.extf %47 : vector<12x1xbf16> to vector<12x1xf32>
    %cst_37 = arith.constant 1.000000e+30 : f32
    %49 = vector.broadcast %cst_37 : f32 to vector<12x1xf32>
    %50 = arith.mulf %49, %48 : vector<12x1xf32>
    %51 = arith.subf %46, %50 : vector<12x1xf32>
    %52 = vector.extract_strided_slice %35 {offsets = [0, 0], sizes = [3, 1], strides = [1, 1]} : vector<6x1xf32> to vector<3x1xf32>
    %53 = vector.extract_strided_slice %21 {offsets = [0, 0], sizes = [3, 32], strides = [1, 1]} : vector<6x32xf32> to vector<3x32xf32>
    %cst_38 = arith.constant dense<0xFF800000> : vector<1xf32>
    %54 = vector.multi_reduction <maximumf>, %52, %cst_38 [0] : vector<3x1xf32> to vector<1xf32>
    %55 = vector.shape_cast %54 : vector<1xf32> to vector<1x1xf32>
    %56 = vector.broadcast %55 : vector<1x1xf32> to vector<3x1xf32>
    %57 = arith.subf %52, %56 : vector<3x1xf32>
    %58 = math.exp %57 : vector<3x1xf32>
    %cst_39 = arith.constant dense<0.000000e+00> : vector<1xf32>
    %59 = vector.multi_reduction <add>, %58, %cst_39 [0] : vector<3x1xf32> to vector<1xf32>
    %60 = vector.shape_cast %59 : vector<1xf32> to vector<1x1xf32>
    %61 = tpu.reciprocal %60 {approx = true} : vector<1x1xf32> -> vector<1x1xf32>
    %62 = vector.broadcast %61 : vector<1x1xf32> to vector<3x1xf32>
    %63 = arith.mulf %58, %62 : vector<3x1xf32>
    %64 = vector.broadcast %63 : vector<3x1xf32> to vector<3x32xf32>
    %65 = arith.mulf %64, %53 : vector<3x32xf32>
    %cst_40 = arith.constant dense<0.000000e+00> : vector<32xf32>
    %66 = vector.multi_reduction <add>, %65, %cst_40 [0] : vector<3x32xf32> to vector<32xf32>
    %67 = vector.shape_cast %66 : vector<32xf32> to vector<1x32xf32>
    %68 = vector.extract_strided_slice %51 {offsets = [0, 0], sizes = [6, 1], strides = [1, 1]} : vector<12x1xf32> to vector<6x1xf32>
    %69 = vector.extract_strided_slice %38 {offsets = [0, 0], sizes = [6, 32], strides = [1, 1]} : vector<12x32xf32> to vector<6x32xf32>
    %cst_41 = arith.constant dense<0xFF800000> : vector<1xf32>
    %70 = vector.multi_reduction <maximumf>, %68, %cst_41 [0] : vector<6x1xf32> to vector<1xf32>
    %71 = vector.shape_cast %70 : vector<1xf32> to vector<1x1xf32>
    %72 = vector.broadcast %71 : vector<1x1xf32> to vector<6x1xf32>
    %73 = arith.subf %68, %72 : vector<6x1xf32>
    %74 = math.exp %73 : vector<6x1xf32>
    %cst_42 = arith.constant dense<0.000000e+00> : vector<1xf32>
    %75 = vector.multi_reduction <add>, %74, %cst_42 [0] : vector<6x1xf32> to vector<1xf32>
    %76 = vector.shape_cast %75 : vector<1xf32> to vector<1x1xf32>
    %77 = tpu.reciprocal %76 {approx = true} : vector<1x1xf32> -> vector<1x1xf32>
    %78 = vector.broadcast %77 : vector<1x1xf32> to vector<6x1xf32>
    %79 = arith.mulf %74, %78 : vector<6x1xf32>
    %80 = vector.broadcast %79 : vector<6x1xf32> to vector<6x32xf32>
    %81 = arith.mulf %80, %69 : vector<6x32xf32>
    %cst_43 = arith.constant dense<0.000000e+00> : vector<32xf32>
    %82 = vector.multi_reduction <add>, %81, %cst_43 [0] : vector<6x32xf32> to vector<32xf32>
    %83 = vector.shape_cast %82 : vector<32xf32> to vector<1x32xf32>
    %84 = vector.extract_strided_slice %35 {offsets = [3, 0], sizes = [3, 1], strides = [1, 1]} : vector<6x1xf32> to vector<3x1xf32>
    %85 = vector.extract_strided_slice %21 {offsets = [3, 0], sizes = [3, 32], strides = [1, 1]} : vector<6x32xf32> to vector<3x32xf32>
    %cst_44 = arith.constant dense<0xFF800000> : vector<1xf32>
    %86 = vector.multi_reduction <maximumf>, %84, %cst_44 [0] : vector<3x1xf32> to vector<1xf32>
    %87 = vector.shape_cast %86 : vector<1xf32> to vector<1x1xf32>
    %88 = vector.broadcast %87 : vector<1x1xf32> to vector<3x1xf32>
    %89 = arith.subf %84, %88 : vector<3x1xf32>
    %90 = math.exp %89 : vector<3x1xf32>
    %cst_45 = arith.constant dense<0.000000e+00> : vector<1xf32>
    %91 = vector.multi_reduction <add>, %90, %cst_45 [0] : vector<3x1xf32> to vector<1xf32>
    %92 = vector.shape_cast %91 : vector<1xf32> to vector<1x1xf32>
    %93 = tpu.reciprocal %92 {approx = true} : vector<1x1xf32> -> vector<1x1xf32>
    %94 = vector.broadcast %93 : vector<1x1xf32> to vector<3x1xf32>
    %95 = arith.mulf %90, %94 : vector<3x1xf32>
    %96 = vector.broadcast %95 : vector<3x1xf32> to vector<3x32xf32>
    %97 = arith.mulf %96, %85 : vector<3x32xf32>
    %cst_46 = arith.constant dense<0.000000e+00> : vector<32xf32>
    %98 = vector.multi_reduction <add>, %97, %cst_46 [0] : vector<3x32xf32> to vector<32xf32>
    %99 = vector.shape_cast %98 : vector<32xf32> to vector<1x32xf32>
    %100 = vector.extract_strided_slice %51 {offsets = [6, 0], sizes = [6, 1], strides = [1, 1]} : vector<12x1xf32> to vector<6x1xf32>
    %101 = vector.extract_strided_slice %38 {offsets = [6, 0], sizes = [6, 32], strides = [1, 1]} : vector<12x32xf32> to vector<6x32xf32>
    %cst_47 = arith.constant dense<0xFF800000> : vector<1xf32>
    %102 = vector.multi_reduction <maximumf>, %100, %cst_47 [0] : vector<6x1xf32> to vector<1xf32>
    %103 = vector.shape_cast %102 : vector<1xf32> to vector<1x1xf32>
    %104 = vector.broadcast %103 : vector<1x1xf32> to vector<6x1xf32>
    %105 = arith.subf %100, %104 : vector<6x1xf32>
    %106 = math.exp %105 : vector<6x1xf32>
    %cst_48 = arith.constant dense<0.000000e+00> : vector<1xf32>
    %107 = vector.multi_reduction <add>, %106, %cst_48 [0] : vector<6x1xf32> to vector<1xf32>
    %108 = vector.shape_cast %107 : vector<1xf32> to vector<1x1xf32>
    %109 = tpu.reciprocal %108 {approx = true} : vector<1x1xf32> -> vector<1x1xf32>
    %110 = vector.broadcast %109 : vector<1x1xf32> to vector<6x1xf32>
    %111 = arith.mulf %106, %110 : vector<6x1xf32>
    %112 = vector.broadcast %111 : vector<6x1xf32> to vector<6x32xf32>
    %113 = arith.mulf %112, %101 : vector<6x32xf32>
    %cst_49 = arith.constant dense<0.000000e+00> : vector<32xf32>
    %114 = vector.multi_reduction <add>, %113, %cst_49 [0] : vector<6x32xf32> to vector<32xf32>
    %115 = vector.shape_cast %114 : vector<32xf32> to vector<1x32xf32>
    %116 = tpu.concatenate %67, %99 in 0 : vector<1x32xf32>, vector<1x32xf32> -> vector<2x32xf32>
    %117 = tpu.concatenate %83, %115 in 0 : vector<1x32xf32>, vector<1x32xf32> -> vector<2x32xf32>
    %118 = tpu.concatenate %117, %116 in 1 : vector<2x32xf32>, vector<2x32xf32> -> vector<2x64xf32>
    %c0_50 = arith.constant 0 : index
    %c0_51 = arith.constant 0 : index
    %119 = vector.load %arg11[%c0_50, %c0_51] : memref<2x64xf32, #tpu.memory_space<vmem>>, vector<2x64xf32>
    tpu.vector_store %arg11[%c0_50, %c0_51], %118 {strides = array<i32>} : memref<2x64xf32, #tpu.memory_space<vmem>>, vector<2x64xf32>,
    %c0_52 = arith.constant 0 : index
    %c0_53 = arith.constant 0 : index
    %120 = vector.load %arg5[%c0_52, %c0_53] : memref<64x32xbf16, #tpu.memory_space<vmem>>, vector<64x32xbf16>
    %121 = arith.truncf %118 : vector<2x64xf32> to vector<2x64xbf16>
    %cst_54 = arith.constant dense<0.000000e+00> : vector<2x32xf32>
    %122 = tpu.matmul %121, %120, %cst_54 {dimension_numbers = #tpu.dot_dimension_numbers<[1], [0], [0], [1], [0, 0, 1, 1], [], []>} : vector<2x64xbf16>, vector<64x32xbf16>, vector<2x32xf32> -> vector<2x32xf32>
    %c0_55 = arith.constant 0 : index
    %c96 = arith.constant 96 : index
    %123 = vector.load %arg6[%c0_55, %c96] : memref<1x257xf32, #tpu.memory_space<vmem>>, vector<1x32xf32>
    %124 = vector.broadcast %123 : vector<1x32xf32> to vector<2x32xf32>
    %125 = arith.addf %122, %124 : vector<2x32xf32>
    %c0_56 = arith.constant 0 : index
    %c130 = arith.constant 130 : index
    %126 = vector.load %arg4[%c0_56, %c130] : memref<32x131xbf16, #tpu.memory_space<vmem>>, vector<32x1xbf16>
    %127 = arith.truncf %125 : vector<2x32xf32> to vector<2x32xbf16>
    %cst_57 = arith.constant dense<0.000000e+00> : vector<2x1xf32>
    %128 = tpu.matmul %127, %126, %cst_57 {dimension_numbers = #tpu.dot_dimension_numbers<[1], [0], [0], [1], [0, 0, 1, 1], [], []>} : vector<2x32xbf16>, vector<32x1xbf16>, vector<2x1xf32> -> vector<2x1xf32>
    %c0_58 = arith.constant 0 : index
    %c128_59 = arith.constant 128 : index
    %129 = vector.load %arg6[%c0_58, %c128_59] : memref<1x257xf32, #tpu.memory_space<vmem>>, vector<1x1xf32>
    %130 = vector.broadcast %129 : vector<1x1xf32> to vector<2x1xf32>
    %131 = arith.addf %128, %130 : vector<2x1xf32>
    %cst_60 = arith.constant 0.000000e+00 : f32
    %132 = vector.broadcast %cst_60 : f32 to vector<2x1xf32>
    %133 = arith.subf %132, %131 : vector<2x1xf32>
    %134 = math.exp %133 : vector<2x1xf32>
    %cst_61 = arith.constant 1.000000e+00 : f32
    %135 = vector.broadcast %cst_61 : f32 to vector<2x1xf32>
    %136 = arith.addf %135, %134 : vector<2x1xf32>
    %cst_62 = arith.constant 1.000000e+00 : f32
    %137 = vector.broadcast %cst_62 : f32 to vector<2x1xf32>
    %138 = arith.divf %137, %136 : vector<2x1xf32>
    %139 = vector.broadcast %138 : vector<2x1xf32> to vector<2x32xf32>
    %140 = arith.mulf %139, %116 : vector<2x32xf32>
    %cst_63 = arith.constant 1.000000e+00 : f32
    %141 = vector.broadcast %cst_63 : f32 to vector<2x1xf32>
    %142 = arith.subf %141, %138 : vector<2x1xf32>
    %143 = vector.broadcast %142 : vector<2x1xf32> to vector<2x32xf32>
    %144 = arith.mulf %143, %117 : vector<2x32xf32>
    %145 = arith.addf %140, %144 : vector<2x32xf32>
    %c0_64 = arith.constant 0 : index
    %c96_65 = arith.constant 96 : index
    %146 = vector.load %arg4[%c0_64, %c96_65] : memref<32x131xbf16, #tpu.memory_space<vmem>>, vector<32x32xbf16>
    %147 = arith.truncf %117 : vector<2x32xf32> to vector<2x32xbf16>
    %cst_66 = arith.constant dense<0.000000e+00> : vector<2x32xf32>
    %148 = tpu.matmul %147, %146, %cst_66 {dimension_numbers = #tpu.dot_dimension_numbers<[1], [0], [0], [1], [0, 0, 1, 1], [], []>} : vector<2x32xbf16>, vector<32x32xbf16>, vector<2x32xf32> -> vector<2x32xf32>
    %c0_67 = arith.constant 0 : index
    %c64_68 = arith.constant 64 : index
    %149 = vector.load %arg6[%c0_67, %c64_68] : memref<1x257xf32, #tpu.memory_space<vmem>>, vector<1x32xf32>
    %150 = vector.broadcast %149 : vector<1x32xf32> to vector<2x32xf32>
    %151 = arith.addf %148, %150 : vector<2x32xf32>
    %152 = tpu.concatenate %145, %151 in 0 : vector<2x32xf32>, vector<2x32xf32> -> vector<4x32xf32>
    %153 = arith.truncf %152 : vector<4x32xf32> to vector<4x32xbf16>
    %154 = arith.truncf %8 : vector<64x32xf32> to vector<64x32xbf16>
    %cst_69 = arith.constant dense<0.000000e+00> : vector<4x64xf32>
    %155 = tpu.matmul %153, %154, %cst_69 {dimension_numbers = #tpu.dot_dimension_numbers<[1], [1], [0], [0], [0, 0, 1, 0], [], []>} : vector<4x32xbf16>, vector<64x32xbf16>, vector<4x64xf32> -> vector<4x64xf32>
    %c0_70 = arith.constant 0 : index
    %c129_71 = arith.constant 129 : index
    %156 = vector.load %arg6[%c0_70, %c129_71] : memref<1x257xf32, #tpu.memory_space<vmem>>, vector<1x64xf32>
    %157 = vector.shape_cast %156 : vector<1x64xf32> to vector<1x64xf32>
    %158 = vector.broadcast %157 : vector<1x64xf32> to vector<2x64xf32>
    %c0_72 = arith.constant 0 : index
    %c193 = arith.constant 193 : index
    %159 = vector.load %arg6[%c0_72, %c193] : memref<1x257xf32, #tpu.memory_space<vmem>>, vector<1x64xf32>
    %160 = vector.shape_cast %159 : vector<1x64xf32> to vector<1x64xf32>
    %161 = vector.broadcast %160 : vector<1x64xf32> to vector<2x64xf32>
    %162 = tpu.concatenate %158, %161 in 0 : vector<2x64xf32>, vector<2x64xf32> -> vector<4x64xf32>
    %163 = arith.addf %155, %162 : vector<4x64xf32>
    %c0_73 = arith.constant 0 : index
    %c0_74 = arith.constant 0 : index
    %164 = vector.load %arg12[%c0_73, %c0_74] : memref<4x64xf32, #tpu.memory_space<vmem>>, vector<4x64xf32>
    tpu.vector_store %arg12[%c0_73, %c0_74], %163 {strides = array<i32>} : memref<4x64xf32, #tpu.memory_space<vmem>>, vector<4x64xf32>,
    return
  }
  func.func @transform_0(%arg0: i32) -> (i32, i32) {
    %c0_i32 = arith.constant 0 : i32
    %c0_i32_0 = arith.constant 0 : i32
    %c0_i32_1 = arith.constant 0 : i32
    return %c0_i32, %c0_i32_0 : i32, i32
  }
  func.func @transform_1(%arg0: i32) -> (i32, i32) {
    %c0_i32 = arith.constant 0 : i32
    %c0_i32_0 = arith.constant 0 : i32
    %c0_i32_1 = arith.constant 0 : i32
    return %c0_i32, %c0_i32_0 : i32, i32
  }
  func.func @transform_2(%arg0: i32) -> (i32, i32) {
    %c0_i32 = arith.constant 0 : i32
    %c0_i32_0 = arith.constant 0 : i32
    %c0_i32_1 = arith.constant 0 : i32
    return %c0_i32, %c0_i32_0 : i32, i32
  }
  func.func @transform_3(%arg0: i32) -> (i32, i32) {
    %c0_i32 = arith.constant 0 : i32
    %c0_i32_0 = arith.constant 0 : i32
    %c0_i32_1 = arith.constant 0 : i32
    return %c0_i32, %c0_i32_0 : i32, i32
  }
  func.func @transform_4(%arg0: i32) -> (i32, i32) {
    %c0_i32 = arith.constant 0 : i32
    %c0_i32_0 = arith.constant 0 : i32
    %c0_i32_1 = arith.constant 0 : i32
    return %c0_i32, %c0_i32_0 : i32, i32
  }
  func.func @transform_5(%arg0: i32) -> (i32, i32) {
    %c0_i32 = arith.constant 0 : i32
    %c0_i32_0 = arith.constant 0 : i32
    %c0_i32_1 = arith.constant 0 : i32
    return %c0_i32, %c0_i32_0 : i32, i32
  }
  func.func @transform_6(%arg0: i32) -> (i32, i32) {
    %c0_i32 = arith.constant 0 : i32
    %c0_i32_0 = arith.constant 0 : i32
    %c0_i32_1 = arith.constant 0 : i32
    return %c0_i32, %c0_i32_0 : i32, i32
  }
  func.func @transform_7(%arg0: i32) -> (i32, i32) {
    %c0_i32 = arith.constant 0 : i32
    %c0_i32_0 = arith.constant 0 : i32
    %c0_i32_1 = arith.constant 0 : i32
    return %c0_i32, %c0_i32_0 : i32, i32
  }
  func.func @transform_8(%arg0: i32) -> (i32, i32) {
    %c0_i32 = arith.constant 0 : i32
    %c0_i32_0 = arith.constant 0 : i32
    %c0_i32_1 = arith.constant 0 : i32
    return %c0_i32, %c0_i32_0 : i32, i32
  }
  func.func @transform_9(%arg0: i32) -> (i32, i32) {
    %c0_i32 = arith.constant 0 : i32
    %c0_i32_0 = arith.constant 0 : i32
    %c0_i32_1 = arith.constant 0 : i32
    return %c0_i32, %c0_i32_0 : i32, i32
  }
  func.func @transform_10(%arg0: i32) -> (i32, i32) {
    %c0_i32 = arith.constant 0 : i32
    %c0_i32_0 = arith.constant 0 : i32
    %c0_i32_1 = arith.constant 0 : i32
    return %c0_i32, %c0_i32_0 : i32, i32
  }
  func.func @transform_11(%arg0: i32) -> (i32, i32) {
    %c0_i32 = arith.constant 0 : i32
    %c0_i32_0 = arith.constant 0 : i32
    %c0_i32_1 = arith.constant 0 : i32
    return %c0_i32, %c0_i32_0 : i32, i32
  }
}

module attributes {stable_mosaic.version = 11 : i64} {
  func.func @kernel(%arg0: i32, %arg1: memref<16x32xf32, #tpu.memory_space<vmem>>, %arg2: memref<16x1xf32, #tpu.memory_space<vmem>>, %arg3: memref<2x8xf32, #tpu.memory_space<vmem>>, %arg4: memref<16x32xf32, #tpu.memory_space<vmem>>, %arg5: memref<12x32xf32, #tpu.memory_space<vmem>>, %arg6: memref<2x6xf32, #tpu.memory_space<vmem>>, %arg7: memref<16x32xf32, #tpu.memory_space<vmem>>, %arg8: memref<2x8xf32, #tpu.memory_space<vmem>>, %arg9: memref<2x64xf32, #tpu.memory_space<vmem>>, %arg10: memref<32x960xbf16, #tpu.memory_space<vmem>>, %arg11: memref<64x160xbf16, #tpu.memory_space<vmem>>, %arg12: memref<1x1696xf32, #tpu.memory_space<vmem>>, %arg13: memref<32x256xbf16, #tpu.memory_space<vmem>>, %arg14: memref<16x128xf32, #tpu.memory_space<vmem>>, %arg15: memref<16x128xf32, #tpu.memory_space<vmem>>) attributes {dimension_semantics = [#tpu.dimension_semantics<arbitrary>], iteration_bounds = array<i64: 1>, scalar_prefetch = 0 : i64, scratch_operands = 0 : i64, tpu.core_type = #tpu.core_type<tc>, window_params = [{pipeline_mode = #tpu.pipeline_mode<synchronous>, transform_indices = @transform_0, window_bounds = array<i64: 16, 32>}, {pipeline_mode = #tpu.pipeline_mode<synchronous>, transform_indices = @transform_1, window_bounds = array<i64: 16, 1>}, {pipeline_mode = #tpu.pipeline_mode<synchronous>, transform_indices = @transform_2, window_bounds = array<i64: 2, 8>}, {pipeline_mode = #tpu.pipeline_mode<synchronous>, transform_indices = @transform_3, window_bounds = array<i64: 16, 32>}, {pipeline_mode = #tpu.pipeline_mode<synchronous>, transform_indices = @transform_4, window_bounds = array<i64: 12, 32>}, {pipeline_mode = #tpu.pipeline_mode<synchronous>, transform_indices = @transform_5, window_bounds = array<i64: 2, 6>}, {pipeline_mode = #tpu.pipeline_mode<synchronous>, transform_indices = @transform_6, window_bounds = array<i64: 16, 32>}, {pipeline_mode = #tpu.pipeline_mode<synchronous>, transform_indices = @transform_7, window_bounds = array<i64: 2, 8>}, {pipeline_mode = #tpu.pipeline_mode<synchronous>, transform_indices = @transform_8, window_bounds = array<i64: 2, 64>}, {pipeline_mode = #tpu.pipeline_mode<synchronous>, transform_indices = @transform_9, window_bounds = array<i64: 32, 960>}, {pipeline_mode = #tpu.pipeline_mode<synchronous>, transform_indices = @transform_10, window_bounds = array<i64: 64, 160>}, {pipeline_mode = #tpu.pipeline_mode<synchronous>, transform_indices = @transform_11, window_bounds = array<i64: 1, 1696>}, {pipeline_mode = #tpu.pipeline_mode<synchronous>, transform_indices = @transform_12, window_bounds = array<i64: 32, 256>}, {pipeline_mode = #tpu.pipeline_mode<synchronous>, transform_indices = @transform_13, window_bounds = array<i64: 16, 128>}, {pipeline_mode = #tpu.pipeline_mode<synchronous>, transform_indices = @transform_14, window_bounds = array<i64: 16, 128>}]} {
    %c0 = arith.constant 0 : index
    %c0_0 = arith.constant 0 : index
    %0 = vector.load %arg3[%c0, %c0_0] : memref<2x8xf32, #tpu.memory_space<vmem>>, vector<2x8xf32>
    %c0_1 = arith.constant 0 : index
    %c0_2 = arith.constant 0 : index
    %1 = vector.load %arg2[%c0_1, %c0_2] : memref<16x1xf32, #tpu.memory_space<vmem>>, vector<16x1xf32>
    %c0_3 = arith.constant 0 : index
    %c0_4 = arith.constant 0 : index
    %2 = vector.load %arg6[%c0_3, %c0_4] : memref<2x6xf32, #tpu.memory_space<vmem>>, vector<2x6xf32>
    %c0_5 = arith.constant 0 : index
    %c0_6 = arith.constant 0 : index
    %3 = vector.load %arg8[%c0_5, %c0_6] : memref<2x8xf32, #tpu.memory_space<vmem>>, vector<2x8xf32>
    %c0_7 = arith.constant 0 : index
    %c0_8 = arith.constant 0 : index
    %4 = vector.load %arg1[%c0_7, %c0_8] : memref<16x32xf32, #tpu.memory_space<vmem>>, vector<16x32xf32>
    %5 = vector.broadcast %1 : vector<16x1xf32> to vector<16x32xf32>
    %6 = arith.mulf %4, %5 : vector<16x32xf32>
    %c0_9 = arith.constant 0 : index
    %c0_10 = arith.constant 0 : index
    %7 = vector.load %arg10[%c0_9, %c0_10] : memref<32x960xbf16, #tpu.memory_space<vmem>>, vector<32x96xbf16>
    %8 = arith.truncf %6 : vector<16x32xf32> to vector<16x32xbf16>
    %cst = arith.constant dense<0.000000e+00> : vector<16x96xf32>
    %9 = tpu.matmul %8, %7, %cst {dimension_numbers = #tpu.dot_dimension_numbers<[1], [0], [0], [1], [0, 0, 1, 1], [], []>} : vector<16x32xbf16>, vector<32x96xbf16>, vector<16x96xf32> -> vector<16x96xf32>
    %c0_11 = arith.constant 0 : index
    %c0_12 = arith.constant 0 : index
    %10 = vector.load %arg12[%c0_11, %c0_12] : memref<1x1696xf32, #tpu.memory_space<vmem>>, vector<1x96xf32>
    %11 = vector.broadcast %10 : vector<1x96xf32> to vector<16x96xf32>
    %12 = arith.addf %9, %11 : vector<16x96xf32>
    %13 = vector.extract_strided_slice %12 {offsets = [0, 0], sizes = [8, 96], strides = [1, 1]} : vector<16x96xf32> to vector<8x96xf32>
    %14 = vector.extract_strided_slice %13 {offsets = [0, 0], sizes = [8, 32], strides = [1, 1]} : vector<8x96xf32> to vector<8x32xf32>
    %15 = vector.extract_strided_slice %13 {offsets = [0, 32], sizes = [8, 32], strides = [1, 1]} : vector<8x96xf32> to vector<8x32xf32>
    %16 = vector.extract_strided_slice %13 {offsets = [0, 64], sizes = [8, 32], strides = [1, 1]} : vector<8x96xf32> to vector<8x32xf32>
    %17 = vector.extract_strided_slice %0 {offsets = [0, 0], sizes = [1, 8], strides = [1, 1]} : vector<2x8xf32> to vector<1x8xf32>
    %cst_13 = arith.constant 0.000000e+00 : f32
    %18 = vector.broadcast %cst_13 : f32 to vector<1x8xf32>
    %19 = arith.cmpf ogt, %17, %18 : vector<1x8xf32>
    %20 = vector.shape_cast %19 : vector<1x8xi1> to vector<1x8xi1>
    %21 = vector.broadcast %20 : vector<1x8xi1> to vector<8x8xi1>
    %22 = vector.extract_strided_slice %14 {offsets = [0, 0], sizes = [8, 16], strides = [1, 1]} : vector<8x32xf32> to vector<8x16xf32>
    %23 = vector.extract_strided_slice %15 {offsets = [0, 0], sizes = [8, 16], strides = [1, 1]} : vector<8x32xf32> to vector<8x16xf32>
    %24 = arith.truncf %22 : vector<8x16xf32> to vector<8x16xbf16>
    %25 = arith.truncf %23 : vector<8x16xf32> to vector<8x16xbf16>
    %cst_14 = arith.constant dense<0.000000e+00> : vector<8x8xf32>
    %26 = tpu.matmul %24, %25, %cst_14 {dimension_numbers = #tpu.dot_dimension_numbers<[1], [1], [0], [0], [0, 0, 1, 0], [], []>} : vector<8x16xbf16>, vector<8x16xbf16>, vector<8x8xf32> -> vector<8x8xf32>
    %cst_15 = arith.constant -1.000000e+30 : f32
    %27 = vector.broadcast %cst_15 : f32 to vector<8x8xf32>
    %28 = arith.select %21, %26, %27 : vector<8x8xi1>, vector<8x8xf32>
    %cst_16 = arith.constant dense<0xFF800000> : vector<8xf32>
    %29 = vector.multi_reduction <maximumf>, %28, %cst_16 [1] : vector<8x8xf32> to vector<8xf32>
    %30 = vector.shape_cast %29 : vector<8xf32> to vector<8x1xf32>
    %31 = vector.broadcast %30 : vector<8x1xf32> to vector<8x8xf32>
    %32 = arith.subf %28, %31 : vector<8x8xf32>
    %33 = math.exp %32 : vector<8x8xf32>
    %cst_17 = arith.constant dense<0.000000e+00> : vector<8xf32>
    %34 = vector.multi_reduction <add>, %33, %cst_17 [1] : vector<8x8xf32> to vector<8xf32>
    %35 = vector.shape_cast %34 : vector<8xf32> to vector<8x1xf32>
    %36 = tpu.reciprocal %35 {approx = true} : vector<8x1xf32> -> vector<8x1xf32>
    %37 = vector.broadcast %36 : vector<8x1xf32> to vector<8x8xf32>
    %38 = arith.mulf %33, %37 : vector<8x8xf32>
    %39 = vector.extract_strided_slice %16 {offsets = [0, 0], sizes = [8, 16], strides = [1, 1]} : vector<8x32xf32> to vector<8x16xf32>
    %40 = arith.truncf %38 : vector<8x8xf32> to vector<8x8xbf16>
    %41 = arith.truncf %39 : vector<8x16xf32> to vector<8x16xbf16>
    %cst_18 = arith.constant dense<0.000000e+00> : vector<8x16xf32>
    %42 = tpu.matmul %40, %41, %cst_18 {dimension_numbers = #tpu.dot_dimension_numbers<[1], [0], [0], [1], [0, 0, 1, 1], [], []>} : vector<8x8xbf16>, vector<8x16xbf16>, vector<8x16xf32> -> vector<8x16xf32>
    %43 = vector.extract_strided_slice %14 {offsets = [0, 16], sizes = [8, 16], strides = [1, 1]} : vector<8x32xf32> to vector<8x16xf32>
    %44 = vector.extract_strided_slice %15 {offsets = [0, 16], sizes = [8, 16], strides = [1, 1]} : vector<8x32xf32> to vector<8x16xf32>
    %45 = arith.truncf %43 : vector<8x16xf32> to vector<8x16xbf16>
    %46 = arith.truncf %44 : vector<8x16xf32> to vector<8x16xbf16>
    %cst_19 = arith.constant dense<0.000000e+00> : vector<8x8xf32>
    %47 = tpu.matmul %45, %46, %cst_19 {dimension_numbers = #tpu.dot_dimension_numbers<[1], [1], [0], [0], [0, 0, 1, 0], [], []>} : vector<8x16xbf16>, vector<8x16xbf16>, vector<8x8xf32> -> vector<8x8xf32>
    %cst_20 = arith.constant -1.000000e+30 : f32
    %48 = vector.broadcast %cst_20 : f32 to vector<8x8xf32>
    %49 = arith.select %21, %47, %48 : vector<8x8xi1>, vector<8x8xf32>
    %cst_21 = arith.constant dense<0xFF800000> : vector<8xf32>
    %50 = vector.multi_reduction <maximumf>, %49, %cst_21 [1] : vector<8x8xf32> to vector<8xf32>
    %51 = vector.shape_cast %50 : vector<8xf32> to vector<8x1xf32>
    %52 = vector.broadcast %51 : vector<8x1xf32> to vector<8x8xf32>
    %53 = arith.subf %49, %52 : vector<8x8xf32>
    %54 = math.exp %53 : vector<8x8xf32>
    %cst_22 = arith.constant dense<0.000000e+00> : vector<8xf32>
    %55 = vector.multi_reduction <add>, %54, %cst_22 [1] : vector<8x8xf32> to vector<8xf32>
    %56 = vector.shape_cast %55 : vector<8xf32> to vector<8x1xf32>
    %57 = tpu.reciprocal %56 {approx = true} : vector<8x1xf32> -> vector<8x1xf32>
    %58 = vector.broadcast %57 : vector<8x1xf32> to vector<8x8xf32>
    %59 = arith.mulf %54, %58 : vector<8x8xf32>
    %60 = vector.extract_strided_slice %16 {offsets = [0, 16], sizes = [8, 16], strides = [1, 1]} : vector<8x32xf32> to vector<8x16xf32>
    %61 = arith.truncf %59 : vector<8x8xf32> to vector<8x8xbf16>
    %62 = arith.truncf %60 : vector<8x16xf32> to vector<8x16xbf16>
    %cst_23 = arith.constant dense<0.000000e+00> : vector<8x16xf32>
    %63 = tpu.matmul %61, %62, %cst_23 {dimension_numbers = #tpu.dot_dimension_numbers<[1], [0], [0], [1], [0, 0, 1, 1], [], []>} : vector<8x8xbf16>, vector<8x16xbf16>, vector<8x16xf32> -> vector<8x16xf32>
    %64 = tpu.concatenate %42, %63 in 1 : vector<8x16xf32>, vector<8x16xf32> -> vector<8x32xf32>
    %65 = vector.extract_strided_slice %12 {offsets = [8, 0], sizes = [8, 96], strides = [1, 1]} : vector<16x96xf32> to vector<8x96xf32>
    %66 = vector.extract_strided_slice %65 {offsets = [0, 0], sizes = [8, 32], strides = [1, 1]} : vector<8x96xf32> to vector<8x32xf32>
    %67 = vector.extract_strided_slice %65 {offsets = [0, 32], sizes = [8, 32], strides = [1, 1]} : vector<8x96xf32> to vector<8x32xf32>
    %68 = vector.extract_strided_slice %65 {offsets = [0, 64], sizes = [8, 32], strides = [1, 1]} : vector<8x96xf32> to vector<8x32xf32>
    %69 = vector.extract_strided_slice %0 {offsets = [1, 0], sizes = [1, 8], strides = [1, 1]} : vector<2x8xf32> to vector<1x8xf32>
    %cst_24 = arith.constant 0.000000e+00 : f32
    %70 = vector.broadcast %cst_24 : f32 to vector<1x8xf32>
    %71 = arith.cmpf ogt, %69, %70 : vector<1x8xf32>
    %72 = vector.shape_cast %71 : vector<1x8xi1> to vector<1x8xi1>
    %73 = vector.broadcast %72 : vector<1x8xi1> to vector<8x8xi1>
    %74 = vector.extract_strided_slice %66 {offsets = [0, 0], sizes = [8, 16], strides = [1, 1]} : vector<8x32xf32> to vector<8x16xf32>
    %75 = vector.extract_strided_slice %67 {offsets = [0, 0], sizes = [8, 16], strides = [1, 1]} : vector<8x32xf32> to vector<8x16xf32>
    %76 = arith.truncf %74 : vector<8x16xf32> to vector<8x16xbf16>
    %77 = arith.truncf %75 : vector<8x16xf32> to vector<8x16xbf16>
    %cst_25 = arith.constant dense<0.000000e+00> : vector<8x8xf32>
    %78 = tpu.matmul %76, %77, %cst_25 {dimension_numbers = #tpu.dot_dimension_numbers<[1], [1], [0], [0], [0, 0, 1, 0], [], []>} : vector<8x16xbf16>, vector<8x16xbf16>, vector<8x8xf32> -> vector<8x8xf32>
    %cst_26 = arith.constant -1.000000e+30 : f32
    %79 = vector.broadcast %cst_26 : f32 to vector<8x8xf32>
    %80 = arith.select %73, %78, %79 : vector<8x8xi1>, vector<8x8xf32>
    %cst_27 = arith.constant dense<0xFF800000> : vector<8xf32>
    %81 = vector.multi_reduction <maximumf>, %80, %cst_27 [1] : vector<8x8xf32> to vector<8xf32>
    %82 = vector.shape_cast %81 : vector<8xf32> to vector<8x1xf32>
    %83 = vector.broadcast %82 : vector<8x1xf32> to vector<8x8xf32>
    %84 = arith.subf %80, %83 : vector<8x8xf32>
    %85 = math.exp %84 : vector<8x8xf32>
    %cst_28 = arith.constant dense<0.000000e+00> : vector<8xf32>
    %86 = vector.multi_reduction <add>, %85, %cst_28 [1] : vector<8x8xf32> to vector<8xf32>
    %87 = vector.shape_cast %86 : vector<8xf32> to vector<8x1xf32>
    %88 = tpu.reciprocal %87 {approx = true} : vector<8x1xf32> -> vector<8x1xf32>
    %89 = vector.broadcast %88 : vector<8x1xf32> to vector<8x8xf32>
    %90 = arith.mulf %85, %89 : vector<8x8xf32>
    %91 = vector.extract_strided_slice %68 {offsets = [0, 0], sizes = [8, 16], strides = [1, 1]} : vector<8x32xf32> to vector<8x16xf32>
    %92 = arith.truncf %90 : vector<8x8xf32> to vector<8x8xbf16>
    %93 = arith.truncf %91 : vector<8x16xf32> to vector<8x16xbf16>
    %cst_29 = arith.constant dense<0.000000e+00> : vector<8x16xf32>
    %94 = tpu.matmul %92, %93, %cst_29 {dimension_numbers = #tpu.dot_dimension_numbers<[1], [0], [0], [1], [0, 0, 1, 1], [], []>} : vector<8x8xbf16>, vector<8x16xbf16>, vector<8x16xf32> -> vector<8x16xf32>
    %95 = vector.extract_strided_slice %66 {offsets = [0, 16], sizes = [8, 16], strides = [1, 1]} : vector<8x32xf32> to vector<8x16xf32>
    %96 = vector.extract_strided_slice %67 {offsets = [0, 16], sizes = [8, 16], strides = [1, 1]} : vector<8x32xf32> to vector<8x16xf32>
    %97 = arith.truncf %95 : vector<8x16xf32> to vector<8x16xbf16>
    %98 = arith.truncf %96 : vector<8x16xf32> to vector<8x16xbf16>
    %cst_30 = arith.constant dense<0.000000e+00> : vector<8x8xf32>
    %99 = tpu.matmul %97, %98, %cst_30 {dimension_numbers = #tpu.dot_dimension_numbers<[1], [1], [0], [0], [0, 0, 1, 0], [], []>} : vector<8x16xbf16>, vector<8x16xbf16>, vector<8x8xf32> -> vector<8x8xf32>
    %cst_31 = arith.constant -1.000000e+30 : f32
    %100 = vector.broadcast %cst_31 : f32 to vector<8x8xf32>
    %101 = arith.select %73, %99, %100 : vector<8x8xi1>, vector<8x8xf32>
    %cst_32 = arith.constant dense<0xFF800000> : vector<8xf32>
    %102 = vector.multi_reduction <maximumf>, %101, %cst_32 [1] : vector<8x8xf32> to vector<8xf32>
    %103 = vector.shape_cast %102 : vector<8xf32> to vector<8x1xf32>
    %104 = vector.broadcast %103 : vector<8x1xf32> to vector<8x8xf32>
    %105 = arith.subf %101, %104 : vector<8x8xf32>
    %106 = math.exp %105 : vector<8x8xf32>
    %cst_33 = arith.constant dense<0.000000e+00> : vector<8xf32>
    %107 = vector.multi_reduction <add>, %106, %cst_33 [1] : vector<8x8xf32> to vector<8xf32>
    %108 = vector.shape_cast %107 : vector<8xf32> to vector<8x1xf32>
    %109 = tpu.reciprocal %108 {approx = true} : vector<8x1xf32> -> vector<8x1xf32>
    %110 = vector.broadcast %109 : vector<8x1xf32> to vector<8x8xf32>
    %111 = arith.mulf %106, %110 : vector<8x8xf32>
    %112 = vector.extract_strided_slice %68 {offsets = [0, 16], sizes = [8, 16], strides = [1, 1]} : vector<8x32xf32> to vector<8x16xf32>
    %113 = arith.truncf %111 : vector<8x8xf32> to vector<8x8xbf16>
    %114 = arith.truncf %112 : vector<8x16xf32> to vector<8x16xbf16>
    %cst_34 = arith.constant dense<0.000000e+00> : vector<8x16xf32>
    %115 = tpu.matmul %113, %114, %cst_34 {dimension_numbers = #tpu.dot_dimension_numbers<[1], [0], [0], [1], [0, 0, 1, 1], [], []>} : vector<8x8xbf16>, vector<8x16xbf16>, vector<8x16xf32> -> vector<8x16xf32>
    %116 = tpu.concatenate %94, %115 in 1 : vector<8x16xf32>, vector<8x16xf32> -> vector<8x32xf32>
    %117 = tpu.concatenate %64, %116 in 0 : vector<8x32xf32>, vector<8x32xf32> -> vector<16x32xf32>
    %c0_35 = arith.constant 0 : index
    %c96 = arith.constant 96 : index
    %118 = vector.load %arg10[%c0_35, %c96] : memref<32x960xbf16, #tpu.memory_space<vmem>>, vector<32x32xbf16>
    %119 = arith.truncf %117 : vector<16x32xf32> to vector<16x32xbf16>
    %cst_36 = arith.constant dense<0.000000e+00> : vector<16x32xf32>
    %120 = tpu.matmul %119, %118, %cst_36 {dimension_numbers = #tpu.dot_dimension_numbers<[1], [0], [0], [1], [0, 0, 1, 1], [], []>} : vector<16x32xbf16>, vector<32x32xbf16>, vector<16x32xf32> -> vector<16x32xf32>
    %c0_37 = arith.constant 0 : index
    %c96_38 = arith.constant 96 : index
    %121 = vector.load %arg12[%c0_37, %c96_38] : memref<1x1696xf32, #tpu.memory_space<vmem>>, vector<1x32xf32>
    %122 = vector.broadcast %121 : vector<1x32xf32> to vector<16x32xf32>
    %123 = arith.addf %120, %122 : vector<16x32xf32>
    %124 = arith.addf %6, %123 : vector<16x32xf32>
    %c0_39 = arith.constant 0 : index
    %c128 = arith.constant 128 : index
    %125 = vector.load %arg12[%c0_39, %c128] : memref<1x1696xf32, #tpu.memory_space<vmem>>, vector<1x32xf32>
    %c0_40 = arith.constant 0 : index
    %c160 = arith.constant 160 : index
    %126 = vector.load %arg12[%c0_40, %c160] : memref<1x1696xf32, #tpu.memory_space<vmem>>, vector<1x32xf32>
    %cst_41 = arith.constant dense<0.000000e+00> : vector<16xf32>
    %127 = vector.multi_reduction <add>, %124, %cst_41 [1] : vector<16x32xf32> to vector<16xf32>
    %128 = vector.shape_cast %127 : vector<16xf32> to vector<16x1xf32>
    %cst_42 = arith.constant 3.200000e+01 : f32
    %129 = vector.broadcast %cst_42 : f32 to vector<16x1xf32>
    %130 = arith.divf %128, %129 : vector<16x1xf32>
    %131 = vector.broadcast %130 : vector<16x1xf32> to vector<16x32xf32>
    %132 = arith.subf %124, %131 : vector<16x32xf32>
    %133 = arith.mulf %132, %132 : vector<16x32xf32>
    %cst_43 = arith.constant dense<0.000000e+00> : vector<16xf32>
    %134 = vector.multi_reduction <add>, %133, %cst_43 [1] : vector<16x32xf32> to vector<16xf32>
    %135 = vector.shape_cast %134 : vector<16xf32> to vector<16x1xf32>
    %cst_44 = arith.constant 3.200000e+01 : f32
    %136 = vector.broadcast %cst_44 : f32 to vector<16x1xf32>
    %137 = arith.divf %135, %136 : vector<16x1xf32>
    %138 = vector.broadcast %130 : vector<16x1xf32> to vector<16x32xf32>
    %139 = arith.subf %124, %138 : vector<16x32xf32>
    %cst_45 = arith.constant 9.99999974E-6 : f32
    %140 = vector.broadcast %cst_45 : f32 to vector<16x1xf32>
    %141 = arith.addf %137, %140 : vector<16x1xf32>
    %142 = math.rsqrt %141 : vector<16x1xf32>
    %143 = vector.broadcast %142 : vector<16x1xf32> to vector<16x32xf32>
    %144 = arith.mulf %139, %143 : vector<16x32xf32>
    %145 = vector.broadcast %125 : vector<1x32xf32> to vector<16x32xf32>
    %146 = arith.mulf %144, %145 : vector<16x32xf32>
    %147 = vector.broadcast %126 : vector<1x32xf32> to vector<16x32xf32>
    %148 = arith.addf %146, %147 : vector<16x32xf32>
    %c0_46 = arith.constant 0 : index
    %c128_47 = arith.constant 128 : index
    %149 = vector.load %arg10[%c0_46, %c128_47] : memref<32x960xbf16, #tpu.memory_space<vmem>>, vector<32x64xbf16>
    %150 = arith.truncf %148 : vector<16x32xf32> to vector<16x32xbf16>
    %cst_48 = arith.constant dense<0.000000e+00> : vector<16x64xf32>
    %151 = tpu.matmul %150, %149, %cst_48 {dimension_numbers = #tpu.dot_dimension_numbers<[1], [0], [0], [1], [0, 0, 1, 1], [], []>} : vector<16x32xbf16>, vector<32x64xbf16>, vector<16x64xf32> -> vector<16x64xf32>
    %c0_49 = arith.constant 0 : index
    %c192 = arith.constant 192 : index
    %152 = vector.load %arg12[%c0_49, %c192] : memref<1x1696xf32, #tpu.memory_space<vmem>>, vector<1x64xf32>
    %153 = vector.broadcast %152 : vector<1x64xf32> to vector<16x64xf32>
    %154 = arith.addf %151, %153 : vector<16x64xf32>
    %cst_50 = arith.constant 0.000000e+00 : f32
    %155 = vector.broadcast %cst_50 : f32 to vector<16x64xf32>
    %156 = arith.maximumf %154, %155 : vector<16x64xf32>
    %c0_51 = arith.constant 0 : index
    %c0_52 = arith.constant 0 : index
    %157 = vector.load %arg11[%c0_51, %c0_52] : memref<64x160xbf16, #tpu.memory_space<vmem>>, vector<64x32xbf16>
    %158 = arith.truncf %156 : vector<16x64xf32> to vector<16x64xbf16>
    %cst_53 = arith.constant dense<0.000000e+00> : vector<16x32xf32>
    %159 = tpu.matmul %158, %157, %cst_53 {dimension_numbers = #tpu.dot_dimension_numbers<[1], [0], [0], [1], [0, 0, 1, 1], [], []>} : vector<16x64xbf16>, vector<64x32xbf16>, vector<16x32xf32> -> vector<16x32xf32>
    %c0_54 = arith.constant 0 : index
    %c256 = arith.constant 256 : index
    %160 = vector.load %arg12[%c0_54, %c256] : memref<1x1696xf32, #tpu.memory_space<vmem>>, vector<1x32xf32>
    %161 = vector.broadcast %160 : vector<1x32xf32> to vector<16x32xf32>
    %162 = arith.addf %159, %161 : vector<16x32xf32>
    %163 = arith.addf %148, %162 : vector<16x32xf32>
    %c0_55 = arith.constant 0 : index
    %c288 = arith.constant 288 : index
    %164 = vector.load %arg12[%c0_55, %c288] : memref<1x1696xf32, #tpu.memory_space<vmem>>, vector<1x32xf32>
    %c0_56 = arith.constant 0 : index
    %c320 = arith.constant 320 : index
    %165 = vector.load %arg12[%c0_56, %c320] : memref<1x1696xf32, #tpu.memory_space<vmem>>, vector<1x32xf32>
    %cst_57 = arith.constant dense<0.000000e+00> : vector<16xf32>
    %166 = vector.multi_reduction <add>, %163, %cst_57 [1] : vector<16x32xf32> to vector<16xf32>
    %167 = vector.shape_cast %166 : vector<16xf32> to vector<16x1xf32>
    %cst_58 = arith.constant 3.200000e+01 : f32
    %168 = vector.broadcast %cst_58 : f32 to vector<16x1xf32>
    %169 = arith.divf %167, %168 : vector<16x1xf32>
    %170 = vector.broadcast %169 : vector<16x1xf32> to vector<16x32xf32>
    %171 = arith.subf %163, %170 : vector<16x32xf32>
    %172 = arith.mulf %171, %171 : vector<16x32xf32>
    %cst_59 = arith.constant dense<0.000000e+00> : vector<16xf32>
    %173 = vector.multi_reduction <add>, %172, %cst_59 [1] : vector<16x32xf32> to vector<16xf32>
    %174 = vector.shape_cast %173 : vector<16xf32> to vector<16x1xf32>
    %cst_60 = arith.constant 3.200000e+01 : f32
    %175 = vector.broadcast %cst_60 : f32 to vector<16x1xf32>
    %176 = arith.divf %174, %175 : vector<16x1xf32>
    %177 = vector.broadcast %169 : vector<16x1xf32> to vector<16x32xf32>
    %178 = arith.subf %163, %177 : vector<16x32xf32>
    %cst_61 = arith.constant 9.99999974E-6 : f32
    %179 = vector.broadcast %cst_61 : f32 to vector<16x1xf32>
    %180 = arith.addf %176, %179 : vector<16x1xf32>
    %181 = math.rsqrt %180 : vector<16x1xf32>
    %182 = vector.broadcast %181 : vector<16x1xf32> to vector<16x32xf32>
    %183 = arith.mulf %178, %182 : vector<16x32xf32>
    %184 = vector.broadcast %164 : vector<1x32xf32> to vector<16x32xf32>
    %185 = arith.mulf %183, %184 : vector<16x32xf32>
    %186 = vector.broadcast %165 : vector<1x32xf32> to vector<16x32xf32>
    %187 = arith.addf %185, %186 : vector<16x32xf32>
    %188 = vector.broadcast %1 : vector<16x1xf32> to vector<16x32xf32>
    %189 = arith.mulf %187, %188 : vector<16x32xf32>
    %c0_62 = arith.constant 0 : index
    %c0_63 = arith.constant 0 : index
    %190 = vector.load %arg5[%c0_62, %c0_63] : memref<12x32xf32, #tpu.memory_space<vmem>>, vector<12x32xf32>
    %c0_64 = arith.constant 0 : index
    %c192_65 = arith.constant 192 : index
    %191 = vector.load %arg10[%c0_64, %c192_65] : memref<32x960xbf16, #tpu.memory_space<vmem>>, vector<32x32xbf16>
    %192 = arith.truncf %190 : vector<12x32xf32> to vector<12x32xbf16>
    %cst_66 = arith.constant dense<0.000000e+00> : vector<12x32xf32>
    %193 = tpu.matmul %192, %191, %cst_66 {dimension_numbers = #tpu.dot_dimension_numbers<[1], [0], [0], [1], [0, 0, 1, 1], [], []>} : vector<12x32xbf16>, vector<32x32xbf16>, vector<12x32xf32> -> vector<12x32xf32>
    %c0_67 = arith.constant 0 : index
    %c352 = arith.constant 352 : index
    %194 = vector.load %arg12[%c0_67, %c352] : memref<1x1696xf32, #tpu.memory_space<vmem>>, vector<1x32xf32>
    %195 = vector.broadcast %194 : vector<1x32xf32> to vector<12x32xf32>
    %196 = arith.addf %193, %195 : vector<12x32xf32>
    %c0_68 = arith.constant 0 : index
    %c0_69 = arith.constant 0 : index
    %197 = vector.load %arg7[%c0_68, %c0_69] : memref<16x32xf32, #tpu.memory_space<vmem>>, vector<16x32xf32>
    %c0_70 = arith.constant 0 : index
    %c224 = arith.constant 224 : index
    %198 = vector.load %arg10[%c0_70, %c224] : memref<32x960xbf16, #tpu.memory_space<vmem>>, vector<32x32xbf16>
    %199 = arith.truncf %197 : vector<16x32xf32> to vector<16x32xbf16>
    %cst_71 = arith.constant dense<0.000000e+00> : vector<16x32xf32>
    %200 = tpu.matmul %199, %198, %cst_71 {dimension_numbers = #tpu.dot_dimension_numbers<[1], [0], [0], [1], [0, 0, 1, 1], [], []>} : vector<16x32xbf16>, vector<32x32xbf16>, vector<16x32xf32> -> vector<16x32xf32>
    %c0_72 = arith.constant 0 : index
    %c384 = arith.constant 384 : index
    %201 = vector.load %arg12[%c0_72, %c384] : memref<1x1696xf32, #tpu.memory_space<vmem>>, vector<1x32xf32>
    %202 = vector.broadcast %201 : vector<1x32xf32> to vector<16x32xf32>
    %203 = arith.addf %200, %202 : vector<16x32xf32>
    %c0_73 = arith.constant 0 : index
    %c0_74 = arith.constant 0 : index
    %204 = vector.load %arg4[%c0_73, %c0_74] : memref<16x32xf32, #tpu.memory_space<vmem>>, vector<16x32xf32>
    %cst_75 = arith.constant 1.000000e+00 : f32
    %205 = vector.broadcast %cst_75 : f32 to vector<1x8xf32>
    %c0_76 = arith.constant 0 : index
    %c256_77 = arith.constant 256 : index
    %206 = vector.load %arg10[%c0_76, %c256_77] : memref<32x960xbf16, #tpu.memory_space<vmem>>, vector<32x96xbf16>
    %207 = arith.truncf %204 : vector<16x32xf32> to vector<16x32xbf16>
    %cst_78 = arith.constant dense<0.000000e+00> : vector<16x96xf32>
    %208 = tpu.matmul %207, %206, %cst_78 {dimension_numbers = #tpu.dot_dimension_numbers<[1], [0], [0], [1], [0, 0, 1, 1], [], []>} : vector<16x32xbf16>, vector<32x96xbf16>, vector<16x96xf32> -> vector<16x96xf32>
    %c0_79 = arith.constant 0 : index
    %c416 = arith.constant 416 : index
    %209 = vector.load %arg12[%c0_79, %c416] : memref<1x1696xf32, #tpu.memory_space<vmem>>, vector<1x96xf32>
    %210 = vector.broadcast %209 : vector<1x96xf32> to vector<16x96xf32>
    %211 = arith.addf %208, %210 : vector<16x96xf32>
    %212 = vector.extract_strided_slice %211 {offsets = [0, 0], sizes = [8, 96], strides = [1, 1]} : vector<16x96xf32> to vector<8x96xf32>
    %213 = vector.extract_strided_slice %212 {offsets = [0, 0], sizes = [8, 32], strides = [1, 1]} : vector<8x96xf32> to vector<8x32xf32>
    %214 = vector.extract_strided_slice %212 {offsets = [0, 32], sizes = [8, 32], strides = [1, 1]} : vector<8x96xf32> to vector<8x32xf32>
    %215 = vector.extract_strided_slice %212 {offsets = [0, 64], sizes = [8, 32], strides = [1, 1]} : vector<8x96xf32> to vector<8x32xf32>
    %cst_80 = arith.constant 0.000000e+00 : f32
    %216 = vector.broadcast %cst_80 : f32 to vector<1x8xf32>
    %217 = arith.cmpf ogt, %205, %216 : vector<1x8xf32>
    %218 = vector.shape_cast %217 : vector<1x8xi1> to vector<1x8xi1>
    %219 = vector.broadcast %218 : vector<1x8xi1> to vector<8x8xi1>
    %220 = tpu.iota {dimensions = array<i32: 0>} : vector<8x8xi32>
    %221 = tpu.iota {dimensions = array<i32: 1>} : vector<8x8xi32>
    %222 = arith.cmpi sge, %220, %221 : vector<8x8xi32>
    %223 = arith.andi %219, %222 : vector<8x8xi1>
    %224 = vector.extract_strided_slice %213 {offsets = [0, 0], sizes = [8, 16], strides = [1, 1]} : vector<8x32xf32> to vector<8x16xf32>
    %225 = vector.extract_strided_slice %214 {offsets = [0, 0], sizes = [8, 16], strides = [1, 1]} : vector<8x32xf32> to vector<8x16xf32>
    %226 = arith.truncf %224 : vector<8x16xf32> to vector<8x16xbf16>
    %227 = arith.truncf %225 : vector<8x16xf32> to vector<8x16xbf16>
    %cst_81 = arith.constant dense<0.000000e+00> : vector<8x8xf32>
    %228 = tpu.matmul %226, %227, %cst_81 {dimension_numbers = #tpu.dot_dimension_numbers<[1], [1], [0], [0], [0, 0, 1, 0], [], []>} : vector<8x16xbf16>, vector<8x16xbf16>, vector<8x8xf32> -> vector<8x8xf32>
    %cst_82 = arith.constant -1.000000e+30 : f32
    %229 = vector.broadcast %cst_82 : f32 to vector<8x8xf32>
    %230 = arith.select %223, %228, %229 : vector<8x8xi1>, vector<8x8xf32>
    %cst_83 = arith.constant dense<0xFF800000> : vector<8xf32>
    %231 = vector.multi_reduction <maximumf>, %230, %cst_83 [1] : vector<8x8xf32> to vector<8xf32>
    %232 = vector.shape_cast %231 : vector<8xf32> to vector<8x1xf32>
    %233 = vector.broadcast %232 : vector<8x1xf32> to vector<8x8xf32>
    %234 = arith.subf %230, %233 : vector<8x8xf32>
    %235 = math.exp %234 : vector<8x8xf32>
    %cst_84 = arith.constant dense<0.000000e+00> : vector<8xf32>
    %236 = vector.multi_reduction <add>, %235, %cst_84 [1] : vector<8x8xf32> to vector<8xf32>
    %237 = vector.shape_cast %236 : vector<8xf32> to vector<8x1xf32>
    %238 = tpu.reciprocal %237 {approx = true} : vector<8x1xf32> -> vector<8x1xf32>
    %239 = vector.broadcast %238 : vector<8x1xf32> to vector<8x8xf32>
    %240 = arith.mulf %235, %239 : vector<8x8xf32>
    %241 = vector.extract_strided_slice %215 {offsets = [0, 0], sizes = [8, 16], strides = [1, 1]} : vector<8x32xf32> to vector<8x16xf32>
    %242 = arith.truncf %240 : vector<8x8xf32> to vector<8x8xbf16>
    %243 = arith.truncf %241 : vector<8x16xf32> to vector<8x16xbf16>
    %cst_85 = arith.constant dense<0.000000e+00> : vector<8x16xf32>
    %244 = tpu.matmul %242, %243, %cst_85 {dimension_numbers = #tpu.dot_dimension_numbers<[1], [0], [0], [1], [0, 0, 1, 1], [], []>} : vector<8x8xbf16>, vector<8x16xbf16>, vector<8x16xf32> -> vector<8x16xf32>
    %245 = vector.extract_strided_slice %213 {offsets = [0, 16], sizes = [8, 16], strides = [1, 1]} : vector<8x32xf32> to vector<8x16xf32>
    %246 = vector.extract_strided_slice %214 {offsets = [0, 16], sizes = [8, 16], strides = [1, 1]} : vector<8x32xf32> to vector<8x16xf32>
    %247 = arith.truncf %245 : vector<8x16xf32> to vector<8x16xbf16>
    %248 = arith.truncf %246 : vector<8x16xf32> to vector<8x16xbf16>
    %cst_86 = arith.constant dense<0.000000e+00> : vector<8x8xf32>
    %249 = tpu.matmul %247, %248, %cst_86 {dimension_numbers = #tpu.dot_dimension_numbers<[1], [1], [0], [0], [0, 0, 1, 0], [], []>} : vector<8x16xbf16>, vector<8x16xbf16>, vector<8x8xf32> -> vector<8x8xf32>
    %cst_87 = arith.constant -1.000000e+30 : f32
    %250 = vector.broadcast %cst_87 : f32 to vector<8x8xf32>
    %251 = arith.select %223, %249, %250 : vector<8x8xi1>, vector<8x8xf32>
    %cst_88 = arith.constant dense<0xFF800000> : vector<8xf32>
    %252 = vector.multi_reduction <maximumf>, %251, %cst_88 [1] : vector<8x8xf32> to vector<8xf32>
    %253 = vector.shape_cast %252 : vector<8xf32> to vector<8x1xf32>
    %254 = vector.broadcast %253 : vector<8x1xf32> to vector<8x8xf32>
    %255 = arith.subf %251, %254 : vector<8x8xf32>
    %256 = math.exp %255 : vector<8x8xf32>
    %cst_89 = arith.constant dense<0.000000e+00> : vector<8xf32>
    %257 = vector.multi_reduction <add>, %256, %cst_89 [1] : vector<8x8xf32> to vector<8xf32>
    %258 = vector.shape_cast %257 : vector<8xf32> to vector<8x1xf32>
    %259 = tpu.reciprocal %258 {approx = true} : vector<8x1xf32> -> vector<8x1xf32>
    %260 = vector.broadcast %259 : vector<8x1xf32> to vector<8x8xf32>
    %261 = arith.mulf %256, %260 : vector<8x8xf32>
    %262 = vector.extract_strided_slice %215 {offsets = [0, 16], sizes = [8, 16], strides = [1, 1]} : vector<8x32xf32> to vector<8x16xf32>
    %263 = arith.truncf %261 : vector<8x8xf32> to vector<8x8xbf16>
    %264 = arith.truncf %262 : vector<8x16xf32> to vector<8x16xbf16>
    %cst_90 = arith.constant dense<0.000000e+00> : vector<8x16xf32>
    %265 = tpu.matmul %263, %264, %cst_90 {dimension_numbers = #tpu.dot_dimension_numbers<[1], [0], [0], [1], [0, 0, 1, 1], [], []>} : vector<8x8xbf16>, vector<8x16xbf16>, vector<8x16xf32> -> vector<8x16xf32>
    %266 = tpu.concatenate %244, %265 in 1 : vector<8x16xf32>, vector<8x16xf32> -> vector<8x32xf32>
    %267 = vector.extract_strided_slice %211 {offsets = [8, 0], sizes = [8, 96], strides = [1, 1]} : vector<16x96xf32> to vector<8x96xf32>
    %268 = vector.extract_strided_slice %267 {offsets = [0, 0], sizes = [8, 32], strides = [1, 1]} : vector<8x96xf32> to vector<8x32xf32>
    %269 = vector.extract_strided_slice %267 {offsets = [0, 32], sizes = [8, 32], strides = [1, 1]} : vector<8x96xf32> to vector<8x32xf32>
    %270 = vector.extract_strided_slice %267 {offsets = [0, 64], sizes = [8, 32], strides = [1, 1]} : vector<8x96xf32> to vector<8x32xf32>
    %cst_91 = arith.constant 0.000000e+00 : f32
    %271 = vector.broadcast %cst_91 : f32 to vector<1x8xf32>
    %272 = arith.cmpf ogt, %205, %271 : vector<1x8xf32>
    %273 = vector.shape_cast %272 : vector<1x8xi1> to vector<1x8xi1>
    %274 = vector.broadcast %273 : vector<1x8xi1> to vector<8x8xi1>
    %275 = tpu.iota {dimensions = array<i32: 0>} : vector<8x8xi32>
    %276 = tpu.iota {dimensions = array<i32: 1>} : vector<8x8xi32>
    %277 = arith.cmpi sge, %275, %276 : vector<8x8xi32>
    %278 = arith.andi %274, %277 : vector<8x8xi1>
    %279 = vector.extract_strided_slice %268 {offsets = [0, 0], sizes = [8, 16], strides = [1, 1]} : vector<8x32xf32> to vector<8x16xf32>
    %280 = vector.extract_strided_slice %269 {offsets = [0, 0], sizes = [8, 16], strides = [1, 1]} : vector<8x32xf32> to vector<8x16xf32>
    %281 = arith.truncf %279 : vector<8x16xf32> to vector<8x16xbf16>
    %282 = arith.truncf %280 : vector<8x16xf32> to vector<8x16xbf16>
    %cst_92 = arith.constant dense<0.000000e+00> : vector<8x8xf32>
    %283 = tpu.matmul %281, %282, %cst_92 {dimension_numbers = #tpu.dot_dimension_numbers<[1], [1], [0], [0], [0, 0, 1, 0], [], []>} : vector<8x16xbf16>, vector<8x16xbf16>, vector<8x8xf32> -> vector<8x8xf32>
    %cst_93 = arith.constant -1.000000e+30 : f32
    %284 = vector.broadcast %cst_93 : f32 to vector<8x8xf32>
    %285 = arith.select %278, %283, %284 : vector<8x8xi1>, vector<8x8xf32>
    %cst_94 = arith.constant dense<0xFF800000> : vector<8xf32>
    %286 = vector.multi_reduction <maximumf>, %285, %cst_94 [1] : vector<8x8xf32> to vector<8xf32>
    %287 = vector.shape_cast %286 : vector<8xf32> to vector<8x1xf32>
    %288 = vector.broadcast %287 : vector<8x1xf32> to vector<8x8xf32>
    %289 = arith.subf %285, %288 : vector<8x8xf32>
    %290 = math.exp %289 : vector<8x8xf32>
    %cst_95 = arith.constant dense<0.000000e+00> : vector<8xf32>
    %291 = vector.multi_reduction <add>, %290, %cst_95 [1] : vector<8x8xf32> to vector<8xf32>
    %292 = vector.shape_cast %291 : vector<8xf32> to vector<8x1xf32>
    %293 = tpu.reciprocal %292 {approx = true} : vector<8x1xf32> -> vector<8x1xf32>
    %294 = vector.broadcast %293 : vector<8x1xf32> to vector<8x8xf32>
    %295 = arith.mulf %290, %294 : vector<8x8xf32>
    %296 = vector.extract_strided_slice %270 {offsets = [0, 0], sizes = [8, 16], strides = [1, 1]} : vector<8x32xf32> to vector<8x16xf32>
    %297 = arith.truncf %295 : vector<8x8xf32> to vector<8x8xbf16>
    %298 = arith.truncf %296 : vector<8x16xf32> to vector<8x16xbf16>
    %cst_96 = arith.constant dense<0.000000e+00> : vector<8x16xf32>
    %299 = tpu.matmul %297, %298, %cst_96 {dimension_numbers = #tpu.dot_dimension_numbers<[1], [0], [0], [1], [0, 0, 1, 1], [], []>} : vector<8x8xbf16>, vector<8x16xbf16>, vector<8x16xf32> -> vector<8x16xf32>
    %300 = vector.extract_strided_slice %268 {offsets = [0, 16], sizes = [8, 16], strides = [1, 1]} : vector<8x32xf32> to vector<8x16xf32>
    %301 = vector.extract_strided_slice %269 {offsets = [0, 16], sizes = [8, 16], strides = [1, 1]} : vector<8x32xf32> to vector<8x16xf32>
    %302 = arith.truncf %300 : vector<8x16xf32> to vector<8x16xbf16>
    %303 = arith.truncf %301 : vector<8x16xf32> to vector<8x16xbf16>
    %cst_97 = arith.constant dense<0.000000e+00> : vector<8x8xf32>
    %304 = tpu.matmul %302, %303, %cst_97 {dimension_numbers = #tpu.dot_dimension_numbers<[1], [1], [0], [0], [0, 0, 1, 0], [], []>} : vector<8x16xbf16>, vector<8x16xbf16>, vector<8x8xf32> -> vector<8x8xf32>
    %cst_98 = arith.constant -1.000000e+30 : f32
    %305 = vector.broadcast %cst_98 : f32 to vector<8x8xf32>
    %306 = arith.select %278, %304, %305 : vector<8x8xi1>, vector<8x8xf32>
    %cst_99 = arith.constant dense<0xFF800000> : vector<8xf32>
    %307 = vector.multi_reduction <maximumf>, %306, %cst_99 [1] : vector<8x8xf32> to vector<8xf32>
    %308 = vector.shape_cast %307 : vector<8xf32> to vector<8x1xf32>
    %309 = vector.broadcast %308 : vector<8x1xf32> to vector<8x8xf32>
    %310 = arith.subf %306, %309 : vector<8x8xf32>
    %311 = math.exp %310 : vector<8x8xf32>
    %cst_100 = arith.constant dense<0.000000e+00> : vector<8xf32>
    %312 = vector.multi_reduction <add>, %311, %cst_100 [1] : vector<8x8xf32> to vector<8xf32>
    %313 = vector.shape_cast %312 : vector<8xf32> to vector<8x1xf32>
    %314 = tpu.reciprocal %313 {approx = true} : vector<8x1xf32> -> vector<8x1xf32>
    %315 = vector.broadcast %314 : vector<8x1xf32> to vector<8x8xf32>
    %316 = arith.mulf %311, %315 : vector<8x8xf32>
    %317 = vector.extract_strided_slice %270 {offsets = [0, 16], sizes = [8, 16], strides = [1, 1]} : vector<8x32xf32> to vector<8x16xf32>
    %318 = arith.truncf %316 : vector<8x8xf32> to vector<8x8xbf16>
    %319 = arith.truncf %317 : vector<8x16xf32> to vector<8x16xbf16>
    %cst_101 = arith.constant dense<0.000000e+00> : vector<8x16xf32>
    %320 = tpu.matmul %318, %319, %cst_101 {dimension_numbers = #tpu.dot_dimension_numbers<[1], [0], [0], [1], [0, 0, 1, 1], [], []>} : vector<8x8xbf16>, vector<8x16xbf16>, vector<8x16xf32> -> vector<8x16xf32>
    %321 = tpu.concatenate %299, %320 in 1 : vector<8x16xf32>, vector<8x16xf32> -> vector<8x32xf32>
    %322 = tpu.concatenate %266, %321 in 0 : vector<8x32xf32>, vector<8x32xf32> -> vector<16x32xf32>
    %c0_102 = arith.constant 0 : index
    %c352_103 = arith.constant 352 : index
    %323 = vector.load %arg10[%c0_102, %c352_103] : memref<32x960xbf16, #tpu.memory_space<vmem>>, vector<32x32xbf16>
    %324 = arith.truncf %322 : vector<16x32xf32> to vector<16x32xbf16>
    %cst_104 = arith.constant dense<0.000000e+00> : vector<16x32xf32>
    %325 = tpu.matmul %324, %323, %cst_104 {dimension_numbers = #tpu.dot_dimension_numbers<[1], [0], [0], [1], [0, 0, 1, 1], [], []>} : vector<16x32xbf16>, vector<32x32xbf16>, vector<16x32xf32> -> vector<16x32xf32>
    %c0_105 = arith.constant 0 : index
    %c512 = arith.constant 512 : index
    %326 = vector.load %arg12[%c0_105, %c512] : memref<1x1696xf32, #tpu.memory_space<vmem>>, vector<1x32xf32>
    %327 = vector.broadcast %326 : vector<1x32xf32> to vector<16x32xf32>
    %328 = arith.addf %325, %327 : vector<16x32xf32>
    %329 = arith.addf %204, %328 : vector<16x32xf32>
    %c0_106 = arith.constant 0 : index
    %c544 = arith.constant 544 : index
    %330 = vector.load %arg12[%c0_106, %c544] : memref<1x1696xf32, #tpu.memory_space<vmem>>, vector<1x32xf32>
    %c0_107 = arith.constant 0 : index
    %c576 = arith.constant 576 : index
    %331 = vector.load %arg12[%c0_107, %c576] : memref<1x1696xf32, #tpu.memory_space<vmem>>, vector<1x32xf32>
    %cst_108 = arith.constant dense<0.000000e+00> : vector<16xf32>
    %332 = vector.multi_reduction <add>, %329, %cst_108 [1] : vector<16x32xf32> to vector<16xf32>
    %333 = vector.shape_cast %332 : vector<16xf32> to vector<16x1xf32>
    %cst_109 = arith.constant 3.200000e+01 : f32
    %334 = vector.broadcast %cst_109 : f32 to vector<16x1xf32>
    %335 = arith.divf %333, %334 : vector<16x1xf32>
    %336 = vector.broadcast %335 : vector<16x1xf32> to vector<16x32xf32>
    %337 = arith.subf %329, %336 : vector<16x32xf32>
    %338 = arith.mulf %337, %337 : vector<16x32xf32>
    %cst_110 = arith.constant dense<0.000000e+00> : vector<16xf32>
    %339 = vector.multi_reduction <add>, %338, %cst_110 [1] : vector<16x32xf32> to vector<16xf32>
    %340 = vector.shape_cast %339 : vector<16xf32> to vector<16x1xf32>
    %cst_111 = arith.constant 3.200000e+01 : f32
    %341 = vector.broadcast %cst_111 : f32 to vector<16x1xf32>
    %342 = arith.divf %340, %341 : vector<16x1xf32>
    %343 = vector.broadcast %335 : vector<16x1xf32> to vector<16x32xf32>
    %344 = arith.subf %329, %343 : vector<16x32xf32>
    %cst_112 = arith.constant 9.99999974E-6 : f32
    %345 = vector.broadcast %cst_112 : f32 to vector<16x1xf32>
    %346 = arith.addf %342, %345 : vector<16x1xf32>
    %347 = math.rsqrt %346 : vector<16x1xf32>
    %348 = vector.broadcast %347 : vector<16x1xf32> to vector<16x32xf32>
    %349 = arith.mulf %344, %348 : vector<16x32xf32>
    %350 = vector.broadcast %330 : vector<1x32xf32> to vector<16x32xf32>
    %351 = arith.mulf %349, %350 : vector<16x32xf32>
    %352 = vector.broadcast %331 : vector<1x32xf32> to vector<16x32xf32>
    %353 = arith.addf %351, %352 : vector<16x32xf32>
    %c0_113 = arith.constant 0 : index
    %c736 = arith.constant 736 : index
    %354 = vector.load %arg12[%c0_113, %c736] : memref<1x1696xf32, #tpu.memory_space<vmem>>, vector<1x32xf32>
    %c0_114 = arith.constant 0 : index
    %c768 = arith.constant 768 : index
    %355 = vector.load %arg12[%c0_114, %c768] : memref<1x1696xf32, #tpu.memory_space<vmem>>, vector<1x32xf32>
    %c0_115 = arith.constant 0 : index
    %c384_116 = arith.constant 384 : index
    %356 = vector.load %arg10[%c0_115, %c384_116] : memref<32x960xbf16, #tpu.memory_space<vmem>>, vector<32x32xbf16>
    %357 = arith.truncf %353 : vector<16x32xf32> to vector<16x32xbf16>
    %cst_117 = arith.constant dense<0.000000e+00> : vector<16x32xf32>
    %358 = tpu.matmul %357, %356, %cst_117 {dimension_numbers = #tpu.dot_dimension_numbers<[1], [0], [0], [1], [0, 0, 1, 1], [], []>} : vector<16x32xbf16>, vector<32x32xbf16>, vector<16x32xf32> -> vector<16x32xf32>
    %c0_118 = arith.constant 0 : index
    %c608 = arith.constant 608 : index
    %359 = vector.load %arg12[%c0_118, %c608] : memref<1x1696xf32, #tpu.memory_space<vmem>>, vector<1x32xf32>
    %360 = vector.broadcast %359 : vector<1x32xf32> to vector<16x32xf32>
    %361 = arith.addf %358, %360 : vector<16x32xf32>
    %c0_119 = arith.constant 0 : index
    %c416_120 = arith.constant 416 : index
    %362 = vector.load %arg10[%c0_119, %c416_120] : memref<32x960xbf16, #tpu.memory_space<vmem>>, vector<32x64xbf16>
    %363 = arith.truncf %189 : vector<16x32xf32> to vector<16x32xbf16>
    %cst_121 = arith.constant dense<0.000000e+00> : vector<16x64xf32>
    %364 = tpu.matmul %363, %362, %cst_121 {dimension_numbers = #tpu.dot_dimension_numbers<[1], [0], [0], [1], [0, 0, 1, 1], [], []>} : vector<16x32xbf16>, vector<32x64xbf16>, vector<16x64xf32> -> vector<16x64xf32>
    %c0_122 = arith.constant 0 : index
    %c640 = arith.constant 640 : index
    %365 = vector.load %arg12[%c0_122, %c640] : memref<1x1696xf32, #tpu.memory_space<vmem>>, vector<1x64xf32>
    %366 = vector.broadcast %365 : vector<1x64xf32> to vector<16x64xf32>
    %367 = arith.addf %364, %366 : vector<16x64xf32>
    %368 = vector.extract_strided_slice %361 {offsets = [0, 0], sizes = [8, 32], strides = [1, 1]} : vector<16x32xf32> to vector<8x32xf32>
    %369 = vector.extract_strided_slice %367 {offsets = [0, 0], sizes = [8, 64], strides = [1, 1]} : vector<16x64xf32> to vector<8x64xf32>
    %370 = vector.extract_strided_slice %369 {offsets = [0, 0], sizes = [8, 32], strides = [1, 1]} : vector<8x64xf32> to vector<8x32xf32>
    %371 = vector.extract_strided_slice %369 {offsets = [0, 32], sizes = [8, 32], strides = [1, 1]} : vector<8x64xf32> to vector<8x32xf32>
    %372 = vector.extract_strided_slice %0 {offsets = [0, 0], sizes = [1, 8], strides = [1, 1]} : vector<2x8xf32> to vector<1x8xf32>
    %cst_123 = arith.constant 0.000000e+00 : f32
    %373 = vector.broadcast %cst_123 : f32 to vector<1x8xf32>
    %374 = arith.cmpf ogt, %372, %373 : vector<1x8xf32>
    %375 = vector.shape_cast %374 : vector<1x8xi1> to vector<1x8xi1>
    %376 = vector.broadcast %375 : vector<1x8xi1> to vector<8x8xi1>
    %377 = vector.extract_strided_slice %368 {offsets = [0, 0], sizes = [8, 16], strides = [1, 1]} : vector<8x32xf32> to vector<8x16xf32>
    %378 = vector.extract_strided_slice %370 {offsets = [0, 0], sizes = [8, 16], strides = [1, 1]} : vector<8x32xf32> to vector<8x16xf32>
    %379 = arith.truncf %377 : vector<8x16xf32> to vector<8x16xbf16>
    %380 = arith.truncf %378 : vector<8x16xf32> to vector<8x16xbf16>
    %cst_124 = arith.constant dense<0.000000e+00> : vector<8x8xf32>
    %381 = tpu.matmul %379, %380, %cst_124 {dimension_numbers = #tpu.dot_dimension_numbers<[1], [1], [0], [0], [0, 0, 1, 0], [], []>} : vector<8x16xbf16>, vector<8x16xbf16>, vector<8x8xf32> -> vector<8x8xf32>
    %cst_125 = arith.constant -1.000000e+30 : f32
    %382 = vector.broadcast %cst_125 : f32 to vector<8x8xf32>
    %383 = arith.select %376, %381, %382 : vector<8x8xi1>, vector<8x8xf32>
    %cst_126 = arith.constant dense<0xFF800000> : vector<8xf32>
    %384 = vector.multi_reduction <maximumf>, %383, %cst_126 [1] : vector<8x8xf32> to vector<8xf32>
    %385 = vector.shape_cast %384 : vector<8xf32> to vector<8x1xf32>
    %386 = vector.broadcast %385 : vector<8x1xf32> to vector<8x8xf32>
    %387 = arith.subf %383, %386 : vector<8x8xf32>
    %388 = math.exp %387 : vector<8x8xf32>
    %cst_127 = arith.constant dense<0.000000e+00> : vector<8xf32>
    %389 = vector.multi_reduction <add>, %388, %cst_127 [1] : vector<8x8xf32> to vector<8xf32>
    %390 = vector.shape_cast %389 : vector<8xf32> to vector<8x1xf32>
    %391 = tpu.reciprocal %390 {approx = true} : vector<8x1xf32> -> vector<8x1xf32>
    %392 = vector.broadcast %391 : vector<8x1xf32> to vector<8x8xf32>
    %393 = arith.mulf %388, %392 : vector<8x8xf32>
    %394 = vector.extract_strided_slice %371 {offsets = [0, 0], sizes = [8, 16], strides = [1, 1]} : vector<8x32xf32> to vector<8x16xf32>
    %395 = arith.truncf %393 : vector<8x8xf32> to vector<8x8xbf16>
    %396 = arith.truncf %394 : vector<8x16xf32> to vector<8x16xbf16>
    %cst_128 = arith.constant dense<0.000000e+00> : vector<8x16xf32>
    %397 = tpu.matmul %395, %396, %cst_128 {dimension_numbers = #tpu.dot_dimension_numbers<[1], [0], [0], [1], [0, 0, 1, 1], [], []>} : vector<8x8xbf16>, vector<8x16xbf16>, vector<8x16xf32> -> vector<8x16xf32>
    %398 = vector.extract_strided_slice %368 {offsets = [0, 16], sizes = [8, 16], strides = [1, 1]} : vector<8x32xf32> to vector<8x16xf32>
    %399 = vector.extract_strided_slice %370 {offsets = [0, 16], sizes = [8, 16], strides = [1, 1]} : vector<8x32xf32> to vector<8x16xf32>
    %400 = arith.truncf %398 : vector<8x16xf32> to vector<8x16xbf16>
    %401 = arith.truncf %399 : vector<8x16xf32> to vector<8x16xbf16>
    %cst_129 = arith.constant dense<0.000000e+00> : vector<8x8xf32>
    %402 = tpu.matmul %400, %401, %cst_129 {dimension_numbers = #tpu.dot_dimension_numbers<[1], [1], [0], [0], [0, 0, 1, 0], [], []>} : vector<8x16xbf16>, vector<8x16xbf16>, vector<8x8xf32> -> vector<8x8xf32>
    %cst_130 = arith.constant -1.000000e+30 : f32
    %403 = vector.broadcast %cst_130 : f32 to vector<8x8xf32>
    %404 = arith.select %376, %402, %403 : vector<8x8xi1>, vector<8x8xf32>
    %cst_131 = arith.constant dense<0xFF800000> : vector<8xf32>
    %405 = vector.multi_reduction <maximumf>, %404, %cst_131 [1] : vector<8x8xf32> to vector<8xf32>
    %406 = vector.shape_cast %405 : vector<8xf32> to vector<8x1xf32>
    %407 = vector.broadcast %406 : vector<8x1xf32> to vector<8x8xf32>
    %408 = arith.subf %404, %407 : vector<8x8xf32>
    %409 = math.exp %408 : vector<8x8xf32>
    %cst_132 = arith.constant dense<0.000000e+00> : vector<8xf32>
    %410 = vector.multi_reduction <add>, %409, %cst_132 [1] : vector<8x8xf32> to vector<8xf32>
    %411 = vector.shape_cast %410 : vector<8xf32> to vector<8x1xf32>
    %412 = tpu.reciprocal %411 {approx = true} : vector<8x1xf32> -> vector<8x1xf32>
    %413 = vector.broadcast %412 : vector<8x1xf32> to vector<8x8xf32>
    %414 = arith.mulf %409, %413 : vector<8x8xf32>
    %415 = vector.extract_strided_slice %371 {offsets = [0, 16], sizes = [8, 16], strides = [1, 1]} : vector<8x32xf32> to vector<8x16xf32>
    %416 = arith.truncf %414 : vector<8x8xf32> to vector<8x8xbf16>
    %417 = arith.truncf %415 : vector<8x16xf32> to vector<8x16xbf16>
    %cst_133 = arith.constant dense<0.000000e+00> : vector<8x16xf32>
    %418 = tpu.matmul %416, %417, %cst_133 {dimension_numbers = #tpu.dot_dimension_numbers<[1], [0], [0], [1], [0, 0, 1, 1], [], []>} : vector<8x8xbf16>, vector<8x16xbf16>, vector<8x16xf32> -> vector<8x16xf32>
    %419 = tpu.concatenate %397, %418 in 1 : vector<8x16xf32>, vector<8x16xf32> -> vector<8x32xf32>
    %420 = vector.extract_strided_slice %361 {offsets = [8, 0], sizes = [8, 32], strides = [1, 1]} : vector<16x32xf32> to vector<8x32xf32>
    %421 = vector.extract_strided_slice %367 {offsets = [8, 0], sizes = [8, 64], strides = [1, 1]} : vector<16x64xf32> to vector<8x64xf32>
    %422 = vector.extract_strided_slice %421 {offsets = [0, 0], sizes = [8, 32], strides = [1, 1]} : vector<8x64xf32> to vector<8x32xf32>
    %423 = vector.extract_strided_slice %421 {offsets = [0, 32], sizes = [8, 32], strides = [1, 1]} : vector<8x64xf32> to vector<8x32xf32>
    %424 = vector.extract_strided_slice %0 {offsets = [1, 0], sizes = [1, 8], strides = [1, 1]} : vector<2x8xf32> to vector<1x8xf32>
    %cst_134 = arith.constant 0.000000e+00 : f32
    %425 = vector.broadcast %cst_134 : f32 to vector<1x8xf32>
    %426 = arith.cmpf ogt, %424, %425 : vector<1x8xf32>
    %427 = vector.shape_cast %426 : vector<1x8xi1> to vector<1x8xi1>
    %428 = vector.broadcast %427 : vector<1x8xi1> to vector<8x8xi1>
    %429 = vector.extract_strided_slice %420 {offsets = [0, 0], sizes = [8, 16], strides = [1, 1]} : vector<8x32xf32> to vector<8x16xf32>
    %430 = vector.extract_strided_slice %422 {offsets = [0, 0], sizes = [8, 16], strides = [1, 1]} : vector<8x32xf32> to vector<8x16xf32>
    %431 = arith.truncf %429 : vector<8x16xf32> to vector<8x16xbf16>
    %432 = arith.truncf %430 : vector<8x16xf32> to vector<8x16xbf16>
    %cst_135 = arith.constant dense<0.000000e+00> : vector<8x8xf32>
    %433 = tpu.matmul %431, %432, %cst_135 {dimension_numbers = #tpu.dot_dimension_numbers<[1], [1], [0], [0], [0, 0, 1, 0], [], []>} : vector<8x16xbf16>, vector<8x16xbf16>, vector<8x8xf32> -> vector<8x8xf32>
    %cst_136 = arith.constant -1.000000e+30 : f32
    %434 = vector.broadcast %cst_136 : f32 to vector<8x8xf32>
    %435 = arith.select %428, %433, %434 : vector<8x8xi1>, vector<8x8xf32>
    %cst_137 = arith.constant dense<0xFF800000> : vector<8xf32>
    %436 = vector.multi_reduction <maximumf>, %435, %cst_137 [1] : vector<8x8xf32> to vector<8xf32>
    %437 = vector.shape_cast %436 : vector<8xf32> to vector<8x1xf32>
    %438 = vector.broadcast %437 : vector<8x1xf32> to vector<8x8xf32>
    %439 = arith.subf %435, %438 : vector<8x8xf32>
    %440 = math.exp %439 : vector<8x8xf32>
    %cst_138 = arith.constant dense<0.000000e+00> : vector<8xf32>
    %441 = vector.multi_reduction <add>, %440, %cst_138 [1] : vector<8x8xf32> to vector<8xf32>
    %442 = vector.shape_cast %441 : vector<8xf32> to vector<8x1xf32>
    %443 = tpu.reciprocal %442 {approx = true} : vector<8x1xf32> -> vector<8x1xf32>
    %444 = vector.broadcast %443 : vector<8x1xf32> to vector<8x8xf32>
    %445 = arith.mulf %440, %444 : vector<8x8xf32>
    %446 = vector.extract_strided_slice %423 {offsets = [0, 0], sizes = [8, 16], strides = [1, 1]} : vector<8x32xf32> to vector<8x16xf32>
    %447 = arith.truncf %445 : vector<8x8xf32> to vector<8x8xbf16>
    %448 = arith.truncf %446 : vector<8x16xf32> to vector<8x16xbf16>
    %cst_139 = arith.constant dense<0.000000e+00> : vector<8x16xf32>
    %449 = tpu.matmul %447, %448, %cst_139 {dimension_numbers = #tpu.dot_dimension_numbers<[1], [0], [0], [1], [0, 0, 1, 1], [], []>} : vector<8x8xbf16>, vector<8x16xbf16>, vector<8x16xf32> -> vector<8x16xf32>
    %450 = vector.extract_strided_slice %420 {offsets = [0, 16], sizes = [8, 16], strides = [1, 1]} : vector<8x32xf32> to vector<8x16xf32>
    %451 = vector.extract_strided_slice %422 {offsets = [0, 16], sizes = [8, 16], strides = [1, 1]} : vector<8x32xf32> to vector<8x16xf32>
    %452 = arith.truncf %450 : vector<8x16xf32> to vector<8x16xbf16>
    %453 = arith.truncf %451 : vector<8x16xf32> to vector<8x16xbf16>
    %cst_140 = arith.constant dense<0.000000e+00> : vector<8x8xf32>
    %454 = tpu.matmul %452, %453, %cst_140 {dimension_numbers = #tpu.dot_dimension_numbers<[1], [1], [0], [0], [0, 0, 1, 0], [], []>} : vector<8x16xbf16>, vector<8x16xbf16>, vector<8x8xf32> -> vector<8x8xf32>
    %cst_141 = arith.constant -1.000000e+30 : f32
    %455 = vector.broadcast %cst_141 : f32 to vector<8x8xf32>
    %456 = arith.select %428, %454, %455 : vector<8x8xi1>, vector<8x8xf32>
    %cst_142 = arith.constant dense<0xFF800000> : vector<8xf32>
    %457 = vector.multi_reduction <maximumf>, %456, %cst_142 [1] : vector<8x8xf32> to vector<8xf32>
    %458 = vector.shape_cast %457 : vector<8xf32> to vector<8x1xf32>
    %459 = vector.broadcast %458 : vector<8x1xf32> to vector<8x8xf32>
    %460 = arith.subf %456, %459 : vector<8x8xf32>
    %461 = math.exp %460 : vector<8x8xf32>
    %cst_143 = arith.constant dense<0.000000e+00> : vector<8xf32>
    %462 = vector.multi_reduction <add>, %461, %cst_143 [1] : vector<8x8xf32> to vector<8xf32>
    %463 = vector.shape_cast %462 : vector<8xf32> to vector<8x1xf32>
    %464 = tpu.reciprocal %463 {approx = true} : vector<8x1xf32> -> vector<8x1xf32>
    %465 = vector.broadcast %464 : vector<8x1xf32> to vector<8x8xf32>
    %466 = arith.mulf %461, %465 : vector<8x8xf32>
    %467 = vector.extract_strided_slice %423 {offsets = [0, 16], sizes = [8, 16], strides = [1, 1]} : vector<8x32xf32> to vector<8x16xf32>
    %468 = arith.truncf %466 : vector<8x8xf32> to vector<8x8xbf16>
    %469 = arith.truncf %467 : vector<8x16xf32> to vector<8x16xbf16>
    %cst_144 = arith.constant dense<0.000000e+00> : vector<8x16xf32>
    %470 = tpu.matmul %468, %469, %cst_144 {dimension_numbers = #tpu.dot_dimension_numbers<[1], [0], [0], [1], [0, 0, 1, 1], [], []>} : vector<8x8xbf16>, vector<8x16xbf16>, vector<8x16xf32> -> vector<8x16xf32>
    %471 = tpu.concatenate %449, %470 in 1 : vector<8x16xf32>, vector<8x16xf32> -> vector<8x32xf32>
    %472 = tpu.concatenate %419, %471 in 0 : vector<8x32xf32>, vector<8x32xf32> -> vector<16x32xf32>
    %c0_145 = arith.constant 0 : index
    %c480 = arith.constant 480 : index
    %473 = vector.load %arg10[%c0_145, %c480] : memref<32x960xbf16, #tpu.memory_space<vmem>>, vector<32x32xbf16>
    %474 = arith.truncf %472 : vector<16x32xf32> to vector<16x32xbf16>
    %cst_146 = arith.constant dense<0.000000e+00> : vector<16x32xf32>
    %475 = tpu.matmul %474, %473, %cst_146 {dimension_numbers = #tpu.dot_dimension_numbers<[1], [0], [0], [1], [0, 0, 1, 1], [], []>} : vector<16x32xbf16>, vector<32x32xbf16>, vector<16x32xf32> -> vector<16x32xf32>
    %c0_147 = arith.constant 0 : index
    %c704 = arith.constant 704 : index
    %476 = vector.load %arg12[%c0_147, %c704] : memref<1x1696xf32, #tpu.memory_space<vmem>>, vector<1x32xf32>
    %477 = vector.broadcast %476 : vector<1x32xf32> to vector<16x32xf32>
    %478 = arith.addf %475, %477 : vector<16x32xf32>
    %479 = arith.addf %353, %478 : vector<16x32xf32>
    %cst_148 = arith.constant dense<0.000000e+00> : vector<16xf32>
    %480 = vector.multi_reduction <add>, %479, %cst_148 [1] : vector<16x32xf32> to vector<16xf32>
    %481 = vector.shape_cast %480 : vector<16xf32> to vector<16x1xf32>
    %cst_149 = arith.constant 3.200000e+01 : f32
    %482 = vector.broadcast %cst_149 : f32 to vector<16x1xf32>
    %483 = arith.divf %481, %482 : vector<16x1xf32>
    %484 = vector.broadcast %483 : vector<16x1xf32> to vector<16x32xf32>
    %485 = arith.subf %479, %484 : vector<16x32xf32>
    %486 = arith.mulf %485, %485 : vector<16x32xf32>
    %cst_150 = arith.constant dense<0.000000e+00> : vector<16xf32>
    %487 = vector.multi_reduction <add>, %486, %cst_150 [1] : vector<16x32xf32> to vector<16xf32>
    %488 = vector.shape_cast %487 : vector<16xf32> to vector<16x1xf32>
    %cst_151 = arith.constant 3.200000e+01 : f32
    %489 = vector.broadcast %cst_151 : f32 to vector<16x1xf32>
    %490 = arith.divf %488, %489 : vector<16x1xf32>
    %491 = vector.broadcast %483 : vector<16x1xf32> to vector<16x32xf32>
    %492 = arith.subf %479, %491 : vector<16x32xf32>
    %cst_152 = arith.constant 9.99999974E-6 : f32
    %493 = vector.broadcast %cst_152 : f32 to vector<16x1xf32>
    %494 = arith.addf %490, %493 : vector<16x1xf32>
    %495 = math.rsqrt %494 : vector<16x1xf32>
    %496 = vector.broadcast %495 : vector<16x1xf32> to vector<16x32xf32>
    %497 = arith.mulf %492, %496 : vector<16x32xf32>
    %498 = vector.broadcast %354 : vector<1x32xf32> to vector<16x32xf32>
    %499 = arith.mulf %497, %498 : vector<16x32xf32>
    %500 = vector.broadcast %355 : vector<1x32xf32> to vector<16x32xf32>
    %501 = arith.addf %499, %500 : vector<16x32xf32>
    %c0_153 = arith.constant 0 : index
    %c928 = arith.constant 928 : index
    %502 = vector.load %arg12[%c0_153, %c928] : memref<1x1696xf32, #tpu.memory_space<vmem>>, vector<1x32xf32>
    %c0_154 = arith.constant 0 : index
    %c960 = arith.constant 960 : index
    %503 = vector.load %arg12[%c0_154, %c960] : memref<1x1696xf32, #tpu.memory_space<vmem>>, vector<1x32xf32>
    %c0_155 = arith.constant 0 : index
    %c512_156 = arith.constant 512 : index
    %504 = vector.load %arg10[%c0_155, %c512_156] : memref<32x960xbf16, #tpu.memory_space<vmem>>, vector<32x32xbf16>
    %505 = arith.truncf %501 : vector<16x32xf32> to vector<16x32xbf16>
    %cst_157 = arith.constant dense<0.000000e+00> : vector<16x32xf32>
    %506 = tpu.matmul %505, %504, %cst_157 {dimension_numbers = #tpu.dot_dimension_numbers<[1], [0], [0], [1], [0, 0, 1, 1], [], []>} : vector<16x32xbf16>, vector<32x32xbf16>, vector<16x32xf32> -> vector<16x32xf32>
    %c0_158 = arith.constant 0 : index
    %c800 = arith.constant 800 : index
    %507 = vector.load %arg12[%c0_158, %c800] : memref<1x1696xf32, #tpu.memory_space<vmem>>, vector<1x32xf32>
    %508 = vector.broadcast %507 : vector<1x32xf32> to vector<16x32xf32>
    %509 = arith.addf %506, %508 : vector<16x32xf32>
    %c0_159 = arith.constant 0 : index
    %c544_160 = arith.constant 544 : index
    %510 = vector.load %arg10[%c0_159, %c544_160] : memref<32x960xbf16, #tpu.memory_space<vmem>>, vector<32x64xbf16>
    %511 = arith.truncf %196 : vector<12x32xf32> to vector<12x32xbf16>
    %cst_161 = arith.constant dense<0.000000e+00> : vector<12x64xf32>
    %512 = tpu.matmul %511, %510, %cst_161 {dimension_numbers = #tpu.dot_dimension_numbers<[1], [0], [0], [1], [0, 0, 1, 1], [], []>} : vector<12x32xbf16>, vector<32x64xbf16>, vector<12x64xf32> -> vector<12x64xf32>
    %c0_162 = arith.constant 0 : index
    %c832 = arith.constant 832 : index
    %513 = vector.load %arg12[%c0_162, %c832] : memref<1x1696xf32, #tpu.memory_space<vmem>>, vector<1x64xf32>
    %514 = vector.broadcast %513 : vector<1x64xf32> to vector<12x64xf32>
    %515 = arith.addf %512, %514 : vector<12x64xf32>
    %516 = vector.extract_strided_slice %509 {offsets = [0, 0], sizes = [8, 32], strides = [1, 1]} : vector<16x32xf32> to vector<8x32xf32>
    %517 = vector.extract_strided_slice %515 {offsets = [0, 0], sizes = [6, 64], strides = [1, 1]} : vector<12x64xf32> to vector<6x64xf32>
    %518 = vector.extract_strided_slice %517 {offsets = [0, 0], sizes = [6, 32], strides = [1, 1]} : vector<6x64xf32> to vector<6x32xf32>
    %519 = vector.extract_strided_slice %517 {offsets = [0, 32], sizes = [6, 32], strides = [1, 1]} : vector<6x64xf32> to vector<6x32xf32>
    %520 = vector.extract_strided_slice %2 {offsets = [0, 0], sizes = [1, 6], strides = [1, 1]} : vector<2x6xf32> to vector<1x6xf32>
    %cst_163 = arith.constant 0.000000e+00 : f32
    %521 = vector.broadcast %cst_163 : f32 to vector<1x6xf32>
    %522 = arith.cmpf ogt, %520, %521 : vector<1x6xf32>
    %523 = vector.shape_cast %522 : vector<1x6xi1> to vector<1x6xi1>
    %524 = vector.broadcast %523 : vector<1x6xi1> to vector<8x6xi1>
    %525 = vector.extract_strided_slice %516 {offsets = [0, 0], sizes = [8, 16], strides = [1, 1]} : vector<8x32xf32> to vector<8x16xf32>
    %526 = vector.extract_strided_slice %518 {offsets = [0, 0], sizes = [6, 16], strides = [1, 1]} : vector<6x32xf32> to vector<6x16xf32>
    %527 = arith.truncf %525 : vector<8x16xf32> to vector<8x16xbf16>
    %528 = arith.truncf %526 : vector<6x16xf32> to vector<6x16xbf16>
    %cst_164 = arith.constant dense<0.000000e+00> : vector<8x6xf32>
    %529 = tpu.matmul %527, %528, %cst_164 {dimension_numbers = #tpu.dot_dimension_numbers<[1], [1], [0], [0], [0, 0, 1, 0], [], []>} : vector<8x16xbf16>, vector<6x16xbf16>, vector<8x6xf32> -> vector<8x6xf32>
    %cst_165 = arith.constant -1.000000e+30 : f32
    %530 = vector.broadcast %cst_165 : f32 to vector<8x6xf32>
    %531 = arith.select %524, %529, %530 : vector<8x6xi1>, vector<8x6xf32>
    %cst_166 = arith.constant dense<0xFF800000> : vector<8xf32>
    %532 = vector.multi_reduction <maximumf>, %531, %cst_166 [1] : vector<8x6xf32> to vector<8xf32>
    %533 = vector.shape_cast %532 : vector<8xf32> to vector<8x1xf32>
    %534 = vector.broadcast %533 : vector<8x1xf32> to vector<8x6xf32>
    %535 = arith.subf %531, %534 : vector<8x6xf32>
    %536 = math.exp %535 : vector<8x6xf32>
    %cst_167 = arith.constant dense<0.000000e+00> : vector<8xf32>
    %537 = vector.multi_reduction <add>, %536, %cst_167 [1] : vector<8x6xf32> to vector<8xf32>
    %538 = vector.shape_cast %537 : vector<8xf32> to vector<8x1xf32>
    %539 = tpu.reciprocal %538 {approx = true} : vector<8x1xf32> -> vector<8x1xf32>
    %540 = vector.broadcast %539 : vector<8x1xf32> to vector<8x6xf32>
    %541 = arith.mulf %536, %540 : vector<8x6xf32>
    %542 = vector.extract_strided_slice %519 {offsets = [0, 0], sizes = [6, 16], strides = [1, 1]} : vector<6x32xf32> to vector<6x16xf32>
    %543 = arith.truncf %541 : vector<8x6xf32> to vector<8x6xbf16>
    %544 = arith.truncf %542 : vector<6x16xf32> to vector<6x16xbf16>
    %cst_168 = arith.constant dense<0.000000e+00> : vector<8x16xf32>
    %545 = tpu.matmul %543, %544, %cst_168 {dimension_numbers = #tpu.dot_dimension_numbers<[1], [0], [0], [1], [0, 0, 1, 1], [], []>} : vector<8x6xbf16>, vector<6x16xbf16>, vector<8x16xf32> -> vector<8x16xf32>
    %546 = vector.extract_strided_slice %516 {offsets = [0, 16], sizes = [8, 16], strides = [1, 1]} : vector<8x32xf32> to vector<8x16xf32>
    %547 = vector.extract_strided_slice %518 {offsets = [0, 16], sizes = [6, 16], strides = [1, 1]} : vector<6x32xf32> to vector<6x16xf32>
    %548 = arith.truncf %546 : vector<8x16xf32> to vector<8x16xbf16>
    %549 = arith.truncf %547 : vector<6x16xf32> to vector<6x16xbf16>
    %cst_169 = arith.constant dense<0.000000e+00> : vector<8x6xf32>
    %550 = tpu.matmul %548, %549, %cst_169 {dimension_numbers = #tpu.dot_dimension_numbers<[1], [1], [0], [0], [0, 0, 1, 0], [], []>} : vector<8x16xbf16>, vector<6x16xbf16>, vector<8x6xf32> -> vector<8x6xf32>
    %cst_170 = arith.constant -1.000000e+30 : f32
    %551 = vector.broadcast %cst_170 : f32 to vector<8x6xf32>
    %552 = arith.select %524, %550, %551 : vector<8x6xi1>, vector<8x6xf32>
    %cst_171 = arith.constant dense<0xFF800000> : vector<8xf32>
    %553 = vector.multi_reduction <maximumf>, %552, %cst_171 [1] : vector<8x6xf32> to vector<8xf32>
    %554 = vector.shape_cast %553 : vector<8xf32> to vector<8x1xf32>
    %555 = vector.broadcast %554 : vector<8x1xf32> to vector<8x6xf32>
    %556 = arith.subf %552, %555 : vector<8x6xf32>
    %557 = math.exp %556 : vector<8x6xf32>
    %cst_172 = arith.constant dense<0.000000e+00> : vector<8xf32>
    %558 = vector.multi_reduction <add>, %557, %cst_172 [1] : vector<8x6xf32> to vector<8xf32>
    %559 = vector.shape_cast %558 : vector<8xf32> to vector<8x1xf32>
    %560 = tpu.reciprocal %559 {approx = true} : vector<8x1xf32> -> vector<8x1xf32>
    %561 = vector.broadcast %560 : vector<8x1xf32> to vector<8x6xf32>
    %562 = arith.mulf %557, %561 : vector<8x6xf32>
    %563 = vector.extract_strided_slice %519 {offsets = [0, 16], sizes = [6, 16], strides = [1, 1]} : vector<6x32xf32> to vector<6x16xf32>
    %564 = arith.truncf %562 : vector<8x6xf32> to vector<8x6xbf16>
    %565 = arith.truncf %563 : vector<6x16xf32> to vector<6x16xbf16>
    %cst_173 = arith.constant dense<0.000000e+00> : vector<8x16xf32>
    %566 = tpu.matmul %564, %565, %cst_173 {dimension_numbers = #tpu.dot_dimension_numbers<[1], [0], [0], [1], [0, 0, 1, 1], [], []>} : vector<8x6xbf16>, vector<6x16xbf16>, vector<8x16xf32> -> vector<8x16xf32>
    %567 = tpu.concatenate %545, %566 in 1 : vector<8x16xf32>, vector<8x16xf32> -> vector<8x32xf32>
    %568 = vector.extract_strided_slice %509 {offsets = [8, 0], sizes = [8, 32], strides = [1, 1]} : vector<16x32xf32> to vector<8x32xf32>
    %569 = vector.extract_strided_slice %515 {offsets = [6, 0], sizes = [6, 64], strides = [1, 1]} : vector<12x64xf32> to vector<6x64xf32>
    %570 = vector.extract_strided_slice %569 {offsets = [0, 0], sizes = [6, 32], strides = [1, 1]} : vector<6x64xf32> to vector<6x32xf32>
    %571 = vector.extract_strided_slice %569 {offsets = [0, 32], sizes = [6, 32], strides = [1, 1]} : vector<6x64xf32> to vector<6x32xf32>
    %572 = vector.extract_strided_slice %2 {offsets = [1, 0], sizes = [1, 6], strides = [1, 1]} : vector<2x6xf32> to vector<1x6xf32>
    %cst_174 = arith.constant 0.000000e+00 : f32
    %573 = vector.broadcast %cst_174 : f32 to vector<1x6xf32>
    %574 = arith.cmpf ogt, %572, %573 : vector<1x6xf32>
    %575 = vector.shape_cast %574 : vector<1x6xi1> to vector<1x6xi1>
    %576 = vector.broadcast %575 : vector<1x6xi1> to vector<8x6xi1>
    %577 = vector.extract_strided_slice %568 {offsets = [0, 0], sizes = [8, 16], strides = [1, 1]} : vector<8x32xf32> to vector<8x16xf32>
    %578 = vector.extract_strided_slice %570 {offsets = [0, 0], sizes = [6, 16], strides = [1, 1]} : vector<6x32xf32> to vector<6x16xf32>
    %579 = arith.truncf %577 : vector<8x16xf32> to vector<8x16xbf16>
    %580 = arith.truncf %578 : vector<6x16xf32> to vector<6x16xbf16>
    %cst_175 = arith.constant dense<0.000000e+00> : vector<8x6xf32>
    %581 = tpu.matmul %579, %580, %cst_175 {dimension_numbers = #tpu.dot_dimension_numbers<[1], [1], [0], [0], [0, 0, 1, 0], [], []>} : vector<8x16xbf16>, vector<6x16xbf16>, vector<8x6xf32> -> vector<8x6xf32>
    %cst_176 = arith.constant -1.000000e+30 : f32
    %582 = vector.broadcast %cst_176 : f32 to vector<8x6xf32>
    %583 = arith.select %576, %581, %582 : vector<8x6xi1>, vector<8x6xf32>
    %cst_177 = arith.constant dense<0xFF800000> : vector<8xf32>
    %584 = vector.multi_reduction <maximumf>, %583, %cst_177 [1] : vector<8x6xf32> to vector<8xf32>
    %585 = vector.shape_cast %584 : vector<8xf32> to vector<8x1xf32>
    %586 = vector.broadcast %585 : vector<8x1xf32> to vector<8x6xf32>
    %587 = arith.subf %583, %586 : vector<8x6xf32>
    %588 = math.exp %587 : vector<8x6xf32>
    %cst_178 = arith.constant dense<0.000000e+00> : vector<8xf32>
    %589 = vector.multi_reduction <add>, %588, %cst_178 [1] : vector<8x6xf32> to vector<8xf32>
    %590 = vector.shape_cast %589 : vector<8xf32> to vector<8x1xf32>
    %591 = tpu.reciprocal %590 {approx = true} : vector<8x1xf32> -> vector<8x1xf32>
    %592 = vector.broadcast %591 : vector<8x1xf32> to vector<8x6xf32>
    %593 = arith.mulf %588, %592 : vector<8x6xf32>
    %594 = vector.extract_strided_slice %571 {offsets = [0, 0], sizes = [6, 16], strides = [1, 1]} : vector<6x32xf32> to vector<6x16xf32>
    %595 = arith.truncf %593 : vector<8x6xf32> to vector<8x6xbf16>
    %596 = arith.truncf %594 : vector<6x16xf32> to vector<6x16xbf16>
    %cst_179 = arith.constant dense<0.000000e+00> : vector<8x16xf32>
    %597 = tpu.matmul %595, %596, %cst_179 {dimension_numbers = #tpu.dot_dimension_numbers<[1], [0], [0], [1], [0, 0, 1, 1], [], []>} : vector<8x6xbf16>, vector<6x16xbf16>, vector<8x16xf32> -> vector<8x16xf32>
    %598 = vector.extract_strided_slice %568 {offsets = [0, 16], sizes = [8, 16], strides = [1, 1]} : vector<8x32xf32> to vector<8x16xf32>
    %599 = vector.extract_strided_slice %570 {offsets = [0, 16], sizes = [6, 16], strides = [1, 1]} : vector<6x32xf32> to vector<6x16xf32>
    %600 = arith.truncf %598 : vector<8x16xf32> to vector<8x16xbf16>
    %601 = arith.truncf %599 : vector<6x16xf32> to vector<6x16xbf16>
    %cst_180 = arith.constant dense<0.000000e+00> : vector<8x6xf32>
    %602 = tpu.matmul %600, %601, %cst_180 {dimension_numbers = #tpu.dot_dimension_numbers<[1], [1], [0], [0], [0, 0, 1, 0], [], []>} : vector<8x16xbf16>, vector<6x16xbf16>, vector<8x6xf32> -> vector<8x6xf32>
    %cst_181 = arith.constant -1.000000e+30 : f32
    %603 = vector.broadcast %cst_181 : f32 to vector<8x6xf32>
    %604 = arith.select %576, %602, %603 : vector<8x6xi1>, vector<8x6xf32>
    %cst_182 = arith.constant dense<0xFF800000> : vector<8xf32>
    %605 = vector.multi_reduction <maximumf>, %604, %cst_182 [1] : vector<8x6xf32> to vector<8xf32>
    %606 = vector.shape_cast %605 : vector<8xf32> to vector<8x1xf32>
    %607 = vector.broadcast %606 : vector<8x1xf32> to vector<8x6xf32>
    %608 = arith.subf %604, %607 : vector<8x6xf32>
    %609 = math.exp %608 : vector<8x6xf32>
    %cst_183 = arith.constant dense<0.000000e+00> : vector<8xf32>
    %610 = vector.multi_reduction <add>, %609, %cst_183 [1] : vector<8x6xf32> to vector<8xf32>
    %611 = vector.shape_cast %610 : vector<8xf32> to vector<8x1xf32>
    %612 = tpu.reciprocal %611 {approx = true} : vector<8x1xf32> -> vector<8x1xf32>
    %613 = vector.broadcast %612 : vector<8x1xf32> to vector<8x6xf32>
    %614 = arith.mulf %609, %613 : vector<8x6xf32>
    %615 = vector.extract_strided_slice %571 {offsets = [0, 16], sizes = [6, 16], strides = [1, 1]} : vector<6x32xf32> to vector<6x16xf32>
    %616 = arith.truncf %614 : vector<8x6xf32> to vector<8x6xbf16>
    %617 = arith.truncf %615 : vector<6x16xf32> to vector<6x16xbf16>
    %cst_184 = arith.constant dense<0.000000e+00> : vector<8x16xf32>
    %618 = tpu.matmul %616, %617, %cst_184 {dimension_numbers = #tpu.dot_dimension_numbers<[1], [0], [0], [1], [0, 0, 1, 1], [], []>} : vector<8x6xbf16>, vector<6x16xbf16>, vector<8x16xf32> -> vector<8x16xf32>
    %619 = tpu.concatenate %597, %618 in 1 : vector<8x16xf32>, vector<8x16xf32> -> vector<8x32xf32>
    %620 = tpu.concatenate %567, %619 in 0 : vector<8x32xf32>, vector<8x32xf32> -> vector<16x32xf32>
    %c0_185 = arith.constant 0 : index
    %c608_186 = arith.constant 608 : index
    %621 = vector.load %arg10[%c0_185, %c608_186] : memref<32x960xbf16, #tpu.memory_space<vmem>>, vector<32x32xbf16>
    %622 = arith.truncf %620 : vector<16x32xf32> to vector<16x32xbf16>
    %cst_187 = arith.constant dense<0.000000e+00> : vector<16x32xf32>
    %623 = tpu.matmul %622, %621, %cst_187 {dimension_numbers = #tpu.dot_dimension_numbers<[1], [0], [0], [1], [0, 0, 1, 1], [], []>} : vector<16x32xbf16>, vector<32x32xbf16>, vector<16x32xf32> -> vector<16x32xf32>
    %c0_188 = arith.constant 0 : index
    %c896 = arith.constant 896 : index
    %624 = vector.load %arg12[%c0_188, %c896] : memref<1x1696xf32, #tpu.memory_space<vmem>>, vector<1x32xf32>
    %625 = vector.broadcast %624 : vector<1x32xf32> to vector<16x32xf32>
    %626 = arith.addf %623, %625 : vector<16x32xf32>
    %627 = arith.addf %501, %626 : vector<16x32xf32>
    %cst_189 = arith.constant dense<0.000000e+00> : vector<16xf32>
    %628 = vector.multi_reduction <add>, %627, %cst_189 [1] : vector<16x32xf32> to vector<16xf32>
    %629 = vector.shape_cast %628 : vector<16xf32> to vector<16x1xf32>
    %cst_190 = arith.constant 3.200000e+01 : f32
    %630 = vector.broadcast %cst_190 : f32 to vector<16x1xf32>
    %631 = arith.divf %629, %630 : vector<16x1xf32>
    %632 = vector.broadcast %631 : vector<16x1xf32> to vector<16x32xf32>
    %633 = arith.subf %627, %632 : vector<16x32xf32>
    %634 = arith.mulf %633, %633 : vector<16x32xf32>
    %cst_191 = arith.constant dense<0.000000e+00> : vector<16xf32>
    %635 = vector.multi_reduction <add>, %634, %cst_191 [1] : vector<16x32xf32> to vector<16xf32>
    %636 = vector.shape_cast %635 : vector<16xf32> to vector<16x1xf32>
    %cst_192 = arith.constant 3.200000e+01 : f32
    %637 = vector.broadcast %cst_192 : f32 to vector<16x1xf32>
    %638 = arith.divf %636, %637 : vector<16x1xf32>
    %639 = vector.broadcast %631 : vector<16x1xf32> to vector<16x32xf32>
    %640 = arith.subf %627, %639 : vector<16x32xf32>
    %cst_193 = arith.constant 9.99999974E-6 : f32
    %641 = vector.broadcast %cst_193 : f32 to vector<16x1xf32>
    %642 = arith.addf %638, %641 : vector<16x1xf32>
    %643 = math.rsqrt %642 : vector<16x1xf32>
    %644 = vector.broadcast %643 : vector<16x1xf32> to vector<16x32xf32>
    %645 = arith.mulf %640, %644 : vector<16x32xf32>
    %646 = vector.broadcast %502 : vector<1x32xf32> to vector<16x32xf32>
    %647 = arith.mulf %645, %646 : vector<16x32xf32>
    %648 = vector.broadcast %503 : vector<1x32xf32> to vector<16x32xf32>
    %649 = arith.addf %647, %648 : vector<16x32xf32>
    %c0_194 = arith.constant 0 : index
    %c1120 = arith.constant 1120 : index
    %650 = vector.load %arg12[%c0_194, %c1120] : memref<1x1696xf32, #tpu.memory_space<vmem>>, vector<1x32xf32>
    %c0_195 = arith.constant 0 : index
    %c1152 = arith.constant 1152 : index
    %651 = vector.load %arg12[%c0_195, %c1152] : memref<1x1696xf32, #tpu.memory_space<vmem>>, vector<1x32xf32>
    %c0_196 = arith.constant 0 : index
    %c640_197 = arith.constant 640 : index
    %652 = vector.load %arg10[%c0_196, %c640_197] : memref<32x960xbf16, #tpu.memory_space<vmem>>, vector<32x32xbf16>
    %653 = arith.truncf %649 : vector<16x32xf32> to vector<16x32xbf16>
    %cst_198 = arith.constant dense<0.000000e+00> : vector<16x32xf32>
    %654 = tpu.matmul %653, %652, %cst_198 {dimension_numbers = #tpu.dot_dimension_numbers<[1], [0], [0], [1], [0, 0, 1, 1], [], []>} : vector<16x32xbf16>, vector<32x32xbf16>, vector<16x32xf32> -> vector<16x32xf32>
    %c0_199 = arith.constant 0 : index
    %c992 = arith.constant 992 : index
    %655 = vector.load %arg12[%c0_199, %c992] : memref<1x1696xf32, #tpu.memory_space<vmem>>, vector<1x32xf32>
    %656 = vector.broadcast %655 : vector<1x32xf32> to vector<16x32xf32>
    %657 = arith.addf %654, %656 : vector<16x32xf32>
    %c0_200 = arith.constant 0 : index
    %c672 = arith.constant 672 : index
    %658 = vector.load %arg10[%c0_200, %c672] : memref<32x960xbf16, #tpu.memory_space<vmem>>, vector<32x64xbf16>
    %659 = arith.truncf %203 : vector<16x32xf32> to vector<16x32xbf16>
    %cst_201 = arith.constant dense<0.000000e+00> : vector<16x64xf32>
    %660 = tpu.matmul %659, %658, %cst_201 {dimension_numbers = #tpu.dot_dimension_numbers<[1], [0], [0], [1], [0, 0, 1, 1], [], []>} : vector<16x32xbf16>, vector<32x64xbf16>, vector<16x64xf32> -> vector<16x64xf32>
    %c0_202 = arith.constant 0 : index
    %c1024 = arith.constant 1024 : index
    %661 = vector.load %arg12[%c0_202, %c1024] : memref<1x1696xf32, #tpu.memory_space<vmem>>, vector<1x64xf32>
    %662 = vector.broadcast %661 : vector<1x64xf32> to vector<16x64xf32>
    %663 = arith.addf %660, %662 : vector<16x64xf32>
    %664 = vector.extract_strided_slice %657 {offsets = [0, 0], sizes = [8, 32], strides = [1, 1]} : vector<16x32xf32> to vector<8x32xf32>
    %665 = vector.extract_strided_slice %663 {offsets = [0, 0], sizes = [8, 64], strides = [1, 1]} : vector<16x64xf32> to vector<8x64xf32>
    %666 = vector.extract_strided_slice %665 {offsets = [0, 0], sizes = [8, 32], strides = [1, 1]} : vector<8x64xf32> to vector<8x32xf32>
    %667 = vector.extract_strided_slice %665 {offsets = [0, 32], sizes = [8, 32], strides = [1, 1]} : vector<8x64xf32> to vector<8x32xf32>
    %668 = vector.extract_strided_slice %3 {offsets = [0, 0], sizes = [1, 8], strides = [1, 1]} : vector<2x8xf32> to vector<1x8xf32>
    %cst_203 = arith.constant 0.000000e+00 : f32
    %669 = vector.broadcast %cst_203 : f32 to vector<1x8xf32>
    %670 = arith.cmpf ogt, %668, %669 : vector<1x8xf32>
    %671 = vector.shape_cast %670 : vector<1x8xi1> to vector<1x8xi1>
    %672 = vector.broadcast %671 : vector<1x8xi1> to vector<8x8xi1>
    %673 = vector.extract_strided_slice %664 {offsets = [0, 0], sizes = [8, 16], strides = [1, 1]} : vector<8x32xf32> to vector<8x16xf32>
    %674 = vector.extract_strided_slice %666 {offsets = [0, 0], sizes = [8, 16], strides = [1, 1]} : vector<8x32xf32> to vector<8x16xf32>
    %675 = arith.truncf %673 : vector<8x16xf32> to vector<8x16xbf16>
    %676 = arith.truncf %674 : vector<8x16xf32> to vector<8x16xbf16>
    %cst_204 = arith.constant dense<0.000000e+00> : vector<8x8xf32>
    %677 = tpu.matmul %675, %676, %cst_204 {dimension_numbers = #tpu.dot_dimension_numbers<[1], [1], [0], [0], [0, 0, 1, 0], [], []>} : vector<8x16xbf16>, vector<8x16xbf16>, vector<8x8xf32> -> vector<8x8xf32>
    %cst_205 = arith.constant -1.000000e+30 : f32
    %678 = vector.broadcast %cst_205 : f32 to vector<8x8xf32>
    %679 = arith.select %672, %677, %678 : vector<8x8xi1>, vector<8x8xf32>
    %cst_206 = arith.constant dense<0xFF800000> : vector<8xf32>
    %680 = vector.multi_reduction <maximumf>, %679, %cst_206 [1] : vector<8x8xf32> to vector<8xf32>
    %681 = vector.shape_cast %680 : vector<8xf32> to vector<8x1xf32>
    %682 = vector.broadcast %681 : vector<8x1xf32> to vector<8x8xf32>
    %683 = arith.subf %679, %682 : vector<8x8xf32>
    %684 = math.exp %683 : vector<8x8xf32>
    %cst_207 = arith.constant dense<0.000000e+00> : vector<8xf32>
    %685 = vector.multi_reduction <add>, %684, %cst_207 [1] : vector<8x8xf32> to vector<8xf32>
    %686 = vector.shape_cast %685 : vector<8xf32> to vector<8x1xf32>
    %687 = tpu.reciprocal %686 {approx = true} : vector<8x1xf32> -> vector<8x1xf32>
    %688 = vector.broadcast %687 : vector<8x1xf32> to vector<8x8xf32>
    %689 = arith.mulf %684, %688 : vector<8x8xf32>
    %690 = vector.extract_strided_slice %667 {offsets = [0, 0], sizes = [8, 16], strides = [1, 1]} : vector<8x32xf32> to vector<8x16xf32>
    %691 = arith.truncf %689 : vector<8x8xf32> to vector<8x8xbf16>
    %692 = arith.truncf %690 : vector<8x16xf32> to vector<8x16xbf16>
    %cst_208 = arith.constant dense<0.000000e+00> : vector<8x16xf32>
    %693 = tpu.matmul %691, %692, %cst_208 {dimension_numbers = #tpu.dot_dimension_numbers<[1], [0], [0], [1], [0, 0, 1, 1], [], []>} : vector<8x8xbf16>, vector<8x16xbf16>, vector<8x16xf32> -> vector<8x16xf32>
    %694 = vector.extract_strided_slice %664 {offsets = [0, 16], sizes = [8, 16], strides = [1, 1]} : vector<8x32xf32> to vector<8x16xf32>
    %695 = vector.extract_strided_slice %666 {offsets = [0, 16], sizes = [8, 16], strides = [1, 1]} : vector<8x32xf32> to vector<8x16xf32>
    %696 = arith.truncf %694 : vector<8x16xf32> to vector<8x16xbf16>
    %697 = arith.truncf %695 : vector<8x16xf32> to vector<8x16xbf16>
    %cst_209 = arith.constant dense<0.000000e+00> : vector<8x8xf32>
    %698 = tpu.matmul %696, %697, %cst_209 {dimension_numbers = #tpu.dot_dimension_numbers<[1], [1], [0], [0], [0, 0, 1, 0], [], []>} : vector<8x16xbf16>, vector<8x16xbf16>, vector<8x8xf32> -> vector<8x8xf32>
    %cst_210 = arith.constant -1.000000e+30 : f32
    %699 = vector.broadcast %cst_210 : f32 to vector<8x8xf32>
    %700 = arith.select %672, %698, %699 : vector<8x8xi1>, vector<8x8xf32>
    %cst_211 = arith.constant dense<0xFF800000> : vector<8xf32>
    %701 = vector.multi_reduction <maximumf>, %700, %cst_211 [1] : vector<8x8xf32> to vector<8xf32>
    %702 = vector.shape_cast %701 : vector<8xf32> to vector<8x1xf32>
    %703 = vector.broadcast %702 : vector<8x1xf32> to vector<8x8xf32>
    %704 = arith.subf %700, %703 : vector<8x8xf32>
    %705 = math.exp %704 : vector<8x8xf32>
    %cst_212 = arith.constant dense<0.000000e+00> : vector<8xf32>
    %706 = vector.multi_reduction <add>, %705, %cst_212 [1] : vector<8x8xf32> to vector<8xf32>
    %707 = vector.shape_cast %706 : vector<8xf32> to vector<8x1xf32>
    %708 = tpu.reciprocal %707 {approx = true} : vector<8x1xf32> -> vector<8x1xf32>
    %709 = vector.broadcast %708 : vector<8x1xf32> to vector<8x8xf32>
    %710 = arith.mulf %705, %709 : vector<8x8xf32>
    %711 = vector.extract_strided_slice %667 {offsets = [0, 16], sizes = [8, 16], strides = [1, 1]} : vector<8x32xf32> to vector<8x16xf32>
    %712 = arith.truncf %710 : vector<8x8xf32> to vector<8x8xbf16>
    %713 = arith.truncf %711 : vector<8x16xf32> to vector<8x16xbf16>
    %cst_213 = arith.constant dense<0.000000e+00> : vector<8x16xf32>
    %714 = tpu.matmul %712, %713, %cst_213 {dimension_numbers = #tpu.dot_dimension_numbers<[1], [0], [0], [1], [0, 0, 1, 1], [], []>} : vector<8x8xbf16>, vector<8x16xbf16>, vector<8x16xf32> -> vector<8x16xf32>
    %715 = tpu.concatenate %693, %714 in 1 : vector<8x16xf32>, vector<8x16xf32> -> vector<8x32xf32>
    %716 = vector.extract_strided_slice %657 {offsets = [8, 0], sizes = [8, 32], strides = [1, 1]} : vector<16x32xf32> to vector<8x32xf32>
    %717 = vector.extract_strided_slice %663 {offsets = [8, 0], sizes = [8, 64], strides = [1, 1]} : vector<16x64xf32> to vector<8x64xf32>
    %718 = vector.extract_strided_slice %717 {offsets = [0, 0], sizes = [8, 32], strides = [1, 1]} : vector<8x64xf32> to vector<8x32xf32>
    %719 = vector.extract_strided_slice %717 {offsets = [0, 32], sizes = [8, 32], strides = [1, 1]} : vector<8x64xf32> to vector<8x32xf32>
    %720 = vector.extract_strided_slice %3 {offsets = [1, 0], sizes = [1, 8], strides = [1, 1]} : vector<2x8xf32> to vector<1x8xf32>
    %cst_214 = arith.constant 0.000000e+00 : f32
    %721 = vector.broadcast %cst_214 : f32 to vector<1x8xf32>
    %722 = arith.cmpf ogt, %720, %721 : vector<1x8xf32>
    %723 = vector.shape_cast %722 : vector<1x8xi1> to vector<1x8xi1>
    %724 = vector.broadcast %723 : vector<1x8xi1> to vector<8x8xi1>
    %725 = vector.extract_strided_slice %716 {offsets = [0, 0], sizes = [8, 16], strides = [1, 1]} : vector<8x32xf32> to vector<8x16xf32>
    %726 = vector.extract_strided_slice %718 {offsets = [0, 0], sizes = [8, 16], strides = [1, 1]} : vector<8x32xf32> to vector<8x16xf32>
    %727 = arith.truncf %725 : vector<8x16xf32> to vector<8x16xbf16>
    %728 = arith.truncf %726 : vector<8x16xf32> to vector<8x16xbf16>
    %cst_215 = arith.constant dense<0.000000e+00> : vector<8x8xf32>
    %729 = tpu.matmul %727, %728, %cst_215 {dimension_numbers = #tpu.dot_dimension_numbers<[1], [1], [0], [0], [0, 0, 1, 0], [], []>} : vector<8x16xbf16>, vector<8x16xbf16>, vector<8x8xf32> -> vector<8x8xf32>
    %cst_216 = arith.constant -1.000000e+30 : f32
    %730 = vector.broadcast %cst_216 : f32 to vector<8x8xf32>
    %731 = arith.select %724, %729, %730 : vector<8x8xi1>, vector<8x8xf32>
    %cst_217 = arith.constant dense<0xFF800000> : vector<8xf32>
    %732 = vector.multi_reduction <maximumf>, %731, %cst_217 [1] : vector<8x8xf32> to vector<8xf32>
    %733 = vector.shape_cast %732 : vector<8xf32> to vector<8x1xf32>
    %734 = vector.broadcast %733 : vector<8x1xf32> to vector<8x8xf32>
    %735 = arith.subf %731, %734 : vector<8x8xf32>
    %736 = math.exp %735 : vector<8x8xf32>
    %cst_218 = arith.constant dense<0.000000e+00> : vector<8xf32>
    %737 = vector.multi_reduction <add>, %736, %cst_218 [1] : vector<8x8xf32> to vector<8xf32>
    %738 = vector.shape_cast %737 : vector<8xf32> to vector<8x1xf32>
    %739 = tpu.reciprocal %738 {approx = true} : vector<8x1xf32> -> vector<8x1xf32>
    %740 = vector.broadcast %739 : vector<8x1xf32> to vector<8x8xf32>
    %741 = arith.mulf %736, %740 : vector<8x8xf32>
    %742 = vector.extract_strided_slice %719 {offsets = [0, 0], sizes = [8, 16], strides = [1, 1]} : vector<8x32xf32> to vector<8x16xf32>
    %743 = arith.truncf %741 : vector<8x8xf32> to vector<8x8xbf16>
    %744 = arith.truncf %742 : vector<8x16xf32> to vector<8x16xbf16>
    %cst_219 = arith.constant dense<0.000000e+00> : vector<8x16xf32>
    %745 = tpu.matmul %743, %744, %cst_219 {dimension_numbers = #tpu.dot_dimension_numbers<[1], [0], [0], [1], [0, 0, 1, 1], [], []>} : vector<8x8xbf16>, vector<8x16xbf16>, vector<8x16xf32> -> vector<8x16xf32>
    %746 = vector.extract_strided_slice %716 {offsets = [0, 16], sizes = [8, 16], strides = [1, 1]} : vector<8x32xf32> to vector<8x16xf32>
    %747 = vector.extract_strided_slice %718 {offsets = [0, 16], sizes = [8, 16], strides = [1, 1]} : vector<8x32xf32> to vector<8x16xf32>
    %748 = arith.truncf %746 : vector<8x16xf32> to vector<8x16xbf16>
    %749 = arith.truncf %747 : vector<8x16xf32> to vector<8x16xbf16>
    %cst_220 = arith.constant dense<0.000000e+00> : vector<8x8xf32>
    %750 = tpu.matmul %748, %749, %cst_220 {dimension_numbers = #tpu.dot_dimension_numbers<[1], [1], [0], [0], [0, 0, 1, 0], [], []>} : vector<8x16xbf16>, vector<8x16xbf16>, vector<8x8xf32> -> vector<8x8xf32>
    %cst_221 = arith.constant -1.000000e+30 : f32
    %751 = vector.broadcast %cst_221 : f32 to vector<8x8xf32>
    %752 = arith.select %724, %750, %751 : vector<8x8xi1>, vector<8x8xf32>
    %cst_222 = arith.constant dense<0xFF800000> : vector<8xf32>
    %753 = vector.multi_reduction <maximumf>, %752, %cst_222 [1] : vector<8x8xf32> to vector<8xf32>
    %754 = vector.shape_cast %753 : vector<8xf32> to vector<8x1xf32>
    %755 = vector.broadcast %754 : vector<8x1xf32> to vector<8x8xf32>
    %756 = arith.subf %752, %755 : vector<8x8xf32>
    %757 = math.exp %756 : vector<8x8xf32>
    %cst_223 = arith.constant dense<0.000000e+00> : vector<8xf32>
    %758 = vector.multi_reduction <add>, %757, %cst_223 [1] : vector<8x8xf32> to vector<8xf32>
    %759 = vector.shape_cast %758 : vector<8xf32> to vector<8x1xf32>
    %760 = tpu.reciprocal %759 {approx = true} : vector<8x1xf32> -> vector<8x1xf32>
    %761 = vector.broadcast %760 : vector<8x1xf32> to vector<8x8xf32>
    %762 = arith.mulf %757, %761 : vector<8x8xf32>
    %763 = vector.extract_strided_slice %719 {offsets = [0, 16], sizes = [8, 16], strides = [1, 1]} : vector<8x32xf32> to vector<8x16xf32>
    %764 = arith.truncf %762 : vector<8x8xf32> to vector<8x8xbf16>
    %765 = arith.truncf %763 : vector<8x16xf32> to vector<8x16xbf16>
    %cst_224 = arith.constant dense<0.000000e+00> : vector<8x16xf32>
    %766 = tpu.matmul %764, %765, %cst_224 {dimension_numbers = #tpu.dot_dimension_numbers<[1], [0], [0], [1], [0, 0, 1, 1], [], []>} : vector<8x8xbf16>, vector<8x16xbf16>, vector<8x16xf32> -> vector<8x16xf32>
    %767 = tpu.concatenate %745, %766 in 1 : vector<8x16xf32>, vector<8x16xf32> -> vector<8x32xf32>
    %768 = tpu.concatenate %715, %767 in 0 : vector<8x32xf32>, vector<8x32xf32> -> vector<16x32xf32>
    %c0_225 = arith.constant 0 : index
    %c736_226 = arith.constant 736 : index
    %769 = vector.load %arg10[%c0_225, %c736_226] : memref<32x960xbf16, #tpu.memory_space<vmem>>, vector<32x32xbf16>
    %770 = arith.truncf %768 : vector<16x32xf32> to vector<16x32xbf16>
    %cst_227 = arith.constant dense<0.000000e+00> : vector<16x32xf32>
    %771 = tpu.matmul %770, %769, %cst_227 {dimension_numbers = #tpu.dot_dimension_numbers<[1], [0], [0], [1], [0, 0, 1, 1], [], []>} : vector<16x32xbf16>, vector<32x32xbf16>, vector<16x32xf32> -> vector<16x32xf32>
    %c0_228 = arith.constant 0 : index
    %c1088 = arith.constant 1088 : index
    %772 = vector.load %arg12[%c0_228, %c1088] : memref<1x1696xf32, #tpu.memory_space<vmem>>, vector<1x32xf32>
    %773 = vector.broadcast %772 : vector<1x32xf32> to vector<16x32xf32>
    %774 = arith.addf %771, %773 : vector<16x32xf32>
    %775 = arith.addf %649, %774 : vector<16x32xf32>
    %cst_229 = arith.constant dense<0.000000e+00> : vector<16xf32>
    %776 = vector.multi_reduction <add>, %775, %cst_229 [1] : vector<16x32xf32> to vector<16xf32>
    %777 = vector.shape_cast %776 : vector<16xf32> to vector<16x1xf32>
    %cst_230 = arith.constant 3.200000e+01 : f32
    %778 = vector.broadcast %cst_230 : f32 to vector<16x1xf32>
    %779 = arith.divf %777, %778 : vector<16x1xf32>
    %780 = vector.broadcast %779 : vector<16x1xf32> to vector<16x32xf32>
    %781 = arith.subf %775, %780 : vector<16x32xf32>
    %782 = arith.mulf %781, %781 : vector<16x32xf32>
    %cst_231 = arith.constant dense<0.000000e+00> : vector<16xf32>
    %783 = vector.multi_reduction <add>, %782, %cst_231 [1] : vector<16x32xf32> to vector<16xf32>
    %784 = vector.shape_cast %783 : vector<16xf32> to vector<16x1xf32>
    %cst_232 = arith.constant 3.200000e+01 : f32
    %785 = vector.broadcast %cst_232 : f32 to vector<16x1xf32>
    %786 = arith.divf %784, %785 : vector<16x1xf32>
    %787 = vector.broadcast %779 : vector<16x1xf32> to vector<16x32xf32>
    %788 = arith.subf %775, %787 : vector<16x32xf32>
    %cst_233 = arith.constant 9.99999974E-6 : f32
    %789 = vector.broadcast %cst_233 : f32 to vector<16x1xf32>
    %790 = arith.addf %786, %789 : vector<16x1xf32>
    %791 = math.rsqrt %790 : vector<16x1xf32>
    %792 = vector.broadcast %791 : vector<16x1xf32> to vector<16x32xf32>
    %793 = arith.mulf %788, %792 : vector<16x32xf32>
    %794 = vector.broadcast %650 : vector<1x32xf32> to vector<16x32xf32>
    %795 = arith.mulf %793, %794 : vector<16x32xf32>
    %796 = vector.broadcast %651 : vector<1x32xf32> to vector<16x32xf32>
    %797 = arith.addf %795, %796 : vector<16x32xf32>
    %c0_234 = arith.constant 0 : index
    %c768_235 = arith.constant 768 : index
    %798 = vector.load %arg10[%c0_234, %c768_235] : memref<32x960xbf16, #tpu.memory_space<vmem>>, vector<32x64xbf16>
    %799 = arith.truncf %797 : vector<16x32xf32> to vector<16x32xbf16>
    %cst_236 = arith.constant dense<0.000000e+00> : vector<16x64xf32>
    %800 = tpu.matmul %799, %798, %cst_236 {dimension_numbers = #tpu.dot_dimension_numbers<[1], [0], [0], [1], [0, 0, 1, 1], [], []>} : vector<16x32xbf16>, vector<32x64xbf16>, vector<16x64xf32> -> vector<16x64xf32>
    %c0_237 = arith.constant 0 : index
    %c1184 = arith.constant 1184 : index
    %801 = vector.load %arg12[%c0_237, %c1184] : memref<1x1696xf32, #tpu.memory_space<vmem>>, vector<1x64xf32>
    %802 = vector.broadcast %801 : vector<1x64xf32> to vector<16x64xf32>
    %803 = arith.addf %800, %802 : vector<16x64xf32>
    %cst_238 = arith.constant 0.000000e+00 : f32
    %804 = vector.broadcast %cst_238 : f32 to vector<16x64xf32>
    %805 = arith.maximumf %803, %804 : vector<16x64xf32>
    %c0_239 = arith.constant 0 : index
    %c32 = arith.constant 32 : index
    %806 = vector.load %arg11[%c0_239, %c32] : memref<64x160xbf16, #tpu.memory_space<vmem>>, vector<64x32xbf16>
    %807 = arith.truncf %805 : vector<16x64xf32> to vector<16x64xbf16>
    %cst_240 = arith.constant dense<0.000000e+00> : vector<16x32xf32>
    %808 = tpu.matmul %807, %806, %cst_240 {dimension_numbers = #tpu.dot_dimension_numbers<[1], [0], [0], [1], [0, 0, 1, 1], [], []>} : vector<16x64xbf16>, vector<64x32xbf16>, vector<16x32xf32> -> vector<16x32xf32>
    %c0_241 = arith.constant 0 : index
    %c1248 = arith.constant 1248 : index
    %809 = vector.load %arg12[%c0_241, %c1248] : memref<1x1696xf32, #tpu.memory_space<vmem>>, vector<1x32xf32>
    %810 = vector.broadcast %809 : vector<1x32xf32> to vector<16x32xf32>
    %811 = arith.addf %808, %810 : vector<16x32xf32>
    %812 = arith.addf %797, %811 : vector<16x32xf32>
    %c0_242 = arith.constant 0 : index
    %c1280 = arith.constant 1280 : index
    %813 = vector.load %arg12[%c0_242, %c1280] : memref<1x1696xf32, #tpu.memory_space<vmem>>, vector<1x32xf32>
    %c0_243 = arith.constant 0 : index
    %c1312 = arith.constant 1312 : index
    %814 = vector.load %arg12[%c0_243, %c1312] : memref<1x1696xf32, #tpu.memory_space<vmem>>, vector<1x32xf32>
    %cst_244 = arith.constant dense<0.000000e+00> : vector<16xf32>
    %815 = vector.multi_reduction <add>, %812, %cst_244 [1] : vector<16x32xf32> to vector<16xf32>
    %816 = vector.shape_cast %815 : vector<16xf32> to vector<16x1xf32>
    %cst_245 = arith.constant 3.200000e+01 : f32
    %817 = vector.broadcast %cst_245 : f32 to vector<16x1xf32>
    %818 = arith.divf %816, %817 : vector<16x1xf32>
    %819 = vector.broadcast %818 : vector<16x1xf32> to vector<16x32xf32>
    %820 = arith.subf %812, %819 : vector<16x32xf32>
    %821 = arith.mulf %820, %820 : vector<16x32xf32>
    %cst_246 = arith.constant dense<0.000000e+00> : vector<16xf32>
    %822 = vector.multi_reduction <add>, %821, %cst_246 [1] : vector<16x32xf32> to vector<16xf32>
    %823 = vector.shape_cast %822 : vector<16xf32> to vector<16x1xf32>
    %cst_247 = arith.constant 3.200000e+01 : f32
    %824 = vector.broadcast %cst_247 : f32 to vector<16x1xf32>
    %825 = arith.divf %823, %824 : vector<16x1xf32>
    %826 = vector.broadcast %818 : vector<16x1xf32> to vector<16x32xf32>
    %827 = arith.subf %812, %826 : vector<16x32xf32>
    %cst_248 = arith.constant 9.99999974E-6 : f32
    %828 = vector.broadcast %cst_248 : f32 to vector<16x1xf32>
    %829 = arith.addf %825, %828 : vector<16x1xf32>
    %830 = math.rsqrt %829 : vector<16x1xf32>
    %831 = vector.broadcast %830 : vector<16x1xf32> to vector<16x32xf32>
    %832 = arith.mulf %827, %831 : vector<16x32xf32>
    %833 = vector.broadcast %813 : vector<1x32xf32> to vector<16x32xf32>
    %834 = arith.mulf %832, %833 : vector<16x32xf32>
    %835 = vector.broadcast %814 : vector<1x32xf32> to vector<16x32xf32>
    %836 = arith.addf %834, %835 : vector<16x32xf32>
    %c0_249 = arith.constant 0 : index
    %c0_250 = arith.constant 0 : index
    %837 = vector.load %arg9[%c0_249, %c0_250] : memref<2x64xf32, #tpu.memory_space<vmem>>, vector<2x64xf32>
    %c0_251 = arith.constant 0 : index
    %c64 = arith.constant 64 : index
    %838 = vector.load %arg11[%c0_251, %c64] : memref<64x160xbf16, #tpu.memory_space<vmem>>, vector<64x64xbf16>
    %839 = arith.truncf %837 : vector<2x64xf32> to vector<2x64xbf16>
    %cst_252 = arith.constant dense<0.000000e+00> : vector<2x64xf32>
    %840 = tpu.matmul %839, %838, %cst_252 {dimension_numbers = #tpu.dot_dimension_numbers<[1], [0], [0], [1], [0, 0, 1, 1], [], []>} : vector<2x64xbf16>, vector<64x64xbf16>, vector<2x64xf32> -> vector<2x64xf32>
    %c0_253 = arith.constant 0 : index
    %c1344 = arith.constant 1344 : index
    %841 = vector.load %arg12[%c0_253, %c1344] : memref<1x1696xf32, #tpu.memory_space<vmem>>, vector<1x64xf32>
    %842 = vector.broadcast %841 : vector<1x64xf32> to vector<2x64xf32>
    %843 = arith.addf %840, %842 : vector<2x64xf32>
    %c0_254 = arith.constant 0 : index
    %c128_255 = arith.constant 128 : index
    %844 = vector.load %arg11[%c0_254, %c128_255] : memref<64x160xbf16, #tpu.memory_space<vmem>>, vector<64x32xbf16>
    %845 = arith.truncf %843 : vector<2x64xf32> to vector<2x64xbf16>
    %cst_256 = arith.constant dense<0.000000e+00> : vector<2x32xf32>
    %846 = tpu.matmul %845, %844, %cst_256 {dimension_numbers = #tpu.dot_dimension_numbers<[1], [0], [0], [1], [0, 0, 1, 1], [], []>} : vector<2x64xbf16>, vector<64x32xbf16>, vector<2x32xf32> -> vector<2x32xf32>
    %c0_257 = arith.constant 0 : index
    %c1408 = arith.constant 1408 : index
    %847 = vector.load %arg12[%c0_257, %c1408] : memref<1x1696xf32, #tpu.memory_space<vmem>>, vector<1x32xf32>
    %848 = vector.broadcast %847 : vector<1x32xf32> to vector<2x32xf32>
    %849 = arith.addf %846, %848 : vector<2x32xf32>
    %c0_258 = arith.constant 0 : index
    %c0_259 = arith.constant 0 : index
    %850 = vector.load %arg13[%c0_258, %c0_259] : memref<32x256xbf16, #tpu.memory_space<vmem>>, vector<32x256xbf16>
    %851 = arith.truncf %836 : vector<16x32xf32> to vector<16x32xbf16>
    %cst_260 = arith.constant dense<0.000000e+00> : vector<16x256xf32>
    %852 = tpu.matmul %851, %850, %cst_260 {dimension_numbers = #tpu.dot_dimension_numbers<[1], [0], [0], [1], [0, 0, 1, 1], [], []>} : vector<16x32xbf16>, vector<32x256xbf16>, vector<16x256xf32> -> vector<16x256xf32>
    %853 = vector.extract_strided_slice %852 {offsets = [0, 0], sizes = [16, 128], strides = [1, 1]} : vector<16x256xf32> to vector<16x128xf32>
    %854 = vector.extract_strided_slice %852 {offsets = [0, 128], sizes = [16, 32], strides = [1, 1]} : vector<16x256xf32> to vector<16x32xf32>
    %855 = vector.extract_strided_slice %849 {offsets = [0, 0], sizes = [1, 32], strides = [1, 1]} : vector<2x32xf32> to vector<1x32xf32>
    %856 = vector.shape_cast %855 : vector<1x32xf32> to vector<1x32xf32>
    %857 = vector.broadcast %856 : vector<1x32xf32> to vector<8x32xf32>
    %858 = vector.extract_strided_slice %849 {offsets = [1, 0], sizes = [1, 32], strides = [1, 1]} : vector<2x32xf32> to vector<1x32xf32>
    %859 = vector.shape_cast %858 : vector<1x32xf32> to vector<1x32xf32>
    %860 = vector.broadcast %859 : vector<1x32xf32> to vector<8x32xf32>
    %861 = tpu.concatenate %857, %860 in 0 : vector<8x32xf32>, vector<8x32xf32> -> vector<16x32xf32>
    %862 = arith.addf %854, %861 : vector<16x32xf32>
    %c0_261 = arith.constant 0 : index
    %c832_262 = arith.constant 832 : index
    %863 = vector.load %arg10[%c0_261, %c832_262] : memref<32x960xbf16, #tpu.memory_space<vmem>>, vector<32x128xbf16>
    %864 = arith.truncf %862 : vector<16x32xf32> to vector<16x32xbf16>
    %cst_263 = arith.constant dense<0.000000e+00> : vector<16x128xf32>
    %865 = tpu.matmul %864, %863, %cst_263 {dimension_numbers = #tpu.dot_dimension_numbers<[1], [0], [0], [1], [0, 0, 1, 1], [], []>} : vector<16x32xbf16>, vector<32x128xbf16>, vector<16x128xf32> -> vector<16x128xf32>
    %c0_264 = arith.constant 0 : index
    %c1440 = arith.constant 1440 : index
    %866 = vector.load %arg12[%c0_264, %c1440] : memref<1x1696xf32, #tpu.memory_space<vmem>>, vector<1x128xf32>
    %867 = vector.broadcast %866 : vector<1x128xf32> to vector<16x128xf32>
    %868 = arith.addf %865, %867 : vector<16x128xf32>
    %c0_265 = arith.constant 0 : index
    %c1568 = arith.constant 1568 : index
    %869 = vector.load %arg12[%c0_265, %c1568] : memref<1x1696xf32, #tpu.memory_space<vmem>>, vector<1x128xf32>
    %870 = vector.broadcast %869 : vector<1x128xf32> to vector<16x128xf32>
    %871 = arith.mulf %868, %870 : vector<16x128xf32>
    %c0_266 = arith.constant 0 : index
    %c0_267 = arith.constant 0 : index
    %872 = vector.load %arg14[%c0_266, %c0_267] : memref<16x128xf32, #tpu.memory_space<vmem>>, vector<16x128xf32>
    tpu.vector_store %arg14[%c0_266, %c0_267], %853 {strides = array<i32>} : memref<16x128xf32, #tpu.memory_space<vmem>>, vector<16x128xf32>,
    %873 = arith.addf %853, %871 : vector<16x128xf32>
    %c0_268 = arith.constant 0 : index
    %c0_269 = arith.constant 0 : index
    %874 = vector.load %arg15[%c0_268, %c0_269] : memref<16x128xf32, #tpu.memory_space<vmem>>, vector<16x128xf32>
    tpu.vector_store %arg15[%c0_268, %c0_269], %873 {strides = array<i32>} : memref<16x128xf32, #tpu.memory_space<vmem>>, vector<16x128xf32>,
    return
  }
  func.func @transform_0(%arg0: i32) -> (i32, i32) {
    %c0_i32 = arith.constant 0 : i32
    %c0_i32_0 = arith.constant 0 : i32
    %c0_i32_1 = arith.constant 0 : i32
    return %c0_i32, %c0_i32_0 : i32, i32
  }
  func.func @transform_1(%arg0: i32) -> (i32, i32) {
    %c0_i32 = arith.constant 0 : i32
    %c0_i32_0 = arith.constant 0 : i32
    %c0_i32_1 = arith.constant 0 : i32
    return %c0_i32, %c0_i32_0 : i32, i32
  }
  func.func @transform_2(%arg0: i32) -> (i32, i32) {
    %c0_i32 = arith.constant 0 : i32
    %c0_i32_0 = arith.constant 0 : i32
    %c0_i32_1 = arith.constant 0 : i32
    return %c0_i32, %c0_i32_0 : i32, i32
  }
  func.func @transform_3(%arg0: i32) -> (i32, i32) {
    %c0_i32 = arith.constant 0 : i32
    %c0_i32_0 = arith.constant 0 : i32
    %c0_i32_1 = arith.constant 0 : i32
    return %c0_i32, %c0_i32_0 : i32, i32
  }
  func.func @transform_4(%arg0: i32) -> (i32, i32) {
    %c0_i32 = arith.constant 0 : i32
    %c0_i32_0 = arith.constant 0 : i32
    %c0_i32_1 = arith.constant 0 : i32
    return %c0_i32, %c0_i32_0 : i32, i32
  }
  func.func @transform_5(%arg0: i32) -> (i32, i32) {
    %c0_i32 = arith.constant 0 : i32
    %c0_i32_0 = arith.constant 0 : i32
    %c0_i32_1 = arith.constant 0 : i32
    return %c0_i32, %c0_i32_0 : i32, i32
  }
  func.func @transform_6(%arg0: i32) -> (i32, i32) {
    %c0_i32 = arith.constant 0 : i32
    %c0_i32_0 = arith.constant 0 : i32
    %c0_i32_1 = arith.constant 0 : i32
    return %c0_i32, %c0_i32_0 : i32, i32
  }
  func.func @transform_7(%arg0: i32) -> (i32, i32) {
    %c0_i32 = arith.constant 0 : i32
    %c0_i32_0 = arith.constant 0 : i32
    %c0_i32_1 = arith.constant 0 : i32
    return %c0_i32, %c0_i32_0 : i32, i32
  }
  func.func @transform_8(%arg0: i32) -> (i32, i32) {
    %c0_i32 = arith.constant 0 : i32
    %c0_i32_0 = arith.constant 0 : i32
    %c0_i32_1 = arith.constant 0 : i32
    return %c0_i32, %c0_i32_0 : i32, i32
  }
  func.func @transform_9(%arg0: i32) -> (i32, i32) {
    %c0_i32 = arith.constant 0 : i32
    %c0_i32_0 = arith.constant 0 : i32
    %c0_i32_1 = arith.constant 0 : i32
    return %c0_i32, %c0_i32_0 : i32, i32
  }
  func.func @transform_10(%arg0: i32) -> (i32, i32) {
    %c0_i32 = arith.constant 0 : i32
    %c0_i32_0 = arith.constant 0 : i32
    %c0_i32_1 = arith.constant 0 : i32
    return %c0_i32, %c0_i32_0 : i32, i32
  }
  func.func @transform_11(%arg0: i32) -> (i32, i32) {
    %c0_i32 = arith.constant 0 : i32
    %c0_i32_0 = arith.constant 0 : i32
    %c0_i32_1 = arith.constant 0 : i32
    return %c0_i32, %c0_i32_0 : i32, i32
  }
  func.func @transform_12(%arg0: i32) -> (i32, i32) {
    %c0_i32 = arith.constant 0 : i32
    %c0_i32_0 = arith.constant 0 : i32
    %c0_i32_1 = arith.constant 0 : i32
    return %c0_i32, %c0_i32_0 : i32, i32
  }
  func.func @transform_13(%arg0: i32) -> (i32, i32) {
    %c0_i32 = arith.constant 0 : i32
    %c0_i32_0 = arith.constant 0 : i32
    %c0_i32_1 = arith.constant 0 : i32
    return %c0_i32, %c0_i32_0 : i32, i32
  }
  func.func @transform_14(%arg0: i32) -> (i32, i32) {
    %c0_i32 = arith.constant 0 : i32
    %c0_i32_0 = arith.constant 0 : i32
    %c0_i32_1 = arith.constant 0 : i32
    return %c0_i32, %c0_i32_0 : i32, i32
  }
}

</mosaic_0001>

<llo_original>
// kernel: forward.2
$region0: #{forward.2}
  #allocation0 [shape = 'u32[]', space=smem, size = 0x4, offset = 0x4, fixed_abs, tag = 'smem constant byte address 0x4 - core index']
  #allocation1 [shape = 'u32[144,128]{1,0:T(1,128)}', space=vmem, size = 0x12000, scoped, tag = 'internal scratch']
  %s0 = inlined_call_operand.vmem [shape: bf16[64,224], index: 0, kind: input, shape index: {}]
  %s1 = inlined_call_operand.vmem [shape: bf16[192,32], index: 1, kind: input, shape index: {}]
  %s2 = inlined_call_operand.vmem [shape: bf16[32,64], index: 2, kind: input, shape index: {}]
  %s3 = inlined_call_operand.vmem [shape: bf16[32,131], index: 3, kind: input, shape index: {}]
  %s4 = inlined_call_operand.vmem [shape: bf16[64,32], index: 4, kind: input, shape index: {}]
  %s5 = inlined_call_operand.vmem [shape: f32[1,257], index: 5, kind: input, shape index: {}]
  %s6 = inlined_call_operand.vmem [shape: bf16[6,64], index: 6, kind: input, shape index: {}]
  %s7 = inlined_call_operand.vmem [shape: bf16[12,32], index: 7, kind: input, shape index: {}]
  %s8 = inlined_call_operand.vmem [shape: f32[64,32], index: 8, kind: output, shape index: {0}]
  %s9 = inlined_call_operand.vmem [shape: f32[12,32], index: 9, kind: output, shape index: {1}]
  %s10 = inlined_call_operand.vmem [shape: f32[2,64], index: 10, kind: output, shape index: {2}]
  %s11 = inlined_call_operand.vmem [shape: f32[4,64], index: 11, kind: output, shape index: {3}]
  %12 = xla_tuple %s8, %s9, %s10, %s11
  %s13 = sld [smem:[#allocation0]]
  $region66: #{forward.2} parent=0
    _
  %s15 = ssub.s32 1, %s13
  %s16 = scalar_select 0, %s15, %s13
  // Predicated region
  $region2: #{forward.2} parent=0 // pred_check
    _
  $region3: #{forward.2} parent=0 // pred_check_branch
    %18 = sbr.rel (0) target = $region5
  $region4: #{forward.2} parent=0 // pred_region
    _
  $region5: #{forward.2} parent=0 // pred_fallthru
    _
  // Predicated region
  $region6: #{forward.2} parent=0 // pred_check
    _
  $region7: #{forward.2} parent=0 // pred_check_branch
    %20 = sbr.rel (0) target = $region9
  $region8: #{forward.2} parent=0 // pred_region
    _
  $region9: #{forward.2} parent=0 // pred_fallthru
    _
  // Predicated region
  $region10: #{forward.2} parent=0 // pred_check
    _
  $region11: #{forward.2} parent=0 // pred_check_branch
    %22 = sbr.rel (0) target = $region13
  $region12: #{forward.2} parent=0 // pred_region
    _
  $region13: #{forward.2} parent=0 // pred_fallthru
    _
  // Predicated region
  $region14: #{forward.2} parent=0 // pred_check
    _
  $region15: #{forward.2} parent=0 // pred_check_branch
    %24 = sbr.rel (0) target = $region17
  $region16: #{forward.2} parent=0 // pred_region
    _
  $region17: #{forward.2} parent=0 // pred_fallthru
    _
  // Predicated region
  $region18: #{forward.2} parent=0 // pred_check
    _
  $region19: #{forward.2} parent=0 // pred_check_branch
    %26 = sbr.rel (0) target = $region21
  $region20: #{forward.2} parent=0 // pred_region
    _
  $region21: #{forward.2} parent=0 // pred_fallthru
    _
  // Predicated region
  $region22: #{forward.2} parent=0 // pred_check
    _
  $region23: #{forward.2} parent=0 // pred_check_branch
    %28 = sbr.rel (0) target = $region25
  $region24: #{forward.2} parent=0 // pred_region
    _
  $region25: #{forward.2} parent=0 // pred_fallthru
    _
  // Predicated region
  $region26: #{forward.2} parent=0 // pred_check
    _
  $region27: #{forward.2} parent=0 // pred_check_branch
    %30 = sbr.rel (0) target = $region29
  $region28: #{forward.2} parent=0 // pred_region
    _
  $region29: #{forward.2} parent=0 // pred_fallthru
    _
  // Predicated region
  $region30: #{forward.2} parent=0 // pred_check
    _
  $region31: #{forward.2} parent=0 // pred_check_branch
    %32 = sbr.rel (0) target = $region33
  $region32: #{forward.2} parent=0 // pred_region
    _
  $region33: #{forward.2} parent=0 // pred_fallthru
    _
  %v34 = vld [vmem:[%s0] sm:$0xff]
  %v35 = vld [vmem:[%s0 + $0x8] sm:$0xff]
  %v36 = vld [vmem:[%s0 + $0x10] sm:$0xff]
  %v37 = vld [vmem:[%s0 + $0x18] sm:$0xff]
  %v38 = vld [vmem:[%s0 + $0x20] sm:$0xff]
  %v39 = vld [vmem:[%s0 + $0x28] sm:$0xff]
  %v40 = vld [vmem:[%s0 + $0x30] sm:$0xff]
  %v41 = vld [vmem:[%s0 + $0x38] sm:$0xff]
  %v42 = vld [vmem:[%s0 + $0x4] sm:$0xf]
  %v43 = vld [vmem:[%s0 + $0xc] sm:$0xf]
  %v44 = vld [vmem:[%s0 + $0x14] sm:$0xf]
  %v45 = vld [vmem:[%s0 + $0x1c] sm:$0xf]
  %v46 = vld [vmem:[%s0 + $0x24] sm:$0xf]
  %v47 = vld [vmem:[%s0 + $0x2c] sm:$0xf]
  %v48 = vld [vmem:[%s0 + $0x34] sm:$0xf]
  %v49 = vld [vmem:[%s0 + $0x3c] sm:$0xf]
  %v50 = vunpack.c.l.bf16 %v42
  %v51 = vunpack.c.l.bf16 %v43
  %v52 = vunpack.c.l.bf16 %v44
  %v53 = vunpack.c.l.bf16 %v45
  %v54 = vunpack.c.l.bf16 %v46
  %v55 = vunpack.c.l.bf16 %v47
  %v56 = vunpack.c.l.bf16 %v48
  %v57 = vunpack.c.l.bf16 %v49
  %v58 = vld [vmem:[%s5] sm:$0x1]
  %v60 = vlaneseq
  %v61 = vshrl.u32 %v60, 7
  %v62 = vsub.s32 0, %v61
  %v63 = vrot.slane %v58, %v62
  %64 = vrot.lane.b32.xlu0 %v63, 64
  %v65 = vpop.permute.xlu0 %64
  %v67 = vadd.f32 %v50, %v65
  %v68 = vadd.f32 %v51, %v65
  %v69 = vadd.f32 %v52, %v65
  %v70 = vadd.f32 %v53, %v65
  %v71 = vadd.f32 %v54, %v65
  %v72 = vadd.f32 %v55, %v65
  %v73 = vadd.f32 %v56, %v65
  %v74 = vadd.f32 %v57, %v65
  %v75 = vld [vmem:[%s1] sm:$0xf]
  %v76 = vld [vmem:[%s1 + $0x4] sm:$0xf]
  %v77 = vld [vmem:[%s1 + $0x8] sm:$0xf]
  %v78 = vld [vmem:[%s1 + $0xc] sm:$0xf]
  %v79 = vld [vmem:[%s1 + $0x10] sm:$0xf]
  %v80 = vld [vmem:[%s1 + $0x14] sm:$0xf]
  %v81 = vld [vmem:[%s1 + $0x18] sm:$0xf]
  %v82 = vld [vmem:[%s1 + $0x1c] sm:$0xf]
  %v83 = vld [vmem:[%s1 + $0x20] sm:$0xf]
  %v84 = vld [vmem:[%s1 + $0x24] sm:$0xf]
  %v85 = vld [vmem:[%s1 + $0x28] sm:$0xf]
  %v86 = vld [vmem:[%s1 + $0x2c] sm:$0xf]
  %v87 = vld [vmem:[%s1 + $0x30] sm:$0xf]
  %v88 = vld [vmem:[%s1 + $0x34] sm:$0xf]
  %v89 = vld [vmem:[%s1 + $0x38] sm:$0xf]
  %v90 = vld [vmem:[%s1 + $0x3c] sm:$0xf]
  %v91 = vld [vmem:[%s1 + $0x40] sm:$0xf]
  %v92 = vld [vmem:[%s1 + $0x44] sm:$0xf]
  %v93 = vld [vmem:[%s1 + $0x48] sm:$0xf]
  %v94 = vld [vmem:[%s1 + $0x4c] sm:$0xf]
  %v95 = vld [vmem:[%s1 + $0x50] sm:$0xf]
  %v96 = vld [vmem:[%s1 + $0x54] sm:$0xf]
  %v97 = vld [vmem:[%s1 + $0x58] sm:$0xf]
  %v98 = vld [vmem:[%s1 + $0x5c] sm:$0xf]
  %v107 = vunpack.c.l.b16 %v34
  %v108 = vunpack.c.h.b16 %v34
  %v109 = vunpack.c.l.b16 %v35
  %v110 = vunpack.c.h.b16 %v35
  %v111 = vunpack.c.l.b16 %v36
  %v112 = vunpack.c.h.b16 %v36
  %v113 = vunpack.c.l.b16 %v37
  %v114 = vunpack.c.h.b16 %v37
  %v115 = vunpack.c.l.b16 %v38
  %v116 = vunpack.c.h.b16 %v38
  %v117 = vunpack.c.l.b16 %v39
  %v118 = vunpack.c.h.b16 %v39
  %v119 = vunpack.c.l.b16 %v40
  %v120 = vunpack.c.h.b16 %v40
  %v121 = vunpack.c.l.b16 %v41
  %v122 = vunpack.c.h.b16 %v41
  %v123 = vpack.c.b16 %v109, %v107
  %v124 = vpack.c.b16 %v110, %v108
  %v125 = vpack.c.b16 %v113, %v111
  %v126 = vpack.c.b16 %v114, %v112
  %v127 = vpack.c.b16 %v117, %v115
  %v128 = vpack.c.b16 %v118, %v116
  %v129 = vpack.c.b16 %v121, %v119
  %v130 = vpack.c.b16 %v122, %v120
  %v159 = vunpack.c.l.b16 %v75
  %v160 = vunpack.c.l.b16 %v76
  %v161 = vunpack.c.l.b16 %v77
  %v162 = vunpack.c.l.b16 %v78
  %v163 = vunpack.c.l.b16 %v79
  %v164 = vunpack.c.l.b16 %v80
  %v165 = vunpack.c.l.b16 %v81
  %v166 = vunpack.c.l.b16 %v82
  %v167 = vunpack.c.l.b16 %v83
  %v168 = vunpack.c.l.b16 %v84
  %v169 = vunpack.c.l.b16 %v85
  %v170 = vunpack.c.l.b16 %v86
  %v171 = vunpack.c.l.b16 %v87
  %v172 = vunpack.c.l.b16 %v88
  %v173 = vunpack.c.l.b16 %v89
  %v174 = vunpack.c.l.b16 %v90
  %v175 = vunpack.c.l.b16 %v91
  %v176 = vunpack.c.l.b16 %v92
  %v177 = vunpack.c.l.b16 %v93
  %v178 = vunpack.c.l.b16 %v94
  %v179 = vunpack.c.l.b16 %v95
  %v180 = vunpack.c.l.b16 %v96
  %v181 = vunpack.c.l.b16 %v97
  %v182 = vunpack.c.l.b16 %v98
  %v183 = vpack.c.b16 %v160, %v159
  %v184 = vpack.c.b16 %v162, %v161
  %v185 = vpack.c.b16 %v164, %v163
  %v186 = vpack.c.b16 %v166, %v165
  %v187 = vpack.c.b16 %v168, %v167
  %v188 = vpack.c.b16 %v170, %v169
  %v189 = vpack.c.b16 %v172, %v171
  %v190 = vpack.c.b16 %v174, %v173
  %v191 = vpack.c.b16 %v176, %v175
  %v192 = vpack.c.b16 %v178, %v177
  %v193 = vpack.c.b16 %v180, %v179
  %v194 = vpack.c.b16 %v182, %v181
  %vm207 = vcmask 523264
  %v209 = vsel %vm207, %v124, 0
  %v212 = vsel %vm207, %v126, 0
  %v215 = vsel %vm207, %v128, 0
  %v218 = vsel %vm207, %v130, 0
  %220 = vmatprep.subr.bf16.mxu0 0
  %221 = vmatpush1.bf16.msra.mxu0 %v183
  %222 = vmatprep.subr.bf16.mxu0 0
  %223 = vmatpush1.bf16.msra.mxu0 %v184
  %224 = vmatprep.subr.bf16.mxu0 0
  %225 = vmatpush1.bf16.msra.mxu0 %v185
  %226 = vmatprep.subr.bf16.mxu0 0
  %227 = vmatpush1.bf16.msra.mxu0 %v186
  %228 = vmatprep.subr.bf16.mxu0 0
  %229 = vmatpush1.bf16.msra.mxu0 %v187
  %230 = vmatprep.subr.bf16.mxu0 0
  %231 = vmatpush1.bf16.msra.mxu0 %v188
  %232 = vmatprep.subr.bf16.mxu0 0
  %233 = vmatpush1.bf16.msra.mxu0 %v189
  %234 = vmatprep.subr.bf16.mxu0 0
  %235 = vmatpush1.bf16.msra.mxu0 %v190
  %236 = vmatprep.subr.bf16.mxu0 0
  %237 = vmatpush1.bf16.msra.mxu0 %v191
  %238 = vmatprep.subr.bf16.mxu0 0
  %239 = vmatpush1.bf16.msra.mxu0 %v192
  %240 = vmatprep.subr.bf16.mxu0 0
  %241 = vmatpush1.bf16.msra.mxu0 %v193
  %242 = vmatprep.subr.bf16.mxu0 0
  %243 = vmatpush1.bf16.msra.mxu0 %v194
  %244 = vmatprep.subr.bf16.mxu0 0
  %245 = vmatpush1.bf16.msra.mxu0 0
  %246 = vmatprep.subr.bf16.mxu0 0
  %247 = vmatpush1.bf16.msra.mxu0 0
  %248 = vmatprep.subr.bf16.mxu0 0
  %249 = vmatpush1.bf16.msra.mxu0 0
  %250 = vmatprep.subr.bf16.mxu0 0
  %251 = vmatpush1.bf16.msra.mxu0 0
  %252 = vmatprep.mubr.bf16.mxu0 %v209
  %253 = vmatmul.mubr.bf16.gmra.mrb[0].mxu0 %v123
  %v254 = vpop.f32.mrb[0].mxu0
  %v255 = vadd.f32 0.0, %v254
  %v256 = vpop.f32.mrb[0].mxu0
  %v257 = vpop.f32.mrb[0].mxu0
  %v258 = vadd.f32 0.0, %v257
  %v259 = vpop.f32.mrb[0].mxu0
  %260 = vmatprep.mubr.bf16.mxu0 %v212
  %261 = vmatmul.mubr.bf16.gmra.mrb[0].mxu0 %v125
  %v262 = vpop.f32.mrb[0].mxu0
  %v263 = vadd.f32 0.0, %v262
  %v264 = vpop.f32.mrb[0].mxu0
  %v265 = vpop.f32.mrb[0].mxu0
  %v266 = vadd.f32 0.0, %v265
  %v267 = vpop.f32.mrb[0].mxu0
  %268 = vmatprep.mubr.bf16.mxu0 %v215
  %269 = vmatmul.mubr.bf16.gmra.mrb[0].mxu0 %v127
  %v270 = vpop.f32.mrb[0].mxu0
  %v271 = vadd.f32 0.0, %v270
  %v272 = vpop.f32.mrb[0].mxu0
  %v273 = vpop.f32.mrb[0].mxu0
  %v274 = vadd.f32 0.0, %v273
  %v275 = vpop.f32.mrb[0].mxu0
  %276 = vmatprep.mubr.bf16.mxu0 %v218
  %277 = vmatmul.mubr.bf16.gmra.mrb[0].mxu0 %v129
  %v278 = vpop.f32.mrb[0].mxu0
  %v279 = vadd.f32 0.0, %v278
  %v280 = vpop.f32.mrb[0].mxu0
  %v281 = vpop.f32.mrb[0].mxu0
  %v282 = vadd.f32 0.0, %v281
  %v283 = vpop.f32.mrb[0].mxu0
  %284 = vdwg.mxu0
  %293 = vrot.lane.b32.xlu0 %v255, 64
  %v294 = vpop.permute.xlu0 %293
  %295 = vrot.lane.b32.xlu0 %v258, 64
  %v296 = vpop.permute.xlu0 %295
  %297 = vrot.lane.b32.xlu0 %v263, 64
  %v298 = vpop.permute.xlu0 %297
  %299 = vrot.lane.b32.xlu0 %v266, 64
  %v300 = vpop.permute.xlu0 %299
  %301 = vrot.lane.b32.xlu0 %v271, 64
  %v302 = vpop.permute.xlu0 %301
  %303 = vrot.lane.b32.xlu0 %v274, 64
  %v304 = vpop.permute.xlu0 %303
  %305 = vrot.lane.b32.xlu0 %v279, 64
  %v306 = vpop.permute.xlu0 %305
  %307 = vrot.lane.b32.xlu0 %v282, 64
  %v308 = vpop.permute.xlu0 %307
  %v317 = vadd.f32 %v67, %v294
  %v318 = vadd.f32 %v68, %v296
  %v319 = vadd.f32 %v69, %v298
  %v320 = vadd.f32 %v70, %v300
  %v321 = vadd.f32 %v71, %v302
  %v322 = vadd.f32 %v72, %v304
  %v323 = vadd.f32 %v73, %v306
  %v324 = vadd.f32 %v74, %v308
  %333 = vrot.lane.b32.xlu0 %v317, 64
  %v334 = vpop.permute.xlu0 %333
  %335 = vrot.lane.b32.xlu0 %v318, 64
  %v336 = vpop.permute.xlu0 %335
  %337 = vrot.lane.b32.xlu0 %v319, 64
  %v338 = vpop.permute.xlu0 %337
  %339 = vrot.lane.b32.xlu0 %v320, 64
  %v340 = vpop.permute.xlu0 %339
  %341 = vrot.lane.b32.xlu0 %v321, 64
  %v342 = vpop.permute.xlu0 %341
  %343 = vrot.lane.b32.xlu0 %v322, 64
  %v344 = vpop.permute.xlu0 %343
  %345 = vrot.lane.b32.xlu0 %v323, 64
  %v346 = vpop.permute.xlu0 %345
  %347 = vrot.lane.b32.xlu0 %v324, 64
  %v348 = vpop.permute.xlu0 %347
  %vm357 = vcmask 261120
  %358 = vst.msk [vmem:[%s8] sm:$0xff] %vm357, %v334
  %359 = vst.msk [vmem:[%s8 + $0x8] sm:$0xff] %vm357, %v336
  %360 = vst.msk [vmem:[%s8 + $0x10] sm:$0xff] %vm357, %v338
  %361 = vst.msk [vmem:[%s8 + $0x18] sm:$0xff] %vm357, %v340
  %362 = vst.msk [vmem:[%s8 + $0x20] sm:$0xff] %vm357, %v342
  %363 = vst.msk [vmem:[%s8 + $0x28] sm:$0xff] %vm357, %v344
  %364 = vst.msk [vmem:[%s8 + $0x30] sm:$0xff] %vm357, %v346
  %365 = vst.msk [vmem:[%s8 + $0x38] sm:$0xff] %vm357, %v348
  %v366 = vld [vmem:[%s2] sm:$0xf]
  %v367 = vld [vmem:[%s2 + $0x4] sm:$0xf]
  %v368 = vld [vmem:[%s2 + $0x8] sm:$0xf]
  %v369 = vld [vmem:[%s2 + $0xc] sm:$0xf]
  %v370 = vld [vmem:[%s3] sm:$0xf]
  %v371 = vld [vmem:[%s3 + $0x8] sm:$0xf]
  %v372 = vld [vmem:[%s3 + $0x10] sm:$0xf]
  %v373 = vld [vmem:[%s3 + $0x18] sm:$0xf]
  %v378 = vunpack.c.l.b16 %v366
  %v379 = vunpack.c.l.b16 %v367
  %v380 = vunpack.c.l.b16 %v368
  %v381 = vunpack.c.l.b16 %v369
  %v382 = vpack.c.b16 %v379, %v378
  %v383 = vpack.c.b16 %v381, %v380
  %384 = vrot.lane.b32.xlu0 %v382, 96
  %v385 = vpop.permute.xlu0 %384
  %386 = vrot.lane.b32.xlu0 %v383, 96
  %v387 = vpop.permute.xlu0 %386
  %v392 = vunpack.c.l.b16 %v370
  %v393 = vunpack.c.l.b16 %v371
  %v394 = vunpack.c.l.b16 %v372
  %v395 = vunpack.c.l.b16 %v373
  %v396 = vpack.c.b16 %v393, %v392
  %v397 = vpack.c.b16 %v395, %v394
  %v401 = vsel %vm357, %v385, 0
  %v404 = vsel %vm357, %v387, 0
  %406 = vmatprep.subr.bf16.mxu0 0
  %407 = vmatpush1.bf16.msra.mxu0 %v396
  %408 = vmatprep.subr.bf16.mxu0 0
  %409 = vmatpush1.bf16.msra.mxu0 %v397
  %410 = vmatprep.subr.bf16.mxu0 0
  %411 = vmatpush1.bf16.msra.mxu0 0
  %412 = vmatprep.subr.bf16.mxu0 0
  %413 = vmatpush1.bf16.msra.mxu0 0
  %414 = vmatprep.subr.bf16.mxu0 0
  %415 = vmatpush1.bf16.msra.mxu0 0
  %416 = vmatprep.subr.bf16.mxu0 0
  %417 = vmatpush1.bf16.msra.mxu0 0
  %418 = vmatprep.subr.bf16.mxu0 0
  %419 = vmatpush1.bf16.msra.mxu0 0
  %420 = vmatprep.subr.bf16.mxu0 0
  %421 = vmatpush1.bf16.msra.mxu0 0
  %422 = vmatprep.subr.bf16.mxu0 0
  %423 = vmatpush1.bf16.msra.mxu0 0
  %424 = vmatprep.subr.bf16.mxu0 0
  %425 = vmatpush1.bf16.msra.mxu0 0
  %426 = vmatprep.subr.bf16.mxu0 0
  %427 = vmatpush1.bf16.msra.mxu0 0
  %428 = vmatprep.subr.bf16.mxu0 0
  %429 = vmatpush1.bf16.msra.mxu0 0
  %430 = vmatprep.subr.bf16.mxu0 0
  %431 = vmatpush1.bf16.msra.mxu0 0
  %432 = vmatprep.subr.bf16.mxu0 0
  %433 = vmatpush1.bf16.msra.mxu0 0
  %434 = vmatprep.subr.bf16.mxu0 0
  %435 = vmatpush1.bf16.msra.mxu0 0
  %436 = vmatprep.subr.bf16.mxu0 0
  %437 = vmatpush1.bf16.msra.mxu0 0
  %438 = vmatprep.mubr.bf16.mxu0 0
  %439 = vmatmul.mubr.bf16.gmra.mrb[0].mxu0 %v401
  %v440 = vpop.f32.mrb[0].mxu0
  %v441 = vadd.f32 0.0, %v440
  %v442 = vpop.f32.mrb[0].mxu0
  %v443 = vpop.f32.mrb[0].mxu0
  %v444 = vadd.f32 0.0, %v443
  %v445 = vpop.f32.mrb[0].mxu0
  %446 = vmatprep.mubr.bf16.mxu0 0
  %447 = vmatmul.mubr.bf16.gmra.mrb[0].mxu0 %v404
  %v448 = vpop.f32.mrb[0].mxu0
  %v449 = vadd.f32 0.0, %v448
  %v450 = vpop.f32.mrb[0].mxu0
  %v451 = vpop.f32.mrb[0].mxu0
  %v452 = vadd.f32 0.0, %v451
  %v453 = vpop.f32.mrb[0].mxu0
  %454 = vdwg.mxu0
  %v455 = vpack.c.bf16 %v444, %v441
  %v456 = vpack.c.bf16 %v452, %v449
  %v457 = vld [vmem:[%s5] sm:$0x1]
  %v459 = vlaneseq
  %v460 = vshrl.u32 %v459, 7
  %v461 = vsub.s32 0, %v460
  %v462 = vrot.slane %v457, %v461
  %463 = vrot.lane.b32.xlu0 %v462, 96
  %v464 = vpop.permute.xlu0 %463
  %v467 = vsel %vm357, %v382, 0
  %v470 = vsel %vm357, %v383, 0
  %472 = vmatprep.subr.bf16.mxu0 0
  %473 = vmatpush1.bf16.msra.mxu0 %v455
  %474 = vmatprep.subr.bf16.mxu0 0
  %475 = vmatpush1.bf16.msra.mxu0 %v456
  %476 = vmatprep.subr.bf16.mxu0 0
  %477 = vmatpush1.bf16.msra.mxu0 0
  %478 = vmatprep.subr.bf16.mxu0 0
  %479 = vmatpush1.bf16.msra.mxu0 0
  %480 = vmatprep.subr.bf16.mxu0 0
  %481 = vmatpush1.bf16.msra.mxu0 0
  %482 = vmatprep.subr.bf16.mxu0 0
  %483 = vmatpush1.bf16.msra.mxu0 0
  %484 = vmatprep.subr.bf16.mxu0 0
  %485 = vmatpush1.bf16.msra.mxu0 0
  %486 = vmatprep.subr.bf16.mxu0 0
  %487 = vmatpush1.bf16.msra.mxu0 0
  %488 = vmatprep.subr.bf16.mxu0 0
  %489 = vmatpush1.bf16.msra.mxu0 0
  %490 = vmatprep.subr.bf16.mxu0 0
  %491 = vmatpush1.bf16.msra.mxu0 0
  %492 = vmatprep.subr.bf16.mxu0 0
  %493 = vmatpush1.bf16.msra.mxu0 0
  %494 = vmatprep.subr.bf16.mxu0 0
  %495 = vmatpush1.bf16.msra.mxu0 0
  %496 = vmatprep.subr.bf16.mxu0 0
  %497 = vmatpush1.bf16.msra.mxu0 0
  %498 = vmatprep.subr.bf16.mxu0 0
  %499 = vmatpush1.bf16.msra.mxu0 0
  %500 = vmatprep.subr.bf16.mxu0 0
  %501 = vmatpush1.bf16.msra.mxu0 0
  %502 = vmatprep.subr.bf16.mxu0 0
  %503 = vmatpush1.bf16.msra.mxu0 0
  %504 = vmatprep.mubr.bf16.mxu0 0
  %505 = vmatmul.mubr.bf16.gmra.mrb[0].mxu0 %v467
  %v506 = vpop.f32.mrb[0].mxu0
  %v507 = vadd.f32 %v464, %v506
  %v508 = vpop.f32.mrb[0].mxu0
  %v509 = vpop.f32.mrb[0].mxu0
  %v510 = vadd.f32 %v464, %v509
  %v511 = vpop.f32.mrb[0].mxu0
  %512 = vmatprep.mubr.bf16.mxu0 0
  %513 = vmatmul.mubr.bf16.gmra.mrb[0].mxu0 %v470
  %v514 = vpop.f32.mrb[0].mxu0
  %v515 = vadd.f32 %v464, %v514
  %v516 = vpop.f32.mrb[0].mxu0
  %v517 = vpop.f32.mrb[0].mxu0
  %v518 = vadd.f32 %v464, %v517
  %v519 = vpop.f32.mrb[0].mxu0
  %520 = vdwg.mxu0
  %v521 = vld [vmem:[%s6] sm:$0x7]
  %v522 = vpack.c.bf16 %v318, %v317
  %v523 = vpack.c.bf16 %v320, %v319
  %v524 = vpack.c.bf16 %v322, %v321
  %v525 = vpack.c.bf16 %v324, %v323
  %530 = vrot.lane.b32.xlu0 %v522, 64
  %v531 = vpop.permute.xlu0 %530
  %532 = vrot.lane.b32.xlu0 %v523, 64
  %v533 = vpop.permute.xlu0 %532
  %534 = vrot.lane.b32.xlu0 %v524, 64
  %v535 = vpop.permute.xlu0 %534
  %536 = vrot.lane.b32.xlu0 %v525, 64
  %v537 = vpop.permute.xlu0 %536
  %v543 = vsel %vm207, %v521, 0
  %545 = vmatprep.subr.bf16.mxu0 0
  %546 = vmatpush1.bf16.msra.mxu0 %v531
  %547 = vmatprep.subr.bf16.mxu0 0
  %548 = vmatpush1.bf16.msra.mxu0 %v533
  %549 = vmatprep.subr.bf16.mxu0 0
  %550 = vmatpush1.bf16.msra.mxu0 %v535
  %551 = vmatprep.subr.bf16.mxu0 0
  %552 = vmatpush1.bf16.msra.mxu0 %v537
  %553 = vmatprep.subr.bf16.mxu0 0
  %554 = vmatpush1.bf16.msra.mxu0 0
  %555 = vmatprep.subr.bf16.mxu0 0
  %556 = vmatpush1.bf16.msra.mxu0 0
  %557 = vmatprep.subr.bf16.mxu0 0
  %558 = vmatpush1.bf16.msra.mxu0 0
  %559 = vmatprep.subr.bf16.mxu0 0
  %560 = vmatpush1.bf16.msra.mxu0 0
  %561 = vmatprep.subr.bf16.mxu0 0
  %562 = vmatpush1.bf16.msra.mxu0 0
  %563 = vmatprep.subr.bf16.mxu0 0
  %564 = vmatpush1.bf16.msra.mxu0 0
  %565 = vmatprep.subr.bf16.mxu0 0
  %566 = vmatpush1.bf16.msra.mxu0 0
  %567 = vmatprep.subr.bf16.mxu0 0
  %568 = vmatpush1.bf16.msra.mxu0 0
  %569 = vmatprep.subr.bf16.mxu0 0
  %570 = vmatpush1.bf16.msra.mxu0 0
  %571 = vmatprep.subr.bf16.mxu0 0
  %572 = vmatpush1.bf16.msra.mxu0 0
  %573 = vmatprep.subr.bf16.mxu0 0
  %574 = vmatpush1.bf16.msra.mxu0 0
  %575 = vmatprep.subr.bf16.mxu0 0
  %576 = vmatpush1.bf16.msra.mxu0 0
  %577 = vmatprep.mubr.bf16.mxu0 0
  %578 = vmatmul.mubr.bf16.gmra.mrb[0].mxu0 %v543
  %v579 = vpop.f32.mrb[0].mxu0
  %v580 = vadd.f32 0.0, %v579
  %v581 = vpop.f32.mrb[0].mxu0
  %v582 = vpop.f32.mrb[0].mxu0
  %v583 = vpop.f32.mrb[0].mxu0
  %584 = vdwg.mxu0
  %v585 = vpack.c.bf16 %v580, %v580
  %586 = vrot.lane.b32.xlu0 %v396, 96
  %v587 = vpop.permute.xlu0 %586
  %588 = vrot.lane.b32.xlu0 %v397, 96
  %v589 = vpop.permute.xlu0 %588
  %v593 = vsel %vm357, %v585, 0
  %595 = vmatprep.subr.bf16.mxu0 0
  %596 = vmatpush1.bf16.msra.mxu0 %v587
  %597 = vmatprep.subr.bf16.mxu0 0
  %598 = vmatpush1.bf16.msra.mxu0 %v589
  %599 = vmatprep.subr.bf16.mxu0 0
  %600 = vmatpush1.bf16.msra.mxu0 0
  %601 = vmatprep.subr.bf16.mxu0 0
  %602 = vmatpush1.bf16.msra.mxu0 0
  %603 = vmatprep.subr.bf16.mxu0 0
  %604 = vmatpush1.bf16.msra.mxu0 0
  %605 = vmatprep.subr.bf16.mxu0 0
  %606 = vmatpush1.bf16.msra.mxu0 0
  %607 = vmatprep.subr.bf16.mxu0 0
  %608 = vmatpush1.bf16.msra.mxu0 0
  %609 = vmatprep.subr.bf16.mxu0 0
  %610 = vmatpush1.bf16.msra.mxu0 0
  %611 = vmatprep.subr.bf16.mxu0 0
  %612 = vmatpush1.bf16.msra.mxu0 0
  %613 = vmatprep.subr.bf16.mxu0 0
  %614 = vmatpush1.bf16.msra.mxu0 0
  %615 = vmatprep.subr.bf16.mxu0 0
  %616 = vmatpush1.bf16.msra.mxu0 0
  %617 = vmatprep.subr.bf16.mxu0 0
  %618 = vmatpush1.bf16.msra.mxu0 0
  %619 = vmatprep.subr.bf16.mxu0 0
  %620 = vmatpush1.bf16.msra.mxu0 0
  %621 = vmatprep.subr.bf16.mxu0 0
  %622 = vmatpush1.bf16.msra.mxu0 0
  %623 = vmatprep.subr.bf16.mxu0 0
  %624 = vmatpush1.bf16.msra.mxu0 0
  %625 = vmatprep.subr.bf16.mxu0 0
  %626 = vmatpush1.bf16.msra.mxu0 0
  %627 = vmatprep.mubr.bf16.mxu0 0
  %628 = vmatmul.mubr.bf16.gmra.mrb[0].mxu0 %v593
  %v629 = vpop.f32.mrb[0].mxu0
  %v630 = vadd.f32 0.0, %v629
  %v631 = vpop.f32.mrb[0].mxu0
  %v632 = vpop.f32.mrb[0].mxu0
  %v633 = vpop.f32.mrb[0].mxu0
  %634 = vdwg.mxu0
  %v635 = vtanh.pop %v630
  %v636 = vld [vmem:[%s3 + $0x4] sm:$0xf]
  %v637 = vld [vmem:[%s3 + $0xc] sm:$0xf]
  %v638 = vld [vmem:[%s3 + $0x14] sm:$0xf]
  %v639 = vld [vmem:[%s3 + $0x1c] sm:$0xf]
  %v640 = vpack.c.bf16 %v635, %v635
  %v645 = vunpack.c.l.b16 %v636
  %v646 = vunpack.c.l.b16 %v637
  %v647 = vunpack.c.l.b16 %v638
  %v648 = vunpack.c.l.b16 %v639
  %v649 = vpack.c.b16 %v646, %v645
  %v650 = vpack.c.b16 %v648, %v647
  %v654 = vsel %vm357, %v640, 0
  %656 = vmatprep.subr.bf16.mxu0 0
  %657 = vmatpush1.bf16.msra.mxu0 %v649
  %658 = vmatprep.subr.bf16.mxu0 0
  %659 = vmatpush1.bf16.msra.mxu0 %v650
  %660 = vmatprep.subr.bf16.mxu0 0
  %661 = vmatpush1.bf16.msra.mxu0 0
  %662 = vmatprep.subr.bf16.mxu0 0
  %663 = vmatpush1.bf16.msra.mxu0 0
  %664 = vmatprep.subr.bf16.mxu0 0
  %665 = vmatpush1.bf16.msra.mxu0 0
  %666 = vmatprep.subr.bf16.mxu0 0
  %667 = vmatpush1.bf16.msra.mxu0 0
  %668 = vmatprep.subr.bf16.mxu0 0
  %669 = vmatpush1.bf16.msra.mxu0 0
  %670 = vmatprep.subr.bf16.mxu0 0
  %671 = vmatpush1.bf16.msra.mxu0 0
  %672 = vmatprep.subr.bf16.mxu0 0
  %673 = vmatpush1.bf16.msra.mxu0 0
  %674 = vmatprep.subr.bf16.mxu0 0
  %675 = vmatpush1.bf16.msra.mxu0 0
  %676 = vmatprep.subr.bf16.mxu0 0
  %677 = vmatpush1.bf16.msra.mxu0 0
  %678 = vmatprep.subr.bf16.mxu0 0
  %679 = vmatpush1.bf16.msra.mxu0 0
  %680 = vmatprep.subr.bf16.mxu0 0
  %681 = vmatpush1.bf16.msra.mxu0 0
  %682 = vmatprep.subr.bf16.mxu0 0
  %683 = vmatpush1.bf16.msra.mxu0 0
  %684 = vmatprep.subr.bf16.mxu0 0
  %685 = vmatpush1.bf16.msra.mxu0 0
  %686 = vmatprep.subr.bf16.mxu0 0
  %687 = vmatpush1.bf16.msra.mxu0 0
  %688 = vmatprep.mubr.bf16.mxu0 0
  %689 = vmatmul.mubr.bf16.gmra.mrb[0].mxu0 %v654
  %v690 = vpop.f32.mrb[0].mxu0
  %v691 = vadd.f32 0.0, %v690
  %v692 = vpop.f32.mrb[0].mxu0
  %v693 = vpop.f32.mrb[0].mxu0
  %v694 = vpop.f32.mrb[0].mxu0
  %695 = vdwg.mxu0
  %v696 = vunpack.c.l.bf16 %v521
  %vm697 = vcmask 521216
  %v698 = vsel %vm697, %v696, 0.0
  %699 = vadd.xlane.f32.xlu0 %v698
  %v700 = vpop.xlane.xlu0 %699
  %vm701 = vcmp.gt.f32.partialorder %v700, 0.0
  %v702 = vsel %vm701, %v691, -1e+30
  %v703 = vld [vmem:[%s7] sm:$0xf]
  %v704 = vld [vmem:[%s7 + $0x4] sm:$0x3]
  %v705 = vpack.c.bf16 %v510, %v507
  %v706 = vpack.c.bf16 %v518, %v515
  %v709 = vunpack.c.l.b16 %v703
  %v710 = vunpack.c.l.b16 %v704
  %v711 = vpack.c.b16 %v710, %v709
  %v713 = vsel %vm357, %v711, 0
  %715 = vmatprep.subr.bf16.mxu0 0
  %716 = vmatpush1.bf16.msra.mxu0 %v705
  %717 = vmatprep.subr.bf16.mxu0 0
  %718 = vmatpush1.bf16.msra.mxu0 %v706
  %719 = vmatprep.subr.bf16.mxu0 0
  %720 = vmatpush1.bf16.msra.mxu0 0
  %721 = vmatprep.subr.bf16.mxu0 0
  %722 = vmatpush1.bf16.msra.mxu0 0
  %723 = vmatprep.subr.bf16.mxu0 0
  %724 = vmatpush1.bf16.msra.mxu0 0
  %725 = vmatprep.subr.bf16.mxu0 0
  %726 = vmatpush1.bf16.msra.mxu0 0
  %727 = vmatprep.subr.bf16.mxu0 0
  %728 = vmatpush1.bf16.msra.mxu0 0
  %729 = vmatprep.subr.bf16.mxu0 0
  %730 = vmatpush1.bf16.msra.mxu0 0
  %731 = vmatprep.subr.bf16.mxu0 0
  %732 = vmatpush1.bf16.msra.mxu0 0
  %733 = vmatprep.subr.bf16.mxu0 0
  %734 = vmatpush1.bf16.msra.mxu0 0
  %735 = vmatprep.subr.bf16.mxu0 0
  %736 = vmatpush1.bf16.msra.mxu0 0
  %737 = vmatprep.subr.bf16.mxu0 0
  %738 = vmatpush1.bf16.msra.mxu0 0
  %739 = vmatprep.subr.bf16.mxu0 0
  %740 = vmatpush1.bf16.msra.mxu0 0
  %741 = vmatprep.subr.bf16.mxu0 0
  %742 = vmatpush1.bf16.msra.mxu0 0
  %743 = vmatprep.subr.bf16.mxu0 0
  %744 = vmatpush1.bf16.msra.mxu0 0
  %745 = vmatprep.subr.bf16.mxu0 0
  %746 = vmatpush1.bf16.msra.mxu0 0
  %747 = vmatprep.mubr.bf16.mxu0 0
  %748 = vmatmul.mubr.bf16.gmra.mrb[0].mxu0 %v713
  %v749 = vpop.f32.mrb[0].mxu0
  %v750 = vadd.f32 0.0, %v749
  %v751 = vpop.f32.mrb[0].mxu0
  %v752 = vpop.f32.mrb[0].mxu0
  %v753 = vadd.f32 0.0, %v752
  %v754 = vpop.f32.mrb[0].mxu0
  %755 = vdwg.mxu0
  %756 = vst.msk [vmem:[%s9] sm:$0xff] %vm357, %v750
  %vm757 = vcmask 257024
  %758 = vst.msk [vmem:[%s9 + $0x8] sm:$0xf] %vm757, %v753
  %v759 = vld [vmem:[%s3] sm:$0xf]
  %v760 = vld [vmem:[%s3 + $0x8] sm:$0xf]
  %v761 = vld [vmem:[%s3 + $0x10] sm:$0xf]
  %v762 = vld [vmem:[%s3 + $0x18] sm:$0xf]
  %v763 = vpack.c.bf16 %v753, %v750
  %v768 = vunpack.c.l.b16 %v759
  %v769 = vunpack.c.l.b16 %v760
  %v770 = vunpack.c.l.b16 %v761
  %v771 = vunpack.c.l.b16 %v762
  %v772 = vpack.c.b16 %v769, %v768
  %v773 = vpack.c.b16 %v771, %v770
  %774 = vrot.lane.b32.xlu0 %v772, 64
  %v775 = vpop.permute.xlu0 %774
  %776 = vrot.lane.b32.xlu0 %v773, 64
  %v777 = vpop.permute.xlu0 %776
  %v781 = vsel %vm357, %v763, 0
  %783 = vmatprep.subr.bf16.mxu0 0
  %784 = vmatpush1.bf16.msra.mxu0 %v775
  %785 = vmatprep.subr.bf16.mxu0 0
  %786 = vmatpush1.bf16.msra.mxu0 %v777
  %787 = vmatprep.subr.bf16.mxu0 0
  %788 = vmatpush1.bf16.msra.mxu0 0
  %789 = vmatprep.subr.bf16.mxu0 0
  %790 = vmatpush1.bf16.msra.mxu0 0
  %791 = vmatprep.subr.bf16.mxu0 0
  %792 = vmatpush1.bf16.msra.mxu0 0
  %793 = vmatprep.subr.bf16.mxu0 0
  %794 = vmatpush1.bf16.msra.mxu0 0
  %795 = vmatprep.subr.bf16.mxu0 0
  %796 = vmatpush1.bf16.msra.mxu0 0
  %797 = vmatprep.subr.bf16.mxu0 0
  %798 = vmatpush1.bf16.msra.mxu0 0
  %799 = vmatprep.subr.bf16.mxu0 0
  %800 = vmatpush1.bf16.msra.mxu0 0
  %801 = vmatprep.subr.bf16.mxu0 0
  %802 = vmatpush1.bf16.msra.mxu0 0
  %803 = vmatprep.subr.bf16.mxu0 0
  %804 = vmatpush1.bf16.msra.mxu0 0
  %805 = vmatprep.subr.bf16.mxu0 0
  %806 = vmatpush1.bf16.msra.mxu0 0
  %807 = vmatprep.subr.bf16.mxu0 0
  %808 = vmatpush1.bf16.msra.mxu0 0
  %809 = vmatprep.subr.bf16.mxu0 0
  %810 = vmatpush1.bf16.msra.mxu0 0
  %811 = vmatprep.subr.bf16.mxu0 0
  %812 = vmatpush1.bf16.msra.mxu0 0
  %813 = vmatprep.subr.bf16.mxu0 0
  %814 = vmatpush1.bf16.msra.mxu0 0
  %815 = vmatprep.mubr.bf16.mxu0 0
  %816 = vmatmul.mubr.bf16.gmra.mrb[0].mxu0 %v781
  %v817 = vpop.f32.mrb[0].mxu0
  %v818 = vadd.f32 0.0, %v817
  %v819 = vpop.f32.mrb[0].mxu0
  %v820 = vpop.f32.mrb[0].mxu0
  %v821 = vadd.f32 0.0, %v820
  %v822 = vpop.f32.mrb[0].mxu0
  %823 = vdwg.mxu0
  %v824 = vtanh.pop %v818
  %v825 = vtanh.pop %v821
  %v826 = vld [vmem:[%s3 + $0x4] sm:$0xf]
  %v827 = vld [vmem:[%s3 + $0xc] sm:$0xf]
  %v828 = vld [vmem:[%s3 + $0x14] sm:$0xf]
  %v829 = vld [vmem:[%s3 + $0x1c] sm:$0xf]
  %v830 = vpack.c.bf16 %v825, %v824
  %v835 = vunpack.c.l.b16 %v826
  %v836 = vunpack.c.l.b16 %v827
  %v837 = vunpack.c.l.b16 %v828
  %v838 = vunpack.c.l.b16 %v829
  %v839 = vpack.c.b16 %v836, %v835
  %v840 = vpack.c.b16 %v838, %v837
  %841 = vrot.lane.b32.xlu0 %v839, 127
  %v842 = vpop.permute.xlu0 %841
  %843 = vrot.lane.b32.xlu0 %v840, 127
  %v844 = vpop.permute.xlu0 %843
  %v848 = vsel %vm357, %v830, 0
  %850 = vmatprep.subr.bf16.mxu0 0
  %851 = vmatpush1.bf16.msra.mxu0 %v842
  %852 = vmatprep.subr.bf16.mxu0 0
  %853 = vmatpush1.bf16.msra.mxu0 %v844
  %854 = vmatprep.subr.bf16.mxu0 0
  %855 = vmatpush1.bf16.msra.mxu0 0
  %856 = vmatprep.subr.bf16.mxu0 0
  %857 = vmatpush1.bf16.msra.mxu0 0
  %858 = vmatprep.subr.bf16.mxu0 0
  %859 = vmatpush1.bf16.msra.mxu0 0
  %860 = vmatprep.subr.bf16.mxu0 0
  %861 = vmatpush1.bf16.msra.mxu0 0
  %862 = vmatprep.subr.bf16.mxu0 0
  %863 = vmatpush1.bf16.msra.mxu0 0
  %864 = vmatprep.subr.bf16.mxu0 0
  %865 = vmatpush1.bf16.msra.mxu0 0
  %866 = vmatprep.subr.bf16.mxu0 0
  %867 = vmatpush1.bf16.msra.mxu0 0
  %868 = vmatprep.subr.bf16.mxu0 0
  %869 = vmatpush1.bf16.msra.mxu0 0
  %870 = vmatprep.subr.bf16.mxu0 0
  %871 = vmatpush1.bf16.msra.mxu0 0
  %872 = vmatprep.subr.bf16.mxu0 0
  %873 = vmatpush1.bf16.msra.mxu0 0
  %874 = vmatprep.subr.bf16.mxu0 0
  %875 = vmatpush1.bf16.msra.mxu0 0
  %876 = vmatprep.subr.bf16.mxu0 0
  %877 = vmatpush1.bf16.msra.mxu0 0
  %878 = vmatprep.subr.bf16.mxu0 0
  %879 = vmatpush1.bf16.msra.mxu0 0
  %880 = vmatprep.subr.bf16.mxu0 0
  %881 = vmatpush1.bf16.msra.mxu0 0
  %882 = vmatprep.mubr.bf16.mxu0 0
  %883 = vmatmul.mubr.bf16.gmra.mrb[0].mxu0 %v848
  %v884 = vpop.f32.mrb[0].mxu0
  %v885 = vadd.f32 0.0, %v884
  %v886 = vpop.f32.mrb[0].mxu0
  %v887 = vpop.f32.mrb[0].mxu0
  %v888 = vadd.f32 0.0, %v887
  %v889 = vpop.f32.mrb[0].mxu0
  %890 = vdwg.mxu0
  %v891 = vunpack.c.l.bf16 %v703
  %v892 = vunpack.c.l.bf16 %v704
  %v893 = vmul.f32 %v891, 1e+30
  %v894 = vmul.f32 %v892, 1e+30
  %v895 = vsub.f32 %v885, %v893
  %v896 = vsub.f32 %v888, %v894
  %vm897 = vcmask 2048
  %v898 = vsel %vm897, %v702, -inf
  %v899 = vrot.slane %v898, 4
  %v900 = vmax.f32 %v898, %v899
  %v901 = vrot.slane %v900, 2
  %v902 = vmax.f32 %v900, %v901
  %v903 = vrot.slane %v902, 1
  %v904 = vmax.f32 %v902, %v903
  %v905 = vsub.f32 %v702, %v904
  %v906 = vmul.f32 %v905, 1.442695
  %v907 = vpow.pop %v906
  %v908 = vsel %vm897, %v907, 0.0
  %v909 = vrot.slane %v908, 4
  %v910 = vadd.f32 %v908, %v909
  %v911 = vrot.slane %v910, 2
  %v912 = vadd.f32 %v910, %v911
  %v913 = vrot.slane %v912, 1
  %v914 = vadd.f32 %v912, %v913
  %v915 = vrcp.pop %v914
  %v916 = vmul.f32 %v907, %v915
  %918 = vset.pattern.permute.xlu0 0
  %919 = vperm.xlu0 %918, %v916
  %v920 = vpop.permute.xlu0 %919
  %v922 = vmul.f32 %v920, %v580
  %vm923 = vcmask 256000
  %v924 = vsel %vm923, %v922, 0.0
  %v925 = vrot.slane %v924, 4
  %v926 = vadd.f32 %v924, %v925
  %v927 = vrot.slane %v926, 2
  %v928 = vadd.f32 %v926, %v927
  %v929 = vrot.slane %v928, 1
  %v930 = vadd.f32 %v928, %v929
  %vm931 = vcmask 5120
  %v932 = vsel %vm931, %v895, -inf
  %v933 = vrot.slane %v932, 4
  %v934 = vmax.f32 %v932, %v933
  %v935 = vrot.slane %v934, 2
  %v936 = vmax.f32 %v934, %v935
  %v937 = vrot.slane %v936, 1
  %v938 = vmax.f32 %v936, %v937
  %v939 = vsub.f32 %v895, %v938
  %v940 = vmul.f32 %v939, 1.442695
  %v941 = vpow.pop %v940
  %v942 = vsel %vm931, %v941, 0.0
  %v943 = vrot.slane %v942, 4
  %v944 = vadd.f32 %v942, %v943
  %v945 = vrot.slane %v944, 2
  %v946 = vadd.f32 %v944, %v945
  %v947 = vrot.slane %v946, 1
  %v948 = vadd.f32 %v946, %v947
  %v949 = vrcp.pop %v948
  %v950 = vmul.f32 %v941, %v949
  %952 = vset.pattern.permute.xlu0 0
  %953 = vperm.xlu0 %952, %v950
  %v954 = vpop.permute.xlu0 %953
  %v956 = vmul.f32 %v954, %v750
  %vm957 = vcmask 259072
  %v958 = vsel %vm957, %v956, 0.0
  %v959 = vrot.slane %v958, 4
  %v960 = vadd.f32 %v958, %v959
  %v961 = vrot.slane %v960, 2
  %v962 = vadd.f32 %v960, %v961
  %v963 = vrot.slane %v962, 1
  %v964 = vadd.f32 %v962, %v963
  %vm965 = vcmask 5123
  %v966 = vsel %vm965, %v702, -inf
  %v967 = vrot.slane %v966, 4
  %v968 = vmax.f32 %v966, %v967
  %v969 = vrot.slane %v968, 2
  %v970 = vmax.f32 %v968, %v969
  %v971 = vrot.slane %v970, 1
  %v972 = vmax.f32 %v970, %v971
  %v973 = vsub.f32 %v702, %v972
  %v974 = vmul.f32 %v973, 1.442695
  %v975 = vpow.pop %v974
  %v977 = vrot.slane %v975, 3
  %v979 = vsel %vm897, %v977, 0.0
  %v980 = vrot.slane %v979, 4
  %v981 = vadd.f32 %v979, %v980
  %v982 = vrot.slane %v981, 2
  %v983 = vadd.f32 %v981, %v982
  %v984 = vrot.slane %v983, 1
  %v985 = vadd.f32 %v983, %v984
  %v986 = vrcp.pop %v985
  %v987 = vmul.f32 %v975, %v986
  %989 = vset.pattern.permute.xlu0 0
  %990 = vperm.xlu0 %989, %v987
  %v991 = vpop.permute.xlu0 %990
  %v993 = vmul.f32 %v991, %v580
  %v995 = vrot.slane %v993, 3
  %v997 = vsel %vm923, %v995, 0.0
  %v998 = vrot.slane %v997, 4
  %v999 = vadd.f32 %v997, %v998
  %v1000 = vrot.slane %v999, 2
  %v1001 = vadd.f32 %v999, %v1000
  %v1002 = vrot.slane %v1001, 1
  %v1003 = vadd.f32 %v1001, %v1002
  %vm1004 = vcmask 7174
  %v1005 = vsel %vm1004, %v895, -inf
  %vm1006 = vcmask 3072
  %v1007 = vsel %vm1006, %v896, -inf
  %v1008 = vmax.f32 %v1005, %v1007
  %v1009 = vrot.slane %v1008, 4
  %v1010 = vmax.f32 %v1008, %v1009
  %v1011 = vrot.slane %v1010, 2
  %v1012 = vmax.f32 %v1010, %v1011
  %v1013 = vrot.slane %v1012, 1
  %v1014 = vmax.f32 %v1012, %v1013
  %v1015 = vsub.f32 %v895, %v1014
  %v1016 = vsub.f32 %v896, %v1014
  %v1017 = vmul.f32 %v1015, 1.442695
  %v1018 = vpow.pop %v1017
  %v1019 = vmul.f32 %v1016, 1.442695
  %v1020 = vpow.pop %v1019
  %vm1023 = vcmask 1041408
  %v1024 = vrot.slane %v1018, 6
  %v1025 = vrot.slane %v1020, 6
  %v1026 = vsel %vm1023, %v1024, %v1025
  %v1028 = vsel %vm931, %v1026, 0.0
  %v1029 = vrot.slane %v1028, 4
  %v1030 = vadd.f32 %v1028, %v1029
  %v1031 = vrot.slane %v1030, 2
  %v1032 = vadd.f32 %v1030, %v1031
  %v1033 = vrot.slane %v1032, 1
  %v1034 = vadd.f32 %v1032, %v1033
  %v1035 = vrcp.pop %v1034
  %v1036 = vmul.f32 %v1018, %v1035
  %v1037 = vmul.f32 %v1020, %v1035
  %1039 = vset.pattern.permute.xlu0 0
  %1040 = vperm.xlu0 %1039, %v1036
  %v1041 = vpop.permute.xlu0 %1040
  %1044 = vset.pattern.permute.xlu0 0
  %1045 = vperm.xlu0 %1044, %v1037
  %v1046 = vpop.permute.xlu0 %1045
  %v1048 = vmul.f32 %v1041, %v750
  %v1049 = vmul.f32 %v1046, %v753
  %v1052 = vrot.slane %v1048, 6
  %v1053 = vrot.slane %v1049, 6
  %v1054 = vsel %vm1023, %v1052, %v1053
  %v1056 = vsel %vm957, %v1054, 0.0
  %v1057 = vrot.slane %v1056, 4
  %v1058 = vadd.f32 %v1056, %v1057
  %v1059 = vrot.slane %v1058, 2
  %v1060 = vadd.f32 %v1058, %v1059
  %v1061 = vrot.slane %v1060, 1
  %v1062 = vadd.f32 %v1060, %v1061
  %vm1063 = vcmask 1040384
  %v1064 = vsel %vm1063, %v930, %v1003
  %v1065 = vsel %vm1063, %v964, %v1062
  %1067 = vrot.lane.b32.xlu0 %v1064, 32
  %v1068 = vpop.permute.xlu0 %1067
  %v1070 = vsel %vm357, %v1065, %v1068
  %vm1071 = vcmask 517120
  %1072 = vst.msk [vmem:[%s10] sm:$0x3] %vm1071, %v1070
  %v1073 = vld [vmem:[%s4] sm:$0xf]
  %v1074 = vld [vmem:[%s4 + $0x4] sm:$0xf]
  %v1075 = vld [vmem:[%s4 + $0x8] sm:$0xf]
  %v1076 = vld [vmem:[%s4 + $0xc] sm:$0xf]
  %v1077 = vld [vmem:[%s4 + $0x10] sm:$0xf]
  %v1078 = vld [vmem:[%s4 + $0x14] sm:$0xf]
  %v1079 = vld [vmem:[%s4 + $0x18] sm:$0xf]
  %v1080 = vld [vmem:[%s4 + $0x1c] sm:$0xf]
  %v1081 = vpack.c.bf16 %v1070, %v1070
  %v1082 = vld [vmem:[%s5] sm:$0x1]
  %v1084 = vlaneseq
  %v1085 = vshrl.u32 %v1084, 7
  %v1086 = vsub.s32 0, %v1085
  %v1087 = vrot.slane %v1082, %v1086
  %v1096 = vunpack.c.l.b16 %v1073
  %v1097 = vunpack.c.l.b16 %v1074
  %v1098 = vunpack.c.l.b16 %v1075
  %v1099 = vunpack.c.l.b16 %v1076
  %v1100 = vunpack.c.l.b16 %v1077
  %v1101 = vunpack.c.l.b16 %v1078
  %v1102 = vunpack.c.l.b16 %v1079
  %v1103 = vunpack.c.l.b16 %v1080
  %v1104 = vpack.c.b16 %v1097, %v1096
  %v1105 = vpack.c.b16 %v1099, %v1098
  %v1106 = vpack.c.b16 %v1101, %v1100
  %v1107 = vpack.c.b16 %v1103, %v1102
  %1112 = vrot.lane.b32.xlu0 %v1087, 32
  %v1113 = vpop.permute.xlu0 %1112
  %v1116 = vsel %vm207, %v1081, 0
  %1118 = vmatprep.subr.bf16.mxu0 0
  %1119 = vmatpush1.bf16.msra.mxu0 %v1104
  %1120 = vmatprep.subr.bf16.mxu0 0
  %1121 = vmatpush1.bf16.msra.mxu0 %v1105
  %1122 = vmatprep.subr.bf16.mxu0 0
  %1123 = vmatpush1.bf16.msra.mxu0 %v1106
  %1124 = vmatprep.subr.bf16.mxu0 0
  %1125 = vmatpush1.bf16.msra.mxu0 %v1107
  %1126 = vmatprep.subr.bf16.mxu0 0
  %1127 = vmatpush1.bf16.msra.mxu0 0
  %1128 = vmatprep.subr.bf16.mxu0 0
  %1129 = vmatpush1.bf16.msra.mxu0 0
  %1130 = vmatprep.subr.bf16.mxu0 0
  %1131 = vmatpush1.bf16.msra.mxu0 0
  %1132 = vmatprep.subr.bf16.mxu0 0
  %1133 = vmatpush1.bf16.msra.mxu0 0
  %1134 = vmatprep.subr.bf16.mxu0 0
  %1135 = vmatpush1.bf16.msra.mxu0 0
  %1136 = vmatprep.subr.bf16.mxu0 0
  %1137 = vmatpush1.bf16.msra.mxu0 0
  %1138 = vmatprep.subr.bf16.mxu0 0
  %1139 = vmatpush1.bf16.msra.mxu0 0
  %1140 = vmatprep.subr.bf16.mxu0 0
  %1141 = vmatpush1.bf16.msra.mxu0 0
  %1142 = vmatprep.subr.bf16.mxu0 0
  %1143 = vmatpush1.bf16.msra.mxu0 0
  %1144 = vmatprep.subr.bf16.mxu0 0
  %1145 = vmatpush1.bf16.msra.mxu0 0
  %1146 = vmatprep.subr.bf16.mxu0 0
  %1147 = vmatpush1.bf16.msra.mxu0 0
  %1148 = vmatprep.subr.bf16.mxu0 0
  %1149 = vmatpush1.bf16.msra.mxu0 0
  %1150 = vmatprep.mubr.bf16.mxu0 0
  %1151 = vmatmul.mubr.bf16.gmra.mrb[0].mxu0 %v1116
  %v1152 = vpop.f32.mrb[0].mxu0
  %v1153 = vadd.f32 %v1113, %v1152
  %v1154 = vpop.f32.mrb[0].mxu0
  %v1155 = vpop.f32.mrb[0].mxu0
  %v1156 = vpop.f32.mrb[0].mxu0
  %1157 = vdwg.mxu0
  %v1158 = vld [vmem:[%s3 + $0x4] sm:$0xf]
  %v1159 = vld [vmem:[%s3 + $0xc] sm:$0xf]
  %v1160 = vld [vmem:[%s3 + $0x14] sm:$0xf]
  %v1161 = vld [vmem:[%s3 + $0x1c] sm:$0xf]
  %v1162 = vpack.c.bf16 %v1153, %v1153
  %v1163 = vld [vmem:[%s5 + $0x1] sm:$0x1]
  %v1165 = vlaneseq
  %v1166 = vshrl.u32 %v1165, 7
  %v1167 = vsub.s32 0, %v1166
  %v1168 = vrot.slane %v1163, %v1167
  %v1174 = vunpack.c.l.b16 %v1158
  %v1175 = vunpack.c.l.b16 %v1159
  %v1176 = vunpack.c.l.b16 %v1160
  %v1177 = vunpack.c.l.b16 %v1161
  %v1178 = vpack.c.b16 %v1175, %v1174
  %v1179 = vpack.c.b16 %v1177, %v1176
  %1180 = vrot.lane.b32.xlu0 %v1178, 126
  %v1181 = vpop.permute.xlu0 %1180
  %1182 = vrot.lane.b32.xlu0 %v1179, 126
  %v1183 = vpop.permute.xlu0 %1182
  %v1187 = vsel %vm357, %v1162, 0
  %1189 = vmatprep.subr.bf16.mxu0 0
  %1190 = vmatpush1.bf16.msra.mxu0 %v1181
  %1191 = vmatprep.subr.bf16.mxu0 0
  %1192 = vmatpush1.bf16.msra.mxu0 %v1183
  %1193 = vmatprep.subr.bf16.mxu0 0
  %1194 = vmatpush1.bf16.msra.mxu0 0
  %1195 = vmatprep.subr.bf16.mxu0 0
  %1196 = vmatpush1.bf16.msra.mxu0 0
  %1197 = vmatprep.subr.bf16.mxu0 0
  %1198 = vmatpush1.bf16.msra.mxu0 0
  %1199 = vmatprep.subr.bf16.mxu0 0
  %1200 = vmatpush1.bf16.msra.mxu0 0
  %1201 = vmatprep.subr.bf16.mxu0 0
  %1202 = vmatpush1.bf16.msra.mxu0 0
  %1203 = vmatprep.subr.bf16.mxu0 0
  %1204 = vmatpush1.bf16.msra.mxu0 0
  %1205 = vmatprep.subr.bf16.mxu0 0
  %1206 = vmatpush1.bf16.msra.mxu0 0
  %1207 = vmatprep.subr.bf16.mxu0 0
  %1208 = vmatpush1.bf16.msra.mxu0 0
  %1209 = vmatprep.subr.bf16.mxu0 0
  %1210 = vmatpush1.bf16.msra.mxu0 0
  %1211 = vmatprep.subr.bf16.mxu0 0
  %1212 = vmatpush1.bf16.msra.mxu0 0
  %1213 = vmatprep.subr.bf16.mxu0 0
  %1214 = vmatpush1.bf16.msra.mxu0 0
  %1215 = vmatprep.subr.bf16.mxu0 0
  %1216 = vmatpush1.bf16.msra.mxu0 0
  %1217 = vmatprep.subr.bf16.mxu0 0
  %1218 = vmatpush1.bf16.msra.mxu0 0
  %1219 = vmatprep.subr.bf16.mxu0 0
  %1220 = vmatpush1.bf16.msra.mxu0 0
  %1221 = vmatprep.mubr.bf16.mxu0 0
  %1222 = vmatmul.mubr.bf16.gmra.mrb[0].mxu0 %v1187
  %v1223 = vpop.f32.mrb[0].mxu0
  %v1224 = vadd.f32 %v1168, %v1223
  %v1225 = vpop.f32.mrb[0].mxu0
  %v1226 = vpop.f32.mrb[0].mxu0
  %v1227 = vpop.f32.mrb[0].mxu0
  %1228 = vdwg.mxu0
  %v1229 = vsub.f32 0.0, %v1224
  %v1230 = vmul.f32 %v1229, 1.442695
  %v1231 = vpow.pop %v1230
  %v1232 = vadd.f32 %v1231, 1.0
  %v1233 = vrcp.pop %v1232
  %v1234 = vmul.f32 1.0, %v1233
  %1236 = vset.pattern.permute.xlu0 0
  %1237 = vperm.xlu0 %1236, %v1234
  %v1238 = vpop.permute.xlu0 %1237
  %v1240 = vmul.f32 %v1238, %v1064
  %v1241 = vsub.f32 1.0, %v1234
  %1243 = vset.pattern.permute.xlu0 0
  %1244 = vperm.xlu0 %1243, %v1241
  %v1245 = vpop.permute.xlu0 %1244
  %v1247 = vmul.f32 %v1245, %v1065
  %v1248 = vadd.f32 %v1240, %v1247
  %v1249 = vld [vmem:[%s3] sm:$0xf]
  %v1250 = vld [vmem:[%s3 + $0x8] sm:$0xf]
  %v1251 = vld [vmem:[%s3 + $0x10] sm:$0xf]
  %v1252 = vld [vmem:[%s3 + $0x18] sm:$0xf]
  %v1253 = vpack.c.bf16 %v1065, %v1065
  %v1258 = vunpack.c.l.b16 %v1249
  %v1259 = vunpack.c.l.b16 %v1250
  %v1260 = vunpack.c.l.b16 %v1251
  %v1261 = vunpack.c.l.b16 %v1252
  %v1262 = vpack.c.b16 %v1259, %v1258
  %v1263 = vpack.c.b16 %v1261, %v1260
  %1264 = vrot.lane.b32.xlu0 %v1262, 32
  %v1265 = vpop.permute.xlu0 %1264
  %1266 = vrot.lane.b32.xlu0 %v1263, 32
  %v1267 = vpop.permute.xlu0 %1266
  %1270 = vrot.lane.b32.xlu0 %v1087, 64
  %v1271 = vpop.permute.xlu0 %1270
  %v1274 = vsel %vm357, %v1253, 0
  %1276 = vmatprep.subr.bf16.mxu0 0
  %1277 = vmatpush1.bf16.msra.mxu0 %v1265
  %1278 = vmatprep.subr.bf16.mxu0 0
  %1279 = vmatpush1.bf16.msra.mxu0 %v1267
  %1280 = vmatprep.subr.bf16.mxu0 0
  %1281 = vmatpush1.bf16.msra.mxu0 0
  %1282 = vmatprep.subr.bf16.mxu0 0
  %1283 = vmatpush1.bf16.msra.mxu0 0
  %1284 = vmatprep.subr.bf16.mxu0 0
  %1285 = vmatpush1.bf16.msra.mxu0 0
  %1286 = vmatprep.subr.bf16.mxu0 0
  %1287 = vmatpush1.bf16.msra.mxu0 0
  %1288 = vmatprep.subr.bf16.mxu0 0
  %1289 = vmatpush1.bf16.msra.mxu0 0
  %1290 = vmatprep.subr.bf16.mxu0 0
  %1291 = vmatpush1.bf16.msra.mxu0 0
  %1292 = vmatprep.subr.bf16.mxu0 0
  %1293 = vmatpush1.bf16.msra.mxu0 0
  %1294 = vmatprep.subr.bf16.mxu0 0
  %1295 = vmatpush1.bf16.msra.mxu0 0
  %1296 = vmatprep.subr.bf16.mxu0 0
  %1297 = vmatpush1.bf16.msra.mxu0 0
  %1298 = vmatprep.subr.bf16.mxu0 0
  %1299 = vmatpush1.bf16.msra.mxu0 0
  %1300 = vmatprep.subr.bf16.mxu0 0
  %1301 = vmatpush1.bf16.msra.mxu0 0
  %1302 = vmatprep.subr.bf16.mxu0 0
  %1303 = vmatpush1.bf16.msra.mxu0 0
  %1304 = vmatprep.subr.bf16.mxu0 0
  %1305 = vmatpush1.bf16.msra.mxu0 0
  %1306 = vmatprep.subr.bf16.mxu0 0
  %1307 = vmatpush1.bf16.msra.mxu0 0
  %1308 = vmatprep.mubr.bf16.mxu0 0
  %1309 = vmatmul.mubr.bf16.gmra.mrb[0].mxu0 %v1274
  %v1310 = vpop.f32.mrb[0].mxu0
  %v1311 = vadd.f32 %v1271, %v1310
  %v1312 = vpop.f32.mrb[0].mxu0
  %v1313 = vpop.f32.mrb[0].mxu0
  %v1314 = vpop.f32.mrb[0].mxu0
  %1315 = vdwg.mxu0
  %v1317 = vrot.slane %v1311, 6
  %v1319 = vsel %vm1023, %v1248, %v1317
  %v1320 = vpack.c.bf16 %v1319, %v1319
  %v1321 = vld [vmem:[%s5 + $0x1] sm:$0x3]
  %v1323 = vlaneseq
  %v1324 = vshrl.u32 %v1323, 7
  %v1325 = vsub.s32 0, %v1324
  %v1326 = vrot.slane %v1321, %v1325
  %v1327 = vlaneseq
  %v1328 = vshrl.u32 %v1327, 7
  %v1329 = vsub.s32 1, %v1328
  %v1330 = vrot.slane %v1321, %v1329
  %1331 = vrot.lane.b32.xlu0 %v1326, 64
  %v1332 = vpop.permute.xlu0 %1331
  %1333 = vrot.lane.b32.xlu0 %v1330, 64
  %v1334 = vpop.permute.xlu0 %1333
  %v1335 = vsel %vm207, %v1332, %v1334
  %v1337 = vsel %vm1023, %v1168, %v1335
  %1339 = vrot.lane.b32.xlu0 %v1337, 127
  %v1340 = vpop.permute.xlu0 %1339
  %v1343 = vsel %vm357, %v1320, 0
  %v1346 = vsel %vm357, %v531, 0
  %v1349 = vsel %vm357, %v533, 0
  %v1352 = vsel %vm357, %v535, 0
  %v1355 = vsel %vm357, %v537, 0
  %1357 = vmatprep.subr.bf16.mxu0 0
  %1358 = vmatpush1.bf16.xpose.msra.mxu0 %v1346
  %1359 = vmatprep.subr.bf16.mxu0 0
  %1360 = vmatpush1.bf16.xpose.msra.mxu0 %v1349
  %1361 = vmatprep.subr.bf16.mxu0 0
  %1362 = vmatpush1.bf16.xpose.msra.mxu0 %v1352
  %1363 = vmatprep.subr.bf16.mxu0 0
  %1364 = vmatpush1.bf16.xpose.msra.mxu0 %v1355
  %1365 = vmatprep.subr.bf16.mxu0 0
  %1366 = vmatpush1.bf16.xpose.msra.mxu0 0
  %1367 = vmatprep.subr.bf16.mxu0 0
  %1368 = vmatpush1.bf16.xpose.msra.mxu0 0
  %1369 = vmatprep.subr.bf16.mxu0 0
  %1370 = vmatpush1.bf16.xpose.msra.mxu0 0
  %1371 = vmatprep.subr.bf16.mxu0 0
  %1372 = vmatpush1.bf16.xpose.msra.mxu0 0
  %1373 = vmatprep.subr.bf16.mxu0 0
  %1374 = vmatpush1.bf16.xpose.msra.mxu0 0
  %1375 = vmatprep.subr.bf16.mxu0 0
  %1376 = vmatpush1.bf16.xpose.msra.mxu0 0
  %1377 = vmatprep.subr.bf16.mxu0 0
  %1378 = vmatpush1.bf16.xpose.msra.mxu0 0
  %1379 = vmatprep.subr.bf16.mxu0 0
  %1380 = vmatpush1.bf16.xpose.msra.mxu0 0
  %1381 = vmatprep.subr.bf16.mxu0 0
  %1382 = vmatpush1.bf16.xpose.msra.mxu0 0
  %1383 = vmatprep.subr.bf16.mxu0 0
  %1384 = vmatpush1.bf16.xpose.msra.mxu0 0
  %1385 = vmatprep.subr.bf16.mxu0 0
  %1386 = vmatpush1.bf16.xpose.msra.mxu0 0
  %1387 = vmatprep.subr.bf16.mxu0 0
  %1388 = vmatpush1.bf16.xpose.msra.mxu0 0
  %1389 = vmatprep.mubr.bf16.mxu0 0
  %1390 = vmatmul.mubr.bf16.gmra.mrb[0].mxu0 %v1343
  %v1391 = vpop.f32.mrb[0].mxu0
  %v1392 = vadd.f32 %v1340, %v1391
  %v1393 = vpop.f32.mrb[0].mxu0
  %v1394 = vpop.f32.mrb[0].mxu0
  %v1395 = vpop.f32.mrb[0].mxu0
  %1396 = vdwg.mxu0
  %vm1397 = vcmask 519168
  %1398 = vst.msk [vmem:[%s11] sm:$0xf] %vm1397, %v1392
  // Predicated region
  $region34: #{forward.2} parent=0 // pred_check
    _
  $region35: #{forward.2} parent=0 // pred_check_branch
    %1400 = sbr.rel (0) target = $region37
  $region36: #{forward.2} parent=0 // pred_region
    _
  $region37: #{forward.2} parent=0 // pred_fallthru
    _
  // Predicated region
  $region38: #{forward.2} parent=0 // pred_check
    _
  $region39: #{forward.2} parent=0 // pred_check_branch
    %1402 = sbr.rel (0) target = $region41
  $region40: #{forward.2} parent=0 // pred_region
    _
  $region41: #{forward.2} parent=0 // pred_fallthru
    _
  // Predicated region
  $region42: #{forward.2} parent=0 // pred_check
    _
  $region43: #{forward.2} parent=0 // pred_check_branch
    %1404 = sbr.rel (0) target = $region45
  $region44: #{forward.2} parent=0 // pred_region
    _
  $region45: #{forward.2} parent=0 // pred_fallthru
    _
  // Predicated region
  $region46: #{forward.2} parent=0 // pred_check
    _
  $region47: #{forward.2} parent=0 // pred_check_branch
    %1406 = sbr.rel (0) target = $region49
  $region48: #{forward.2} parent=0 // pred_region
    _
  $region49: #{forward.2} parent=0 // pred_fallthru
    _
  // Predicated region
  $region50: #{forward.2} parent=0 // pred_check
    _
  $region51: #{forward.2} parent=0 // pred_check_branch
    %1408 = sbr.rel (0) target = $region53
  $region52: #{forward.2} parent=0 // pred_region
    _
  $region53: #{forward.2} parent=0 // pred_fallthru
    _
  // Predicated region
  $region54: #{forward.2} parent=0 // pred_check
    _
  $region55: #{forward.2} parent=0 // pred_check_branch
    %1410 = sbr.rel (0) target = $region57
  $region56: #{forward.2} parent=0 // pred_region
    _
  $region57: #{forward.2} parent=0 // pred_fallthru
    _
  // Predicated region
  $region58: #{forward.2} parent=0 // pred_check
    _
  $region59: #{forward.2} parent=0 // pred_check_branch
    %1412 = sbr.rel (0) target = $region61
  $region60: #{forward.2} parent=0 // pred_region
    _
  $region61: #{forward.2} parent=0 // pred_fallthru
    _
  // Predicated region
  $region62: #{forward.2} parent=0 // pred_check
    _
  $region63: #{forward.2} parent=0 // pred_check_branch
    %1414 = sbr.rel (0) target = $region65
  $region64: #{forward.2} parent=0 // pred_region
    _
  $region65: #{forward.2} parent=0 // pred_fallthru
    _

// kernel: forward.3
$region0: #{forward.3}
  #allocation0 [shape = 'u32[]', space=smem, size = 0x4, offset = 0x4, fixed_abs, tag = 'smem constant byte address 0x4 - core index']
  #allocation1 [shape = 'u32[144,128]{1,0:T(1,128)}', space=vmem, size = 0x12000, scoped, tag = 'internal scratch']
  %s0 = inlined_call_operand.vmem [shape: f32[16,32], index: 0, kind: input, shape index: {}]
  %s1 = inlined_call_operand.vmem [shape: f32[16,1], index: 1, kind: input, shape index: {}]
  %s2 = inlined_call_operand.vmem [shape: f32[2,8], index: 2, kind: input, shape index: {}]
  %s3 = inlined_call_operand.vmem [shape: f32[16,32], index: 3, kind: input, shape index: {}]
  %s4 = inlined_call_operand.vmem [shape: f32[12,32], index: 4, kind: input, shape index: {}]
  %s5 = inlined_call_operand.vmem [shape: f32[2,6], index: 5, kind: input, shape index: {}]
  %s6 = inlined_call_operand.vmem [shape: f32[16,32], index: 6, kind: input, shape index: {}]
  %s7 = inlined_call_operand.vmem [shape: f32[2,8], index: 7, kind: input, shape index: {}]
  %s8 = inlined_call_operand.vmem [shape: f32[2,64], index: 8, kind: input, shape index: {}]
  %s9 = inlined_call_operand.vmem [shape: bf16[32,960], index: 9, kind: input, shape index: {}]
  %s10 = inlined_call_operand.vmem [shape: bf16[64,160], index: 10, kind: input, shape index: {}]
  %s11 = inlined_call_operand.vmem [shape: f32[1,1696], index: 11, kind: input, shape index: {}]
  %s12 = inlined_call_operand.vmem [shape: bf16[32,256], index: 12, kind: input, shape index: {}]
  %s13 = inlined_call_operand.vmem [shape: f32[16,128], index: 13, kind: output, shape index: {0}]
  %s14 = inlined_call_operand.vmem [shape: f32[16,128], index: 14, kind: output, shape index: {1}]
  %15 = xla_tuple %s13, %s14
  %s16 = sld [smem:[#allocation0]]
  $region70: #{forward.3} parent=0
    _
  %s18 = ssub.s32 1, %s16
  %s19 = scalar_select 0, %s18, %s16
  // Predicated region
  $region2: #{forward.3} parent=0 // pred_check
    _
  $region3: #{forward.3} parent=0 // pred_check_branch
    %21 = sbr.rel (0) target = $region5
  $region4: #{forward.3} parent=0 // pred_region
    _
  $region5: #{forward.3} parent=0 // pred_fallthru
    _
  // Predicated region
  $region6: #{forward.3} parent=0 // pred_check
    _
  $region7: #{forward.3} parent=0 // pred_check_branch
    %23 = sbr.rel (0) target = $region9
  $region8: #{forward.3} parent=0 // pred_region
    _
  $region9: #{forward.3} parent=0 // pred_fallthru
    _
  // Predicated region
  $region10: #{forward.3} parent=0 // pred_check
    _
  $region11: #{forward.3} parent=0 // pred_check_branch
    %25 = sbr.rel (0) target = $region13
  $region12: #{forward.3} parent=0 // pred_region
    _
  $region13: #{forward.3} parent=0 // pred_fallthru
    _
  // Predicated region
  $region14: #{forward.3} parent=0 // pred_check
    _
  $region15: #{forward.3} parent=0 // pred_check_branch
    %27 = sbr.rel (0) target = $region17
  $region16: #{forward.3} parent=0 // pred_region
    _
  $region17: #{forward.3} parent=0 // pred_fallthru
    _
  // Predicated region
  $region18: #{forward.3} parent=0 // pred_check
    _
  $region19: #{forward.3} parent=0 // pred_check_branch
    %29 = sbr.rel (0) target = $region21
  $region20: #{forward.3} parent=0 // pred_region
    _
  $region21: #{forward.3} parent=0 // pred_fallthru
    _
  // Predicated region
  $region22: #{forward.3} parent=0 // pred_check
    _
  $region23: #{forward.3} parent=0 // pred_check_branch
    %31 = sbr.rel (0) target = $region25
  $region24: #{forward.3} parent=0 // pred_region
    _
  $region25: #{forward.3} parent=0 // pred_fallthru
    _
  // Predicated region
  $region26: #{forward.3} parent=0 // pred_check
    _
  $region27: #{forward.3} parent=0 // pred_check_branch
    %33 = sbr.rel (0) target = $region29
  $region28: #{forward.3} parent=0 // pred_region
    _
  $region29: #{forward.3} parent=0 // pred_fallthru
    _
  // Predicated region
  $region30: #{forward.3} parent=0 // pred_check
    _
  $region31: #{forward.3} parent=0 // pred_check_branch
    %35 = sbr.rel (0) target = $region33
  $region32: #{forward.3} parent=0 // pred_region
    _
  $region33: #{forward.3} parent=0 // pred_fallthru
    _
  // Predicated region
  $region34: #{forward.3} parent=0 // pred_check
    _
  $region35: #{forward.3} parent=0 // pred_check_branch
    %37 = sbr.rel (0) target = $region37
  $region36: #{forward.3} parent=0 // pred_region
    _
  $region37: #{forward.3} parent=0 // pred_fallthru
    _
  // Predicated region
  $region38: #{forward.3} parent=0 // pred_check
    _
  $region39: #{forward.3} parent=0 // pred_check_branch
    %39 = sbr.rel (0) target = $region41
  $region40: #{forward.3} parent=0 // pred_region
    _
  $region41: #{forward.3} parent=0 // pred_fallthru
    _
  // Predicated region
  $region42: #{forward.3} parent=0 // pred_check
    _
  $region43: #{forward.3} parent=0 // pred_check_branch
    %41 = sbr.rel (0) target = $region45
  $region44: #{forward.3} parent=0 // pred_region
    _
  $region45: #{forward.3} parent=0 // pred_fallthru
    _
  // Predicated region
  $region46: #{forward.3} parent=0 // pred_check
    _
  $region47: #{forward.3} parent=0 // pred_check_branch
    %43 = sbr.rel (0) target = $region49
  $region48: #{forward.3} parent=0 // pred_region
    _
  $region49: #{forward.3} parent=0 // pred_fallthru
    _
  // Predicated region
  $region50: #{forward.3} parent=0 // pred_check
    _
  $region51: #{forward.3} parent=0 // pred_check_branch
    %45 = sbr.rel (0) target = $region53
  $region52: #{forward.3} parent=0 // pred_region
    _
  $region53: #{forward.3} parent=0 // pred_fallthru
    _
  %v47 = vld [vmem:[%s2] sm:$0x3]
  %v48 = vld [vmem:[%s1] sm:$0xff]
  %v49 = vld [vmem:[%s1 + $0x8] sm:$0xff]
  %v50 = vld [vmem:[%s5] sm:$0x3]
  %v51 = vld [vmem:[%s7] sm:$0x3]
  %v52 = vld [vmem:[%s0] sm:$0xff]
  %v53 = vld [vmem:[%s0 + $0x8] sm:$0xff]
  %55 = vset.pattern.permute.xlu0 0
  %56 = vperm.xlu0 %55, %v48
  %v57 = vpop.permute.xlu0 %56
  %60 = vset.pattern.permute.xlu0 0
  %61 = vperm.xlu0 %60, %v49
  %v62 = vpop.permute.xlu0 %61
  %v64 = vmul.f32 %v52, %v57
  %v65 = vmul.f32 %v53, %v62
  %v66 = vld [vmem:[%s9] sm:$0xf]
  %v67 = vld [vmem:[%s9 + $0x20] sm:$0xf]
  %v68 = vld [vmem:[%s9 + $0x40] sm:$0xf]
  %v69 = vld [vmem:[%s9 + $0x60] sm:$0xf]
  %v70 = vpack.c.bf16 %v65, %v64
  %v71 = vld [vmem:[%s11] sm:$0x1]
  %v73 = vlaneseq
  %v74 = vshrl.u32 %v73, 7
  %v75 = vsub.s32 0, %v74
  %v76 = vrot.slane %v71, %v75
  %v82 = vunpack.c.l.b16 %v66
  %v83 = vunpack.c.l.b16 %v67
  %v84 = vunpack.c.l.b16 %v68
  %v85 = vunpack.c.l.b16 %v69
  %v86 = vpack.c.b16 %v83, %v82
  %v87 = vpack.c.b16 %v85, %v84
  %vm90 = vcmask 261120
  %v92 = vsel %vm90, %v70, 0
  %94 = vmatprep.subr.bf16.mxu0 0
  %95 = vmatpush1.bf16.msra.mxu0 %v86
  %96 = vmatprep.subr.bf16.mxu0 0
  %97 = vmatpush1.bf16.msra.mxu0 %v87
  %98 = vmatprep.subr.bf16.mxu0 0
  %99 = vmatpush1.bf16.msra.mxu0 0
  %100 = vmatprep.subr.bf16.mxu0 0
  %101 = vmatpush1.bf16.msra.mxu0 0
  %102 = vmatprep.subr.bf16.mxu0 0
  %103 = vmatpush1.bf16.msra.mxu0 0
  %104 = vmatprep.subr.bf16.mxu0 0
  %105 = vmatpush1.bf16.msra.mxu0 0
  %106 = vmatprep.subr.bf16.mxu0 0
  %107 = vmatpush1.bf16.msra.mxu0 0
  %108 = vmatprep.subr.bf16.mxu0 0
  %109 = vmatpush1.bf16.msra.mxu0 0
  %110 = vmatprep.subr.bf16.mxu0 0
  %111 = vmatpush1.bf16.msra.mxu0 0
  %112 = vmatprep.subr.bf16.mxu0 0
  %113 = vmatpush1.bf16.msra.mxu0 0
  %114 = vmatprep.subr.bf16.mxu0 0
  %115 = vmatpush1.bf16.msra.mxu0 0
  %116 = vmatprep.subr.bf16.mxu0 0
  %117 = vmatpush1.bf16.msra.mxu0 0
  %118 = vmatprep.subr.bf16.mxu0 0
  %119 = vmatpush1.bf16.msra.mxu0 0
  %120 = vmatprep.subr.bf16.mxu0 0
  %121 = vmatpush1.bf16.msra.mxu0 0
  %122 = vmatprep.subr.bf16.mxu0 0
  %123 = vmatpush1.bf16.msra.mxu0 0
  %124 = vmatprep.subr.bf16.mxu0 0
  %125 = vmatpush1.bf16.msra.mxu0 0
  %126 = vmatprep.mubr.bf16.mxu0 0
  %127 = vmatmul.mubr.bf16.gmra.mrb[0].mxu0 %v92
  %v128 = vpop.f32.mrb[0].mxu0
  %v129 = vadd.f32 %v76, %v128
  %v130 = vpop.f32.mrb[0].mxu0
  %v131 = vpop.f32.mrb[0].mxu0
  %v132 = vadd.f32 %v76, %v131
  %v133 = vpop.f32.mrb[0].mxu0
  %134 = vdwg.mxu0
  %vm135 = vcmp.gt.f32.partialorder %v47, 0.0
  %v136 = vsel %vm135, 1, 0
  %v137 = vlaneseq
  %v138 = vshrl.u32 %v137, 7
  %v139 = vsub.s32 0, %v138
  %v140 = vrot.slane %v136, %v139
  %vm141 = vcmp.eq.s32.totalorder %v140, 1
  %v142 = vpack.c.bf16 %v129, %v129
  %144 = vrot.lane.b32.xlu0 %v142, 96
  %v145 = vpop.permute.xlu0 %144
  %vm146 = vcmask 130048
  %v148 = vsel %vm146, %v142, 0
  %v151 = vsel %vm146, %v145, 0
  %153 = vmatprep.subr.bf16.mxu0 0
  %154 = vmatpush1.bf16.xpose.msra.mxu0 %v151
  %155 = vmatprep.subr.bf16.mxu0 0
  %156 = vmatpush1.bf16.xpose.msra.mxu0 0
  %157 = vmatprep.subr.bf16.mxu0 0
  %158 = vmatpush1.bf16.xpose.msra.mxu0 0
  %159 = vmatprep.subr.bf16.mxu0 0
  %160 = vmatpush1.bf16.xpose.msra.mxu0 0
  %161 = vmatprep.subr.bf16.mxu0 0
  %162 = vmatpush1.bf16.xpose.msra.mxu0 0
  %163 = vmatprep.subr.bf16.mxu0 0
  %164 = vmatpush1.bf16.xpose.msra.mxu0 0
  %165 = vmatprep.subr.bf16.mxu0 0
  %166 = vmatpush1.bf16.xpose.msra.mxu0 0
  %167 = vmatprep.subr.bf16.mxu0 0
  %168 = vmatpush1.bf16.xpose.msra.mxu0 0
  %169 = vmatprep.subr.bf16.mxu0 0
  %170 = vmatpush1.bf16.xpose.msra.mxu0 0
  %171 = vmatprep.subr.bf16.mxu0 0
  %172 = vmatpush1.bf16.xpose.msra.mxu0 0
  %173 = vmatprep.subr.bf16.mxu0 0
  %174 = vmatpush1.bf16.xpose.msra.mxu0 0
  %175 = vmatprep.subr.bf16.mxu0 0
  %176 = vmatpush1.bf16.xpose.msra.mxu0 0
  %177 = vmatprep.subr.bf16.mxu0 0
  %178 = vmatpush1.bf16.xpose.msra.mxu0 0
  %179 = vmatprep.subr.bf16.mxu0 0
  %180 = vmatpush1.bf16.xpose.msra.mxu0 0
  %181 = vmatprep.subr.bf16.mxu0 0
  %182 = vmatpush1.bf16.xpose.msra.mxu0 0
  %183 = vmatprep.subr.bf16.mxu0 0
  %184 = vmatpush1.bf16.xpose.msra.mxu0 0
  %185 = vmatprep.mubr.bf16.mxu0 0
  %186 = vmatmul.mubr.bf16.gmra.mrb[0].mxu0 %v148
  %v187 = vpop.f32.mrb[0].mxu0
  %v188 = vadd.f32 0.0, %v187
  %v189 = vpop.f32.mrb[0].mxu0
  %v190 = vpop.f32.mrb[0].mxu0
  %v191 = vpop.f32.mrb[0].mxu0
  %192 = vdwg.mxu0
  %v193 = vsel %vm141, %v188, -1e+30
  %vm194 = vcmask 64512
  %v195 = vsel %vm194, %v193, -inf
  %196 = vmax.xlane.f32.xlu0 %v195
  %v197 = vpop.xlane.xlu0 %196
  %v198 = vsub.f32 %v193, %v197
  %v199 = vmul.f32 %v198, 1.442695
  %v200 = vpow.pop %v199
  %v201 = vsel %vm194, %v200, 0.0
  %202 = vadd.xlane.f32.xlu0 %v201
  %v203 = vpop.xlane.xlu0 %202
  %v204 = vrcp.pop %v203
  %v205 = vmul.f32 %v200, %v204
  %v206 = vpack.c.bf16 %v205, %v205
  %207 = vrot.lane.b32.xlu0 %v142, 64
  %v208 = vpop.permute.xlu0 %207
  %v210 = vsel %vm194, %v206, 0
  %vm212 = vcmask 1043456
  %v214 = vsel %vm212, %v208, 0
  %216 = vmatprep.subr.bf16.mxu0 0
  %217 = vmatpush1.bf16.msra.mxu0 %v214
  %218 = vmatprep.subr.bf16.mxu0 0
  %219 = vmatpush1.bf16.msra.mxu0 0
  %220 = vmatprep.subr.bf16.mxu0 0
  %221 = vmatpush1.bf16.msra.mxu0 0
  %222 = vmatprep.subr.bf16.mxu0 0
  %223 = vmatpush1.bf16.msra.mxu0 0
  %224 = vmatprep.subr.bf16.mxu0 0
  %225 = vmatpush1.bf16.msra.mxu0 0
  %226 = vmatprep.subr.bf16.mxu0 0
  %227 = vmatpush1.bf16.msra.mxu0 0
  %228 = vmatprep.subr.bf16.mxu0 0
  %229 = vmatpush1.bf16.msra.mxu0 0
  %230 = vmatprep.subr.bf16.mxu0 0
  %231 = vmatpush1.bf16.msra.mxu0 0
  %232 = vmatprep.subr.bf16.mxu0 0
  %233 = vmatpush1.bf16.msra.mxu0 0
  %234 = vmatprep.subr.bf16.mxu0 0
  %235 = vmatpush1.bf16.msra.mxu0 0
  %236 = vmatprep.subr.bf16.mxu0 0
  %237 = vmatpush1.bf16.msra.mxu0 0
  %238 = vmatprep.subr.bf16.mxu0 0
  %239 = vmatpush1.bf16.msra.mxu0 0
  %240 = vmatprep.subr.bf16.mxu0 0
  %241 = vmatpush1.bf16.msra.mxu0 0
  %242 = vmatprep.subr.bf16.mxu0 0
  %243 = vmatpush1.bf16.msra.mxu0 0
  %244 = vmatprep.subr.bf16.mxu0 0
  %245 = vmatpush1.bf16.msra.mxu0 0
  %246 = vmatprep.subr.bf16.mxu0 0
  %247 = vmatpush1.bf16.msra.mxu0 0
  %248 = vmatprep.mubr.bf16.mxu0 0
  %249 = vmatmul.mubr.bf16.gmra.mrb[0].mxu0 %v210
  %v250 = vpop.f32.mrb[0].mxu0
  %v251 = vadd.f32 0.0, %v250
  %v252 = vpop.f32.mrb[0].mxu0
  %v253 = vpop.f32.mrb[0].mxu0
  %v254 = vpop.f32.mrb[0].mxu0
  %255 = vdwg.mxu0
  %256 = vrot.lane.b32.xlu0 %v142, 112
  %v257 = vpop.permute.xlu0 %256
  %258 = vrot.lane.b32.xlu0 %v142, 80
  %v259 = vpop.permute.xlu0 %258
  %v261 = vsel %vm146, %v257, 0
  %v264 = vsel %vm146, %v259, 0
  %266 = vmatprep.subr.bf16.mxu0 0
  %267 = vmatpush1.bf16.xpose.msra.mxu0 %v264
  %268 = vmatprep.subr.bf16.mxu0 0
  %269 = vmatpush1.bf16.xpose.msra.mxu0 0
  %270 = vmatprep.subr.bf16.mxu0 0
  %271 = vmatpush1.bf16.xpose.msra.mxu0 0
  %272 = vmatprep.subr.bf16.mxu0 0
  %273 = vmatpush1.bf16.xpose.msra.mxu0 0
  %274 = vmatprep.subr.bf16.mxu0 0
  %275 = vmatpush1.bf16.xpose.msra.mxu0 0
  %276 = vmatprep.subr.bf16.mxu0 0
  %277 = vmatpush1.bf16.xpose.msra.mxu0 0
  %278 = vmatprep.subr.bf16.mxu0 0
  %279 = vmatpush1.bf16.xpose.msra.mxu0 0
  %280 = vmatprep.subr.bf16.mxu0 0
  %281 = vmatpush1.bf16.xpose.msra.mxu0 0
  %282 = vmatprep.subr.bf16.mxu0 0
  %283 = vmatpush1.bf16.xpose.msra.mxu0 0
  %284 = vmatprep.subr.bf16.mxu0 0
  %285 = vmatpush1.bf16.xpose.msra.mxu0 0
  %286 = vmatprep.subr.bf16.mxu0 0
  %287 = vmatpush1.bf16.xpose.msra.mxu0 0
  %288 = vmatprep.subr.bf16.mxu0 0
  %289 = vmatpush1.bf16.xpose.msra.mxu0 0
  %290 = vmatprep.subr.bf16.mxu0 0
  %291 = vmatpush1.bf16.xpose.msra.mxu0 0
  %292 = vmatprep.subr.bf16.mxu0 0
  %293 = vmatpush1.bf16.xpose.msra.mxu0 0
  %294 = vmatprep.subr.bf16.mxu0 0
  %295 = vmatpush1.bf16.xpose.msra.mxu0 0
  %296 = vmatprep.subr.bf16.mxu0 0
  %297 = vmatpush1.bf16.xpose.msra.mxu0 0
  %298 = vmatprep.mubr.bf16.mxu0 0
  %299 = vmatmul.mubr.bf16.gmra.mrb[0].mxu0 %v261
  %v300 = vpop.f32.mrb[0].mxu0
  %v301 = vadd.f32 0.0, %v300
  %v302 = vpop.f32.mrb[0].mxu0
  %v303 = vpop.f32.mrb[0].mxu0
  %v304 = vpop.f32.mrb[0].mxu0
  %305 = vdwg.mxu0
  %v306 = vsel %vm141, %v301, -1e+30
  %v307 = vsel %vm194, %v306, -inf
  %308 = vmax.xlane.f32.xlu0 %v307
  %v309 = vpop.xlane.xlu0 %308
  %v310 = vsub.f32 %v306, %v309
  %v311 = vmul.f32 %v310, 1.442695
  %v312 = vpow.pop %v311
  %v313 = vsel %vm194, %v312, 0.0
  %314 = vadd.xlane.f32.xlu0 %v313
  %v315 = vpop.xlane.xlu0 %314
  %v316 = vrcp.pop %v315
  %v317 = vmul.f32 %v312, %v316
  %v318 = vpack.c.bf16 %v317, %v317
  %319 = vrot.lane.b32.xlu0 %v142, 48
  %v320 = vpop.permute.xlu0 %319
  %v322 = vsel %vm194, %v318, 0
  %v325 = vsel %vm212, %v320, 0
  %327 = vmatprep.subr.bf16.mxu0 0
  %328 = vmatpush1.bf16.msra.mxu0 %v325
  %329 = vmatprep.subr.bf16.mxu0 0
  %330 = vmatpush1.bf16.msra.mxu0 0
  %331 = vmatprep.subr.bf16.mxu0 0
  %332 = vmatpush1.bf16.msra.mxu0 0
  %333 = vmatprep.subr.bf16.mxu0 0
  %334 = vmatpush1.bf16.msra.mxu0 0
  %335 = vmatprep.subr.bf16.mxu0 0
  %336 = vmatpush1.bf16.msra.mxu0 0
  %337 = vmatprep.subr.bf16.mxu0 0
  %338 = vmatpush1.bf16.msra.mxu0 0
  %339 = vmatprep.subr.bf16.mxu0 0
  %340 = vmatpush1.bf16.msra.mxu0 0
  %341 = vmatprep.subr.bf16.mxu0 0
  %342 = vmatpush1.bf16.msra.mxu0 0
  %343 = vmatprep.subr.bf16.mxu0 0
  %344 = vmatpush1.bf16.msra.mxu0 0
  %345 = vmatprep.subr.bf16.mxu0 0
  %346 = vmatpush1.bf16.msra.mxu0 0
  %347 = vmatprep.subr.bf16.mxu0 0
  %348 = vmatpush1.bf16.msra.mxu0 0
  %349 = vmatprep.subr.bf16.mxu0 0
  %350 = vmatpush1.bf16.msra.mxu0 0
  %351 = vmatprep.subr.bf16.mxu0 0
  %352 = vmatpush1.bf16.msra.mxu0 0
  %353 = vmatprep.subr.bf16.mxu0 0
  %354 = vmatpush1.bf16.msra.mxu0 0
  %355 = vmatprep.subr.bf16.mxu0 0
  %356 = vmatpush1.bf16.msra.mxu0 0
  %357 = vmatprep.subr.bf16.mxu0 0
  %358 = vmatpush1.bf16.msra.mxu0 0
  %359 = vmatprep.mubr.bf16.mxu0 0
  %360 = vmatmul.mubr.bf16.gmra.mrb[0].mxu0 %v322
  %v361 = vpop.f32.mrb[0].mxu0
  %v362 = vadd.f32 0.0, %v361
  %v363 = vpop.f32.mrb[0].mxu0
  %v364 = vpop.f32.mrb[0].mxu0
  %v365 = vpop.f32.mrb[0].mxu0
  %366 = vdwg.mxu0
  %368 = vrot.lane.b32.xlu0 %v362, 16
  %v369 = vpop.permute.xlu0 %368
  %v371 = vsel %vm146, %v251, %v369
  %v372 = vlaneseq
  %v373 = vshrl.u32 %v372, 7
  %v374 = vsub.s32 1, %v373
  %v375 = vrot.slane %v136, %v374
  %vm376 = vcmp.eq.s32.totalorder %v375, 1
  %v377 = vpack.c.bf16 %v132, %v132
  %379 = vrot.lane.b32.xlu0 %v377, 96
  %v380 = vpop.permute.xlu0 %379
  %v382 = vsel %vm146, %v377, 0
  %v385 = vsel %vm146, %v380, 0
  %387 = vmatprep.subr.bf16.mxu0 0
  %388 = vmatpush1.bf16.xpose.msra.mxu0 %v385
  %389 = vmatprep.subr.bf16.mxu0 0
  %390 = vmatpush1.bf16.xpose.msra.mxu0 0
  %391 = vmatprep.subr.bf16.mxu0 0
  %392 = vmatpush1.bf16.xpose.msra.mxu0 0
  %393 = vmatprep.subr.bf16.mxu0 0
  %394 = vmatpush1.bf16.xpose.msra.mxu0 0
  %395 = vmatprep.subr.bf16.mxu0 0
  %396 = vmatpush1.bf16.xpose.msra.mxu0 0
  %397 = vmatprep.subr.bf16.mxu0 0
  %398 = vmatpush1.bf16.xpose.msra.mxu0 0
  %399 = vmatprep.subr.bf16.mxu0 0
  %400 = vmatpush1.bf16.xpose.msra.mxu0 0
  %401 = vmatprep.subr.bf16.mxu0 0
  %402 = vmatpush1.bf16.xpose.msra.mxu0 0
  %403 = vmatprep.subr.bf16.mxu0 0
  %404 = vmatpush1.bf16.xpose.msra.mxu0 0
  %405 = vmatprep.subr.bf16.mxu0 0
  %406 = vmatpush1.bf16.xpose.msra.mxu0 0
  %407 = vmatprep.subr.bf16.mxu0 0
  %408 = vmatpush1.bf16.xpose.msra.mxu0 0
  %409 = vmatprep.subr.bf16.mxu0 0
  %410 = vmatpush1.bf16.xpose.msra.mxu0 0
  %411 = vmatprep.subr.bf16.mxu0 0
  %412 = vmatpush1.bf16.xpose.msra.mxu0 0
  %413 = vmatprep.subr.bf16.mxu0 0
  %414 = vmatpush1.bf16.xpose.msra.mxu0 0
  %415 = vmatprep.subr.bf16.mxu0 0
  %416 = vmatpush1.bf16.xpose.msra.mxu0 0
  %417 = vmatprep.subr.bf16.mxu0 0
  %418 = vmatpush1.bf16.xpose.msra.mxu0 0
  %419 = vmatprep.mubr.bf16.mxu0 0
  %420 = vmatmul.mubr.bf16.gmra.mrb[0].mxu0 %v382
  %v421 = vpop.f32.mrb[0].mxu0
  %v422 = vadd.f32 0.0, %v421
  %v423 = vpop.f32.mrb[0].mxu0
  %v424 = vpop.f32.mrb[0].mxu0
  %v425 = vpop.f32.mrb[0].mxu0
  %426 = vdwg.mxu0
  %v427 = vsel %vm376, %v422, -1e+30
  %v428 = vsel %vm194, %v427, -inf
  %429 = vmax.xlane.f32.xlu0 %v428
  %v430 = vpop.xlane.xlu0 %429
  %v431 = vsub.f32 %v427, %v430
  %v432 = vmul.f32 %v431, 1.442695
  %v433 = vpow.pop %v432
  %v434 = vsel %vm194, %v433, 0.0
  %435 = vadd.xlane.f32.xlu0 %v434
  %v436 = vpop.xlane.xlu0 %435
  %v437 = vrcp.pop %v436
  %v438 = vmul.f32 %v433, %v437
  %v439 = vpack.c.bf16 %v438, %v438
  %440 = vrot.lane.b32.xlu0 %v377, 64
  %v441 = vpop.permute.xlu0 %440
  %v443 = vsel %vm194, %v439, 0
  %v446 = vsel %vm212, %v441, 0
  %448 = vmatprep.subr.bf16.mxu0 0
  %449 = vmatpush1.bf16.msra.mxu0 %v446
  %450 = vmatprep.subr.bf16.mxu0 0
  %451 = vmatpush1.bf16.msra.mxu0 0
  %452 = vmatprep.subr.bf16.mxu0 0
  %453 = vmatpush1.bf16.msra.mxu0 0
  %454 = vmatprep.subr.bf16.mxu0 0
  %455 = vmatpush1.bf16.msra.mxu0 0
  %456 = vmatprep.subr.bf16.mxu0 0
  %457 = vmatpush1.bf16.msra.mxu0 0
  %458 = vmatprep.subr.bf16.mxu0 0
  %459 = vmatpush1.bf16.msra.mxu0 0
  %460 = vmatprep.subr.bf16.mxu0 0
  %461 = vmatpush1.bf16.msra.mxu0 0
  %462 = vmatprep.subr.bf16.mxu0 0
  %463 = vmatpush1.bf16.msra.mxu0 0
  %464 = vmatprep.subr.bf16.mxu0 0
  %465 = vmatpush1.bf16.msra.mxu0 0
  %466 = vmatprep.subr.bf16.mxu0 0
  %467 = vmatpush1.bf16.msra.mxu0 0
  %468 = vmatprep.subr.bf16.mxu0 0
  %469 = vmatpush1.bf16.msra.mxu0 0
  %470 = vmatprep.subr.bf16.mxu0 0
  %471 = vmatpush1.bf16.msra.mxu0 0
  %472 = vmatprep.subr.bf16.mxu0 0
  %473 = vmatpush1.bf16.msra.mxu0 0
  %474 = vmatprep.subr.bf16.mxu0 0
  %475 = vmatpush1.bf16.msra.mxu0 0
  %476 = vmatprep.subr.bf16.mxu0 0
  %477 = vmatpush1.bf16.msra.mxu0 0
  %478 = vmatprep.subr.bf16.mxu0 0
  %479 = vmatpush1.bf16.msra.mxu0 0
  %480 = vmatprep.mubr.bf16.mxu0 0
  %481 = vmatmul.mubr.bf16.gmra.mrb[0].mxu0 %v443
  %v482 = vpop.f32.mrb[0].mxu0
  %v483 = vadd.f32 0.0, %v482
  %v484 = vpop.f32.mrb[0].mxu0
  %v485 = vpop.f32.mrb[0].mxu0
  %v486 = vpop.f32.mrb[0].mxu0
  %487 = vdwg.mxu0
  %488 = vrot.lane.b32.xlu0 %v377, 112
  %v489 = vpop.permute.xlu0 %488
  %490 = vrot.lane.b32.xlu0 %v377, 80
  %v491 = vpop.permute.xlu0 %490
  %v493 = vsel %vm146, %v489, 0
  %v496 = vsel %vm146, %v491, 0
  %498 = vmatprep.subr.bf16.mxu0 0
  %499 = vmatpush1.bf16.xpose.msra.mxu0 %v496
  %500 = vmatprep.subr.bf16.mxu0 0
  %501 = vmatpush1.bf16.xpose.msra.mxu0 0
  %502 = vmatprep.subr.bf16.mxu0 0
  %503 = vmatpush1.bf16.xpose.msra.mxu0 0
  %504 = vmatprep.subr.bf16.mxu0 0
  %505 = vmatpush1.bf16.xpose.msra.mxu0 0
  %506 = vmatprep.subr.bf16.mxu0 0
  %507 = vmatpush1.bf16.xpose.msra.mxu0 0
  %508 = vmatprep.subr.bf16.mxu0 0
  %509 = vmatpush1.bf16.xpose.msra.mxu0 0
  %510 = vmatprep.subr.bf16.mxu0 0
  %511 = vmatpush1.bf16.xpose.msra.mxu0 0
  %512 = vmatprep.subr.bf16.mxu0 0
  %513 = vmatpush1.bf16.xpose.msra.mxu0 0
  %514 = vmatprep.subr.bf16.mxu0 0
  %515 = vmatpush1.bf16.xpose.msra.mxu0 0
  %516 = vmatprep.subr.bf16.mxu0 0
  %517 = vmatpush1.bf16.xpose.msra.mxu0 0
  %518 = vmatprep.subr.bf16.mxu0 0
  %519 = vmatpush1.bf16.xpose.msra.mxu0 0
  %520 = vmatprep.subr.bf16.mxu0 0
  %521 = vmatpush1.bf16.xpose.msra.mxu0 0
  %522 = vmatprep.subr.bf16.mxu0 0
  %523 = vmatpush1.bf16.xpose.msra.mxu0 0
  %524 = vmatprep.subr.bf16.mxu0 0
  %525 = vmatpush1.bf16.xpose.msra.mxu0 0
  %526 = vmatprep.subr.bf16.mxu0 0
  %527 = vmatpush1.bf16.xpose.msra.mxu0 0
  %528 = vmatprep.subr.bf16.mxu0 0
  %529 = vmatpush1.bf16.xpose.msra.mxu0 0
  %530 = vmatprep.mubr.bf16.mxu0 0
  %531 = vmatmul.mubr.bf16.gmra.mrb[0].mxu0 %v493
  %v532 = vpop.f32.mrb[0].mxu0
  %v533 = vadd.f32 0.0, %v532
  %v534 = vpop.f32.mrb[0].mxu0
  %v535 = vpop.f32.mrb[0].mxu0
  %v536 = vpop.f32.mrb[0].mxu0
  %537 = vdwg.mxu0
  %v538 = vsel %vm376, %v533, -1e+30
  %v539 = vsel %vm194, %v538, -inf
  %540 = vmax.xlane.f32.xlu0 %v539
  %v541 = vpop.xlane.xlu0 %540
  %v542 = vsub.f32 %v538, %v541
  %v543 = vmul.f32 %v542, 1.442695
  %v544 = vpow.pop %v543
  %v545 = vsel %vm194, %v544, 0.0
  %546 = vadd.xlane.f32.xlu0 %v545
  %v547 = vpop.xlane.xlu0 %546
  %v548 = vrcp.pop %v547
  %v549 = vmul.f32 %v544, %v548
  %v550 = vpack.c.bf16 %v549, %v549
  %551 = vrot.lane.b32.xlu0 %v377, 48
  %v552 = vpop.permute.xlu0 %551
  %v554 = vsel %vm194, %v550, 0
  %v557 = vsel %vm212, %v552, 0
  %559 = vmatprep.subr.bf16.mxu0 0
  %560 = vmatpush1.bf16.msra.mxu0 %v557
  %561 = vmatprep.subr.bf16.mxu0 0
  %562 = vmatpush1.bf16.msra.mxu0 0
  %563 = vmatprep.subr.bf16.mxu0 0
  %564 = vmatpush1.bf16.msra.mxu0 0
  %565 = vmatprep.subr.bf16.mxu0 0
  %566 = vmatpush1.bf16.msra.mxu0 0
  %567 = vmatprep.subr.bf16.mxu0 0
  %568 = vmatpush1.bf16.msra.mxu0 0
  %569 = vmatprep.subr.bf16.mxu0 0
  %570 = vmatpush1.bf16.msra.mxu0 0
  %571 = vmatprep.subr.bf16.mxu0 0
  %572 = vmatpush1.bf16.msra.mxu0 0
  %573 = vmatprep.subr.bf16.mxu0 0
  %574 = vmatpush1.bf16.msra.mxu0 0
  %575 = vmatprep.subr.bf16.mxu0 0
  %576 = vmatpush1.bf16.msra.mxu0 0
  %577 = vmatprep.subr.bf16.mxu0 0
  %578 = vmatpush1.bf16.msra.mxu0 0
  %579 = vmatprep.subr.bf16.mxu0 0
  %580 = vmatpush1.bf16.msra.mxu0 0
  %581 = vmatprep.subr.bf16.mxu0 0
  %582 = vmatpush1.bf16.msra.mxu0 0
  %583 = vmatprep.subr.bf16.mxu0 0
  %584 = vmatpush1.bf16.msra.mxu0 0
  %585 = vmatprep.subr.bf16.mxu0 0
  %586 = vmatpush1.bf16.msra.mxu0 0
  %587 = vmatprep.subr.bf16.mxu0 0
  %588 = vmatpush1.bf16.msra.mxu0 0
  %589 = vmatprep.subr.bf16.mxu0 0
  %590 = vmatpush1.bf16.msra.mxu0 0
  %591 = vmatprep.mubr.bf16.mxu0 0
  %592 = vmatmul.mubr.bf16.gmra.mrb[0].mxu0 %v554
  %v593 = vpop.f32.mrb[0].mxu0
  %v594 = vadd.f32 0.0, %v593
  %v595 = vpop.f32.mrb[0].mxu0
  %v596 = vpop.f32.mrb[0].mxu0
  %v597 = vpop.f32.mrb[0].mxu0
  %598 = vdwg.mxu0
  %600 = vrot.lane.b32.xlu0 %v594, 16
  %v601 = vpop.permute.xlu0 %600
  %v603 = vsel %vm146, %v483, %v601
  %v604 = vpack.c.bf16 %v603, %v371
  %605 = vrot.lane.b32.xlu0 %v86, 32
  %v606 = vpop.permute.xlu0 %605
  %607 = vrot.lane.b32.xlu0 %v87, 32
  %v608 = vpop.permute.xlu0 %607
  %611 = vrot.lane.b32.xlu0 %v76, 32
  %v612 = vpop.permute.xlu0 %611
  %v615 = vsel %vm90, %v604, 0
  %617 = vmatprep.subr.bf16.mxu0 0
  %618 = vmatpush1.bf16.msra.mxu0 %v606
  %619 = vmatprep.subr.bf16.mxu0 0
  %620 = vmatpush1.bf16.msra.mxu0 %v608
  %621 = vmatprep.subr.bf16.mxu0 0
  %622 = vmatpush1.bf16.msra.mxu0 0
  %623 = vmatprep.subr.bf16.mxu0 0
  %624 = vmatpush1.bf16.msra.mxu0 0
  %625 = vmatprep.subr.bf16.mxu0 0
  %626 = vmatpush1.bf16.msra.mxu0 0
  %627 = vmatprep.subr.bf16.mxu0 0
  %628 = vmatpush1.bf16.msra.mxu0 0
  %629 = vmatprep.subr.bf16.mxu0 0
  %630 = vmatpush1.bf16.msra.mxu0 0
  %631 = vmatprep.subr.bf16.mxu0 0
  %632 = vmatpush1.bf16.msra.mxu0 0
  %633 = vmatprep.subr.bf16.mxu0 0
  %634 = vmatpush1.bf16.msra.mxu0 0
  %635 = vmatprep.subr.bf16.mxu0 0
  %636 = vmatpush1.bf16.msra.mxu0 0
  %637 = vmatprep.subr.bf16.mxu0 0
  %638 = vmatpush1.bf16.msra.mxu0 0
  %639 = vmatprep.subr.bf16.mxu0 0
  %640 = vmatpush1.bf16.msra.mxu0 0
  %641 = vmatprep.subr.bf16.mxu0 0
  %642 = vmatpush1.bf16.msra.mxu0 0
  %643 = vmatprep.subr.bf16.mxu0 0
  %644 = vmatpush1.bf16.msra.mxu0 0
  %645 = vmatprep.subr.bf16.mxu0 0
  %646 = vmatpush1.bf16.msra.mxu0 0
  %647 = vmatprep.subr.bf16.mxu0 0
  %648 = vmatpush1.bf16.msra.mxu0 0
  %649 = vmatprep.mubr.bf16.mxu0 0
  %650 = vmatmul.mubr.bf16.gmra.mrb[0].mxu0 %v615
  %v651 = vpop.f32.mrb[0].mxu0
  %v652 = vadd.f32 %v612, %v651
  %v653 = vpop.f32.mrb[0].mxu0
  %v654 = vpop.f32.mrb[0].mxu0
  %v655 = vadd.f32 %v612, %v654
  %v656 = vpop.f32.mrb[0].mxu0
  %657 = vdwg.mxu0
  %v658 = vadd.f32 %v64, %v652
  %v659 = vadd.f32 %v65, %v655
  %v660 = vld [vmem:[%s11 + $0x1] sm:$0x1]
  %v661 = vsel %vm90, %v658, 0.0
  %662 = vadd.xlane.f32.xlu0 %v661
  %v663 = vpop.xlane.xlu0 %662
  %v664 = vsel %vm90, %v659, 0.0
  %665 = vadd.xlane.f32.xlu0 %v664
  %v666 = vpop.xlane.xlu0 %665
  %v667 = vrcp.pop 32.0
  %v668 = vmul.f32 %v663, %v667
  %v669 = vmul.f32 %v666, %v667
  %v670 = vsub.f32 %v658, %v668
  %v671 = vsub.f32 %v659, %v669
  %v672 = vmul.f32 %v670, %v670
  %v673 = vmul.f32 %v671, %v671
  %v674 = vsel %vm90, %v672, 0.0
  %675 = vadd.xlane.f32.xlu0 %v674
  %v676 = vpop.xlane.xlu0 %675
  %v677 = vsel %vm90, %v673, 0.0
  %678 = vadd.xlane.f32.xlu0 %v677
  %v679 = vpop.xlane.xlu0 %678
  %v680 = vmul.f32 %v676, %v667
  %v681 = vmul.f32 %v679, %v667
  %v682 = vadd.f32 %v680, 1e-05
  %v683 = vadd.f32 %v681, 1e-05
  %v684 = vrsqrt.pop %v682
  %v685 = vrsqrt.pop %v683
  %v686 = vmul.f32 %v670, %v684
  %v687 = vmul.f32 %v671, %v685
  %v689 = vlaneseq
  %v690 = vshrl.u32 %v689, 7
  %v691 = vsub.s32 0, %v690
  %v692 = vrot.slane %v660, %v691
  %v694 = vmul.f32 %v686, %v692
  %v695 = vmul.f32 %v687, %v692
  %696 = vrot.lane.b32.xlu0 %v692, 96
  %v697 = vpop.permute.xlu0 %696
  %v699 = vadd.f32 %v694, %v697
  %v700 = vadd.f32 %v695, %v697
  %v701 = vld [vmem:[%s9 + $0x4] sm:$0xf]
  %v702 = vld [vmem:[%s9 + $0x24] sm:$0xf]
  %v703 = vld [vmem:[%s9 + $0x44] sm:$0xf]
  %v704 = vld [vmem:[%s9 + $0x64] sm:$0xf]
  %v705 = vpack.c.bf16 %v700, %v699
  %v710 = vunpack.c.l.b16 %v701
  %v711 = vunpack.c.l.b16 %v702
  %v712 = vunpack.c.l.b16 %v703
  %v713 = vunpack.c.l.b16 %v704
  %v714 = vpack.c.b16 %v711, %v710
  %v715 = vpack.c.b16 %v713, %v712
  %718 = vrot.lane.b32.xlu0 %v692, 64
  %v719 = vpop.permute.xlu0 %718
  %v722 = vsel %vm90, %v705, 0
  %724 = vmatprep.subr.bf16.mxu0 0
  %725 = vmatpush1.bf16.msra.mxu0 %v714
  %726 = vmatprep.subr.bf16.mxu0 0
  %727 = vmatpush1.bf16.msra.mxu0 %v715
  %728 = vmatprep.subr.bf16.mxu0 0
  %729 = vmatpush1.bf16.msra.mxu0 0
  %730 = vmatprep.subr.bf16.mxu0 0
  %731 = vmatpush1.bf16.msra.mxu0 0
  %732 = vmatprep.subr.bf16.mxu0 0
  %733 = vmatpush1.bf16.msra.mxu0 0
  %734 = vmatprep.subr.bf16.mxu0 0
  %735 = vmatpush1.bf16.msra.mxu0 0
  %736 = vmatprep.subr.bf16.mxu0 0
  %737 = vmatpush1.bf16.msra.mxu0 0
  %738 = vmatprep.subr.bf16.mxu0 0
  %739 = vmatpush1.bf16.msra.mxu0 0
  %740 = vmatprep.subr.bf16.mxu0 0
  %741 = vmatpush1.bf16.msra.mxu0 0
  %742 = vmatprep.subr.bf16.mxu0 0
  %743 = vmatpush1.bf16.msra.mxu0 0
  %744 = vmatprep.subr.bf16.mxu0 0
  %745 = vmatpush1.bf16.msra.mxu0 0
  %746 = vmatprep.subr.bf16.mxu0 0
  %747 = vmatpush1.bf16.msra.mxu0 0
  %748 = vmatprep.subr.bf16.mxu0 0
  %749 = vmatpush1.bf16.msra.mxu0 0
  %750 = vmatprep.subr.bf16.mxu0 0
  %751 = vmatpush1.bf16.msra.mxu0 0
  %752 = vmatprep.subr.bf16.mxu0 0
  %753 = vmatpush1.bf16.msra.mxu0 0
  %754 = vmatprep.subr.bf16.mxu0 0
  %755 = vmatpush1.bf16.msra.mxu0 0
  %756 = vmatprep.mubr.bf16.mxu0 0
  %757 = vmatmul.mubr.bf16.gmra.mrb[0].mxu0 %v722
  %v758 = vpop.f32.mrb[0].mxu0
  %v759 = vadd.f32 %v719, %v758
  %v760 = vpop.f32.mrb[0].mxu0
  %v761 = vpop.f32.mrb[0].mxu0
  %v762 = vadd.f32 %v719, %v761
  %v763 = vpop.f32.mrb[0].mxu0
  %764 = vdwg.mxu0
  %v765 = vmax.f32 %v759, 0.0
  %v766 = vmax.f32 %v762, 0.0
  %v767 = vld [vmem:[%s10] sm:$0xf]
  %v768 = vld [vmem:[%s10 + $0x8] sm:$0xf]
  %v769 = vld [vmem:[%s10 + $0x10] sm:$0xf]
  %v770 = vld [vmem:[%s10 + $0x18] sm:$0xf]
  %v771 = vld [vmem:[%s10 + $0x20] sm:$0xf]
  %v772 = vld [vmem:[%s10 + $0x28] sm:$0xf]
  %v773 = vld [vmem:[%s10 + $0x30] sm:$0xf]
  %v774 = vld [vmem:[%s10 + $0x38] sm:$0xf]
  %v775 = vpack.c.bf16 %v766, %v765
  %v776 = vld [vmem:[%s11 + $0x2] sm:$0x1]
  %v778 = vlaneseq
  %v779 = vshrl.u32 %v778, 7
  %v780 = vsub.s32 0, %v779
  %v781 = vrot.slane %v776, %v780
  %v791 = vunpack.c.l.b16 %v767
  %v792 = vunpack.c.l.b16 %v768
  %v793 = vunpack.c.l.b16 %v769
  %v794 = vunpack.c.l.b16 %v770
  %v795 = vunpack.c.l.b16 %v771
  %v796 = vunpack.c.l.b16 %v772
  %v797 = vunpack.c.l.b16 %v773
  %v798 = vunpack.c.l.b16 %v774
  %v799 = vpack.c.b16 %v792, %v791
  %v800 = vpack.c.b16 %v794, %v793
  %v801 = vpack.c.b16 %v796, %v795
  %v802 = vpack.c.b16 %v798, %v797
  %vm807 = vcmask 523264
  %v809 = vsel %vm807, %v775, 0
  %811 = vmatprep.subr.bf16.mxu0 0
  %812 = vmatpush1.bf16.msra.mxu0 %v799
  %813 = vmatprep.subr.bf16.mxu0 0
  %814 = vmatpush1.bf16.msra.mxu0 %v800
  %815 = vmatprep.subr.bf16.mxu0 0
  %816 = vmatpush1.bf16.msra.mxu0 %v801
  %817 = vmatprep.subr.bf16.mxu0 0
  %818 = vmatpush1.bf16.msra.mxu0 %v802
  %819 = vmatprep.subr.bf16.mxu0 0
  %820 = vmatpush1.bf16.msra.mxu0 0
  %821 = vmatprep.subr.bf16.mxu0 0
  %822 = vmatpush1.bf16.msra.mxu0 0
  %823 = vmatprep.subr.bf16.mxu0 0
  %824 = vmatpush1.bf16.msra.mxu0 0
  %825 = vmatprep.subr.bf16.mxu0 0
  %826 = vmatpush1.bf16.msra.mxu0 0
  %827 = vmatprep.subr.bf16.mxu0 0
  %828 = vmatpush1.bf16.msra.mxu0 0
  %829 = vmatprep.subr.bf16.mxu0 0
  %830 = vmatpush1.bf16.msra.mxu0 0
  %831 = vmatprep.subr.bf16.mxu0 0
  %832 = vmatpush1.bf16.msra.mxu0 0
  %833 = vmatprep.subr.bf16.mxu0 0
  %834 = vmatpush1.bf16.msra.mxu0 0
  %835 = vmatprep.subr.bf16.mxu0 0
  %836 = vmatpush1.bf16.msra.mxu0 0
  %837 = vmatprep.subr.bf16.mxu0 0
  %838 = vmatpush1.bf16.msra.mxu0 0
  %839 = vmatprep.subr.bf16.mxu0 0
  %840 = vmatpush1.bf16.msra.mxu0 0
  %841 = vmatprep.subr.bf16.mxu0 0
  %842 = vmatpush1.bf16.msra.mxu0 0
  %843 = vmatprep.mubr.bf16.mxu0 0
  %844 = vmatmul.mubr.bf16.gmra.mrb[0].mxu0 %v809
  %v845 = vpop.f32.mrb[0].mxu0
  %v846 = vadd.f32 %v781, %v845
  %v847 = vpop.f32.mrb[0].mxu0
  %v848 = vpop.f32.mrb[0].mxu0
  %v849 = vadd.f32 %v781, %v848
  %v850 = vpop.f32.mrb[0].mxu0
  %851 = vdwg.mxu0
  %v852 = vadd.f32 %v699, %v846
  %v853 = vadd.f32 %v700, %v849
  %v854 = vsel %vm90, %v852, 0.0
  %855 = vadd.xlane.f32.xlu0 %v854
  %v856 = vpop.xlane.xlu0 %855
  %v857 = vsel %vm90, %v853, 0.0
  %858 = vadd.xlane.f32.xlu0 %v857
  %v859 = vpop.xlane.xlu0 %858
  %v860 = vmul.f32 %v856, %v667
  %v861 = vmul.f32 %v859, %v667
  %v862 = vsub.f32 %v852, %v860
  %v863 = vsub.f32 %v853, %v861
  %v864 = vmul.f32 %v862, %v862
  %v865 = vmul.f32 %v863, %v863
  %v866 = vsel %vm90, %v864, 0.0
  %867 = vadd.xlane.f32.xlu0 %v866
  %v868 = vpop.xlane.xlu0 %867
  %v869 = vsel %vm90, %v865, 0.0
  %870 = vadd.xlane.f32.xlu0 %v869
  %v871 = vpop.xlane.xlu0 %870
  %v872 = vmul.f32 %v868, %v667
  %v873 = vmul.f32 %v871, %v667
  %v874 = vadd.f32 %v872, 1e-05
  %v875 = vadd.f32 %v873, 1e-05
  %v876 = vrsqrt.pop %v874
  %v877 = vrsqrt.pop %v875
  %v878 = vmul.f32 %v862, %v876
  %v879 = vmul.f32 %v863, %v877
  %880 = vrot.lane.b32.xlu0 %v781, 96
  %v881 = vpop.permute.xlu0 %880
  %v883 = vmul.f32 %v878, %v881
  %v884 = vmul.f32 %v879, %v881
  %885 = vrot.lane.b32.xlu0 %v781, 64
  %v886 = vpop.permute.xlu0 %885
  %v888 = vadd.f32 %v883, %v886
  %v889 = vadd.f32 %v884, %v886
  %v890 = vmul.f32 %v888, %v57
  %v891 = vmul.f32 %v889, %v62
  %v892 = vld [vmem:[%s4] sm:$0xff]
  %v893 = vld [vmem:[%s4 + $0x8] sm:$0xf]
  %v894 = vpack.c.bf16 %v893, %v892
  %895 = vrot.lane.b32.xlu0 %v714, 64
  %v896 = vpop.permute.xlu0 %895
  %897 = vrot.lane.b32.xlu0 %v715, 64
  %v898 = vpop.permute.xlu0 %897
  %901 = vrot.lane.b32.xlu0 %v781, 32
  %v902 = vpop.permute.xlu0 %901
  %v905 = vsel %vm90, %v894, 0
  %907 = vmatprep.subr.bf16.mxu0 0
  %908 = vmatpush1.bf16.msra.mxu0 %v896
  %909 = vmatprep.subr.bf16.mxu0 0
  %910 = vmatpush1.bf16.msra.mxu0 %v898
  %911 = vmatprep.subr.bf16.mxu0 0
  %912 = vmatpush1.bf16.msra.mxu0 0
  %913 = vmatprep.subr.bf16.mxu0 0
  %914 = vmatpush1.bf16.msra.mxu0 0
  %915 = vmatprep.subr.bf16.mxu0 0
  %916 = vmatpush1.bf16.msra.mxu0 0
  %917 = vmatprep.subr.bf16.mxu0 0
  %918 = vmatpush1.bf16.msra.mxu0 0
  %919 = vmatprep.subr.bf16.mxu0 0
  %920 = vmatpush1.bf16.msra.mxu0 0
  %921 = vmatprep.subr.bf16.mxu0 0
  %922 = vmatpush1.bf16.msra.mxu0 0
  %923 = vmatprep.subr.bf16.mxu0 0
  %924 = vmatpush1.bf16.msra.mxu0 0
  %925 = vmatprep.subr.bf16.mxu0 0
  %926 = vmatpush1.bf16.msra.mxu0 0
  %927 = vmatprep.subr.bf16.mxu0 0
  %928 = vmatpush1.bf16.msra.mxu0 0
  %929 = vmatprep.subr.bf16.mxu0 0
  %930 = vmatpush1.bf16.msra.mxu0 0
  %931 = vmatprep.subr.bf16.mxu0 0
  %932 = vmatpush1.bf16.msra.mxu0 0
  %933 = vmatprep.subr.bf16.mxu0 0
  %934 = vmatpush1.bf16.msra.mxu0 0
  %935 = vmatprep.subr.bf16.mxu0 0
  %936 = vmatpush1.bf16.msra.mxu0 0
  %937 = vmatprep.subr.bf16.mxu0 0
  %938 = vmatpush1.bf16.msra.mxu0 0
  %939 = vmatprep.mubr.bf16.mxu0 0
  %940 = vmatmul.mubr.bf16.gmra.mrb[0].mxu0 %v905
  %v941 = vpop.f32.mrb[0].mxu0
  %v942 = vadd.f32 %v902, %v941
  %v943 = vpop.f32.mrb[0].mxu0
  %v944 = vpop.f32.mrb[0].mxu0
  %v945 = vadd.f32 %v902, %v944
  %v946 = vpop.f32.mrb[0].mxu0
  %947 = vdwg.mxu0
  %v948 = vld [vmem:[%s6] sm:$0xff]
  %v949 = vld [vmem:[%s6 + $0x8] sm:$0xff]
  %v950 = vpack.c.bf16 %v949, %v948
  %v951 = vld [vmem:[%s11 + $0x3] sm:$0x1]
  %v953 = vlaneseq
  %v954 = vshrl.u32 %v953, 7
  %v955 = vsub.s32 0, %v954
  %v956 = vrot.slane %v951, %v955
  %958 = vrot.lane.b32.xlu0 %v714, 32
  %v959 = vpop.permute.xlu0 %958
  %960 = vrot.lane.b32.xlu0 %v715, 32
  %v961 = vpop.permute.xlu0 %960
  %v965 = vsel %vm90, %v950, 0
  %967 = vmatprep.subr.bf16.mxu0 0
  %968 = vmatpush1.bf16.msra.mxu0 %v959
  %969 = vmatprep.subr.bf16.mxu0 0
  %970 = vmatpush1.bf16.msra.mxu0 %v961
  %971 = vmatprep.subr.bf16.mxu0 0
  %972 = vmatpush1.bf16.msra.mxu0 0
  %973 = vmatprep.subr.bf16.mxu0 0
  %974 = vmatpush1.bf16.msra.mxu0 0
  %975 = vmatprep.subr.bf16.mxu0 0
  %976 = vmatpush1.bf16.msra.mxu0 0
  %977 = vmatprep.subr.bf16.mxu0 0
  %978 = vmatpush1.bf16.msra.mxu0 0
  %979 = vmatprep.subr.bf16.mxu0 0
  %980 = vmatpush1.bf16.msra.mxu0 0
  %981 = vmatprep.subr.bf16.mxu0 0
  %982 = vmatpush1.bf16.msra.mxu0 0
  %983 = vmatprep.subr.bf16.mxu0 0
  %984 = vmatpush1.bf16.msra.mxu0 0
  %985 = vmatprep.subr.bf16.mxu0 0
  %986 = vmatpush1.bf16.msra.mxu0 0
  %987 = vmatprep.subr.bf16.mxu0 0
  %988 = vmatpush1.bf16.msra.mxu0 0
  %989 = vmatprep.subr.bf16.mxu0 0
  %990 = vmatpush1.bf16.msra.mxu0 0
  %991 = vmatprep.subr.bf16.mxu0 0
  %992 = vmatpush1.bf16.msra.mxu0 0
  %993 = vmatprep.subr.bf16.mxu0 0
  %994 = vmatpush1.bf16.msra.mxu0 0
  %995 = vmatprep.subr.bf16.mxu0 0
  %996 = vmatpush1.bf16.msra.mxu0 0
  %997 = vmatprep.subr.bf16.mxu0 0
  %998 = vmatpush1.bf16.msra.mxu0 0
  %999 = vmatprep.mubr.bf16.mxu0 0
  %1000 = vmatmul.mubr.bf16.gmra.mrb[0].mxu0 %v965
  %v1001 = vpop.f32.mrb[0].mxu0
  %v1002 = vadd.f32 %v956, %v1001
  %v1003 = vpop.f32.mrb[0].mxu0
  %v1004 = vpop.f32.mrb[0].mxu0
  %v1005 = vadd.f32 %v956, %v1004
  %v1006 = vpop.f32.mrb[0].mxu0
  %1007 = vdwg.mxu0
  %v1008 = vld [vmem:[%s3] sm:$0xff]
  %v1009 = vld [vmem:[%s3 + $0x8] sm:$0xff]
  %v1010 = vld [vmem:[%s9 + $0x8] sm:$0xf]
  %v1011 = vld [vmem:[%s9 + $0x28] sm:$0xf]
  %v1012 = vld [vmem:[%s9 + $0x48] sm:$0xf]
  %v1013 = vld [vmem:[%s9 + $0x68] sm:$0xf]
  %v1014 = vpack.c.bf16 %v1009, %v1008
  %v1019 = vunpack.c.l.b16 %v1010
  %v1020 = vunpack.c.l.b16 %v1011
  %v1021 = vunpack.c.l.b16 %v1012
  %v1022 = vunpack.c.l.b16 %v1013
  %v1023 = vpack.c.b16 %v1020, %v1019
  %v1024 = vpack.c.b16 %v1022, %v1021
  %1027 = vrot.lane.b32.xlu0 %v956, 96
  %v1028 = vpop.permute.xlu0 %1027
  %v1031 = vsel %vm90, %v1014, 0
  %1033 = vmatprep.subr.bf16.mxu0 0
  %1034 = vmatpush1.bf16.msra.mxu0 %v1023
  %1035 = vmatprep.subr.bf16.mxu0 0
  %1036 = vmatpush1.bf16.msra.mxu0 %v1024
  %1037 = vmatprep.subr.bf16.mxu0 0
  %1038 = vmatpush1.bf16.msra.mxu0 0
  %1039 = vmatprep.subr.bf16.mxu0 0
  %1040 = vmatpush1.bf16.msra.mxu0 0
  %1041 = vmatprep.subr.bf16.mxu0 0
  %1042 = vmatpush1.bf16.msra.mxu0 0
  %1043 = vmatprep.subr.bf16.mxu0 0
  %1044 = vmatpush1.bf16.msra.mxu0 0
  %1045 = vmatprep.subr.bf16.mxu0 0
  %1046 = vmatpush1.bf16.msra.mxu0 0
  %1047 = vmatprep.subr.bf16.mxu0 0
  %1048 = vmatpush1.bf16.msra.mxu0 0
  %1049 = vmatprep.subr.bf16.mxu0 0
  %1050 = vmatpush1.bf16.msra.mxu0 0
  %1051 = vmatprep.subr.bf16.mxu0 0
  %1052 = vmatpush1.bf16.msra.mxu0 0
  %1053 = vmatprep.subr.bf16.mxu0 0
  %1054 = vmatpush1.bf16.msra.mxu0 0
  %1055 = vmatprep.subr.bf16.mxu0 0
  %1056 = vmatpush1.bf16.msra.mxu0 0
  %1057 = vmatprep.subr.bf16.mxu0 0
  %1058 = vmatpush1.bf16.msra.mxu0 0
  %1059 = vmatprep.subr.bf16.mxu0 0
  %1060 = vmatpush1.bf16.msra.mxu0 0
  %1061 = vmatprep.subr.bf16.mxu0 0
  %1062 = vmatpush1.bf16.msra.mxu0 0
  %1063 = vmatprep.subr.bf16.mxu0 0
  %1064 = vmatpush1.bf16.msra.mxu0 0
  %1065 = vmatprep.mubr.bf16.mxu0 0
  %1066 = vmatmul.mubr.bf16.gmra.mrb[0].mxu0 %v1031
  %v1067 = vpop.f32.mrb[0].mxu0
  %v1068 = vadd.f32 %v1028, %v1067
  %v1069 = vpop.f32.mrb[0].mxu0
  %v1070 = vpop.f32.mrb[0].mxu0
  %v1071 = vadd.f32 %v1028, %v1070
  %v1072 = vpop.f32.mrb[0].mxu0
  %1073 = vdwg.mxu0
  %vm1074 = vcmp.gt.f32.partialorder 1.0, 0.0
  %v1075 = vsel %vm1074, 1, 0
  %vm1076 = vcmp.eq.s32.totalorder %v1075, 1
  %v1077 = vlaneseq
  %v1078 = vshrl.u32 %v1077, 7
  %v1079 = vlaneseq
  %v1080 = vand.u32 %v1079, 127
  %vm1081 = vcmp.ge.s32.totalorder %v1078, %v1080
  %vm1082 = vmand %vm1076, %vm1081
  %v1083 = vpack.c.bf16 %v1068, %v1068
  %1085 = vrot.lane.b32.xlu0 %v1083, 96
  %v1086 = vpop.permute.xlu0 %1085
  %v1088 = vsel %vm146, %v1083, 0
  %v1091 = vsel %vm146, %v1086, 0
  %1093 = vmatprep.subr.bf16.mxu0 0
  %1094 = vmatpush1.bf16.xpose.msra.mxu0 %v1091
  %1095 = vmatprep.subr.bf16.mxu0 0
  %1096 = vmatpush1.bf16.xpose.msra.mxu0 0
  %1097 = vmatprep.subr.bf16.mxu0 0
  %1098 = vmatpush1.bf16.xpose.msra.mxu0 0
  %1099 = vmatprep.subr.bf16.mxu0 0
  %1100 = vmatpush1.bf16.xpose.msra.mxu0 0
  %1101 = vmatprep.subr.bf16.mxu0 0
  %1102 = vmatpush1.bf16.xpose.msra.mxu0 0
  %1103 = vmatprep.subr.bf16.mxu0 0
  %1104 = vmatpush1.bf16.xpose.msra.mxu0 0
  %1105 = vmatprep.subr.bf16.mxu0 0
  %1106 = vmatpush1.bf16.xpose.msra.mxu0 0
  %1107 = vmatprep.subr.bf16.mxu0 0
  %1108 = vmatpush1.bf16.xpose.msra.mxu0 0
  %1109 = vmatprep.subr.bf16.mxu0 0
  %1110 = vmatpush1.bf16.xpose.msra.mxu0 0
  %1111 = vmatprep.subr.bf16.mxu0 0
  %1112 = vmatpush1.bf16.xpose.msra.mxu0 0
  %1113 = vmatprep.subr.bf16.mxu0 0
  %1114 = vmatpush1.bf16.xpose.msra.mxu0 0
  %1115 = vmatprep.subr.bf16.mxu0 0
  %1116 = vmatpush1.bf16.xpose.msra.mxu0 0
  %1117 = vmatprep.subr.bf16.mxu0 0
  %1118 = vmatpush1.bf16.xpose.msra.mxu0 0
  %1119 = vmatprep.subr.bf16.mxu0 0
  %1120 = vmatpush1.bf16.xpose.msra.mxu0 0
  %1121 = vmatprep.subr.bf16.mxu0 0
  %1122 = vmatpush1.bf16.xpose.msra.mxu0 0
  %1123 = vmatprep.subr.bf16.mxu0 0
  %1124 = vmatpush1.bf16.xpose.msra.mxu0 0
  %1125 = vmatprep.mubr.bf16.mxu0 0
  %1126 = vmatmul.mubr.bf16.gmra.mrb[0].mxu0 %v1088
  %v1127 = vpop.f32.mrb[0].mxu0
  %v1128 = vadd.f32 0.0, %v1127
  %v1129 = vpop.f32.mrb[0].mxu0
  %v1130 = vpop.f32.mrb[0].mxu0
  %v1131 = vpop.f32.mrb[0].mxu0
  %1132 = vdwg.mxu0
  %v1133 = vsel %vm1082, %v1128, -1e+30
  %v1134 = vsel %vm194, %v1133, -inf
  %1135 = vmax.xlane.f32.xlu0 %v1134
  %v1136 = vpop.xlane.xlu0 %1135
  %v1137 = vsub.f32 %v1133, %v1136
  %v1138 = vmul.f32 %v1137, 1.442695
  %v1139 = vpow.pop %v1138
  %v1140 = vsel %vm194, %v1139, 0.0
  %1141 = vadd.xlane.f32.xlu0 %v1140
  %v1142 = vpop.xlane.xlu0 %1141
  %v1143 = vrcp.pop %v1142
  %v1144 = vmul.f32 %v1139, %v1143
  %v1145 = vpack.c.bf16 %v1144, %v1144
  %1146 = vrot.lane.b32.xlu0 %v1083, 64
  %v1147 = vpop.permute.xlu0 %1146
  %v1149 = vsel %vm194, %v1145, 0
  %v1152 = vsel %vm212, %v1147, 0
  %1154 = vmatprep.subr.bf16.mxu0 0
  %1155 = vmatpush1.bf16.msra.mxu0 %v1152
  %1156 = vmatprep.subr.bf16.mxu0 0
  %1157 = vmatpush1.bf16.msra.mxu0 0
  %1158 = vmatprep.subr.bf16.mxu0 0
  %1159 = vmatpush1.bf16.msra.mxu0 0
  %1160 = vmatprep.subr.bf16.mxu0 0
  %1161 = vmatpush1.bf16.msra.mxu0 0
  %1162 = vmatprep.subr.bf16.mxu0 0
  %1163 = vmatpush1.bf16.msra.mxu0 0
  %1164 = vmatprep.subr.bf16.mxu0 0
  %1165 = vmatpush1.bf16.msra.mxu0 0
  %1166 = vmatprep.subr.bf16.mxu0 0
  %1167 = vmatpush1.bf16.msra.mxu0 0
  %1168 = vmatprep.subr.bf16.mxu0 0
  %1169 = vmatpush1.bf16.msra.mxu0 0
  %1170 = vmatprep.subr.bf16.mxu0 0
  %1171 = vmatpush1.bf16.msra.mxu0 0
  %1172 = vmatprep.subr.bf16.mxu0 0
  %1173 = vmatpush1.bf16.msra.mxu0 0
  %1174 = vmatprep.subr.bf16.mxu0 0
  %1175 = vmatpush1.bf16.msra.mxu0 0
  %1176 = vmatprep.subr.bf16.mxu0 0
  %1177 = vmatpush1.bf16.msra.mxu0 0
  %1178 = vmatprep.subr.bf16.mxu0 0
  %1179 = vmatpush1.bf16.msra.mxu0 0
  %1180 = vmatprep.subr.bf16.mxu0 0
  %1181 = vmatpush1.bf16.msra.mxu0 0
  %1182 = vmatprep.subr.bf16.mxu0 0
  %1183 = vmatpush1.bf16.msra.mxu0 0
  %1184 = vmatprep.subr.bf16.mxu0 0
  %1185 = vmatpush1.bf16.msra.mxu0 0
  %1186 = vmatprep.mubr.bf16.mxu0 0
  %1187 = vmatmul.mubr.bf16.gmra.mrb[0].mxu0 %v1149
  %v1188 = vpop.f32.mrb[0].mxu0
  %v1189 = vadd.f32 0.0, %v1188
  %v1190 = vpop.f32.mrb[0].mxu0
  %v1191 = vpop.f32.mrb[0].mxu0
  %v1192 = vpop.f32.mrb[0].mxu0
  %1193 = vdwg.mxu0
  %1194 = vrot.lane.b32.xlu0 %v1083, 112
  %v1195 = vpop.permute.xlu0 %1194
  %1196 = vrot.lane.b32.xlu0 %v1083, 80
  %v1197 = vpop.permute.xlu0 %1196
  %v1199 = vsel %vm146, %v1195, 0
  %v1202 = vsel %vm146, %v1197, 0
  %1204 = vmatprep.subr.bf16.mxu0 0
  %1205 = vmatpush1.bf16.xpose.msra.mxu0 %v1202
  %1206 = vmatprep.subr.bf16.mxu0 0
  %1207 = vmatpush1.bf16.xpose.msra.mxu0 0
  %1208 = vmatprep.subr.bf16.mxu0 0
  %1209 = vmatpush1.bf16.xpose.msra.mxu0 0
  %1210 = vmatprep.subr.bf16.mxu0 0
  %1211 = vmatpush1.bf16.xpose.msra.mxu0 0
  %1212 = vmatprep.subr.bf16.mxu0 0
  %1213 = vmatpush1.bf16.xpose.msra.mxu0 0
  %1214 = vmatprep.subr.bf16.mxu0 0
  %1215 = vmatpush1.bf16.xpose.msra.mxu0 0
  %1216 = vmatprep.subr.bf16.mxu0 0
  %1217 = vmatpush1.bf16.xpose.msra.mxu0 0
  %1218 = vmatprep.subr.bf16.mxu0 0
  %1219 = vmatpush1.bf16.xpose.msra.mxu0 0
  %1220 = vmatprep.subr.bf16.mxu0 0
  %1221 = vmatpush1.bf16.xpose.msra.mxu0 0
  %1222 = vmatprep.subr.bf16.mxu0 0
  %1223 = vmatpush1.bf16.xpose.msra.mxu0 0
  %1224 = vmatprep.subr.bf16.mxu0 0
  %1225 = vmatpush1.bf16.xpose.msra.mxu0 0
  %1226 = vmatprep.subr.bf16.mxu0 0
  %1227 = vmatpush1.bf16.xpose.msra.mxu0 0
  %1228 = vmatprep.subr.bf16.mxu0 0
  %1229 = vmatpush1.bf16.xpose.msra.mxu0 0
  %1230 = vmatprep.subr.bf16.mxu0 0
  %1231 = vmatpush1.bf16.xpose.msra.mxu0 0
  %1232 = vmatprep.subr.bf16.mxu0 0
  %1233 = vmatpush1.bf16.xpose.msra.mxu0 0
  %1234 = vmatprep.subr.bf16.mxu0 0
  %1235 = vmatpush1.bf16.xpose.msra.mxu0 0
  %1236 = vmatprep.mubr.bf16.mxu0 0
  %1237 = vmatmul.mubr.bf16.gmra.mrb[0].mxu0 %v1199
  %v1238 = vpop.f32.mrb[0].mxu0
  %v1239 = vadd.f32 0.0, %v1238
  %v1240 = vpop.f32.mrb[0].mxu0
  %v1241 = vpop.f32.mrb[0].mxu0
  %v1242 = vpop.f32.mrb[0].mxu0
  %1243 = vdwg.mxu0
  %v1244 = vsel %vm1082, %v1239, -1e+30
  %v1245 = vsel %vm194, %v1244, -inf
  %1246 = vmax.xlane.f32.xlu0 %v1245
  %v1247 = vpop.xlane.xlu0 %1246
  %v1248 = vsub.f32 %v1244, %v1247
  %v1249 = vmul.f32 %v1248, 1.442695
  %v1250 = vpow.pop %v1249
  %v1251 = vsel %vm194, %v1250, 0.0
  %1252 = vadd.xlane.f32.xlu0 %v1251
  %v1253 = vpop.xlane.xlu0 %1252
  %v1254 = vrcp.pop %v1253
  %v1255 = vmul.f32 %v1250, %v1254
  %v1256 = vpack.c.bf16 %v1255, %v1255
  %1257 = vrot.lane.b32.xlu0 %v1083, 48
  %v1258 = vpop.permute.xlu0 %1257
  %v1260 = vsel %vm194, %v1256, 0
  %v1263 = vsel %vm212, %v1258, 0
  %1265 = vmatprep.subr.bf16.mxu0 0
  %1266 = vmatpush1.bf16.msra.mxu0 %v1263
  %1267 = vmatprep.subr.bf16.mxu0 0
  %1268 = vmatpush1.bf16.msra.mxu0 0
  %1269 = vmatprep.subr.bf16.mxu0 0
  %1270 = vmatpush1.bf16.msra.mxu0 0
  %1271 = vmatprep.subr.bf16.mxu0 0
  %1272 = vmatpush1.bf16.msra.mxu0 0
  %1273 = vmatprep.subr.bf16.mxu0 0
  %1274 = vmatpush1.bf16.msra.mxu0 0
  %1275 = vmatprep.subr.bf16.mxu0 0
  %1276 = vmatpush1.bf16.msra.mxu0 0
  %1277 = vmatprep.subr.bf16.mxu0 0
  %1278 = vmatpush1.bf16.msra.mxu0 0
  %1279 = vmatprep.subr.bf16.mxu0 0
  %1280 = vmatpush1.bf16.msra.mxu0 0
  %1281 = vmatprep.subr.bf16.mxu0 0
  %1282 = vmatpush1.bf16.msra.mxu0 0
  %1283 = vmatprep.subr.bf16.mxu0 0
  %1284 = vmatpush1.bf16.msra.mxu0 0
  %1285 = vmatprep.subr.bf16.mxu0 0
  %1286 = vmatpush1.bf16.msra.mxu0 0
  %1287 = vmatprep.subr.bf16.mxu0 0
  %1288 = vmatpush1.bf16.msra.mxu0 0
  %1289 = vmatprep.subr.bf16.mxu0 0
  %1290 = vmatpush1.bf16.msra.mxu0 0
  %1291 = vmatprep.subr.bf16.mxu0 0
  %1292 = vmatpush1.bf16.msra.mxu0 0
  %1293 = vmatprep.subr.bf16.mxu0 0
  %1294 = vmatpush1.bf16.msra.mxu0 0
  %1295 = vmatprep.subr.bf16.mxu0 0
  %1296 = vmatpush1.bf16.msra.mxu0 0
  %1297 = vmatprep.mubr.bf16.mxu0 0
  %1298 = vmatmul.mubr.bf16.gmra.mrb[0].mxu0 %v1260
  %v1299 = vpop.f32.mrb[0].mxu0
  %v1300 = vadd.f32 0.0, %v1299
  %v1301 = vpop.f32.mrb[0].mxu0
  %v1302 = vpop.f32.mrb[0].mxu0
  %v1303 = vpop.f32.mrb[0].mxu0
  %1304 = vdwg.mxu0
  %1306 = vrot.lane.b32.xlu0 %v1300, 16
  %v1307 = vpop.permute.xlu0 %1306
  %v1309 = vsel %vm146, %v1189, %v1307
  %v1310 = vpack.c.bf16 %v1071, %v1071
  %1312 = vrot.lane.b32.xlu0 %v1310, 96
  %v1313 = vpop.permute.xlu0 %1312
  %v1315 = vsel %vm146, %v1310, 0
  %v1318 = vsel %vm146, %v1313, 0
  %1320 = vmatprep.subr.bf16.mxu0 0
  %1321 = vmatpush1.bf16.xpose.msra.mxu0 %v1318
  %1322 = vmatprep.subr.bf16.mxu0 0
  %1323 = vmatpush1.bf16.xpose.msra.mxu0 0
  %1324 = vmatprep.subr.bf16.mxu0 0
  %1325 = vmatpush1.bf16.xpose.msra.mxu0 0
  %1326 = vmatprep.subr.bf16.mxu0 0
  %1327 = vmatpush1.bf16.xpose.msra.mxu0 0
  %1328 = vmatprep.subr.bf16.mxu0 0
  %1329 = vmatpush1.bf16.xpose.msra.mxu0 0
  %1330 = vmatprep.subr.bf16.mxu0 0
  %1331 = vmatpush1.bf16.xpose.msra.mxu0 0
  %1332 = vmatprep.subr.bf16.mxu0 0
  %1333 = vmatpush1.bf16.xpose.msra.mxu0 0
  %1334 = vmatprep.subr.bf16.mxu0 0
  %1335 = vmatpush1.bf16.xpose.msra.mxu0 0
  %1336 = vmatprep.subr.bf16.mxu0 0
  %1337 = vmatpush1.bf16.xpose.msra.mxu0 0
  %1338 = vmatprep.subr.bf16.mxu0 0
  %1339 = vmatpush1.bf16.xpose.msra.mxu0 0
  %1340 = vmatprep.subr.bf16.mxu0 0
  %1341 = vmatpush1.bf16.xpose.msra.mxu0 0
  %1342 = vmatprep.subr.bf16.mxu0 0
  %1343 = vmatpush1.bf16.xpose.msra.mxu0 0
  %1344 = vmatprep.subr.bf16.mxu0 0
  %1345 = vmatpush1.bf16.xpose.msra.mxu0 0
  %1346 = vmatprep.subr.bf16.mxu0 0
  %1347 = vmatpush1.bf16.xpose.msra.mxu0 0
  %1348 = vmatprep.subr.bf16.mxu0 0
  %1349 = vmatpush1.bf16.xpose.msra.mxu0 0
  %1350 = vmatprep.subr.bf16.mxu0 0
  %1351 = vmatpush1.bf16.xpose.msra.mxu0 0
  %1352 = vmatprep.mubr.bf16.mxu0 0
  %1353 = vmatmul.mubr.bf16.gmra.mrb[0].mxu0 %v1315
  %v1354 = vpop.f32.mrb[0].mxu0
  %v1355 = vadd.f32 0.0, %v1354
  %v1356 = vpop.f32.mrb[0].mxu0
  %v1357 = vpop.f32.mrb[0].mxu0
  %v1358 = vpop.f32.mrb[0].mxu0
  %1359 = vdwg.mxu0
  %v1360 = vsel %vm1082, %v1355, -1e+30
  %v1361 = vsel %vm194, %v1360, -inf
  %1362 = vmax.xlane.f32.xlu0 %v1361
  %v1363 = vpop.xlane.xlu0 %1362
  %v1364 = vsub.f32 %v1360, %v1363
  %v1365 = vmul.f32 %v1364, 1.442695
  %v1366 = vpow.pop %v1365
  %v1367 = vsel %vm194, %v1366, 0.0
  %1368 = vadd.xlane.f32.xlu0 %v1367
  %v1369 = vpop.xlane.xlu0 %1368
  %v1370 = vrcp.pop %v1369
  %v1371 = vmul.f32 %v1366, %v1370
  %v1372 = vpack.c.bf16 %v1371, %v1371
  %1373 = vrot.lane.b32.xlu0 %v1310, 64
  %v1374 = vpop.permute.xlu0 %1373
  %v1376 = vsel %vm194, %v1372, 0
  %v1379 = vsel %vm212, %v1374, 0
  %1381 = vmatprep.subr.bf16.mxu0 0
  %1382 = vmatpush1.bf16.msra.mxu0 %v1379
  %1383 = vmatprep.subr.bf16.mxu0 0
  %1384 = vmatpush1.bf16.msra.mxu0 0
  %1385 = vmatprep.subr.bf16.mxu0 0
  %1386 = vmatpush1.bf16.msra.mxu0 0
  %1387 = vmatprep.subr.bf16.mxu0 0
  %1388 = vmatpush1.bf16.msra.mxu0 0
  %1389 = vmatprep.subr.bf16.mxu0 0
  %1390 = vmatpush1.bf16.msra.mxu0 0
  %1391 = vmatprep.subr.bf16.mxu0 0
  %1392 = vmatpush1.bf16.msra.mxu0 0
  %1393 = vmatprep.subr.bf16.mxu0 0
  %1394 = vmatpush1.bf16.msra.mxu0 0
  %1395 = vmatprep.subr.bf16.mxu0 0
  %1396 = vmatpush1.bf16.msra.mxu0 0
  %1397 = vmatprep.subr.bf16.mxu0 0
  %1398 = vmatpush1.bf16.msra.mxu0 0
  %1399 = vmatprep.subr.bf16.mxu0 0
  %1400 = vmatpush1.bf16.msra.mxu0 0
  %1401 = vmatprep.subr.bf16.mxu0 0
  %1402 = vmatpush1.bf16.msra.mxu0 0
  %1403 = vmatprep.subr.bf16.mxu0 0
  %1404 = vmatpush1.bf16.msra.mxu0 0
  %1405 = vmatprep.subr.bf16.mxu0 0
  %1406 = vmatpush1.bf16.msra.mxu0 0
  %1407 = vmatprep.subr.bf16.mxu0 0
  %1408 = vmatpush1.bf16.msra.mxu0 0
  %1409 = vmatprep.subr.bf16.mxu0 0
  %1410 = vmatpush1.bf16.msra.mxu0 0
  %1411 = vmatprep.subr.bf16.mxu0 0
  %1412 = vmatpush1.bf16.msra.mxu0 0
  %1413 = vmatprep.mubr.bf16.mxu0 0
  %1414 = vmatmul.mubr.bf16.gmra.mrb[0].mxu0 %v1376
  %v1415 = vpop.f32.mrb[0].mxu0
  %v1416 = vadd.f32 0.0, %v1415
  %v1417 = vpop.f32.mrb[0].mxu0
  %v1418 = vpop.f32.mrb[0].mxu0
  %v1419 = vpop.f32.mrb[0].mxu0
  %1420 = vdwg.mxu0
  %1421 = vrot.lane.b32.xlu0 %v1310, 112
  %v1422 = vpop.permute.xlu0 %1421
  %1423 = vrot.lane.b32.xlu0 %v1310, 80
  %v1424 = vpop.permute.xlu0 %1423
  %v1426 = vsel %vm146, %v1422, 0
  %v1429 = vsel %vm146, %v1424, 0
  %1431 = vmatprep.subr.bf16.mxu0 0
  %1432 = vmatpush1.bf16.xpose.msra.mxu0 %v1429
  %1433 = vmatprep.subr.bf16.mxu0 0
  %1434 = vmatpush1.bf16.xpose.msra.mxu0 0
  %1435 = vmatprep.subr.bf16.mxu0 0
  %1436 = vmatpush1.bf16.xpose.msra.mxu0 0
  %1437 = vmatprep.subr.bf16.mxu0 0
  %1438 = vmatpush1.bf16.xpose.msra.mxu0 0
  %1439 = vmatprep.subr.bf16.mxu0 0
  %1440 = vmatpush1.bf16.xpose.msra.mxu0 0
  %1441 = vmatprep.subr.bf16.mxu0 0
  %1442 = vmatpush1.bf16.xpose.msra.mxu0 0
  %1443 = vmatprep.subr.bf16.mxu0 0
  %1444 = vmatpush1.bf16.xpose.msra.mxu0 0
  %1445 = vmatprep.subr.bf16.mxu0 0
  %1446 = vmatpush1.bf16.xpose.msra.mxu0 0
  %1447 = vmatprep.subr.bf16.mxu0 0
  %1448 = vmatpush1.bf16.xpose.msra.mxu0 0
  %1449 = vmatprep.subr.bf16.mxu0 0
  %1450 = vmatpush1.bf16.xpose.msra.mxu0 0
  %1451 = vmatprep.subr.bf16.mxu0 0
  %1452 = vmatpush1.bf16.xpose.msra.mxu0 0
  %1453 = vmatprep.subr.bf16.mxu0 0
  %1454 = vmatpush1.bf16.xpose.msra.mxu0 0
  %1455 = vmatprep.subr.bf16.mxu0 0
  %1456 = vmatpush1.bf16.xpose.msra.mxu0 0
  %1457 = vmatprep.subr.bf16.mxu0 0
  %1458 = vmatpush1.bf16.xpose.msra.mxu0 0
  %1459 = vmatprep.subr.bf16.mxu0 0
  %1460 = vmatpush1.bf16.xpose.msra.mxu0 0
  %1461 = vmatprep.subr.bf16.mxu0 0
  %1462 = vmatpush1.bf16.xpose.msra.mxu0 0
  %1463 = vmatprep.mubr.bf16.mxu0 0
  %1464 = vmatmul.mubr.bf16.gmra.mrb[0].mxu0 %v1426
  %v1465 = vpop.f32.mrb[0].mxu0
  %v1466 = vadd.f32 0.0, %v1465
  %v1467 = vpop.f32.mrb[0].mxu0
  %v1468 = vpop.f32.mrb[0].mxu0
  %v1469 = vpop.f32.mrb[0].mxu0
  %1470 = vdwg.mxu0
  %v1471 = vsel %vm1082, %v1466, -1e+30
  %v1472 = vsel %vm194, %v1471, -inf
  %1473 = vmax.xlane.f32.xlu0 %v1472
  %v1474 = vpop.xlane.xlu0 %1473
  %v1475 = vsub.f32 %v1471, %v1474
  %v1476 = vmul.f32 %v1475, 1.442695
  %v1477 = vpow.pop %v1476
  %v1478 = vsel %vm194, %v1477, 0.0
  %1479 = vadd.xlane.f32.xlu0 %v1478
  %v1480 = vpop.xlane.xlu0 %1479
  %v1481 = vrcp.pop %v1480
  %v1482 = vmul.f32 %v1477, %v1481
  %v1483 = vpack.c.bf16 %v1482, %v1482
  %1484 = vrot.lane.b32.xlu0 %v1310, 48
  %v1485 = vpop.permute.xlu0 %1484
  %v1487 = vsel %vm194, %v1483, 0
  %v1490 = vsel %vm212, %v1485, 0
  %1492 = vmatprep.subr.bf16.mxu0 0
  %1493 = vmatpush1.bf16.msra.mxu0 %v1490
  %1494 = vmatprep.subr.bf16.mxu0 0
  %1495 = vmatpush1.bf16.msra.mxu0 0
  %1496 = vmatprep.subr.bf16.mxu0 0
  %1497 = vmatpush1.bf16.msra.mxu0 0
  %1498 = vmatprep.subr.bf16.mxu0 0
  %1499 = vmatpush1.bf16.msra.mxu0 0
  %1500 = vmatprep.subr.bf16.mxu0 0
  %1501 = vmatpush1.bf16.msra.mxu0 0
  %1502 = vmatprep.subr.bf16.mxu0 0
  %1503 = vmatpush1.bf16.msra.mxu0 0
  %1504 = vmatprep.subr.bf16.mxu0 0
  %1505 = vmatpush1.bf16.msra.mxu0 0
  %1506 = vmatprep.subr.bf16.mxu0 0
  %1507 = vmatpush1.bf16.msra.mxu0 0
  %1508 = vmatprep.subr.bf16.mxu0 0
  %1509 = vmatpush1.bf16.msra.mxu0 0
  %1510 = vmatprep.subr.bf16.mxu0 0
  %1511 = vmatpush1.bf16.msra.mxu0 0
  %1512 = vmatprep.subr.bf16.mxu0 0
  %1513 = vmatpush1.bf16.msra.mxu0 0
  %1514 = vmatprep.subr.bf16.mxu0 0
  %1515 = vmatpush1.bf16.msra.mxu0 0
  %1516 = vmatprep.subr.bf16.mxu0 0
  %1517 = vmatpush1.bf16.msra.mxu0 0
  %1518 = vmatprep.subr.bf16.mxu0 0
  %1519 = vmatpush1.bf16.msra.mxu0 0
  %1520 = vmatprep.subr.bf16.mxu0 0
  %1521 = vmatpush1.bf16.msra.mxu0 0
  %1522 = vmatprep.subr.bf16.mxu0 0
  %1523 = vmatpush1.bf16.msra.mxu0 0
  %1524 = vmatprep.mubr.bf16.mxu0 0
  %1525 = vmatmul.mubr.bf16.gmra.mrb[0].mxu0 %v1487
  %v1526 = vpop.f32.mrb[0].mxu0
  %v1527 = vadd.f32 0.0, %v1526
  %v1528 = vpop.f32.mrb[0].mxu0
  %v1529 = vpop.f32.mrb[0].mxu0
  %v1530 = vpop.f32.mrb[0].mxu0
  %1531 = vdwg.mxu0
  %1533 = vrot.lane.b32.xlu0 %v1527, 16
  %v1534 = vpop.permute.xlu0 %1533
  %v1536 = vsel %vm146, %v1416, %v1534
  %v1537 = vpack.c.bf16 %v1536, %v1309
  %v1538 = vld [vmem:[%s11 + $0x4] sm:$0x1]
  %v1540 = vlaneseq
  %v1541 = vshrl.u32 %v1540, 7
  %v1542 = vsub.s32 0, %v1541
  %v1543 = vrot.slane %v1538, %v1542
  %1545 = vrot.lane.b32.xlu0 %v1023, 32
  %v1546 = vpop.permute.xlu0 %1545
  %1547 = vrot.lane.b32.xlu0 %v1024, 32
  %v1548 = vpop.permute.xlu0 %1547
  %v1552 = vsel %vm90, %v1537, 0
  %1554 = vmatprep.subr.bf16.mxu0 0
  %1555 = vmatpush1.bf16.msra.mxu0 %v1546
  %1556 = vmatprep.subr.bf16.mxu0 0
  %1557 = vmatpush1.bf16.msra.mxu0 %v1548
  %1558 = vmatprep.subr.bf16.mxu0 0
  %1559 = vmatpush1.bf16.msra.mxu0 0
  %1560 = vmatprep.subr.bf16.mxu0 0
  %1561 = vmatpush1.bf16.msra.mxu0 0
  %1562 = vmatprep.subr.bf16.mxu0 0
  %1563 = vmatpush1.bf16.msra.mxu0 0
  %1564 = vmatprep.subr.bf16.mxu0 0
  %1565 = vmatpush1.bf16.msra.mxu0 0
  %1566 = vmatprep.subr.bf16.mxu0 0
  %1567 = vmatpush1.bf16.msra.mxu0 0
  %1568 = vmatprep.subr.bf16.mxu0 0
  %1569 = vmatpush1.bf16.msra.mxu0 0
  %1570 = vmatprep.subr.bf16.mxu0 0
  %1571 = vmatpush1.bf16.msra.mxu0 0
  %1572 = vmatprep.subr.bf16.mxu0 0
  %1573 = vmatpush1.bf16.msra.mxu0 0
  %1574 = vmatprep.subr.bf16.mxu0 0
  %1575 = vmatpush1.bf16.msra.mxu0 0
  %1576 = vmatprep.subr.bf16.mxu0 0
  %1577 = vmatpush1.bf16.msra.mxu0 0
  %1578 = vmatprep.subr.bf16.mxu0 0
  %1579 = vmatpush1.bf16.msra.mxu0 0
  %1580 = vmatprep.subr.bf16.mxu0 0
  %1581 = vmatpush1.bf16.msra.mxu0 0
  %1582 = vmatprep.subr.bf16.mxu0 0
  %1583 = vmatpush1.bf16.msra.mxu0 0
  %1584 = vmatprep.subr.bf16.mxu0 0
  %1585 = vmatpush1.bf16.msra.mxu0 0
  %1586 = vmatprep.mubr.bf16.mxu0 0
  %1587 = vmatmul.mubr.bf16.gmra.mrb[0].mxu0 %v1552
  %v1588 = vpop.f32.mrb[0].mxu0
  %v1589 = vadd.f32 %v1543, %v1588
  %v1590 = vpop.f32.mrb[0].mxu0
  %v1591 = vpop.f32.mrb[0].mxu0
  %v1592 = vadd.f32 %v1543, %v1591
  %v1593 = vpop.f32.mrb[0].mxu0
  %1594 = vdwg.mxu0
  %v1595 = vadd.f32 %v1008, %v1589
  %v1596 = vadd.f32 %v1009, %v1592
  %v1597 = vsel %vm90, %v1595, 0.0
  %1598 = vadd.xlane.f32.xlu0 %v1597
  %v1599 = vpop.xlane.xlu0 %1598
  %v1600 = vsel %vm90, %v1596, 0.0
  %1601 = vadd.xlane.f32.xlu0 %v1600
  %v1602 = vpop.xlane.xlu0 %1601
  %v1603 = vmul.f32 %v1599, %v667
  %v1604 = vmul.f32 %v1602, %v667
  %v1605 = vsub.f32 %v1595, %v1603
  %v1606 = vsub.f32 %v1596, %v1604
  %v1607 = vmul.f32 %v1605, %v1605
  %v1608 = vmul.f32 %v1606, %v1606
  %v1609 = vsel %vm90, %v1607, 0.0
  %1610 = vadd.xlane.f32.xlu0 %v1609
  %v1611 = vpop.xlane.xlu0 %1610
  %v1612 = vsel %vm90, %v1608, 0.0
  %1613 = vadd.xlane.f32.xlu0 %v1612
  %v1614 = vpop.xlane.xlu0 %1613
  %v1615 = vmul.f32 %v1611, %v667
  %v1616 = vmul.f32 %v1614, %v667
  %v1617 = vadd.f32 %v1615, 1e-05
  %v1618 = vadd.f32 %v1616, 1e-05
  %v1619 = vrsqrt.pop %v1617
  %v1620 = vrsqrt.pop %v1618
  %v1621 = vmul.f32 %v1605, %v1619
  %v1622 = vmul.f32 %v1606, %v1620
  %1623 = vrot.lane.b32.xlu0 %v1543, 96
  %v1624 = vpop.permute.xlu0 %1623
  %v1626 = vmul.f32 %v1621, %v1624
  %v1627 = vmul.f32 %v1622, %v1624
  %1628 = vrot.lane.b32.xlu0 %v1543, 64
  %v1629 = vpop.permute.xlu0 %1628
  %v1631 = vadd.f32 %v1626, %v1629
  %v1632 = vadd.f32 %v1627, %v1629
  %v1633 = vld [vmem:[%s11 + $0x5] sm:$0x1]
  %v1634 = vld [vmem:[%s11 + $0x6] sm:$0x1]
  %v1635 = vld [vmem:[%s9 + $0xc] sm:$0xf]
  %v1636 = vld [vmem:[%s9 + $0x2c] sm:$0xf]
  %v1637 = vld [vmem:[%s9 + $0x4c] sm:$0xf]
  %v1638 = vld [vmem:[%s9 + $0x6c] sm:$0xf]
  %v1639 = vpack.c.bf16 %v1632, %v1631
  %v1644 = vunpack.c.l.b16 %v1635
  %v1645 = vunpack.c.l.b16 %v1636
  %v1646 = vunpack.c.l.b16 %v1637
  %v1647 = vunpack.c.l.b16 %v1638
  %v1648 = vpack.c.b16 %v1645, %v1644
  %v1649 = vpack.c.b16 %v1647, %v1646
  %1652 = vrot.lane.b32.xlu0 %v1543, 32
  %v1653 = vpop.permute.xlu0 %1652
  %v1656 = vsel %vm90, %v1639, 0
  %1658 = vmatprep.subr.bf16.mxu0 0
  %1659 = vmatpush1.bf16.msra.mxu0 %v1648
  %1660 = vmatprep.subr.bf16.mxu0 0
  %1661 = vmatpush1.bf16.msra.mxu0 %v1649
  %1662 = vmatprep.subr.bf16.mxu0 0
  %1663 = vmatpush1.bf16.msra.mxu0 0
  %1664 = vmatprep.subr.bf16.mxu0 0
  %1665 = vmatpush1.bf16.msra.mxu0 0
  %1666 = vmatprep.subr.bf16.mxu0 0
  %1667 = vmatpush1.bf16.msra.mxu0 0
  %1668 = vmatprep.subr.bf16.mxu0 0
  %1669 = vmatpush1.bf16.msra.mxu0 0
  %1670 = vmatprep.subr.bf16.mxu0 0
  %1671 = vmatpush1.bf16.msra.mxu0 0
  %1672 = vmatprep.subr.bf16.mxu0 0
  %1673 = vmatpush1.bf16.msra.mxu0 0
  %1674 = vmatprep.subr.bf16.mxu0 0
  %1675 = vmatpush1.bf16.msra.mxu0 0
  %1676 = vmatprep.subr.bf16.mxu0 0
  %1677 = vmatpush1.bf16.msra.mxu0 0
  %1678 = vmatprep.subr.bf16.mxu0 0
  %1679 = vmatpush1.bf16.msra.mxu0 0
  %1680 = vmatprep.subr.bf16.mxu0 0
  %1681 = vmatpush1.bf16.msra.mxu0 0
  %1682 = vmatprep.subr.bf16.mxu0 0
  %1683 = vmatpush1.bf16.msra.mxu0 0
  %1684 = vmatprep.subr.bf16.mxu0 0
  %1685 = vmatpush1.bf16.msra.mxu0 0
  %1686 = vmatprep.subr.bf16.mxu0 0
  %1687 = vmatpush1.bf16.msra.mxu0 0
  %1688 = vmatprep.subr.bf16.mxu0 0
  %1689 = vmatpush1.bf16.msra.mxu0 0
  %1690 = vmatprep.mubr.bf16.mxu0 0
  %1691 = vmatmul.mubr.bf16.gmra.mrb[0].mxu0 %v1656
  %v1692 = vpop.f32.mrb[0].mxu0
  %v1693 = vadd.f32 %v1653, %v1692
  %v1694 = vpop.f32.mrb[0].mxu0
  %v1695 = vpop.f32.mrb[0].mxu0
  %v1696 = vadd.f32 %v1653, %v1695
  %v1697 = vpop.f32.mrb[0].mxu0
  %1698 = vdwg.mxu0
  %v1699 = vpack.c.bf16 %v891, %v890
  %v1701 = vlaneseq
  %v1702 = vshrl.u32 %v1701, 7
  %v1703 = vsub.s32 0, %v1702
  %v1704 = vrot.slane %v1633, %v1703
  %1706 = vrot.lane.b32.xlu0 %v1648, 96
  %v1707 = vpop.permute.xlu0 %1706
  %1708 = vrot.lane.b32.xlu0 %v1649, 96
  %v1709 = vpop.permute.xlu0 %1708
  %v1713 = vsel %vm90, %v1699, 0
  %1715 = vmatprep.subr.bf16.mxu0 0
  %1716 = vmatpush1.bf16.msra.mxu0 %v1707
  %1717 = vmatprep.subr.bf16.mxu0 0
  %1718 = vmatpush1.bf16.msra.mxu0 %v1709
  %1719 = vmatprep.subr.bf16.mxu0 0
  %1720 = vmatpush1.bf16.msra.mxu0 0
  %1721 = vmatprep.subr.bf16.mxu0 0
  %1722 = vmatpush1.bf16.msra.mxu0 0
  %1723 = vmatprep.subr.bf16.mxu0 0
  %1724 = vmatpush1.bf16.msra.mxu0 0
  %1725 = vmatprep.subr.bf16.mxu0 0
  %1726 = vmatpush1.bf16.msra.mxu0 0
  %1727 = vmatprep.subr.bf16.mxu0 0
  %1728 = vmatpush1.bf16.msra.mxu0 0
  %1729 = vmatprep.subr.bf16.mxu0 0
  %1730 = vmatpush1.bf16.msra.mxu0 0
  %1731 = vmatprep.subr.bf16.mxu0 0
  %1732 = vmatpush1.bf16.msra.mxu0 0
  %1733 = vmatprep.subr.bf16.mxu0 0
  %1734 = vmatpush1.bf16.msra.mxu0 0
  %1735 = vmatprep.subr.bf16.mxu0 0
  %1736 = vmatpush1.bf16.msra.mxu0 0
  %1737 = vmatprep.subr.bf16.mxu0 0
  %1738 = vmatpush1.bf16.msra.mxu0 0
  %1739 = vmatprep.subr.bf16.mxu0 0
  %1740 = vmatpush1.bf16.msra.mxu0 0
  %1741 = vmatprep.subr.bf16.mxu0 0
  %1742 = vmatpush1.bf16.msra.mxu0 0
  %1743 = vmatprep.subr.bf16.mxu0 0
  %1744 = vmatpush1.bf16.msra.mxu0 0
  %1745 = vmatprep.subr.bf16.mxu0 0
  %1746 = vmatpush1.bf16.msra.mxu0 0
  %1747 = vmatprep.mubr.bf16.mxu0 0
  %1748 = vmatmul.mubr.bf16.gmra.mrb[0].mxu0 %v1713
  %v1749 = vpop.f32.mrb[0].mxu0
  %v1750 = vadd.f32 %v1704, %v1749
  %v1751 = vpop.f32.mrb[0].mxu0
  %v1752 = vpop.f32.mrb[0].mxu0
  %v1753 = vadd.f32 %v1704, %v1752
  %v1754 = vpop.f32.mrb[0].mxu0
  %1755 = vdwg.mxu0
  %v1756 = vpack.c.bf16 %v1693, %v1693
  %v1757 = vpack.c.bf16 %v1750, %v1750
  %v1759 = vsel %vm146, %v1756, 0
  %v1762 = vsel %vm146, %v1757, 0
  %1764 = vmatprep.subr.bf16.mxu0 0
  %1765 = vmatpush1.bf16.xpose.msra.mxu0 %v1762
  %1766 = vmatprep.subr.bf16.mxu0 0
  %1767 = vmatpush1.bf16.xpose.msra.mxu0 0
  %1768 = vmatprep.subr.bf16.mxu0 0
  %1769 = vmatpush1.bf16.xpose.msra.mxu0 0
  %1770 = vmatprep.subr.bf16.mxu0 0
  %1771 = vmatpush1.bf16.xpose.msra.mxu0 0
  %1772 = vmatprep.subr.bf16.mxu0 0
  %1773 = vmatpush1.bf16.xpose.msra.mxu0 0
  %1774 = vmatprep.subr.bf16.mxu0 0
  %1775 = vmatpush1.bf16.xpose.msra.mxu0 0
  %1776 = vmatprep.subr.bf16.mxu0 0
  %1777 = vmatpush1.bf16.xpose.msra.mxu0 0
  %1778 = vmatprep.subr.bf16.mxu0 0
  %1779 = vmatpush1.bf16.xpose.msra.mxu0 0
  %1780 = vmatprep.subr.bf16.mxu0 0
  %1781 = vmatpush1.bf16.xpose.msra.mxu0 0
  %1782 = vmatprep.subr.bf16.mxu0 0
  %1783 = vmatpush1.bf16.xpose.msra.mxu0 0
  %1784 = vmatprep.subr.bf16.mxu0 0
  %1785 = vmatpush1.bf16.xpose.msra.mxu0 0
  %1786 = vmatprep.subr.bf16.mxu0 0
  %1787 = vmatpush1.bf16.xpose.msra.mxu0 0
  %1788 = vmatprep.subr.bf16.mxu0 0
  %1789 = vmatpush1.bf16.xpose.msra.mxu0 0
  %1790 = vmatprep.subr.bf16.mxu0 0
  %1791 = vmatpush1.bf16.xpose.msra.mxu0 0
  %1792 = vmatprep.subr.bf16.mxu0 0
  %1793 = vmatpush1.bf16.xpose.msra.mxu0 0
  %1794 = vmatprep.subr.bf16.mxu0 0
  %1795 = vmatpush1.bf16.xpose.msra.mxu0 0
  %1796 = vmatprep.mubr.bf16.mxu0 0
  %1797 = vmatmul.mubr.bf16.gmra.mrb[0].mxu0 %v1759
  %v1798 = vpop.f32.mrb[0].mxu0
  %v1799 = vadd.f32 0.0, %v1798
  %v1800 = vpop.f32.mrb[0].mxu0
  %v1801 = vpop.f32.mrb[0].mxu0
  %v1802 = vpop.f32.mrb[0].mxu0
  %1803 = vdwg.mxu0
  %v1804 = vsel %vm141, %v1799, -1e+30
  %v1805 = vsel %vm194, %v1804, -inf
  %1806 = vmax.xlane.f32.xlu0 %v1805
  %v1807 = vpop.xlane.xlu0 %1806
  %v1808 = vsub.f32 %v1804, %v1807
  %v1809 = vmul.f32 %v1808, 1.442695
  %v1810 = vpow.pop %v1809
  %v1811 = vsel %vm194, %v1810, 0.0
  %1812 = vadd.xlane.f32.xlu0 %v1811
  %v1813 = vpop.xlane.xlu0 %1812
  %v1814 = vrcp.pop %v1813
  %v1815 = vmul.f32 %v1810, %v1814
  %v1816 = vpack.c.bf16 %v1815, %v1815
  %1818 = vrot.lane.b32.xlu0 %v1757, 96
  %v1819 = vpop.permute.xlu0 %1818
  %v1821 = vsel %vm194, %v1816, 0
  %v1824 = vsel %vm212, %v1819, 0
  %1826 = vmatprep.subr.bf16.mxu0 0
  %1827 = vmatpush1.bf16.msra.mxu0 %v1824
  %1828 = vmatprep.subr.bf16.mxu0 0
  %1829 = vmatpush1.bf16.msra.mxu0 0
  %1830 = vmatprep.subr.bf16.mxu0 0
  %1831 = vmatpush1.bf16.msra.mxu0 0
  %1832 = vmatprep.subr.bf16.mxu0 0
  %1833 = vmatpush1.bf16.msra.mxu0 0
  %1834 = vmatprep.subr.bf16.mxu0 0
  %1835 = vmatpush1.bf16.msra.mxu0 0
  %1836 = vmatprep.subr.bf16.mxu0 0
  %1837 = vmatpush1.bf16.msra.mxu0 0
  %1838 = vmatprep.subr.bf16.mxu0 0
  %1839 = vmatpush1.bf16.msra.mxu0 0
  %1840 = vmatprep.subr.bf16.mxu0 0
  %1841 = vmatpush1.bf16.msra.mxu0 0
  %1842 = vmatprep.subr.bf16.mxu0 0
  %1843 = vmatpush1.bf16.msra.mxu0 0
  %1844 = vmatprep.subr.bf16.mxu0 0
  %1845 = vmatpush1.bf16.msra.mxu0 0
  %1846 = vmatprep.subr.bf16.mxu0 0
  %1847 = vmatpush1.bf16.msra.mxu0 0
  %1848 = vmatprep.subr.bf16.mxu0 0
  %1849 = vmatpush1.bf16.msra.mxu0 0
  %1850 = vmatprep.subr.bf16.mxu0 0
  %1851 = vmatpush1.bf16.msra.mxu0 0
  %1852 = vmatprep.subr.bf16.mxu0 0
  %1853 = vmatpush1.bf16.msra.mxu0 0
  %1854 = vmatprep.subr.bf16.mxu0 0
  %1855 = vmatpush1.bf16.msra.mxu0 0
  %1856 = vmatprep.subr.bf16.mxu0 0
  %1857 = vmatpush1.bf16.msra.mxu0 0
  %1858 = vmatprep.mubr.bf16.mxu0 0
  %1859 = vmatmul.mubr.bf16.gmra.mrb[0].mxu0 %v1821
  %v1860 = vpop.f32.mrb[0].mxu0
  %v1861 = vadd.f32 0.0, %v1860
  %v1862 = vpop.f32.mrb[0].mxu0
  %v1863 = vpop.f32.mrb[0].mxu0
  %v1864 = vpop.f32.mrb[0].mxu0
  %1865 = vdwg.mxu0
  %1867 = vrot.lane.b32.xlu0 %v1756, 112
  %v1868 = vpop.permute.xlu0 %1867
  %1869 = vrot.lane.b32.xlu0 %v1757, 112
  %v1870 = vpop.permute.xlu0 %1869
  %v1872 = vsel %vm146, %v1868, 0
  %v1875 = vsel %vm146, %v1870, 0
  %1877 = vmatprep.subr.bf16.mxu0 0
  %1878 = vmatpush1.bf16.xpose.msra.mxu0 %v1875
  %1879 = vmatprep.subr.bf16.mxu0 0
  %1880 = vmatpush1.bf16.xpose.msra.mxu0 0
  %1881 = vmatprep.subr.bf16.mxu0 0
  %1882 = vmatpush1.bf16.xpose.msra.mxu0 0
  %1883 = vmatprep.subr.bf16.mxu0 0
  %1884 = vmatpush1.bf16.xpose.msra.mxu0 0
  %1885 = vmatprep.subr.bf16.mxu0 0
  %1886 = vmatpush1.bf16.xpose.msra.mxu0 0
  %1887 = vmatprep.subr.bf16.mxu0 0
  %1888 = vmatpush1.bf16.xpose.msra.mxu0 0
  %1889 = vmatprep.subr.bf16.mxu0 0
  %1890 = vmatpush1.bf16.xpose.msra.mxu0 0
  %1891 = vmatprep.subr.bf16.mxu0 0
  %1892 = vmatpush1.bf16.xpose.msra.mxu0 0
  %1893 = vmatprep.subr.bf16.mxu0 0
  %1894 = vmatpush1.bf16.xpose.msra.mxu0 0
  %1895 = vmatprep.subr.bf16.mxu0 0
  %1896 = vmatpush1.bf16.xpose.msra.mxu0 0
  %1897 = vmatprep.subr.bf16.mxu0 0
  %1898 = vmatpush1.bf16.xpose.msra.mxu0 0
  %1899 = vmatprep.subr.bf16.mxu0 0
  %1900 = vmatpush1.bf16.xpose.msra.mxu0 0
  %1901 = vmatprep.subr.bf16.mxu0 0
  %1902 = vmatpush1.bf16.xpose.msra.mxu0 0
  %1903 = vmatprep.subr.bf16.mxu0 0
  %1904 = vmatpush1.bf16.xpose.msra.mxu0 0
  %1905 = vmatprep.subr.bf16.mxu0 0
  %1906 = vmatpush1.bf16.xpose.msra.mxu0 0
  %1907 = vmatprep.subr.bf16.mxu0 0
  %1908 = vmatpush1.bf16.xpose.msra.mxu0 0
  %1909 = vmatprep.mubr.bf16.mxu0 0
  %1910 = vmatmul.mubr.bf16.gmra.mrb[0].mxu0 %v1872
  %v1911 = vpop.f32.mrb[0].mxu0
  %v1912 = vadd.f32 0.0, %v1911
  %v1913 = vpop.f32.mrb[0].mxu0
  %v1914 = vpop.f32.mrb[0].mxu0
  %v1915 = vpop.f32.mrb[0].mxu0
  %1916 = vdwg.mxu0
  %v1917 = vsel %vm141, %v1912, -1e+30
  %v1918 = vsel %vm194, %v1917, -inf
  %1919 = vmax.xlane.f32.xlu0 %v1918
  %v1920 = vpop.xlane.xlu0 %1919
  %v1921 = vsub.f32 %v1917, %v1920
  %v1922 = vmul.f32 %v1921, 1.442695
  %v1923 = vpow.pop %v1922
  %v1924 = vsel %vm194, %v1923, 0.0
  %1925 = vadd.xlane.f32.xlu0 %v1924
  %v1926 = vpop.xlane.xlu0 %1925
  %v1927 = vrcp.pop %v1926
  %v1928 = vmul.f32 %v1923, %v1927
  %v1929 = vpack.c.bf16 %v1928, %v1928
  %1930 = vrot.lane.b32.xlu0 %v1757, 80
  %v1931 = vpop.permute.xlu0 %1930
  %v1933 = vsel %vm194, %v1929, 0
  %v1936 = vsel %vm212, %v1931, 0
  %1938 = vmatprep.subr.bf16.mxu0 0
  %1939 = vmatpush1.bf16.msra.mxu0 %v1936
  %1940 = vmatprep.subr.bf16.mxu0 0
  %1941 = vmatpush1.bf16.msra.mxu0 0
  %1942 = vmatprep.subr.bf16.mxu0 0
  %1943 = vmatpush1.bf16.msra.mxu0 0
  %1944 = vmatprep.subr.bf16.mxu0 0
  %1945 = vmatpush1.bf16.msra.mxu0 0
  %1946 = vmatprep.subr.bf16.mxu0 0
  %1947 = vmatpush1.bf16.msra.mxu0 0
  %1948 = vmatprep.subr.bf16.mxu0 0
  %1949 = vmatpush1.bf16.msra.mxu0 0
  %1950 = vmatprep.subr.bf16.mxu0 0
  %1951 = vmatpush1.bf16.msra.mxu0 0
  %1952 = vmatprep.subr.bf16.mxu0 0
  %1953 = vmatpush1.bf16.msra.mxu0 0
  %1954 = vmatprep.subr.bf16.mxu0 0
  %1955 = vmatpush1.bf16.msra.mxu0 0
  %1956 = vmatprep.subr.bf16.mxu0 0
  %1957 = vmatpush1.bf16.msra.mxu0 0
  %1958 = vmatprep.subr.bf16.mxu0 0
  %1959 = vmatpush1.bf16.msra.mxu0 0
  %1960 = vmatprep.subr.bf16.mxu0 0
  %1961 = vmatpush1.bf16.msra.mxu0 0
  %1962 = vmatprep.subr.bf16.mxu0 0
  %1963 = vmatpush1.bf16.msra.mxu0 0
  %1964 = vmatprep.subr.bf16.mxu0 0
  %1965 = vmatpush1.bf16.msra.mxu0 0
  %1966 = vmatprep.subr.bf16.mxu0 0
  %1967 = vmatpush1.bf16.msra.mxu0 0
  %1968 = vmatprep.subr.bf16.mxu0 0
  %1969 = vmatpush1.bf16.msra.mxu0 0
  %1970 = vmatprep.mubr.bf16.mxu0 0
  %1971 = vmatmul.mubr.bf16.gmra.mrb[0].mxu0 %v1933
  %v1972 = vpop.f32.mrb[0].mxu0
  %v1973 = vadd.f32 0.0, %v1972
  %v1974 = vpop.f32.mrb[0].mxu0
  %v1975 = vpop.f32.mrb[0].mxu0
  %v1976 = vpop.f32.mrb[0].mxu0
  %1977 = vdwg.mxu0
  %1979 = vrot.lane.b32.xlu0 %v1973, 16
  %v1980 = vpop.permute.xlu0 %1979
  %v1982 = vsel %vm146, %v1861, %v1980
  %v1983 = vpack.c.bf16 %v1696, %v1696
  %v1984 = vpack.c.bf16 %v1753, %v1753
  %v1986 = vsel %vm146, %v1983, 0
  %v1989 = vsel %vm146, %v1984, 0
  %1991 = vmatprep.subr.bf16.mxu0 0
  %1992 = vmatpush1.bf16.xpose.msra.mxu0 %v1989
  %1993 = vmatprep.subr.bf16.mxu0 0
  %1994 = vmatpush1.bf16.xpose.msra.mxu0 0
  %1995 = vmatprep.subr.bf16.mxu0 0
  %1996 = vmatpush1.bf16.xpose.msra.mxu0 0
  %1997 = vmatprep.subr.bf16.mxu0 0
  %1998 = vmatpush1.bf16.xpose.msra.mxu0 0
  %1999 = vmatprep.subr.bf16.mxu0 0
  %2000 = vmatpush1.bf16.xpose.msra.mxu0 0
  %2001 = vmatprep.subr.bf16.mxu0 0
  %2002 = vmatpush1.bf16.xpose.msra.mxu0 0
  %2003 = vmatprep.subr.bf16.mxu0 0
  %2004 = vmatpush1.bf16.xpose.msra.mxu0 0
  %2005 = vmatprep.subr.bf16.mxu0 0
  %2006 = vmatpush1.bf16.xpose.msra.mxu0 0
  %2007 = vmatprep.subr.bf16.mxu0 0
  %2008 = vmatpush1.bf16.xpose.msra.mxu0 0
  %2009 = vmatprep.subr.bf16.mxu0 0
  %2010 = vmatpush1.bf16.xpose.msra.mxu0 0
  %2011 = vmatprep.subr.bf16.mxu0 0
  %2012 = vmatpush1.bf16.xpose.msra.mxu0 0
  %2013 = vmatprep.subr.bf16.mxu0 0
  %2014 = vmatpush1.bf16.xpose.msra.mxu0 0
  %2015 = vmatprep.subr.bf16.mxu0 0
  %2016 = vmatpush1.bf16.xpose.msra.mxu0 0
  %2017 = vmatprep.subr.bf16.mxu0 0
  %2018 = vmatpush1.bf16.xpose.msra.mxu0 0
  %2019 = vmatprep.subr.bf16.mxu0 0
  %2020 = vmatpush1.bf16.xpose.msra.mxu0 0
  %2021 = vmatprep.subr.bf16.mxu0 0
  %2022 = vmatpush1.bf16.xpose.msra.mxu0 0
  %2023 = vmatprep.mubr.bf16.mxu0 0
  %2024 = vmatmul.mubr.bf16.gmra.mrb[0].mxu0 %v1986
  %v2025 = vpop.f32.mrb[0].mxu0
  %v2026 = vadd.f32 0.0, %v2025
  %v2027 = vpop.f32.mrb[0].mxu0
  %v2028 = vpop.f32.mrb[0].mxu0
  %v2029 = vpop.f32.mrb[0].mxu0
  %2030 = vdwg.mxu0
  %v2031 = vsel %vm376, %v2026, -1e+30
  %v2032 = vsel %vm194, %v2031, -inf
  %2033 = vmax.xlane.f32.xlu0 %v2032
  %v2034 = vpop.xlane.xlu0 %2033
  %v2035 = vsub.f32 %v2031, %v2034
  %v2036 = vmul.f32 %v2035, 1.442695
  %v2037 = vpow.pop %v2036
  %v2038 = vsel %vm194, %v2037, 0.0
  %2039 = vadd.xlane.f32.xlu0 %v2038
  %v2040 = vpop.xlane.xlu0 %2039
  %v2041 = vrcp.pop %v2040
  %v2042 = vmul.f32 %v2037, %v2041
  %v2043 = vpack.c.bf16 %v2042, %v2042
  %2045 = vrot.lane.b32.xlu0 %v1984, 96
  %v2046 = vpop.permute.xlu0 %2045
  %v2048 = vsel %vm194, %v2043, 0
  %v2051 = vsel %vm212, %v2046, 0
  %2053 = vmatprep.subr.bf16.mxu0 0
  %2054 = vmatpush1.bf16.msra.mxu0 %v2051
  %2055 = vmatprep.subr.bf16.mxu0 0
  %2056 = vmatpush1.bf16.msra.mxu0 0
  %2057 = vmatprep.subr.bf16.mxu0 0
  %2058 = vmatpush1.bf16.msra.mxu0 0
  %2059 = vmatprep.subr.bf16.mxu0 0
  %2060 = vmatpush1.bf16.msra.mxu0 0
  %2061 = vmatprep.subr.bf16.mxu0 0
  %2062 = vmatpush1.bf16.msra.mxu0 0
  %2063 = vmatprep.subr.bf16.mxu0 0
  %2064 = vmatpush1.bf16.msra.mxu0 0
  %2065 = vmatprep.subr.bf16.mxu0 0
  %2066 = vmatpush1.bf16.msra.mxu0 0
  %2067 = vmatprep.subr.bf16.mxu0 0
  %2068 = vmatpush1.bf16.msra.mxu0 0
  %2069 = vmatprep.subr.bf16.mxu0 0
  %2070 = vmatpush1.bf16.msra.mxu0 0
  %2071 = vmatprep.subr.bf16.mxu0 0
  %2072 = vmatpush1.bf16.msra.mxu0 0
  %2073 = vmatprep.subr.bf16.mxu0 0
  %2074 = vmatpush1.bf16.msra.mxu0 0
  %2075 = vmatprep.subr.bf16.mxu0 0
  %2076 = vmatpush1.bf16.msra.mxu0 0
  %2077 = vmatprep.subr.bf16.mxu0 0
  %2078 = vmatpush1.bf16.msra.mxu0 0
  %2079 = vmatprep.subr.bf16.mxu0 0
  %2080 = vmatpush1.bf16.msra.mxu0 0
  %2081 = vmatprep.subr.bf16.mxu0 0
  %2082 = vmatpush1.bf16.msra.mxu0 0
  %2083 = vmatprep.subr.bf16.mxu0 0
  %2084 = vmatpush1.bf16.msra.mxu0 0
  %2085 = vmatprep.mubr.bf16.mxu0 0
  %2086 = vmatmul.mubr.bf16.gmra.mrb[0].mxu0 %v2048
  %v2087 = vpop.f32.mrb[0].mxu0
  %v2088 = vadd.f32 0.0, %v2087
  %v2089 = vpop.f32.mrb[0].mxu0
  %v2090 = vpop.f32.mrb[0].mxu0
  %v2091 = vpop.f32.mrb[0].mxu0
  %2092 = vdwg.mxu0
  %2094 = vrot.lane.b32.xlu0 %v1983, 112
  %v2095 = vpop.permute.xlu0 %2094
  %2096 = vrot.lane.b32.xlu0 %v1984, 112
  %v2097 = vpop.permute.xlu0 %2096
  %v2099 = vsel %vm146, %v2095, 0
  %v2102 = vsel %vm146, %v2097, 0
  %2104 = vmatprep.subr.bf16.mxu0 0
  %2105 = vmatpush1.bf16.xpose.msra.mxu0 %v2102
  %2106 = vmatprep.subr.bf16.mxu0 0
  %2107 = vmatpush1.bf16.xpose.msra.mxu0 0
  %2108 = vmatprep.subr.bf16.mxu0 0
  %2109 = vmatpush1.bf16.xpose.msra.mxu0 0
  %2110 = vmatprep.subr.bf16.mxu0 0
  %2111 = vmatpush1.bf16.xpose.msra.mxu0 0
  %2112 = vmatprep.subr.bf16.mxu0 0
  %2113 = vmatpush1.bf16.xpose.msra.mxu0 0
  %2114 = vmatprep.subr.bf16.mxu0 0
  %2115 = vmatpush1.bf16.xpose.msra.mxu0 0
  %2116 = vmatprep.subr.bf16.mxu0 0
  %2117 = vmatpush1.bf16.xpose.msra.mxu0 0
  %2118 = vmatprep.subr.bf16.mxu0 0
  %2119 = vmatpush1.bf16.xpose.msra.mxu0 0
  %2120 = vmatprep.subr.bf16.mxu0 0
  %2121 = vmatpush1.bf16.xpose.msra.mxu0 0
  %2122 = vmatprep.subr.bf16.mxu0 0
  %2123 = vmatpush1.bf16.xpose.msra.mxu0 0
  %2124 = vmatprep.subr.bf16.mxu0 0
  %2125 = vmatpush1.bf16.xpose.msra.mxu0 0
  %2126 = vmatprep.subr.bf16.mxu0 0
  %2127 = vmatpush1.bf16.xpose.msra.mxu0 0
  %2128 = vmatprep.subr.bf16.mxu0 0
  %2129 = vmatpush1.bf16.xpose.msra.mxu0 0
  %2130 = vmatprep.subr.bf16.mxu0 0
  %2131 = vmatpush1.bf16.xpose.msra.mxu0 0
  %2132 = vmatprep.subr.bf16.mxu0 0
  %2133 = vmatpush1.bf16.xpose.msra.mxu0 0
  %2134 = vmatprep.subr.bf16.mxu0 0
  %2135 = vmatpush1.bf16.xpose.msra.mxu0 0
  %2136 = vmatprep.mubr.bf16.mxu0 0
  %2137 = vmatmul.mubr.bf16.gmra.mrb[0].mxu0 %v2099
  %v2138 = vpop.f32.mrb[0].mxu0
  %v2139 = vadd.f32 0.0, %v2138
  %v2140 = vpop.f32.mrb[0].mxu0
  %v2141 = vpop.f32.mrb[0].mxu0
  %v2142 = vpop.f32.mrb[0].mxu0
  %2143 = vdwg.mxu0
  %v2144 = vsel %vm376, %v2139, -1e+30
  %v2145 = vsel %vm194, %v2144, -inf
  %2146 = vmax.xlane.f32.xlu0 %v2145
  %v2147 = vpop.xlane.xlu0 %2146
  %v2148 = vsub.f32 %v2144, %v2147
  %v2149 = vmul.f32 %v2148, 1.442695
  %v2150 = vpow.pop %v2149
  %v2151 = vsel %vm194, %v2150, 0.0
  %2152 = vadd.xlane.f32.xlu0 %v2151
  %v2153 = vpop.xlane.xlu0 %2152
  %v2154 = vrcp.pop %v2153
  %v2155 = vmul.f32 %v2150, %v2154
  %v2156 = vpack.c.bf16 %v2155, %v2155
  %2157 = vrot.lane.b32.xlu0 %v1984, 80
  %v2158 = vpop.permute.xlu0 %2157
  %v2160 = vsel %vm194, %v2156, 0
  %v2163 = vsel %vm212, %v2158, 0
  %2165 = vmatprep.subr.bf16.mxu0 0
  %2166 = vmatpush1.bf16.msra.mxu0 %v2163
  %2167 = vmatprep.subr.bf16.mxu0 0
  %2168 = vmatpush1.bf16.msra.mxu0 0
  %2169 = vmatprep.subr.bf16.mxu0 0
  %2170 = vmatpush1.bf16.msra.mxu0 0
  %2171 = vmatprep.subr.bf16.mxu0 0
  %2172 = vmatpush1.bf16.msra.mxu0 0
  %2173 = vmatprep.subr.bf16.mxu0 0
  %2174 = vmatpush1.bf16.msra.mxu0 0
  %2175 = vmatprep.subr.bf16.mxu0 0
  %2176 = vmatpush1.bf16.msra.mxu0 0
  %2177 = vmatprep.subr.bf16.mxu0 0
  %2178 = vmatpush1.bf16.msra.mxu0 0
  %2179 = vmatprep.subr.bf16.mxu0 0
  %2180 = vmatpush1.bf16.msra.mxu0 0
  %2181 = vmatprep.subr.bf16.mxu0 0
  %2182 = vmatpush1.bf16.msra.mxu0 0
  %2183 = vmatprep.subr.bf16.mxu0 0
  %2184 = vmatpush1.bf16.msra.mxu0 0
  %2185 = vmatprep.subr.bf16.mxu0 0
  %2186 = vmatpush1.bf16.msra.mxu0 0
  %2187 = vmatprep.subr.bf16.mxu0 0
  %2188 = vmatpush1.bf16.msra.mxu0 0
  %2189 = vmatprep.subr.bf16.mxu0 0
  %2190 = vmatpush1.bf16.msra.mxu0 0
  %2191 = vmatprep.subr.bf16.mxu0 0
  %2192 = vmatpush1.bf16.msra.mxu0 0
  %2193 = vmatprep.subr.bf16.mxu0 0
  %2194 = vmatpush1.bf16.msra.mxu0 0
  %2195 = vmatprep.subr.bf16.mxu0 0
  %2196 = vmatpush1.bf16.msra.mxu0 0
  %2197 = vmatprep.mubr.bf16.mxu0 0
  %2198 = vmatmul.mubr.bf16.gmra.mrb[0].mxu0 %v2160
  %v2199 = vpop.f32.mrb[0].mxu0
  %v2200 = vadd.f32 0.0, %v2199
  %v2201 = vpop.f32.mrb[0].mxu0
  %v2202 = vpop.f32.mrb[0].mxu0
  %v2203 = vpop.f32.mrb[0].mxu0
  %2204 = vdwg.mxu0
  %2206 = vrot.lane.b32.xlu0 %v2200, 16
  %v2207 = vpop.permute.xlu0 %2206
  %v2209 = vsel %vm146, %v2088, %v2207
  %v2210 = vpack.c.bf16 %v2209, %v1982
  %2211 = vrot.lane.b32.xlu0 %v1648, 32
  %v2212 = vpop.permute.xlu0 %2211
  %2213 = vrot.lane.b32.xlu0 %v1649, 32
  %v2214 = vpop.permute.xlu0 %2213
  %2217 = vrot.lane.b32.xlu0 %v1704, 64
  %v2218 = vpop.permute.xlu0 %2217
  %v2221 = vsel %vm90, %v2210, 0
  %2223 = vmatprep.subr.bf16.mxu0 0
  %2224 = vmatpush1.bf16.msra.mxu0 %v2212
  %2225 = vmatprep.subr.bf16.mxu0 0
  %2226 = vmatpush1.bf16.msra.mxu0 %v2214
  %2227 = vmatprep.subr.bf16.mxu0 0
  %2228 = vmatpush1.bf16.msra.mxu0 0
  %2229 = vmatprep.subr.bf16.mxu0 0
  %2230 = vmatpush1.bf16.msra.mxu0 0
  %2231 = vmatprep.subr.bf16.mxu0 0
  %2232 = vmatpush1.bf16.msra.mxu0 0
  %2233 = vmatprep.subr.bf16.mxu0 0
  %2234 = vmatpush1.bf16.msra.mxu0 0
  %2235 = vmatprep.subr.bf16.mxu0 0
  %2236 = vmatpush1.bf16.msra.mxu0 0
  %2237 = vmatprep.subr.bf16.mxu0 0
  %2238 = vmatpush1.bf16.msra.mxu0 0
  %2239 = vmatprep.subr.bf16.mxu0 0
  %2240 = vmatpush1.bf16.msra.mxu0 0
  %2241 = vmatprep.subr.bf16.mxu0 0
  %2242 = vmatpush1.bf16.msra.mxu0 0
  %2243 = vmatprep.subr.bf16.mxu0 0
  %2244 = vmatpush1.bf16.msra.mxu0 0
  %2245 = vmatprep.subr.bf16.mxu0 0
  %2246 = vmatpush1.bf16.msra.mxu0 0
  %2247 = vmatprep.subr.bf16.mxu0 0
  %2248 = vmatpush1.bf16.msra.mxu0 0
  %2249 = vmatprep.subr.bf16.mxu0 0
  %2250 = vmatpush1.bf16.msra.mxu0 0
  %2251 = vmatprep.subr.bf16.mxu0 0
  %2252 = vmatpush1.bf16.msra.mxu0 0
  %2253 = vmatprep.subr.bf16.mxu0 0
  %2254 = vmatpush1.bf16.msra.mxu0 0
  %2255 = vmatprep.mubr.bf16.mxu0 0
  %2256 = vmatmul.mubr.bf16.gmra.mrb[0].mxu0 %v2221
  %v2257 = vpop.f32.mrb[0].mxu0
  %v2258 = vadd.f32 %v2218, %v2257
  %v2259 = vpop.f32.mrb[0].mxu0
  %v2260 = vpop.f32.mrb[0].mxu0
  %v2261 = vadd.f32 %v2218, %v2260
  %v2262 = vpop.f32.mrb[0].mxu0
  %2263 = vdwg.mxu0
  %v2264 = vadd.f32 %v1631, %v2258
  %v2265 = vadd.f32 %v1632, %v2261
  %v2266 = vsel %vm90, %v2264, 0.0
  %2267 = vadd.xlane.f32.xlu0 %v2266
  %v2268 = vpop.xlane.xlu0 %2267
  %v2269 = vsel %vm90, %v2265, 0.0
  %2270 = vadd.xlane.f32.xlu0 %v2269
  %v2271 = vpop.xlane.xlu0 %2270
  %v2272 = vmul.f32 %v2268, %v667
  %v2273 = vmul.f32 %v2271, %v667
  %v2274 = vsub.f32 %v2264, %v2272
  %v2275 = vsub.f32 %v2265, %v2273
  %v2276 = vmul.f32 %v2274, %v2274
  %v2277 = vmul.f32 %v2275, %v2275
  %v2278 = vsel %vm90, %v2276, 0.0
  %2279 = vadd.xlane.f32.xlu0 %v2278
  %v2280 = vpop.xlane.xlu0 %2279
  %v2281 = vsel %vm90, %v2277, 0.0
  %2282 = vadd.xlane.f32.xlu0 %v2281
  %v2283 = vpop.xlane.xlu0 %2282
  %v2284 = vmul.f32 %v2280, %v667
  %v2285 = vmul.f32 %v2283, %v667
  %v2286 = vadd.f32 %v2284, 1e-05
  %v2287 = vadd.f32 %v2285, 1e-05
  %v2288 = vrsqrt.pop %v2286
  %v2289 = vrsqrt.pop %v2287
  %v2290 = vmul.f32 %v2274, %v2288
  %v2291 = vmul.f32 %v2275, %v2289
  %2292 = vrot.lane.b32.xlu0 %v1704, 32
  %v2293 = vpop.permute.xlu0 %2292
  %v2295 = vmul.f32 %v2290, %v2293
  %v2296 = vmul.f32 %v2291, %v2293
  %v2298 = vlaneseq
  %v2299 = vshrl.u32 %v2298, 7
  %v2300 = vsub.s32 0, %v2299
  %v2301 = vrot.slane %v1634, %v2300
  %v2303 = vadd.f32 %v2295, %v2301
  %v2304 = vadd.f32 %v2296, %v2301
  %v2305 = vld [vmem:[%s11 + $0x7] sm:$0x1]
  %v2306 = vld [vmem:[%s9 + $0x10] sm:$0xf]
  %v2307 = vld [vmem:[%s9 + $0x30] sm:$0xf]
  %v2308 = vld [vmem:[%s9 + $0x50] sm:$0xf]
  %v2309 = vld [vmem:[%s9 + $0x70] sm:$0xf]
  %v2310 = vpack.c.bf16 %v2304, %v2303
  %v2315 = vunpack.c.l.b16 %v2306
  %v2316 = vunpack.c.l.b16 %v2307
  %v2317 = vunpack.c.l.b16 %v2308
  %v2318 = vunpack.c.l.b16 %v2309
  %v2319 = vpack.c.b16 %v2316, %v2315
  %v2320 = vpack.c.b16 %v2318, %v2317
  %2323 = vrot.lane.b32.xlu0 %v2301, 96
  %v2324 = vpop.permute.xlu0 %2323
  %v2327 = vsel %vm90, %v2310, 0
  %2329 = vmatprep.subr.bf16.mxu0 0
  %2330 = vmatpush1.bf16.msra.mxu0 %v2319
  %2331 = vmatprep.subr.bf16.mxu0 0
  %2332 = vmatpush1.bf16.msra.mxu0 %v2320
  %2333 = vmatprep.subr.bf16.mxu0 0
  %2334 = vmatpush1.bf16.msra.mxu0 0
  %2335 = vmatprep.subr.bf16.mxu0 0
  %2336 = vmatpush1.bf16.msra.mxu0 0
  %2337 = vmatprep.subr.bf16.mxu0 0
  %2338 = vmatpush1.bf16.msra.mxu0 0
  %2339 = vmatprep.subr.bf16.mxu0 0
  %2340 = vmatpush1.bf16.msra.mxu0 0
  %2341 = vmatprep.subr.bf16.mxu0 0
  %2342 = vmatpush1.bf16.msra.mxu0 0
  %2343 = vmatprep.subr.bf16.mxu0 0
  %2344 = vmatpush1.bf16.msra.mxu0 0
  %2345 = vmatprep.subr.bf16.mxu0 0
  %2346 = vmatpush1.bf16.msra.mxu0 0
  %2347 = vmatprep.subr.bf16.mxu0 0
  %2348 = vmatpush1.bf16.msra.mxu0 0
  %2349 = vmatprep.subr.bf16.mxu0 0
  %2350 = vmatpush1.bf16.msra.mxu0 0
  %2351 = vmatprep.subr.bf16.mxu0 0
  %2352 = vmatpush1.bf16.msra.mxu0 0
  %2353 = vmatprep.subr.bf16.mxu0 0
  %2354 = vmatpush1.bf16.msra.mxu0 0
  %2355 = vmatprep.subr.bf16.mxu0 0
  %2356 = vmatpush1.bf16.msra.mxu0 0
  %2357 = vmatprep.subr.bf16.mxu0 0
  %2358 = vmatpush1.bf16.msra.mxu0 0
  %2359 = vmatprep.subr.bf16.mxu0 0
  %2360 = vmatpush1.bf16.msra.mxu0 0
  %2361 = vmatprep.mubr.bf16.mxu0 0
  %2362 = vmatmul.mubr.bf16.gmra.mrb[0].mxu0 %v2327
  %v2363 = vpop.f32.mrb[0].mxu0
  %v2364 = vadd.f32 %v2324, %v2363
  %v2365 = vpop.f32.mrb[0].mxu0
  %v2366 = vpop.f32.mrb[0].mxu0
  %v2367 = vadd.f32 %v2324, %v2366
  %v2368 = vpop.f32.mrb[0].mxu0
  %2369 = vdwg.mxu0
  %v2370 = vpack.c.bf16 %v945, %v942
  %2371 = vrot.lane.b32.xlu0 %v2319, 96
  %v2372 = vpop.permute.xlu0 %2371
  %2373 = vrot.lane.b32.xlu0 %v2320, 96
  %v2374 = vpop.permute.xlu0 %2373
  %2377 = vrot.lane.b32.xlu0 %v2301, 64
  %v2378 = vpop.permute.xlu0 %2377
  %v2381 = vsel %vm90, %v2370, 0
  %2383 = vmatprep.subr.bf16.mxu0 0
  %2384 = vmatpush1.bf16.msra.mxu0 %v2372
  %2385 = vmatprep.subr.bf16.mxu0 0
  %2386 = vmatpush1.bf16.msra.mxu0 %v2374
  %2387 = vmatprep.subr.bf16.mxu0 0
  %2388 = vmatpush1.bf16.msra.mxu0 0
  %2389 = vmatprep.subr.bf16.mxu0 0
  %2390 = vmatpush1.bf16.msra.mxu0 0
  %2391 = vmatprep.subr.bf16.mxu0 0
  %2392 = vmatpush1.bf16.msra.mxu0 0
  %2393 = vmatprep.subr.bf16.mxu0 0
  %2394 = vmatpush1.bf16.msra.mxu0 0
  %2395 = vmatprep.subr.bf16.mxu0 0
  %2396 = vmatpush1.bf16.msra.mxu0 0
  %2397 = vmatprep.subr.bf16.mxu0 0
  %2398 = vmatpush1.bf16.msra.mxu0 0
  %2399 = vmatprep.subr.bf16.mxu0 0
  %2400 = vmatpush1.bf16.msra.mxu0 0
  %2401 = vmatprep.subr.bf16.mxu0 0
  %2402 = vmatpush1.bf16.msra.mxu0 0
  %2403 = vmatprep.subr.bf16.mxu0 0
  %2404 = vmatpush1.bf16.msra.mxu0 0
  %2405 = vmatprep.subr.bf16.mxu0 0
  %2406 = vmatpush1.bf16.msra.mxu0 0
  %2407 = vmatprep.subr.bf16.mxu0 0
  %2408 = vmatpush1.bf16.msra.mxu0 0
  %2409 = vmatprep.subr.bf16.mxu0 0
  %2410 = vmatpush1.bf16.msra.mxu0 0
  %2411 = vmatprep.subr.bf16.mxu0 0
  %2412 = vmatpush1.bf16.msra.mxu0 0
  %2413 = vmatprep.subr.bf16.mxu0 0
  %2414 = vmatpush1.bf16.msra.mxu0 0
  %2415 = vmatprep.mubr.bf16.mxu0 0
  %2416 = vmatmul.mubr.bf16.gmra.mrb[0].mxu0 %v2381
  %v2417 = vpop.f32.mrb[0].mxu0
  %v2418 = vadd.f32 %v2378, %v2417
  %v2419 = vpop.f32.mrb[0].mxu0
  %v2420 = vpop.f32.mrb[0].mxu0
  %v2421 = vadd.f32 %v2378, %v2420
  %v2422 = vpop.f32.mrb[0].mxu0
  %2423 = vdwg.mxu0
  %vm2424 = vcmp.gt.f32.partialorder %v50, 0.0
  %v2425 = vsel %vm2424, 1, 0
  %v2426 = vlaneseq
  %v2427 = vshrl.u32 %v2426, 7
  %v2428 = vsub.s32 0, %v2427
  %v2429 = vrot.slane %v2425, %v2428
  %vm2430 = vcmp.eq.s32.totalorder %v2429, 1
  %v2431 = vpack.c.bf16 %v2364, %v2364
  %v2432 = vpack.c.bf16 %v2418, %v2418
  %v2434 = vsel %vm146, %v2431, 0
  %v2437 = vsel %vm146, %v2432, 0
  %2439 = vmatprep.subr.bf16.mxu0 0
  %2440 = vmatpush1.bf16.xpose.msra.mxu0 %v2437
  %2441 = vmatprep.subr.bf16.mxu0 0
  %2442 = vmatpush1.bf16.xpose.msra.mxu0 0
  %2443 = vmatprep.subr.bf16.mxu0 0
  %2444 = vmatpush1.bf16.xpose.msra.mxu0 0
  %2445 = vmatprep.subr.bf16.mxu0 0
  %2446 = vmatpush1.bf16.xpose.msra.mxu0 0
  %2447 = vmatprep.subr.bf16.mxu0 0
  %2448 = vmatpush1.bf16.xpose.msra.mxu0 0
  %2449 = vmatprep.subr.bf16.mxu0 0
  %2450 = vmatpush1.bf16.xpose.msra.mxu0 0
  %2451 = vmatprep.subr.bf16.mxu0 0
  %2452 = vmatpush1.bf16.xpose.msra.mxu0 0
  %2453 = vmatprep.subr.bf16.mxu0 0
  %2454 = vmatpush1.bf16.xpose.msra.mxu0 0
  %2455 = vmatprep.subr.bf16.mxu0 0
  %2456 = vmatpush1.bf16.xpose.msra.mxu0 0
  %2457 = vmatprep.subr.bf16.mxu0 0
  %2458 = vmatpush1.bf16.xpose.msra.mxu0 0
  %2459 = vmatprep.subr.bf16.mxu0 0
  %2460 = vmatpush1.bf16.xpose.msra.mxu0 0
  %2461 = vmatprep.subr.bf16.mxu0 0
  %2462 = vmatpush1.bf16.xpose.msra.mxu0 0
  %2463 = vmatprep.subr.bf16.mxu0 0
  %2464 = vmatpush1.bf16.xpose.msra.mxu0 0
  %2465 = vmatprep.subr.bf16.mxu0 0
  %2466 = vmatpush1.bf16.xpose.msra.mxu0 0
  %2467 = vmatprep.subr.bf16.mxu0 0
  %2468 = vmatpush1.bf16.xpose.msra.mxu0 0
  %2469 = vmatprep.subr.bf16.mxu0 0
  %2470 = vmatpush1.bf16.xpose.msra.mxu0 0
  %2471 = vmatprep.mubr.bf16.mxu0 0
  %2472 = vmatmul.mubr.bf16.gmra.mrb[0].mxu0 %v2434
  %v2473 = vpop.f32.mrb[0].mxu0
  %v2474 = vadd.f32 0.0, %v2473
  %v2475 = vpop.f32.mrb[0].mxu0
  %v2476 = vpop.f32.mrb[0].mxu0
  %v2477 = vpop.f32.mrb[0].mxu0
  %2478 = vdwg.mxu0
  %v2479 = vsel %vm2430, %v2474, -1e+30
  %vm2480 = vcmask 48128
  %v2481 = vsel %vm2480, %v2479, -inf
  %2482 = vmax.xlane.f32.xlu0 %v2481
  %v2483 = vpop.xlane.xlu0 %2482
  %v2484 = vsub.f32 %v2479, %v2483
  %v2485 = vmul.f32 %v2484, 1.442695
  %v2486 = vpow.pop %v2485
  %v2487 = vsel %vm2480, %v2486, 0.0
  %2488 = vadd.xlane.f32.xlu0 %v2487
  %v2489 = vpop.xlane.xlu0 %2488
  %v2490 = vrcp.pop %v2489
  %v2491 = vmul.f32 %v2486, %v2490
  %v2492 = vpack.c.bf16 %v2491, %v2491
  %2494 = vrot.lane.b32.xlu0 %v2432, 96
  %v2495 = vpop.permute.xlu0 %2494
  %v2497 = vsel %vm2480, %v2492, 0
  %vm2499 = vcmask 1042432
  %v2501 = vsel %vm2499, %v2495, 0
  %2503 = vmatprep.subr.bf16.mxu0 0
  %2504 = vmatpush1.bf16.msra.mxu0 %v2501
  %2505 = vmatprep.subr.bf16.mxu0 0
  %2506 = vmatpush1.bf16.msra.mxu0 0
  %2507 = vmatprep.subr.bf16.mxu0 0
  %2508 = vmatpush1.bf16.msra.mxu0 0
  %2509 = vmatprep.subr.bf16.mxu0 0
  %2510 = vmatpush1.bf16.msra.mxu0 0
  %2511 = vmatprep.subr.bf16.mxu0 0
  %2512 = vmatpush1.bf16.msra.mxu0 0
  %2513 = vmatprep.subr.bf16.mxu0 0
  %2514 = vmatpush1.bf16.msra.mxu0 0
  %2515 = vmatprep.subr.bf16.mxu0 0
  %2516 = vmatpush1.bf16.msra.mxu0 0
  %2517 = vmatprep.subr.bf16.mxu0 0
  %2518 = vmatpush1.bf16.msra.mxu0 0
  %2519 = vmatprep.subr.bf16.mxu0 0
  %2520 = vmatpush1.bf16.msra.mxu0 0
  %2521 = vmatprep.subr.bf16.mxu0 0
  %2522 = vmatpush1.bf16.msra.mxu0 0
  %2523 = vmatprep.subr.bf16.mxu0 0
  %2524 = vmatpush1.bf16.msra.mxu0 0
  %2525 = vmatprep.subr.bf16.mxu0 0
  %2526 = vmatpush1.bf16.msra.mxu0 0
  %2527 = vmatprep.subr.bf16.mxu0 0
  %2528 = vmatpush1.bf16.msra.mxu0 0
  %2529 = vmatprep.subr.bf16.mxu0 0
  %2530 = vmatpush1.bf16.msra.mxu0 0
  %2531 = vmatprep.subr.bf16.mxu0 0
  %2532 = vmatpush1.bf16.msra.mxu0 0
  %2533 = vmatprep.subr.bf16.mxu0 0
  %2534 = vmatpush1.bf16.msra.mxu0 0
  %2535 = vmatprep.mubr.bf16.mxu0 0
  %2536 = vmatmul.mubr.bf16.gmra.mrb[0].mxu0 %v2497
  %v2537 = vpop.f32.mrb[0].mxu0
  %v2538 = vadd.f32 0.0, %v2537
  %v2539 = vpop.f32.mrb[0].mxu0
  %v2540 = vpop.f32.mrb[0].mxu0
  %v2541 = vpop.f32.mrb[0].mxu0
  %2542 = vdwg.mxu0
  %2544 = vrot.lane.b32.xlu0 %v2431, 112
  %v2545 = vpop.permute.xlu0 %2544
  %2546 = vrot.lane.b32.xlu0 %v2432, 112
  %v2547 = vpop.permute.xlu0 %2546
  %v2549 = vsel %vm146, %v2545, 0
  %v2552 = vsel %vm146, %v2547, 0
  %2554 = vmatprep.subr.bf16.mxu0 0
  %2555 = vmatpush1.bf16.xpose.msra.mxu0 %v2552
  %2556 = vmatprep.subr.bf16.mxu0 0
  %2557 = vmatpush1.bf16.xpose.msra.mxu0 0
  %2558 = vmatprep.subr.bf16.mxu0 0
  %2559 = vmatpush1.bf16.xpose.msra.mxu0 0
  %2560 = vmatprep.subr.bf16.mxu0 0
  %2561 = vmatpush1.bf16.xpose.msra.mxu0 0
  %2562 = vmatprep.subr.bf16.mxu0 0
  %2563 = vmatpush1.bf16.xpose.msra.mxu0 0
  %2564 = vmatprep.subr.bf16.mxu0 0
  %2565 = vmatpush1.bf16.xpose.msra.mxu0 0
  %2566 = vmatprep.subr.bf16.mxu0 0
  %2567 = vmatpush1.bf16.xpose.msra.mxu0 0
  %2568 = vmatprep.subr.bf16.mxu0 0
  %2569 = vmatpush1.bf16.xpose.msra.mxu0 0
  %2570 = vmatprep.subr.bf16.mxu0 0
  %2571 = vmatpush1.bf16.xpose.msra.mxu0 0
  %2572 = vmatprep.subr.bf16.mxu0 0
  %2573 = vmatpush1.bf16.xpose.msra.mxu0 0
  %2574 = vmatprep.subr.bf16.mxu0 0
  %2575 = vmatpush1.bf16.xpose.msra.mxu0 0
  %2576 = vmatprep.subr.bf16.mxu0 0
  %2577 = vmatpush1.bf16.xpose.msra.mxu0 0
  %2578 = vmatprep.subr.bf16.mxu0 0
  %2579 = vmatpush1.bf16.xpose.msra.mxu0 0
  %2580 = vmatprep.subr.bf16.mxu0 0
  %2581 = vmatpush1.bf16.xpose.msra.mxu0 0
  %2582 = vmatprep.subr.bf16.mxu0 0
  %2583 = vmatpush1.bf16.xpose.msra.mxu0 0
  %2584 = vmatprep.subr.bf16.mxu0 0
  %2585 = vmatpush1.bf16.xpose.msra.mxu0 0
  %2586 = vmatprep.mubr.bf16.mxu0 0
  %2587 = vmatmul.mubr.bf16.gmra.mrb[0].mxu0 %v2549
  %v2588 = vpop.f32.mrb[0].mxu0
  %v2589 = vadd.f32 0.0, %v2588
  %v2590 = vpop.f32.mrb[0].mxu0
  %v2591 = vpop.f32.mrb[0].mxu0
  %v2592 = vpop.f32.mrb[0].mxu0
  %2593 = vdwg.mxu0
  %v2594 = vsel %vm2430, %v2589, -1e+30
  %v2595 = vsel %vm2480, %v2594, -inf
  %2596 = vmax.xlane.f32.xlu0 %v2595
  %v2597 = vpop.xlane.xlu0 %2596
  %v2598 = vsub.f32 %v2594, %v2597
  %v2599 = vmul.f32 %v2598, 1.442695
  %v2600 = vpow.pop %v2599
  %v2601 = vsel %vm2480, %v2600, 0.0
  %2602 = vadd.xlane.f32.xlu0 %v2601
  %v2603 = vpop.xlane.xlu0 %2602
  %v2604 = vrcp.pop %v2603
  %v2605 = vmul.f32 %v2600, %v2604
  %v2606 = vpack.c.bf16 %v2605, %v2605
  %2607 = vrot.lane.b32.xlu0 %v2432, 80
  %v2608 = vpop.permute.xlu0 %2607
  %v2610 = vsel %vm2480, %v2606, 0
  %v2613 = vsel %vm2499, %v2608, 0
  %2615 = vmatprep.subr.bf16.mxu0 0
  %2616 = vmatpush1.bf16.msra.mxu0 %v2613
  %2617 = vmatprep.subr.bf16.mxu0 0
  %2618 = vmatpush1.bf16.msra.mxu0 0
  %2619 = vmatprep.subr.bf16.mxu0 0
  %2620 = vmatpush1.bf16.msra.mxu0 0
  %2621 = vmatprep.subr.bf16.mxu0 0
  %2622 = vmatpush1.bf16.msra.mxu0 0
  %2623 = vmatprep.subr.bf16.mxu0 0
  %2624 = vmatpush1.bf16.msra.mxu0 0
  %2625 = vmatprep.subr.bf16.mxu0 0
  %2626 = vmatpush1.bf16.msra.mxu0 0
  %2627 = vmatprep.subr.bf16.mxu0 0
  %2628 = vmatpush1.bf16.msra.mxu0 0
  %2629 = vmatprep.subr.bf16.mxu0 0
  %2630 = vmatpush1.bf16.msra.mxu0 0
  %2631 = vmatprep.subr.bf16.mxu0 0
  %2632 = vmatpush1.bf16.msra.mxu0 0
  %2633 = vmatprep.subr.bf16.mxu0 0
  %2634 = vmatpush1.bf16.msra.mxu0 0
  %2635 = vmatprep.subr.bf16.mxu0 0
  %2636 = vmatpush1.bf16.msra.mxu0 0
  %2637 = vmatprep.subr.bf16.mxu0 0
  %2638 = vmatpush1.bf16.msra.mxu0 0
  %2639 = vmatprep.subr.bf16.mxu0 0
  %2640 = vmatpush1.bf16.msra.mxu0 0
  %2641 = vmatprep.subr.bf16.mxu0 0
  %2642 = vmatpush1.bf16.msra.mxu0 0
  %2643 = vmatprep.subr.bf16.mxu0 0
  %2644 = vmatpush1.bf16.msra.mxu0 0
  %2645 = vmatprep.subr.bf16.mxu0 0
  %2646 = vmatpush1.bf16.msra.mxu0 0
  %2647 = vmatprep.mubr.bf16.mxu0 0
  %2648 = vmatmul.mubr.bf16.gmra.mrb[0].mxu0 %v2610
  %v2649 = vpop.f32.mrb[0].mxu0
  %v2650 = vadd.f32 0.0, %v2649
  %v2651 = vpop.f32.mrb[0].mxu0
  %v2652 = vpop.f32.mrb[0].mxu0
  %v2653 = vpop.f32.mrb[0].mxu0
  %2654 = vdwg.mxu0
  %2656 = vrot.lane.b32.xlu0 %v2650, 16
  %v2657 = vpop.permute.xlu0 %2656
  %v2659 = vsel %vm146, %v2538, %v2657
  %v2660 = vlaneseq
  %v2661 = vshrl.u32 %v2660, 7
  %v2662 = vsub.s32 1, %v2661
  %v2663 = vrot.slane %v2425, %v2662
  %vm2664 = vcmp.eq.s32.totalorder %v2663, 1
  %v2665 = vpack.c.bf16 %v2367, %v2367
  %v2666 = vpack.c.bf16 %v2421, %v2418
  %v2668 = vrot.slane %v2666, 3
  %v2670 = vsel %vm146, %v2665, 0
  %v2673 = vsel %vm146, %v2668, 0
  %2675 = vmatprep.subr.bf16.mxu0 0
  %2676 = vmatpush1.bf16.xpose.msra.mxu0 %v2673
  %2677 = vmatprep.subr.bf16.mxu0 0
  %2678 = vmatpush1.bf16.xpose.msra.mxu0 0
  %2679 = vmatprep.subr.bf16.mxu0 0
  %2680 = vmatpush1.bf16.xpose.msra.mxu0 0
  %2681 = vmatprep.subr.bf16.mxu0 0
  %2682 = vmatpush1.bf16.xpose.msra.mxu0 0
  %2683 = vmatprep.subr.bf16.mxu0 0
  %2684 = vmatpush1.bf16.xpose.msra.mxu0 0
  %2685 = vmatprep.subr.bf16.mxu0 0
  %2686 = vmatpush1.bf16.xpose.msra.mxu0 0
  %2687 = vmatprep.subr.bf16.mxu0 0
  %2688 = vmatpush1.bf16.xpose.msra.mxu0 0
  %2689 = vmatprep.subr.bf16.mxu0 0
  %2690 = vmatpush1.bf16.xpose.msra.mxu0 0
  %2691 = vmatprep.subr.bf16.mxu0 0
  %2692 = vmatpush1.bf16.xpose.msra.mxu0 0
  %2693 = vmatprep.subr.bf16.mxu0 0
  %2694 = vmatpush1.bf16.xpose.msra.mxu0 0
  %2695 = vmatprep.subr.bf16.mxu0 0
  %2696 = vmatpush1.bf16.xpose.msra.mxu0 0
  %2697 = vmatprep.subr.bf16.mxu0 0
  %2698 = vmatpush1.bf16.xpose.msra.mxu0 0
  %2699 = vmatprep.subr.bf16.mxu0 0
  %2700 = vmatpush1.bf16.xpose.msra.mxu0 0
  %2701 = vmatprep.subr.bf16.mxu0 0
  %2702 = vmatpush1.bf16.xpose.msra.mxu0 0
  %2703 = vmatprep.subr.bf16.mxu0 0
  %2704 = vmatpush1.bf16.xpose.msra.mxu0 0
  %2705 = vmatprep.subr.bf16.mxu0 0
  %2706 = vmatpush1.bf16.xpose.msra.mxu0 0
  %2707 = vmatprep.mubr.bf16.mxu0 0
  %2708 = vmatmul.mubr.bf16.gmra.mrb[0].mxu0 %v2670
  %v2709 = vpop.f32.mrb[0].mxu0
  %v2710 = vadd.f32 0.0, %v2709
  %v2711 = vpop.f32.mrb[0].mxu0
  %v2712 = vpop.f32.mrb[0].mxu0
  %v2713 = vpop.f32.mrb[0].mxu0
  %2714 = vdwg.mxu0
  %v2715 = vsel %vm2664, %v2710, -1e+30
  %v2716 = vsel %vm2480, %v2715, -inf
  %2717 = vmax.xlane.f32.xlu0 %v2716
  %v2718 = vpop.xlane.xlu0 %2717
  %v2719 = vsub.f32 %v2715, %v2718
  %v2720 = vmul.f32 %v2719, 1.442695
  %v2721 = vpow.pop %v2720
  %v2722 = vsel %vm2480, %v2721, 0.0
  %2723 = vadd.xlane.f32.xlu0 %v2722
  %v2724 = vpop.xlane.xlu0 %2723
  %v2725 = vrcp.pop %v2724
  %v2726 = vmul.f32 %v2721, %v2725
  %v2727 = vpack.c.bf16 %v2726, %v2726
  %2728 = vrot.lane.b32.xlu0 %v2668, 96
  %v2729 = vpop.permute.xlu0 %2728
  %v2731 = vsel %vm2480, %v2727, 0
  %v2734 = vsel %vm2499, %v2729, 0
  %2736 = vmatprep.subr.bf16.mxu0 0
  %2737 = vmatpush1.bf16.msra.mxu0 %v2734
  %2738 = vmatprep.subr.bf16.mxu0 0
  %2739 = vmatpush1.bf16.msra.mxu0 0
  %2740 = vmatprep.subr.bf16.mxu0 0
  %2741 = vmatpush1.bf16.msra.mxu0 0
  %2742 = vmatprep.subr.bf16.mxu0 0
  %2743 = vmatpush1.bf16.msra.mxu0 0
  %2744 = vmatprep.subr.bf16.mxu0 0
  %2745 = vmatpush1.bf16.msra.mxu0 0
  %2746 = vmatprep.subr.bf16.mxu0 0
  %2747 = vmatpush1.bf16.msra.mxu0 0
  %2748 = vmatprep.subr.bf16.mxu0 0
  %2749 = vmatpush1.bf16.msra.mxu0 0
  %2750 = vmatprep.subr.bf16.mxu0 0
  %2751 = vmatpush1.bf16.msra.mxu0 0
  %2752 = vmatprep.subr.bf16.mxu0 0
  %2753 = vmatpush1.bf16.msra.mxu0 0
  %2754 = vmatprep.subr.bf16.mxu0 0
  %2755 = vmatpush1.bf16.msra.mxu0 0
  %2756 = vmatprep.subr.bf16.mxu0 0
  %2757 = vmatpush1.bf16.msra.mxu0 0
  %2758 = vmatprep.subr.bf16.mxu0 0
  %2759 = vmatpush1.bf16.msra.mxu0 0
  %2760 = vmatprep.subr.bf16.mxu0 0
  %2761 = vmatpush1.bf16.msra.mxu0 0
  %2762 = vmatprep.subr.bf16.mxu0 0
  %2763 = vmatpush1.bf16.msra.mxu0 0
  %2764 = vmatprep.subr.bf16.mxu0 0
  %2765 = vmatpush1.bf16.msra.mxu0 0
  %2766 = vmatprep.subr.bf16.mxu0 0
  %2767 = vmatpush1.bf16.msra.mxu0 0
  %2768 = vmatprep.mubr.bf16.mxu0 0
  %2769 = vmatmul.mubr.bf16.gmra.mrb[0].mxu0 %v2731
  %v2770 = vpop.f32.mrb[0].mxu0
  %v2771 = vadd.f32 0.0, %v2770
  %v2772 = vpop.f32.mrb[0].mxu0
  %v2773 = vpop.f32.mrb[0].mxu0
  %v2774 = vpop.f32.mrb[0].mxu0
  %2775 = vdwg.mxu0
  %2777 = vrot.lane.b32.xlu0 %v2665, 112
  %v2778 = vpop.permute.xlu0 %2777
  %2779 = vrot.lane.b32.xlu0 %v2668, 112
  %v2780 = vpop.permute.xlu0 %2779
  %v2782 = vsel %vm146, %v2778, 0
  %v2785 = vsel %vm146, %v2780, 0
  %2787 = vmatprep.subr.bf16.mxu0 0
  %2788 = vmatpush1.bf16.xpose.msra.mxu0 %v2785
  %2789 = vmatprep.subr.bf16.mxu0 0
  %2790 = vmatpush1.bf16.xpose.msra.mxu0 0
  %2791 = vmatprep.subr.bf16.mxu0 0
  %2792 = vmatpush1.bf16.xpose.msra.mxu0 0
  %2793 = vmatprep.subr.bf16.mxu0 0
  %2794 = vmatpush1.bf16.xpose.msra.mxu0 0
  %2795 = vmatprep.subr.bf16.mxu0 0
  %2796 = vmatpush1.bf16.xpose.msra.mxu0 0
  %2797 = vmatprep.subr.bf16.mxu0 0
  %2798 = vmatpush1.bf16.xpose.msra.mxu0 0
  %2799 = vmatprep.subr.bf16.mxu0 0
  %2800 = vmatpush1.bf16.xpose.msra.mxu0 0
  %2801 = vmatprep.subr.bf16.mxu0 0
  %2802 = vmatpush1.bf16.xpose.msra.mxu0 0
  %2803 = vmatprep.subr.bf16.mxu0 0
  %2804 = vmatpush1.bf16.xpose.msra.mxu0 0
  %2805 = vmatprep.subr.bf16.mxu0 0
  %2806 = vmatpush1.bf16.xpose.msra.mxu0 0
  %2807 = vmatprep.subr.bf16.mxu0 0
  %2808 = vmatpush1.bf16.xpose.msra.mxu0 0
  %2809 = vmatprep.subr.bf16.mxu0 0
  %2810 = vmatpush1.bf16.xpose.msra.mxu0 0
  %2811 = vmatprep.subr.bf16.mxu0 0
  %2812 = vmatpush1.bf16.xpose.msra.mxu0 0
  %2813 = vmatprep.subr.bf16.mxu0 0
  %2814 = vmatpush1.bf16.xpose.msra.mxu0 0
  %2815 = vmatprep.subr.bf16.mxu0 0
  %2816 = vmatpush1.bf16.xpose.msra.mxu0 0
  %2817 = vmatprep.subr.bf16.mxu0 0
  %2818 = vmatpush1.bf16.xpose.msra.mxu0 0
  %2819 = vmatprep.mubr.bf16.mxu0 0
  %2820 = vmatmul.mubr.bf16.gmra.mrb[0].mxu0 %v2782
  %v2821 = vpop.f32.mrb[0].mxu0
  %v2822 = vadd.f32 0.0, %v2821
  %v2823 = vpop.f32.mrb[0].mxu0
  %v2824 = vpop.f32.mrb[0].mxu0
  %v2825 = vpop.f32.mrb[0].mxu0
  %2826 = vdwg.mxu0
  %v2827 = vsel %vm2664, %v2822, -1e+30
  %v2828 = vsel %vm2480, %v2827, -inf
  %2829 = vmax.xlane.f32.xlu0 %v2828
  %v2830 = vpop.xlane.xlu0 %2829
  %v2831 = vsub.f32 %v2827, %v2830
  %v2832 = vmul.f32 %v2831, 1.442695
  %v2833 = vpow.pop %v2832
  %v2834 = vsel %vm2480, %v2833, 0.0
  %2835 = vadd.xlane.f32.xlu0 %v2834
  %v2836 = vpop.xlane.xlu0 %2835
  %v2837 = vrcp.pop %v2836
  %v2838 = vmul.f32 %v2833, %v2837
  %v2839 = vpack.c.bf16 %v2838, %v2838
  %2840 = vrot.lane.b32.xlu0 %v2668, 80
  %v2841 = vpop.permute.xlu0 %2840
  %v2843 = vsel %vm2480, %v2839, 0
  %v2846 = vsel %vm2499, %v2841, 0
  %2848 = vmatprep.subr.bf16.mxu0 0
  %2849 = vmatpush1.bf16.msra.mxu0 %v2846
  %2850 = vmatprep.subr.bf16.mxu0 0
  %2851 = vmatpush1.bf16.msra.mxu0 0
  %2852 = vmatprep.subr.bf16.mxu0 0
  %2853 = vmatpush1.bf16.msra.mxu0 0
  %2854 = vmatprep.subr.bf16.mxu0 0
  %2855 = vmatpush1.bf16.msra.mxu0 0
  %2856 = vmatprep.subr.bf16.mxu0 0
  %2857 = vmatpush1.bf16.msra.mxu0 0
  %2858 = vmatprep.subr.bf16.mxu0 0
  %2859 = vmatpush1.bf16.msra.mxu0 0
  %2860 = vmatprep.subr.bf16.mxu0 0
  %2861 = vmatpush1.bf16.msra.mxu0 0
  %2862 = vmatprep.subr.bf16.mxu0 0
  %2863 = vmatpush1.bf16.msra.mxu0 0
  %2864 = vmatprep.subr.bf16.mxu0 0
  %2865 = vmatpush1.bf16.msra.mxu0 0
  %2866 = vmatprep.subr.bf16.mxu0 0
  %2867 = vmatpush1.bf16.msra.mxu0 0
  %2868 = vmatprep.subr.bf16.mxu0 0
  %2869 = vmatpush1.bf16.msra.mxu0 0
  %2870 = vmatprep.subr.bf16.mxu0 0
  %2871 = vmatpush1.bf16.msra.mxu0 0
  %2872 = vmatprep.subr.bf16.mxu0 0
  %2873 = vmatpush1.bf16.msra.mxu0 0
  %2874 = vmatprep.subr.bf16.mxu0 0
  %2875 = vmatpush1.bf16.msra.mxu0 0
  %2876 = vmatprep.subr.bf16.mxu0 0
  %2877 = vmatpush1.bf16.msra.mxu0 0
  %2878 = vmatprep.subr.bf16.mxu0 0
  %2879 = vmatpush1.bf16.msra.mxu0 0
  %2880 = vmatprep.mubr.bf16.mxu0 0
  %2881 = vmatmul.mubr.bf16.gmra.mrb[0].mxu0 %v2843
  %v2882 = vpop.f32.mrb[0].mxu0
  %v2883 = vadd.f32 0.0, %v2882
  %v2884 = vpop.f32.mrb[0].mxu0
  %v2885 = vpop.f32.mrb[0].mxu0
  %v2886 = vpop.f32.mrb[0].mxu0
  %2887 = vdwg.mxu0
  %2889 = vrot.lane.b32.xlu0 %v2883, 16
  %v2890 = vpop.permute.xlu0 %2889
  %v2892 = vsel %vm146, %v2771, %v2890
  %v2893 = vpack.c.bf16 %v2892, %v2659
  %v2895 = vlaneseq
  %v2896 = vshrl.u32 %v2895, 7
  %v2897 = vsub.s32 0, %v2896
  %v2898 = vrot.slane %v2305, %v2897
  %2900 = vrot.lane.b32.xlu0 %v2319, 32
  %v2901 = vpop.permute.xlu0 %2900
  %2902 = vrot.lane.b32.xlu0 %v2320, 32
  %v2903 = vpop.permute.xlu0 %2902
  %v2907 = vsel %vm90, %v2893, 0
  %2909 = vmatprep.subr.bf16.mxu0 0
  %2910 = vmatpush1.bf16.msra.mxu0 %v2901
  %2911 = vmatprep.subr.bf16.mxu0 0
  %2912 = vmatpush1.bf16.msra.mxu0 %v2903
  %2913 = vmatprep.subr.bf16.mxu0 0
  %2914 = vmatpush1.bf16.msra.mxu0 0
  %2915 = vmatprep.subr.bf16.mxu0 0
  %2916 = vmatpush1.bf16.msra.mxu0 0
  %2917 = vmatprep.subr.bf16.mxu0 0
  %2918 = vmatpush1.bf16.msra.mxu0 0
  %2919 = vmatprep.subr.bf16.mxu0 0
  %2920 = vmatpush1.bf16.msra.mxu0 0
  %2921 = vmatprep.subr.bf16.mxu0 0
  %2922 = vmatpush1.bf16.msra.mxu0 0
  %2923 = vmatprep.subr.bf16.mxu0 0
  %2924 = vmatpush1.bf16.msra.mxu0 0
  %2925 = vmatprep.subr.bf16.mxu0 0
  %2926 = vmatpush1.bf16.msra.mxu0 0
  %2927 = vmatprep.subr.bf16.mxu0 0
  %2928 = vmatpush1.bf16.msra.mxu0 0
  %2929 = vmatprep.subr.bf16.mxu0 0
  %2930 = vmatpush1.bf16.msra.mxu0 0
  %2931 = vmatprep.subr.bf16.mxu0 0
  %2932 = vmatpush1.bf16.msra.mxu0 0
  %2933 = vmatprep.subr.bf16.mxu0 0
  %2934 = vmatpush1.bf16.msra.mxu0 0
  %2935 = vmatprep.subr.bf16.mxu0 0
  %2936 = vmatpush1.bf16.msra.mxu0 0
  %2937 = vmatprep.subr.bf16.mxu0 0
  %2938 = vmatpush1.bf16.msra.mxu0 0
  %2939 = vmatprep.subr.bf16.mxu0 0
  %2940 = vmatpush1.bf16.msra.mxu0 0
  %2941 = vmatprep.mubr.bf16.mxu0 0
  %2942 = vmatmul.mubr.bf16.gmra.mrb[0].mxu0 %v2907
  %v2943 = vpop.f32.mrb[0].mxu0
  %v2944 = vadd.f32 %v2898, %v2943
  %v2945 = vpop.f32.mrb[0].mxu0
  %v2946 = vpop.f32.mrb[0].mxu0
  %v2947 = vadd.f32 %v2898, %v2946
  %v2948 = vpop.f32.mrb[0].mxu0
  %2949 = vdwg.mxu0
  %v2950 = vadd.f32 %v2303, %v2944
  %v2951 = vadd.f32 %v2304, %v2947
  %v2952 = vsel %vm90, %v2950, 0.0
  %2953 = vadd.xlane.f32.xlu0 %v2952
  %v2954 = vpop.xlane.xlu0 %2953
  %v2955 = vsel %vm90, %v2951, 0.0
  %2956 = vadd.xlane.f32.xlu0 %v2955
  %v2957 = vpop.xlane.xlu0 %2956
  %v2958 = vmul.f32 %v2954, %v667
  %v2959 = vmul.f32 %v2957, %v667
  %v2960 = vsub.f32 %v2950, %v2958
  %v2961 = vsub.f32 %v2951, %v2959
  %v2962 = vmul.f32 %v2960, %v2960
  %v2963 = vmul.f32 %v2961, %v2961
  %v2964 = vsel %vm90, %v2962, 0.0
  %2965 = vadd.xlane.f32.xlu0 %v2964
  %v2966 = vpop.xlane.xlu0 %2965
  %v2967 = vsel %vm90, %v2963, 0.0
  %2968 = vadd.xlane.f32.xlu0 %v2967
  %v2969 = vpop.xlane.xlu0 %2968
  %v2970 = vmul.f32 %v2966, %v667
  %v2971 = vmul.f32 %v2969, %v667
  %v2972 = vadd.f32 %v2970, 1e-05
  %v2973 = vadd.f32 %v2971, 1e-05
  %v2974 = vrsqrt.pop %v2972
  %v2975 = vrsqrt.pop %v2973
  %v2976 = vmul.f32 %v2960, %v2974
  %v2977 = vmul.f32 %v2961, %v2975
  %2978 = vrot.lane.b32.xlu0 %v2898, 96
  %v2979 = vpop.permute.xlu0 %2978
  %v2981 = vmul.f32 %v2976, %v2979
  %v2982 = vmul.f32 %v2977, %v2979
  %2983 = vrot.lane.b32.xlu0 %v2898, 64
  %v2984 = vpop.permute.xlu0 %2983
  %v2986 = vadd.f32 %v2981, %v2984
  %v2987 = vadd.f32 %v2982, %v2984
  %v2988 = vld [vmem:[%s11 + $0x8] sm:$0x1]
  %v2989 = vld [vmem:[%s11 + $0x9] sm:$0x1]
  %v2990 = vld [vmem:[%s9 + $0x14] sm:$0xf]
  %v2991 = vld [vmem:[%s9 + $0x34] sm:$0xf]
  %v2992 = vld [vmem:[%s9 + $0x54] sm:$0xf]
  %v2993 = vld [vmem:[%s9 + $0x74] sm:$0xf]
  %v2994 = vpack.c.bf16 %v2987, %v2986
  %v2999 = vunpack.c.l.b16 %v2990
  %v3000 = vunpack.c.l.b16 %v2991
  %v3001 = vunpack.c.l.b16 %v2992
  %v3002 = vunpack.c.l.b16 %v2993
  %v3003 = vpack.c.b16 %v3000, %v2999
  %v3004 = vpack.c.b16 %v3002, %v3001
  %3007 = vrot.lane.b32.xlu0 %v2898, 32
  %v3008 = vpop.permute.xlu0 %3007
  %v3011 = vsel %vm90, %v2994, 0
  %3013 = vmatprep.subr.bf16.mxu0 0
  %3014 = vmatpush1.bf16.msra.mxu0 %v3003
  %3015 = vmatprep.subr.bf16.mxu0 0
  %3016 = vmatpush1.bf16.msra.mxu0 %v3004
  %3017 = vmatprep.subr.bf16.mxu0 0
  %3018 = vmatpush1.bf16.msra.mxu0 0
  %3019 = vmatprep.subr.bf16.mxu0 0
  %3020 = vmatpush1.bf16.msra.mxu0 0
  %3021 = vmatprep.subr.bf16.mxu0 0
  %3022 = vmatpush1.bf16.msra.mxu0 0
  %3023 = vmatprep.subr.bf16.mxu0 0
  %3024 = vmatpush1.bf16.msra.mxu0 0
  %3025 = vmatprep.subr.bf16.mxu0 0
  %3026 = vmatpush1.bf16.msra.mxu0 0
  %3027 = vmatprep.subr.bf16.mxu0 0
  %3028 = vmatpush1.bf16.msra.mxu0 0
  %3029 = vmatprep.subr.bf16.mxu0 0
  %3030 = vmatpush1.bf16.msra.mxu0 0
  %3031 = vmatprep.subr.bf16.mxu0 0
  %3032 = vmatpush1.bf16.msra.mxu0 0
  %3033 = vmatprep.subr.bf16.mxu0 0
  %3034 = vmatpush1.bf16.msra.mxu0 0
  %3035 = vmatprep.subr.bf16.mxu0 0
  %3036 = vmatpush1.bf16.msra.mxu0 0
  %3037 = vmatprep.subr.bf16.mxu0 0
  %3038 = vmatpush1.bf16.msra.mxu0 0
  %3039 = vmatprep.subr.bf16.mxu0 0
  %3040 = vmatpush1.bf16.msra.mxu0 0
  %3041 = vmatprep.subr.bf16.mxu0 0
  %3042 = vmatpush1.bf16.msra.mxu0 0
  %3043 = vmatprep.subr.bf16.mxu0 0
  %3044 = vmatpush1.bf16.msra.mxu0 0
  %3045 = vmatprep.mubr.bf16.mxu0 0
  %3046 = vmatmul.mubr.bf16.gmra.mrb[0].mxu0 %v3011
  %v3047 = vpop.f32.mrb[0].mxu0
  %v3048 = vadd.f32 %v3008, %v3047
  %v3049 = vpop.f32.mrb[0].mxu0
  %v3050 = vpop.f32.mrb[0].mxu0
  %v3051 = vadd.f32 %v3008, %v3050
  %v3052 = vpop.f32.mrb[0].mxu0
  %3053 = vdwg.mxu0
  %v3054 = vpack.c.bf16 %v1005, %v1002
  %v3056 = vlaneseq
  %v3057 = vshrl.u32 %v3056, 7
  %v3058 = vsub.s32 0, %v3057
  %v3059 = vrot.slane %v2988, %v3058
  %3061 = vrot.lane.b32.xlu0 %v3003, 96
  %v3062 = vpop.permute.xlu0 %3061
  %3063 = vrot.lane.b32.xlu0 %v3004, 96
  %v3064 = vpop.permute.xlu0 %3063
  %v3068 = vsel %vm90, %v3054, 0
  %3070 = vmatprep.subr.bf16.mxu0 0
  %3071 = vmatpush1.bf16.msra.mxu0 %v3062
  %3072 = vmatprep.subr.bf16.mxu0 0
  %3073 = vmatpush1.bf16.msra.mxu0 %v3064
  %3074 = vmatprep.subr.bf16.mxu0 0
  %3075 = vmatpush1.bf16.msra.mxu0 0
  %3076 = vmatprep.subr.bf16.mxu0 0
  %3077 = vmatpush1.bf16.msra.mxu0 0
  %3078 = vmatprep.subr.bf16.mxu0 0
  %3079 = vmatpush1.bf16.msra.mxu0 0
  %3080 = vmatprep.subr.bf16.mxu0 0
  %3081 = vmatpush1.bf16.msra.mxu0 0
  %3082 = vmatprep.subr.bf16.mxu0 0
  %3083 = vmatpush1.bf16.msra.mxu0 0
  %3084 = vmatprep.subr.bf16.mxu0 0
  %3085 = vmatpush1.bf16.msra.mxu0 0
  %3086 = vmatprep.subr.bf16.mxu0 0
  %3087 = vmatpush1.bf16.msra.mxu0 0
  %3088 = vmatprep.subr.bf16.mxu0 0
  %3089 = vmatpush1.bf16.msra.mxu0 0
  %3090 = vmatprep.subr.bf16.mxu0 0
  %3091 = vmatpush1.bf16.msra.mxu0 0
  %3092 = vmatprep.subr.bf16.mxu0 0
  %3093 = vmatpush1.bf16.msra.mxu0 0
  %3094 = vmatprep.subr.bf16.mxu0 0
  %3095 = vmatpush1.bf16.msra.mxu0 0
  %3096 = vmatprep.subr.bf16.mxu0 0
  %3097 = vmatpush1.bf16.msra.mxu0 0
  %3098 = vmatprep.subr.bf16.mxu0 0
  %3099 = vmatpush1.bf16.msra.mxu0 0
  %3100 = vmatprep.subr.bf16.mxu0 0
  %3101 = vmatpush1.bf16.msra.mxu0 0
  %3102 = vmatprep.mubr.bf16.mxu0 0
  %3103 = vmatmul.mubr.bf16.gmra.mrb[0].mxu0 %v3068
  %v3104 = vpop.f32.mrb[0].mxu0
  %v3105 = vadd.f32 %v3059, %v3104
  %v3106 = vpop.f32.mrb[0].mxu0
  %v3107 = vpop.f32.mrb[0].mxu0
  %v3108 = vadd.f32 %v3059, %v3107
  %v3109 = vpop.f32.mrb[0].mxu0
  %3110 = vdwg.mxu0
  %vm3111 = vcmp.gt.f32.partialorder %v51, 0.0
  %v3112 = vsel %vm3111, 1, 0
  %v3113 = vlaneseq
  %v3114 = vshrl.u32 %v3113, 7
  %v3115 = vsub.s32 0, %v3114
  %v3116 = vrot.slane %v3112, %v3115
  %vm3117 = vcmp.eq.s32.totalorder %v3116, 1
  %v3118 = vpack.c.bf16 %v3048, %v3048
  %v3119 = vpack.c.bf16 %v3105, %v3105
  %v3121 = vsel %vm146, %v3118, 0
  %v3124 = vsel %vm146, %v3119, 0
  %3126 = vmatprep.subr.bf16.mxu0 0
  %3127 = vmatpush1.bf16.xpose.msra.mxu0 %v3124
  %3128 = vmatprep.subr.bf16.mxu0 0
  %3129 = vmatpush1.bf16.xpose.msra.mxu0 0
  %3130 = vmatprep.subr.bf16.mxu0 0
  %3131 = vmatpush1.bf16.xpose.msra.mxu0 0
  %3132 = vmatprep.subr.bf16.mxu0 0
  %3133 = vmatpush1.bf16.xpose.msra.mxu0 0
  %3134 = vmatprep.subr.bf16.mxu0 0
  %3135 = vmatpush1.bf16.xpose.msra.mxu0 0
  %3136 = vmatprep.subr.bf16.mxu0 0
  %3137 = vmatpush1.bf16.xpose.msra.mxu0 0
  %3138 = vmatprep.subr.bf16.mxu0 0
  %3139 = vmatpush1.bf16.xpose.msra.mxu0 0
  %3140 = vmatprep.subr.bf16.mxu0 0
  %3141 = vmatpush1.bf16.xpose.msra.mxu0 0
  %3142 = vmatprep.subr.bf16.mxu0 0
  %3143 = vmatpush1.bf16.xpose.msra.mxu0 0
  %3144 = vmatprep.subr.bf16.mxu0 0
  %3145 = vmatpush1.bf16.xpose.msra.mxu0 0
  %3146 = vmatprep.subr.bf16.mxu0 0
  %3147 = vmatpush1.bf16.xpose.msra.mxu0 0
  %3148 = vmatprep.subr.bf16.mxu0 0
  %3149 = vmatpush1.bf16.xpose.msra.mxu0 0
  %3150 = vmatprep.subr.bf16.mxu0 0
  %3151 = vmatpush1.bf16.xpose.msra.mxu0 0
  %3152 = vmatprep.subr.bf16.mxu0 0
  %3153 = vmatpush1.bf16.xpose.msra.mxu0 0
  %3154 = vmatprep.subr.bf16.mxu0 0
  %3155 = vmatpush1.bf16.xpose.msra.mxu0 0
  %3156 = vmatprep.subr.bf16.mxu0 0
  %3157 = vmatpush1.bf16.xpose.msra.mxu0 0
  %3158 = vmatprep.mubr.bf16.mxu0 0
  %3159 = vmatmul.mubr.bf16.gmra.mrb[0].mxu0 %v3121
  %v3160 = vpop.f32.mrb[0].mxu0
  %v3161 = vadd.f32 0.0, %v3160
  %v3162 = vpop.f32.mrb[0].mxu0
  %v3163 = vpop.f32.mrb[0].mxu0
  %v3164 = vpop.f32.mrb[0].mxu0
  %3165 = vdwg.mxu0
  %v3166 = vsel %vm3117, %v3161, -1e+30
  %v3167 = vsel %vm194, %v3166, -inf
  %3168 = vmax.xlane.f32.xlu0 %v3167
  %v3169 = vpop.xlane.xlu0 %3168
  %v3170 = vsub.f32 %v3166, %v3169
  %v3171 = vmul.f32 %v3170, 1.442695
  %v3172 = vpow.pop %v3171
  %v3173 = vsel %vm194, %v3172, 0.0
  %3174 = vadd.xlane.f32.xlu0 %v3173
  %v3175 = vpop.xlane.xlu0 %3174
  %v3176 = vrcp.pop %v3175
  %v3177 = vmul.f32 %v3172, %v3176
  %v3178 = vpack.c.bf16 %v3177, %v3177
  %3180 = vrot.lane.b32.xlu0 %v3119, 96
  %v3181 = vpop.permute.xlu0 %3180
  %v3183 = vsel %vm194, %v3178, 0
  %v3186 = vsel %vm212, %v3181, 0
  %3188 = vmatprep.subr.bf16.mxu0 0
  %3189 = vmatpush1.bf16.msra.mxu0 %v3186
  %3190 = vmatprep.subr.bf16.mxu0 0
  %3191 = vmatpush1.bf16.msra.mxu0 0
  %3192 = vmatprep.subr.bf16.mxu0 0
  %3193 = vmatpush1.bf16.msra.mxu0 0
  %3194 = vmatprep.subr.bf16.mxu0 0
  %3195 = vmatpush1.bf16.msra.mxu0 0
  %3196 = vmatprep.subr.bf16.mxu0 0
  %3197 = vmatpush1.bf16.msra.mxu0 0
  %3198 = vmatprep.subr.bf16.mxu0 0
  %3199 = vmatpush1.bf16.msra.mxu0 0
  %3200 = vmatprep.subr.bf16.mxu0 0
  %3201 = vmatpush1.bf16.msra.mxu0 0
  %3202 = vmatprep.subr.bf16.mxu0 0
  %3203 = vmatpush1.bf16.msra.mxu0 0
  %3204 = vmatprep.subr.bf16.mxu0 0
  %3205 = vmatpush1.bf16.msra.mxu0 0
  %3206 = vmatprep.subr.bf16.mxu0 0
  %3207 = vmatpush1.bf16.msra.mxu0 0
  %3208 = vmatprep.subr.bf16.mxu0 0
  %3209 = vmatpush1.bf16.msra.mxu0 0
  %3210 = vmatprep.subr.bf16.mxu0 0
  %3211 = vmatpush1.bf16.msra.mxu0 0
  %3212 = vmatprep.subr.bf16.mxu0 0
  %3213 = vmatpush1.bf16.msra.mxu0 0
  %3214 = vmatprep.subr.bf16.mxu0 0
  %3215 = vmatpush1.bf16.msra.mxu0 0
  %3216 = vmatprep.subr.bf16.mxu0 0
  %3217 = vmatpush1.bf16.msra.mxu0 0
  %3218 = vmatprep.subr.bf16.mxu0 0
  %3219 = vmatpush1.bf16.msra.mxu0 0
  %3220 = vmatprep.mubr.bf16.mxu0 0
  %3221 = vmatmul.mubr.bf16.gmra.mrb[0].mxu0 %v3183
  %v3222 = vpop.f32.mrb[0].mxu0
  %v3223 = vadd.f32 0.0, %v3222
  %v3224 = vpop.f32.mrb[0].mxu0
  %v3225 = vpop.f32.mrb[0].mxu0
  %v3226 = vpop.f32.mrb[0].mxu0
  %3227 = vdwg.mxu0
  %3229 = vrot.lane.b32.xlu0 %v3118, 112
  %v3230 = vpop.permute.xlu0 %3229
  %3231 = vrot.lane.b32.xlu0 %v3119, 112
  %v3232 = vpop.permute.xlu0 %3231
  %v3234 = vsel %vm146, %v3230, 0
  %v3237 = vsel %vm146, %v3232, 0
  %3239 = vmatprep.subr.bf16.mxu0 0
  %3240 = vmatpush1.bf16.xpose.msra.mxu0 %v3237
  %3241 = vmatprep.subr.bf16.mxu0 0
  %3242 = vmatpush1.bf16.xpose.msra.mxu0 0
  %3243 = vmatprep.subr.bf16.mxu0 0
  %3244 = vmatpush1.bf16.xpose.msra.mxu0 0
  %3245 = vmatprep.subr.bf16.mxu0 0
  %3246 = vmatpush1.bf16.xpose.msra.mxu0 0
  %3247 = vmatprep.subr.bf16.mxu0 0
  %3248 = vmatpush1.bf16.xpose.msra.mxu0 0
  %3249 = vmatprep.subr.bf16.mxu0 0
  %3250 = vmatpush1.bf16.xpose.msra.mxu0 0
  %3251 = vmatprep.subr.bf16.mxu0 0
  %3252 = vmatpush1.bf16.xpose.msra.mxu0 0
  %3253 = vmatprep.subr.bf16.mxu0 0
  %3254 = vmatpush1.bf16.xpose.msra.mxu0 0
  %3255 = vmatprep.subr.bf16.mxu0 0
  %3256 = vmatpush1.bf16.xpose.msra.mxu0 0
  %3257 = vmatprep.subr.bf16.mxu0 0
  %3258 = vmatpush1.bf16.xpose.msra.mxu0 0
  %3259 = vmatprep.subr.bf16.mxu0 0
  %3260 = vmatpush1.bf16.xpose.msra.mxu0 0
  %3261 = vmatprep.subr.bf16.mxu0 0
  %3262 = vmatpush1.bf16.xpose.msra.mxu0 0
  %3263 = vmatprep.subr.bf16.mxu0 0
  %3264 = vmatpush1.bf16.xpose.msra.mxu0 0
  %3265 = vmatprep.subr.bf16.mxu0 0
  %3266 = vmatpush1.bf16.xpose.msra.mxu0 0
  %3267 = vmatprep.subr.bf16.mxu0 0
  %3268 = vmatpush1.bf16.xpose.msra.mxu0 0
  %3269 = vmatprep.subr.bf16.mxu0 0
  %3270 = vmatpush1.bf16.xpose.msra.mxu0 0
  %3271 = vmatprep.mubr.bf16.mxu0 0
  %3272 = vmatmul.mubr.bf16.gmra.mrb[0].mxu0 %v3234
  %v3273 = vpop.f32.mrb[0].mxu0
  %v3274 = vadd.f32 0.0, %v3273
  %v3275 = vpop.f32.mrb[0].mxu0
  %v3276 = vpop.f32.mrb[0].mxu0
  %v3277 = vpop.f32.mrb[0].mxu0
  %3278 = vdwg.mxu0
  %v3279 = vsel %vm3117, %v3274, -1e+30
  %v3280 = vsel %vm194, %v3279, -inf
  %3281 = vmax.xlane.f32.xlu0 %v3280
  %v3282 = vpop.xlane.xlu0 %3281
  %v3283 = vsub.f32 %v3279, %v3282
  %v3284 = vmul.f32 %v3283, 1.442695
  %v3285 = vpow.pop %v3284
  %v3286 = vsel %vm194, %v3285, 0.0
  %3287 = vadd.xlane.f32.xlu0 %v3286
  %v3288 = vpop.xlane.xlu0 %3287
  %v3289 = vrcp.pop %v3288
  %v3290 = vmul.f32 %v3285, %v3289
  %v3291 = vpack.c.bf16 %v3290, %v3290
  %3292 = vrot.lane.b32.xlu0 %v3119, 80
  %v3293 = vpop.permute.xlu0 %3292
  %v3295 = vsel %vm194, %v3291, 0
  %v3298 = vsel %vm212, %v3293, 0
  %3300 = vmatprep.subr.bf16.mxu0 0
  %3301 = vmatpush1.bf16.msra.mxu0 %v3298
  %3302 = vmatprep.subr.bf16.mxu0 0
  %3303 = vmatpush1.bf16.msra.mxu0 0
  %3304 = vmatprep.subr.bf16.mxu0 0
  %3305 = vmatpush1.bf16.msra.mxu0 0
  %3306 = vmatprep.subr.bf16.mxu0 0
  %3307 = vmatpush1.bf16.msra.mxu0 0
  %3308 = vmatprep.subr.bf16.mxu0 0
  %3309 = vmatpush1.bf16.msra.mxu0 0
  %3310 = vmatprep.subr.bf16.mxu0 0
  %3311 = vmatpush1.bf16.msra.mxu0 0
  %3312 = vmatprep.subr.bf16.mxu0 0
  %3313 = vmatpush1.bf16.msra.mxu0 0
  %3314 = vmatprep.subr.bf16.mxu0 0
  %3315 = vmatpush1.bf16.msra.mxu0 0
  %3316 = vmatprep.subr.bf16.mxu0 0
  %3317 = vmatpush1.bf16.msra.mxu0 0
  %3318 = vmatprep.subr.bf16.mxu0 0
  %3319 = vmatpush1.bf16.msra.mxu0 0
  %3320 = vmatprep.subr.bf16.mxu0 0
  %3321 = vmatpush1.bf16.msra.mxu0 0
  %3322 = vmatprep.subr.bf16.mxu0 0
  %3323 = vmatpush1.bf16.msra.mxu0 0
  %3324 = vmatprep.subr.bf16.mxu0 0
  %3325 = vmatpush1.bf16.msra.mxu0 0
  %3326 = vmatprep.subr.bf16.mxu0 0
  %3327 = vmatpush1.bf16.msra.mxu0 0
  %3328 = vmatprep.subr.bf16.mxu0 0
  %3329 = vmatpush1.bf16.msra.mxu0 0
  %3330 = vmatprep.subr.bf16.mxu0 0
  %3331 = vmatpush1.bf16.msra.mxu0 0
  %3332 = vmatprep.mubr.bf16.mxu0 0
  %3333 = vmatmul.mubr.bf16.gmra.mrb[0].mxu0 %v3295
  %v3334 = vpop.f32.mrb[0].mxu0
  %v3335 = vadd.f32 0.0, %v3334
  %v3336 = vpop.f32.mrb[0].mxu0
  %v3337 = vpop.f32.mrb[0].mxu0
  %v3338 = vpop.f32.mrb[0].mxu0
  %3339 = vdwg.mxu0
  %3341 = vrot.lane.b32.xlu0 %v3335, 16
  %v3342 = vpop.permute.xlu0 %3341
  %v3344 = vsel %vm146, %v3223, %v3342
  %v3345 = vlaneseq
  %v3346 = vshrl.u32 %v3345, 7
  %v3347 = vsub.s32 1, %v3346
  %v3348 = vrot.slane %v3112, %v3347
  %vm3349 = vcmp.eq.s32.totalorder %v3348, 1
  %v3350 = vpack.c.bf16 %v3051, %v3051
  %v3351 = vpack.c.bf16 %v3108, %v3108
  %v3353 = vsel %vm146, %v3350, 0
  %v3356 = vsel %vm146, %v3351, 0
  %3358 = vmatprep.subr.bf16.mxu0 0
  %3359 = vmatpush1.bf16.xpose.msra.mxu0 %v3356
  %3360 = vmatprep.subr.bf16.mxu0 0
  %3361 = vmatpush1.bf16.xpose.msra.mxu0 0
  %3362 = vmatprep.subr.bf16.mxu0 0
  %3363 = vmatpush1.bf16.xpose.msra.mxu0 0
  %3364 = vmatprep.subr.bf16.mxu0 0
  %3365 = vmatpush1.bf16.xpose.msra.mxu0 0
  %3366 = vmatprep.subr.bf16.mxu0 0
  %3367 = vmatpush1.bf16.xpose.msra.mxu0 0
  %3368 = vmatprep.subr.bf16.mxu0 0
  %3369 = vmatpush1.bf16.xpose.msra.mxu0 0
  %3370 = vmatprep.subr.bf16.mxu0 0
  %3371 = vmatpush1.bf16.xpose.msra.mxu0 0
  %3372 = vmatprep.subr.bf16.mxu0 0
  %3373 = vmatpush1.bf16.xpose.msra.mxu0 0
  %3374 = vmatprep.subr.bf16.mxu0 0
  %3375 = vmatpush1.bf16.xpose.msra.mxu0 0
  %3376 = vmatprep.subr.bf16.mxu0 0
  %3377 = vmatpush1.bf16.xpose.msra.mxu0 0
  %3378 = vmatprep.subr.bf16.mxu0 0
  %3379 = vmatpush1.bf16.xpose.msra.mxu0 0
  %3380 = vmatprep.subr.bf16.mxu0 0
  %3381 = vmatpush1.bf16.xpose.msra.mxu0 0
  %3382 = vmatprep.subr.bf16.mxu0 0
  %3383 = vmatpush1.bf16.xpose.msra.mxu0 0
  %3384 = vmatprep.subr.bf16.mxu0 0
  %3385 = vmatpush1.bf16.xpose.msra.mxu0 0
  %3386 = vmatprep.subr.bf16.mxu0 0
  %3387 = vmatpush1.bf16.xpose.msra.mxu0 0
  %3388 = vmatprep.subr.bf16.mxu0 0
  %3389 = vmatpush1.bf16.xpose.msra.mxu0 0
  %3390 = vmatprep.mubr.bf16.mxu0 0
  %3391 = vmatmul.mubr.bf16.gmra.mrb[0].mxu0 %v3353
  %v3392 = vpop.f32.mrb[0].mxu0
  %v3393 = vadd.f32 0.0, %v3392
  %v3394 = vpop.f32.mrb[0].mxu0
  %v3395 = vpop.f32.mrb[0].mxu0
  %v3396 = vpop.f32.mrb[0].mxu0
  %3397 = vdwg.mxu0
  %v3398 = vsel %vm3349, %v3393, -1e+30
  %v3399 = vsel %vm194, %v3398, -inf
  %3400 = vmax.xlane.f32.xlu0 %v3399
  %v3401 = vpop.xlane.xlu0 %3400
  %v3402 = vsub.f32 %v3398, %v3401
  %v3403 = vmul.f32 %v3402, 1.442695
  %v3404 = vpow.pop %v3403
  %v3405 = vsel %vm194, %v3404, 0.0
  %3406 = vadd.xlane.f32.xlu0 %v3405
  %v3407 = vpop.xlane.xlu0 %3406
  %v3408 = vrcp.pop %v3407
  %v3409 = vmul.f32 %v3404, %v3408
  %v3410 = vpack.c.bf16 %v3409, %v3409
  %3412 = vrot.lane.b32.xlu0 %v3351, 96
  %v3413 = vpop.permute.xlu0 %3412
  %v3415 = vsel %vm194, %v3410, 0
  %v3418 = vsel %vm212, %v3413, 0
  %3420 = vmatprep.subr.bf16.mxu0 0
  %3421 = vmatpush1.bf16.msra.mxu0 %v3418
  %3422 = vmatprep.subr.bf16.mxu0 0
  %3423 = vmatpush1.bf16.msra.mxu0 0
  %3424 = vmatprep.subr.bf16.mxu0 0
  %3425 = vmatpush1.bf16.msra.mxu0 0
  %3426 = vmatprep.subr.bf16.mxu0 0
  %3427 = vmatpush1.bf16.msra.mxu0 0
  %3428 = vmatprep.subr.bf16.mxu0 0
  %3429 = vmatpush1.bf16.msra.mxu0 0
  %3430 = vmatprep.subr.bf16.mxu0 0
  %3431 = vmatpush1.bf16.msra.mxu0 0
  %3432 = vmatprep.subr.bf16.mxu0 0
  %3433 = vmatpush1.bf16.msra.mxu0 0
  %3434 = vmatprep.subr.bf16.mxu0 0
  %3435 = vmatpush1.bf16.msra.mxu0 0
  %3436 = vmatprep.subr.bf16.mxu0 0
  %3437 = vmatpush1.bf16.msra.mxu0 0
  %3438 = vmatprep.subr.bf16.mxu0 0
  %3439 = vmatpush1.bf16.msra.mxu0 0
  %3440 = vmatprep.subr.bf16.mxu0 0
  %3441 = vmatpush1.bf16.msra.mxu0 0
  %3442 = vmatprep.subr.bf16.mxu0 0
  %3443 = vmatpush1.bf16.msra.mxu0 0
  %3444 = vmatprep.subr.bf16.mxu0 0
  %3445 = vmatpush1.bf16.msra.mxu0 0
  %3446 = vmatprep.subr.bf16.mxu0 0
  %3447 = vmatpush1.bf16.msra.mxu0 0
  %3448 = vmatprep.subr.bf16.mxu0 0
  %3449 = vmatpush1.bf16.msra.mxu0 0
  %3450 = vmatprep.subr.bf16.mxu0 0
  %3451 = vmatpush1.bf16.msra.mxu0 0
  %3452 = vmatprep.mubr.bf16.mxu0 0
  %3453 = vmatmul.mubr.bf16.gmra.mrb[0].mxu0 %v3415
  %v3454 = vpop.f32.mrb[0].mxu0
  %v3455 = vadd.f32 0.0, %v3454
  %v3456 = vpop.f32.mrb[0].mxu0
  %v3457 = vpop.f32.mrb[0].mxu0
  %v3458 = vpop.f32.mrb[0].mxu0
  %3459 = vdwg.mxu0
  %3461 = vrot.lane.b32.xlu0 %v3350, 112
  %v3462 = vpop.permute.xlu0 %3461
  %3463 = vrot.lane.b32.xlu0 %v3351, 112
  %v3464 = vpop.permute.xlu0 %3463
  %v3466 = vsel %vm146, %v3462, 0
  %v3469 = vsel %vm146, %v3464, 0
  %3471 = vmatprep.subr.bf16.mxu0 0
  %3472 = vmatpush1.bf16.xpose.msra.mxu0 %v3469
  %3473 = vmatprep.subr.bf16.mxu0 0
  %3474 = vmatpush1.bf16.xpose.msra.mxu0 0
  %3475 = vmatprep.subr.bf16.mxu0 0
  %3476 = vmatpush1.bf16.xpose.msra.mxu0 0
  %3477 = vmatprep.subr.bf16.mxu0 0
  %3478 = vmatpush1.bf16.xpose.msra.mxu0 0
  %3479 = vmatprep.subr.bf16.mxu0 0
  %3480 = vmatpush1.bf16.xpose.msra.mxu0 0
  %3481 = vmatprep.subr.bf16.mxu0 0
  %3482 = vmatpush1.bf16.xpose.msra.mxu0 0
  %3483 = vmatprep.subr.bf16.mxu0 0
  %3484 = vmatpush1.bf16.xpose.msra.mxu0 0
  %3485 = vmatprep.subr.bf16.mxu0 0
  %3486 = vmatpush1.bf16.xpose.msra.mxu0 0
  %3487 = vmatprep.subr.bf16.mxu0 0
  %3488 = vmatpush1.bf16.xpose.msra.mxu0 0
  %3489 = vmatprep.subr.bf16.mxu0 0
  %3490 = vmatpush1.bf16.xpose.msra.mxu0 0
  %3491 = vmatprep.subr.bf16.mxu0 0
  %3492 = vmatpush1.bf16.xpose.msra.mxu0 0
  %3493 = vmatprep.subr.bf16.mxu0 0
  %3494 = vmatpush1.bf16.xpose.msra.mxu0 0
  %3495 = vmatprep.subr.bf16.mxu0 0
  %3496 = vmatpush1.bf16.xpose.msra.mxu0 0
  %3497 = vmatprep.subr.bf16.mxu0 0
  %3498 = vmatpush1.bf16.xpose.msra.mxu0 0
  %3499 = vmatprep.subr.bf16.mxu0 0
  %3500 = vmatpush1.bf16.xpose.msra.mxu0 0
  %3501 = vmatprep.subr.bf16.mxu0 0
  %3502 = vmatpush1.bf16.xpose.msra.mxu0 0
  %3503 = vmatprep.mubr.bf16.mxu0 0
  %3504 = vmatmul.mubr.bf16.gmra.mrb[0].mxu0 %v3466
  %v3505 = vpop.f32.mrb[0].mxu0
  %v3506 = vadd.f32 0.0, %v3505
  %v3507 = vpop.f32.mrb[0].mxu0
  %v3508 = vpop.f32.mrb[0].mxu0
  %v3509 = vpop.f32.mrb[0].mxu0
  %3510 = vdwg.mxu0
  %v3511 = vsel %vm3349, %v3506, -1e+30
  %v3512 = vsel %vm194, %v3511, -inf
  %3513 = vmax.xlane.f32.xlu0 %v3512
  %v3514 = vpop.xlane.xlu0 %3513
  %v3515 = vsub.f32 %v3511, %v3514
  %v3516 = vmul.f32 %v3515, 1.442695
  %v3517 = vpow.pop %v3516
  %v3518 = vsel %vm194, %v3517, 0.0
  %3519 = vadd.xlane.f32.xlu0 %v3518
  %v3520 = vpop.xlane.xlu0 %3519
  %v3521 = vrcp.pop %v3520
  %v3522 = vmul.f32 %v3517, %v3521
  %v3523 = vpack.c.bf16 %v3522, %v3522
  %3524 = vrot.lane.b32.xlu0 %v3351, 80
  %v3525 = vpop.permute.xlu0 %3524
  %v3527 = vsel %vm194, %v3523, 0
  %v3530 = vsel %vm212, %v3525, 0
  %3532 = vmatprep.subr.bf16.mxu0 0
  %3533 = vmatpush1.bf16.msra.mxu0 %v3530
  %3534 = vmatprep.subr.bf16.mxu0 0
  %3535 = vmatpush1.bf16.msra.mxu0 0
  %3536 = vmatprep.subr.bf16.mxu0 0
  %3537 = vmatpush1.bf16.msra.mxu0 0
  %3538 = vmatprep.subr.bf16.mxu0 0
  %3539 = vmatpush1.bf16.msra.mxu0 0
  %3540 = vmatprep.subr.bf16.mxu0 0
  %3541 = vmatpush1.bf16.msra.mxu0 0
  %3542 = vmatprep.subr.bf16.mxu0 0
  %3543 = vmatpush1.bf16.msra.mxu0 0
  %3544 = vmatprep.subr.bf16.mxu0 0
  %3545 = vmatpush1.bf16.msra.mxu0 0
  %3546 = vmatprep.subr.bf16.mxu0 0
  %3547 = vmatpush1.bf16.msra.mxu0 0
  %3548 = vmatprep.subr.bf16.mxu0 0
  %3549 = vmatpush1.bf16.msra.mxu0 0
  %3550 = vmatprep.subr.bf16.mxu0 0
  %3551 = vmatpush1.bf16.msra.mxu0 0
  %3552 = vmatprep.subr.bf16.mxu0 0
  %3553 = vmatpush1.bf16.msra.mxu0 0
  %3554 = vmatprep.subr.bf16.mxu0 0
  %3555 = vmatpush1.bf16.msra.mxu0 0
  %3556 = vmatprep.subr.bf16.mxu0 0
  %3557 = vmatpush1.bf16.msra.mxu0 0
  %3558 = vmatprep.subr.bf16.mxu0 0
  %3559 = vmatpush1.bf16.msra.mxu0 0
  %3560 = vmatprep.subr.bf16.mxu0 0
  %3561 = vmatpush1.bf16.msra.mxu0 0
  %3562 = vmatprep.subr.bf16.mxu0 0
  %3563 = vmatpush1.bf16.msra.mxu0 0
  %3564 = vmatprep.mubr.bf16.mxu0 0
  %3565 = vmatmul.mubr.bf16.gmra.mrb[0].mxu0 %v3527
  %v3566 = vpop.f32.mrb[0].mxu0
  %v3567 = vadd.f32 0.0, %v3566
  %v3568 = vpop.f32.mrb[0].mxu0
  %v3569 = vpop.f32.mrb[0].mxu0
  %v3570 = vpop.f32.mrb[0].mxu0
  %3571 = vdwg.mxu0
  %3573 = vrot.lane.b32.xlu0 %v3567, 16
  %v3574 = vpop.permute.xlu0 %3573
  %v3576 = vsel %vm146, %v3455, %v3574
  %v3577 = vpack.c.bf16 %v3576, %v3344
  %3578 = vrot.lane.b32.xlu0 %v3003, 32
  %v3579 = vpop.permute.xlu0 %3578
  %3580 = vrot.lane.b32.xlu0 %v3004, 32
  %v3581 = vpop.permute.xlu0 %3580
  %3584 = vrot.lane.b32.xlu0 %v3059, 64
  %v3585 = vpop.permute.xlu0 %3584
  %v3588 = vsel %vm90, %v3577, 0
  %3590 = vmatprep.subr.bf16.mxu0 0
  %3591 = vmatpush1.bf16.msra.mxu0 %v3579
  %3592 = vmatprep.subr.bf16.mxu0 0
  %3593 = vmatpush1.bf16.msra.mxu0 %v3581
  %3594 = vmatprep.subr.bf16.mxu0 0
  %3595 = vmatpush1.bf16.msra.mxu0 0
  %3596 = vmatprep.subr.bf16.mxu0 0
  %3597 = vmatpush1.bf16.msra.mxu0 0
  %3598 = vmatprep.subr.bf16.mxu0 0
  %3599 = vmatpush1.bf16.msra.mxu0 0
  %3600 = vmatprep.subr.bf16.mxu0 0
  %3601 = vmatpush1.bf16.msra.mxu0 0
  %3602 = vmatprep.subr.bf16.mxu0 0
  %3603 = vmatpush1.bf16.msra.mxu0 0
  %3604 = vmatprep.subr.bf16.mxu0 0
  %3605 = vmatpush1.bf16.msra.mxu0 0
  %3606 = vmatprep.subr.bf16.mxu0 0
  %3607 = vmatpush1.bf16.msra.mxu0 0
  %3608 = vmatprep.subr.bf16.mxu0 0
  %3609 = vmatpush1.bf16.msra.mxu0 0
  %3610 = vmatprep.subr.bf16.mxu0 0
  %3611 = vmatpush1.bf16.msra.mxu0 0
  %3612 = vmatprep.subr.bf16.mxu0 0
  %3613 = vmatpush1.bf16.msra.mxu0 0
  %3614 = vmatprep.subr.bf16.mxu0 0
  %3615 = vmatpush1.bf16.msra.mxu0 0
  %3616 = vmatprep.subr.bf16.mxu0 0
  %3617 = vmatpush1.bf16.msra.mxu0 0
  %3618 = vmatprep.subr.bf16.mxu0 0
  %3619 = vmatpush1.bf16.msra.mxu0 0
  %3620 = vmatprep.subr.bf16.mxu0 0
  %3621 = vmatpush1.bf16.msra.mxu0 0
  %3622 = vmatprep.mubr.bf16.mxu0 0
  %3623 = vmatmul.mubr.bf16.gmra.mrb[0].mxu0 %v3588
  %v3624 = vpop.f32.mrb[0].mxu0
  %v3625 = vadd.f32 %v3585, %v3624
  %v3626 = vpop.f32.mrb[0].mxu0
  %v3627 = vpop.f32.mrb[0].mxu0
  %v3628 = vadd.f32 %v3585, %v3627
  %v3629 = vpop.f32.mrb[0].mxu0
  %3630 = vdwg.mxu0
  %v3631 = vadd.f32 %v2986, %v3625
  %v3632 = vadd.f32 %v2987, %v3628
  %v3633 = vsel %vm90, %v3631, 0.0
  %3634 = vadd.xlane.f32.xlu0 %v3633
  %v3635 = vpop.xlane.xlu0 %3634
  %v3636 = vsel %vm90, %v3632, 0.0
  %3637 = vadd.xlane.f32.xlu0 %v3636
  %v3638 = vpop.xlane.xlu0 %3637
  %v3639 = vmul.f32 %v3635, %v667
  %v3640 = vmul.f32 %v3638, %v667
  %v3641 = vsub.f32 %v3631, %v3639
  %v3642 = vsub.f32 %v3632, %v3640
  %v3643 = vmul.f32 %v3641, %v3641
  %v3644 = vmul.f32 %v3642, %v3642
  %v3645 = vsel %vm90, %v3643, 0.0
  %3646 = vadd.xlane.f32.xlu0 %v3645
  %v3647 = vpop.xlane.xlu0 %3646
  %v3648 = vsel %vm90, %v3644, 0.0
  %3649 = vadd.xlane.f32.xlu0 %v3648
  %v3650 = vpop.xlane.xlu0 %3649
  %v3651 = vmul.f32 %v3647, %v667
  %v3652 = vmul.f32 %v3650, %v667
  %v3653 = vadd.f32 %v3651, 1e-05
  %v3654 = vadd.f32 %v3652, 1e-05
  %v3655 = vrsqrt.pop %v3653
  %v3656 = vrsqrt.pop %v3654
  %v3657 = vmul.f32 %v3641, %v3655
  %v3658 = vmul.f32 %v3642, %v3656
  %3659 = vrot.lane.b32.xlu0 %v3059, 32
  %v3660 = vpop.permute.xlu0 %3659
  %v3662 = vmul.f32 %v3657, %v3660
  %v3663 = vmul.f32 %v3658, %v3660
  %v3665 = vlaneseq
  %v3666 = vshrl.u32 %v3665, 7
  %v3667 = vsub.s32 0, %v3666
  %v3668 = vrot.slane %v2989, %v3667
  %v3670 = vadd.f32 %v3662, %v3668
  %v3671 = vadd.f32 %v3663, %v3668
  %v3672 = vld [vmem:[%s9 + $0x18] sm:$0xf]
  %v3673 = vld [vmem:[%s9 + $0x38] sm:$0xf]
  %v3674 = vld [vmem:[%s9 + $0x58] sm:$0xf]
  %v3675 = vld [vmem:[%s9 + $0x78] sm:$0xf]
  %v3676 = vpack.c.bf16 %v3671, %v3670
  %v3681 = vunpack.c.l.b16 %v3672
  %v3682 = vunpack.c.l.b16 %v3673
  %v3683 = vunpack.c.l.b16 %v3674
  %v3684 = vunpack.c.l.b16 %v3675
  %v3685 = vpack.c.b16 %v3682, %v3681
  %v3686 = vpack.c.b16 %v3684, %v3683
  %3689 = vrot.lane.b32.xlu0 %v3668, 96
  %v3690 = vpop.permute.xlu0 %3689
  %v3693 = vsel %vm90, %v3676, 0
  %3695 = vmatprep.subr.bf16.mxu0 0
  %3696 = vmatpush1.bf16.msra.mxu0 %v3685
  %3697 = vmatprep.subr.bf16.mxu0 0
  %3698 = vmatpush1.bf16.msra.mxu0 %v3686
  %3699 = vmatprep.subr.bf16.mxu0 0
  %3700 = vmatpush1.bf16.msra.mxu0 0
  %3701 = vmatprep.subr.bf16.mxu0 0
  %3702 = vmatpush1.bf16.msra.mxu0 0
  %3703 = vmatprep.subr.bf16.mxu0 0
  %3704 = vmatpush1.bf16.msra.mxu0 0
  %3705 = vmatprep.subr.bf16.mxu0 0
  %3706 = vmatpush1.bf16.msra.mxu0 0
  %3707 = vmatprep.subr.bf16.mxu0 0
  %3708 = vmatpush1.bf16.msra.mxu0 0
  %3709 = vmatprep.subr.bf16.mxu0 0
  %3710 = vmatpush1.bf16.msra.mxu0 0
  %3711 = vmatprep.subr.bf16.mxu0 0
  %3712 = vmatpush1.bf16.msra.mxu0 0
  %3713 = vmatprep.subr.bf16.mxu0 0
  %3714 = vmatpush1.bf16.msra.mxu0 0
  %3715 = vmatprep.subr.bf16.mxu0 0
  %3716 = vmatpush1.bf16.msra.mxu0 0
  %3717 = vmatprep.subr.bf16.mxu0 0
  %3718 = vmatpush1.bf16.msra.mxu0 0
  %3719 = vmatprep.subr.bf16.mxu0 0
  %3720 = vmatpush1.bf16.msra.mxu0 0
  %3721 = vmatprep.subr.bf16.mxu0 0
  %3722 = vmatpush1.bf16.msra.mxu0 0
  %3723 = vmatprep.subr.bf16.mxu0 0
  %3724 = vmatpush1.bf16.msra.mxu0 0
  %3725 = vmatprep.subr.bf16.mxu0 0
  %3726 = vmatpush1.bf16.msra.mxu0 0
  %3727 = vmatprep.mubr.bf16.mxu0 0
  %3728 = vmatmul.mubr.bf16.gmra.mrb[0].mxu0 %v3693
  %v3729 = vpop.f32.mrb[0].mxu0
  %v3730 = vadd.f32 %v3690, %v3729
  %v3731 = vpop.f32.mrb[0].mxu0
  %v3732 = vpop.f32.mrb[0].mxu0
  %v3733 = vadd.f32 %v3690, %v3732
  %v3734 = vpop.f32.mrb[0].mxu0
  %3735 = vdwg.mxu0
  %v3736 = vmax.f32 %v3730, 0.0
  %v3737 = vmax.f32 %v3733, 0.0
  %v3738 = vpack.c.bf16 %v3737, %v3736
  %3739 = vrot.lane.b32.xlu0 %v799, 96
  %v3740 = vpop.permute.xlu0 %3739
  %3741 = vrot.lane.b32.xlu0 %v800, 96
  %v3742 = vpop.permute.xlu0 %3741
  %3743 = vrot.lane.b32.xlu0 %v801, 96
  %v3744 = vpop.permute.xlu0 %3743
  %3745 = vrot.lane.b32.xlu0 %v802, 96
  %v3746 = vpop.permute.xlu0 %3745
  %3751 = vrot.lane.b32.xlu0 %v3668, 32
  %v3752 = vpop.permute.xlu0 %3751
  %v3755 = vsel %vm807, %v3738, 0
  %3757 = vmatprep.subr.bf16.mxu0 0
  %3758 = vmatpush1.bf16.msra.mxu0 %v3740
  %3759 = vmatprep.subr.bf16.mxu0 0
  %3760 = vmatpush1.bf16.msra.mxu0 %v3742
  %3761 = vmatprep.subr.bf16.mxu0 0
  %3762 = vmatpush1.bf16.msra.mxu0 %v3744
  %3763 = vmatprep.subr.bf16.mxu0 0
  %3764 = vmatpush1.bf16.msra.mxu0 %v3746
  %3765 = vmatprep.subr.bf16.mxu0 0
  %3766 = vmatpush1.bf16.msra.mxu0 0
  %3767 = vmatprep.subr.bf16.mxu0 0
  %3768 = vmatpush1.bf16.msra.mxu0 0
  %3769 = vmatprep.subr.bf16.mxu0 0
  %3770 = vmatpush1.bf16.msra.mxu0 0
  %3771 = vmatprep.subr.bf16.mxu0 0
  %3772 = vmatpush1.bf16.msra.mxu0 0
  %3773 = vmatprep.subr.bf16.mxu0 0
  %3774 = vmatpush1.bf16.msra.mxu0 0
  %3775 = vmatprep.subr.bf16.mxu0 0
  %3776 = vmatpush1.bf16.msra.mxu0 0
  %3777 = vmatprep.subr.bf16.mxu0 0
  %3778 = vmatpush1.bf16.msra.mxu0 0
  %3779 = vmatprep.subr.bf16.mxu0 0
  %3780 = vmatpush1.bf16.msra.mxu0 0
  %3781 = vmatprep.subr.bf16.mxu0 0
  %3782 = vmatpush1.bf16.msra.mxu0 0
  %3783 = vmatprep.subr.bf16.mxu0 0
  %3784 = vmatpush1.bf16.msra.mxu0 0
  %3785 = vmatprep.subr.bf16.mxu0 0
  %3786 = vmatpush1.bf16.msra.mxu0 0
  %3787 = vmatprep.subr.bf16.mxu0 0
  %3788 = vmatpush1.bf16.msra.mxu0 0
  %3789 = vmatprep.mubr.bf16.mxu0 0
  %3790 = vmatmul.mubr.bf16.gmra.mrb[0].mxu0 %v3755
  %v3791 = vpop.f32.mrb[0].mxu0
  %v3792 = vadd.f32 %v3752, %v3791
  %v3793 = vpop.f32.mrb[0].mxu0
  %v3794 = vpop.f32.mrb[0].mxu0
  %v3795 = vadd.f32 %v3752, %v3794
  %v3796 = vpop.f32.mrb[0].mxu0
  %3797 = vdwg.mxu0
  %v3798 = vadd.f32 %v3670, %v3792
  %v3799 = vadd.f32 %v3671, %v3795
  %v3800 = vld [vmem:[%s11 + $0xa] sm:$0x1]
  %v3801 = vsel %vm90, %v3798, 0.0
  %3802 = vadd.xlane.f32.xlu0 %v3801
  %v3803 = vpop.xlane.xlu0 %3802
  %v3804 = vsel %vm90, %v3799, 0.0
  %3805 = vadd.xlane.f32.xlu0 %v3804
  %v3806 = vpop.xlane.xlu0 %3805
  %v3807 = vmul.f32 %v3803, %v667
  %v3808 = vmul.f32 %v3806, %v667
  %v3809 = vsub.f32 %v3798, %v3807
  %v3810 = vsub.f32 %v3799, %v3808
  %v3811 = vmul.f32 %v3809, %v3809
  %v3812 = vmul.f32 %v3810, %v3810
  %v3813 = vsel %vm90, %v3811, 0.0
  %3814 = vadd.xlane.f32.xlu0 %v3813
  %v3815 = vpop.xlane.xlu0 %3814
  %v3816 = vsel %vm90, %v3812, 0.0
  %3817 = vadd.xlane.f32.xlu0 %v3816
  %v3818 = vpop.xlane.xlu0 %3817
  %v3819 = vmul.f32 %v3815, %v667
  %v3820 = vmul.f32 %v3818, %v667
  %v3821 = vadd.f32 %v3819, 1e-05
  %v3822 = vadd.f32 %v3820, 1e-05
  %v3823 = vrsqrt.pop %v3821
  %v3824 = vrsqrt.pop %v3822
  %v3825 = vmul.f32 %v3809, %v3823
  %v3826 = vmul.f32 %v3810, %v3824
  %v3828 = vlaneseq
  %v3829 = vshrl.u32 %v3828, 7
  %v3830 = vsub.s32 0, %v3829
  %v3831 = vrot.slane %v3800, %v3830
  %v3833 = vmul.f32 %v3825, %v3831
  %v3834 = vmul.f32 %v3826, %v3831
  %3835 = vrot.lane.b32.xlu0 %v3831, 96
  %v3836 = vpop.permute.xlu0 %3835
  %v3838 = vadd.f32 %v3833, %v3836
  %v3839 = vadd.f32 %v3834, %v3836
  %v3840 = vld [vmem:[%s8] sm:$0x3]
  %v3841 = vpack.c.bf16 %v3840, %v3840
  %3842 = vrot.lane.b32.xlu0 %v799, 64
  %v3843 = vpop.permute.xlu0 %3842
  %3844 = vrot.lane.b32.xlu0 %v800, 64
  %v3845 = vpop.permute.xlu0 %3844
  %3846 = vrot.lane.b32.xlu0 %v801, 64
  %v3847 = vpop.permute.xlu0 %3846
  %3848 = vrot.lane.b32.xlu0 %v802, 64
  %v3849 = vpop.permute.xlu0 %3848
  %3854 = vrot.lane.b32.xlu0 %v3831, 64
  %v3855 = vpop.permute.xlu0 %3854
  %v3858 = vsel %vm807, %v3841, 0
  %3860 = vmatprep.subr.bf16.mxu0 0
  %3861 = vmatpush1.bf16.msra.mxu0 %v3843
  %3862 = vmatprep.subr.bf16.mxu0 0
  %3863 = vmatpush1.bf16.msra.mxu0 %v3845
  %3864 = vmatprep.subr.bf16.mxu0 0
  %3865 = vmatpush1.bf16.msra.mxu0 %v3847
  %3866 = vmatprep.subr.bf16.mxu0 0
  %3867 = vmatpush1.bf16.msra.mxu0 %v3849
  %3868 = vmatprep.subr.bf16.mxu0 0
  %3869 = vmatpush1.bf16.msra.mxu0 0
  %3870 = vmatprep.subr.bf16.mxu0 0
  %3871 = vmatpush1.bf16.msra.mxu0 0
  %3872 = vmatprep.subr.bf16.mxu0 0
  %3873 = vmatpush1.bf16.msra.mxu0 0
  %3874 = vmatprep.subr.bf16.mxu0 0
  %3875 = vmatpush1.bf16.msra.mxu0 0
  %3876 = vmatprep.subr.bf16.mxu0 0
  %3877 = vmatpush1.bf16.msra.mxu0 0
  %3878 = vmatprep.subr.bf16.mxu0 0
  %3879 = vmatpush1.bf16.msra.mxu0 0
  %3880 = vmatprep.subr.bf16.mxu0 0
  %3881 = vmatpush1.bf16.msra.mxu0 0
  %3882 = vmatprep.subr.bf16.mxu0 0
  %3883 = vmatpush1.bf16.msra.mxu0 0
  %3884 = vmatprep.subr.bf16.mxu0 0
  %3885 = vmatpush1.bf16.msra.mxu0 0
  %3886 = vmatprep.subr.bf16.mxu0 0
  %3887 = vmatpush1.bf16.msra.mxu0 0
  %3888 = vmatprep.subr.bf16.mxu0 0
  %3889 = vmatpush1.bf16.msra.mxu0 0
  %3890 = vmatprep.subr.bf16.mxu0 0
  %3891 = vmatpush1.bf16.msra.mxu0 0
  %3892 = vmatprep.mubr.bf16.mxu0 0
  %3893 = vmatmul.mubr.bf16.gmra.mrb[0].mxu0 %v3858
  %v3894 = vpop.f32.mrb[0].mxu0
  %v3895 = vadd.f32 %v3855, %v3894
  %v3896 = vpop.f32.mrb[0].mxu0
  %v3897 = vpop.f32.mrb[0].mxu0
  %v3898 = vpop.f32.mrb[0].mxu0
  %3899 = vdwg.mxu0
  %v3900 = vld [vmem:[%s10 + $0x4] sm:$0xf]
  %v3901 = vld [vmem:[%s10 + $0xc] sm:$0xf]
  %v3902 = vld [vmem:[%s10 + $0x14] sm:$0xf]
  %v3903 = vld [vmem:[%s10 + $0x1c] sm:$0xf]
  %v3904 = vld [vmem:[%s10 + $0x24] sm:$0xf]
  %v3905 = vld [vmem:[%s10 + $0x2c] sm:$0xf]
  %v3906 = vld [vmem:[%s10 + $0x34] sm:$0xf]
  %v3907 = vld [vmem:[%s10 + $0x3c] sm:$0xf]
  %v3908 = vpack.c.bf16 %v3895, %v3895
  %v3909 = vld [vmem:[%s11 + $0xb] sm:$0x1]
  %v3911 = vlaneseq
  %v3912 = vshrl.u32 %v3911, 7
  %v3913 = vsub.s32 0, %v3912
  %v3914 = vrot.slane %v3909, %v3913
  %v3924 = vunpack.c.l.b16 %v3900
  %v3925 = vunpack.c.l.b16 %v3901
  %v3926 = vunpack.c.l.b16 %v3902
  %v3927 = vunpack.c.l.b16 %v3903
  %v3928 = vunpack.c.l.b16 %v3904
  %v3929 = vunpack.c.l.b16 %v3905
  %v3930 = vunpack.c.l.b16 %v3906
  %v3931 = vunpack.c.l.b16 %v3907
  %v3932 = vpack.c.b16 %v3925, %v3924
  %v3933 = vpack.c.b16 %v3927, %v3926
  %v3934 = vpack.c.b16 %v3929, %v3928
  %v3935 = vpack.c.b16 %v3931, %v3930
  %v3941 = vsel %vm807, %v3908, 0
  %3943 = vmatprep.subr.bf16.mxu0 0
  %3944 = vmatpush1.bf16.msra.mxu0 %v3932
  %3945 = vmatprep.subr.bf16.mxu0 0
  %3946 = vmatpush1.bf16.msra.mxu0 %v3933
  %3947 = vmatprep.subr.bf16.mxu0 0
  %3948 = vmatpush1.bf16.msra.mxu0 %v3934
  %3949 = vmatprep.subr.bf16.mxu0 0
  %3950 = vmatpush1.bf16.msra.mxu0 %v3935
  %3951 = vmatprep.subr.bf16.mxu0 0
  %3952 = vmatpush1.bf16.msra.mxu0 0
  %3953 = vmatprep.subr.bf16.mxu0 0
  %3954 = vmatpush1.bf16.msra.mxu0 0
  %3955 = vmatprep.subr.bf16.mxu0 0
  %3956 = vmatpush1.bf16.msra.mxu0 0
  %3957 = vmatprep.subr.bf16.mxu0 0
  %3958 = vmatpush1.bf16.msra.mxu0 0
  %3959 = vmatprep.subr.bf16.mxu0 0
  %3960 = vmatpush1.bf16.msra.mxu0 0
  %3961 = vmatprep.subr.bf16.mxu0 0
  %3962 = vmatpush1.bf16.msra.mxu0 0
  %3963 = vmatprep.subr.bf16.mxu0 0
  %3964 = vmatpush1.bf16.msra.mxu0 0
  %3965 = vmatprep.subr.bf16.mxu0 0
  %3966 = vmatpush1.bf16.msra.mxu0 0
  %3967 = vmatprep.subr.bf16.mxu0 0
  %3968 = vmatpush1.bf16.msra.mxu0 0
  %3969 = vmatprep.subr.bf16.mxu0 0
  %3970 = vmatpush1.bf16.msra.mxu0 0
  %3971 = vmatprep.subr.bf16.mxu0 0
  %3972 = vmatpush1.bf16.msra.mxu0 0
  %3973 = vmatprep.subr.bf16.mxu0 0
  %3974 = vmatpush1.bf16.msra.mxu0 0
  %3975 = vmatprep.mubr.bf16.mxu0 0
  %3976 = vmatmul.mubr.bf16.gmra.mrb[0].mxu0 %v3941
  %v3977 = vpop.f32.mrb[0].mxu0
  %v3978 = vadd.f32 %v3914, %v3977
  %v3979 = vpop.f32.mrb[0].mxu0
  %v3980 = vpop.f32.mrb[0].mxu0
  %v3981 = vpop.f32.mrb[0].mxu0
  %3982 = vdwg.mxu0
  %v3983 = vld [vmem:[%s12] sm:$0xff]
  %v3984 = vld [vmem:[%s12 + $0x8] sm:$0xff]
  %v3985 = vld [vmem:[%s12 + $0x10] sm:$0xff]
  %v3986 = vld [vmem:[%s12 + $0x18] sm:$0xff]
  %v3987 = vpack.c.bf16 %v3839, %v3838
  %v3992 = vunpack.c.l.b16 %v3983
  %v3993 = vunpack.c.h.b16 %v3983
  %v3994 = vunpack.c.l.b16 %v3984
  %v3995 = vunpack.c.h.b16 %v3984
  %v3996 = vunpack.c.l.b16 %v3985
  %v3997 = vunpack.c.h.b16 %v3985
  %v3998 = vunpack.c.l.b16 %v3986
  %v3999 = vunpack.c.h.b16 %v3986
  %v4000 = vpack.c.b16 %v3994, %v3992
  %v4001 = vpack.c.b16 %v3995, %v3993
  %v4002 = vpack.c.b16 %v3998, %v3996
  %v4003 = vpack.c.b16 %v3999, %v3997
  %v4009 = vsel %vm90, %v3987, 0
  %4011 = vmatprep.subr.bf16.mxu0 %v4001
  %4012 = vmatpush1.bf16.msra.mxu0 %v4000
  %4013 = vmatprep.subr.bf16.mxu0 %v4003
  %4014 = vmatpush1.bf16.msra.mxu0 %v4002
  %4015 = vmatprep.subr.bf16.mxu0 0
  %4016 = vmatpush1.bf16.msra.mxu0 0
  %4017 = vmatprep.subr.bf16.mxu0 0
  %4018 = vmatpush1.bf16.msra.mxu0 0
  %4019 = vmatprep.subr.bf16.mxu0 0
  %4020 = vmatpush1.bf16.msra.mxu0 0
  %4021 = vmatprep.subr.bf16.mxu0 0
  %4022 = vmatpush1.bf16.msra.mxu0 0
  %4023 = vmatprep.subr.bf16.mxu0 0
  %4024 = vmatpush1.bf16.msra.mxu0 0
  %4025 = vmatprep.subr.bf16.mxu0 0
  %4026 = vmatpush1.bf16.msra.mxu0 0
  %4027 = vmatprep.subr.bf16.mxu0 0
  %4028 = vmatpush1.bf16.msra.mxu0 0
  %4029 = vmatprep.subr.bf16.mxu0 0
  %4030 = vmatpush1.bf16.msra.mxu0 0
  %4031 = vmatprep.subr.bf16.mxu0 0
  %4032 = vmatpush1.bf16.msra.mxu0 0
  %4033 = vmatprep.subr.bf16.mxu0 0
  %4034 = vmatpush1.bf16.msra.mxu0 0
  %4035 = vmatprep.subr.bf16.mxu0 0
  %4036 = vmatpush1.bf16.msra.mxu0 0
  %4037 = vmatprep.subr.bf16.mxu0 0
  %4038 = vmatpush1.bf16.msra.mxu0 0
  %4039 = vmatprep.subr.bf16.mxu0 0
  %4040 = vmatpush1.bf16.msra.mxu0 0
  %4041 = vmatprep.subr.bf16.mxu0 0
  %4042 = vmatpush1.bf16.msra.mxu0 0
  %4043 = vmatprep.mubr.bf16.mxu0 0
  %4044 = vmatmul.mubr.bf16.gmra.mrb[0].mxu0 %v4009
  %v4045 = vpop.f32.mrb[0].mxu0
  %v4046 = vadd.f32 0.0, %v4045
  %v4047 = vpop.f32.mrb[0].mxu0
  %v4048 = vadd.f32 0.0, %v4047
  %v4049 = vpop.f32.mrb[0].mxu0
  %v4050 = vadd.f32 0.0, %v4049
  %v4051 = vpop.f32.mrb[0].mxu0
  %v4052 = vadd.f32 0.0, %v4051
  %4053 = vdwg.mxu0
  %v4054 = vlaneseq
  %v4055 = vshrl.u32 %v4054, 7
  %v4056 = vsub.s32 0, %v4055
  %v4057 = vrot.slane %v3978, %v4056
  %v4058 = vlaneseq
  %v4059 = vshrl.u32 %v4058, 7
  %v4060 = vsub.s32 1, %v4059
  %v4061 = vrot.slane %v3978, %v4060
  %v4062 = vadd.f32 %v4048, %v4057
  %v4063 = vadd.f32 %v4052, %v4061
  %v4064 = vld [vmem:[%s9 + $0x18] sm:$0xff]
  %v4065 = vld [vmem:[%s9 + $0x38] sm:$0xff]
  %v4066 = vld [vmem:[%s9 + $0x58] sm:$0xff]
  %v4067 = vld [vmem:[%s9 + $0x78] sm:$0xff]
  %v4068 = vpack.c.bf16 %v4063, %v4062
  %v4069 = vld [vmem:[%s11 + $0xb] sm:$0x3]
  %v4071 = vlaneseq
  %v4072 = vshrl.u32 %v4071, 7
  %v4073 = vsub.s32 0, %v4072
  %v4074 = vrot.slane %v4069, %v4073
  %v4075 = vlaneseq
  %v4076 = vshrl.u32 %v4075, 7
  %v4077 = vsub.s32 1, %v4076
  %v4078 = vrot.slane %v4069, %v4077
  %v4083 = vunpack.c.l.b16 %v4064
  %v4084 = vunpack.c.h.b16 %v4064
  %v4085 = vunpack.c.l.b16 %v4065
  %v4086 = vunpack.c.h.b16 %v4065
  %v4087 = vunpack.c.l.b16 %v4066
  %v4088 = vunpack.c.h.b16 %v4066
  %v4089 = vunpack.c.l.b16 %v4067
  %v4090 = vunpack.c.h.b16 %v4067
  %v4091 = vpack.c.b16 %v4085, %v4083
  %v4092 = vpack.c.b16 %v4086, %v4084
  %v4093 = vpack.c.b16 %v4089, %v4087
  %v4094 = vpack.c.b16 %v4090, %v4088
  %4095 = vrot.lane.b32.xlu0 %v4091, 64
  %v4096 = vpop.permute.xlu0 %4095
  %4097 = vrot.lane.b32.xlu0 %v4092, 64
  %v4098 = vpop.permute.xlu0 %4097
  %4099 = vrot.lane.b32.xlu0 %v4093, 64
  %v4100 = vpop.permute.xlu0 %4099
  %4101 = vrot.lane.b32.xlu0 %v4094, 64
  %v4102 = vpop.permute.xlu0 %4101
  %vm4103 = vcmask 523264
  %v4104 = vsel %vm4103, %v4096, %v4098
  %v4105 = vsel %vm4103, %v4100, %v4102
  %4108 = vrot.lane.b32.xlu0 %v4074, 96
  %v4109 = vpop.permute.xlu0 %4108
  %4110 = vrot.lane.b32.xlu0 %v4078, 96
  %v4111 = vpop.permute.xlu0 %4110
  %vm4112 = vcmask 785408
  %v4113 = vsel %vm4112, %v4109, %v4111
  %v4116 = vsel %vm90, %v4068, 0
  %4118 = vmatprep.subr.bf16.mxu0 0
  %4119 = vmatpush1.bf16.msra.mxu0 %v4104
  %4120 = vmatprep.subr.bf16.mxu0 0
  %4121 = vmatpush1.bf16.msra.mxu0 %v4105
  %4122 = vmatprep.subr.bf16.mxu0 0
  %4123 = vmatpush1.bf16.msra.mxu0 0
  %4124 = vmatprep.subr.bf16.mxu0 0
  %4125 = vmatpush1.bf16.msra.mxu0 0
  %4126 = vmatprep.subr.bf16.mxu0 0
  %4127 = vmatpush1.bf16.msra.mxu0 0
  %4128 = vmatprep.subr.bf16.mxu0 0
  %4129 = vmatpush1.bf16.msra.mxu0 0
  %4130 = vmatprep.subr.bf16.mxu0 0
  %4131 = vmatpush1.bf16.msra.mxu0 0
  %4132 = vmatprep.subr.bf16.mxu0 0
  %4133 = vmatpush1.bf16.msra.mxu0 0
  %4134 = vmatprep.subr.bf16.mxu0 0
  %4135 = vmatpush1.bf16.msra.mxu0 0
  %4136 = vmatprep.subr.bf16.mxu0 0
  %4137 = vmatpush1.bf16.msra.mxu0 0
  %4138 = vmatprep.subr.bf16.mxu0 0
  %4139 = vmatpush1.bf16.msra.mxu0 0
  %4140 = vmatprep.subr.bf16.mxu0 0
  %4141 = vmatpush1.bf16.msra.mxu0 0
  %4142 = vmatprep.subr.bf16.mxu0 0
  %4143 = vmatpush1.bf16.msra.mxu0 0
  %4144 = vmatprep.subr.bf16.mxu0 0
  %4145 = vmatpush1.bf16.msra.mxu0 0
  %4146 = vmatprep.subr.bf16.mxu0 0
  %4147 = vmatpush1.bf16.msra.mxu0 0
  %4148 = vmatprep.subr.bf16.mxu0 0
  %4149 = vmatpush1.bf16.msra.mxu0 0
  %4150 = vmatprep.mubr.bf16.mxu0 0
  %4151 = vmatmul.mubr.bf16.gmra.mrb[0].mxu0 %v4116
  %v4152 = vpop.f32.mrb[0].mxu0
  %v4153 = vadd.f32 %v4113, %v4152
  %v4154 = vpop.f32.mrb[0].mxu0
  %v4155 = vpop.f32.mrb[0].mxu0
  %v4156 = vadd.f32 %v4113, %v4155
  %v4157 = vpop.f32.mrb[0].mxu0
  %4158 = vdwg.mxu0
  %v4159 = vld [vmem:[%s11 + $0xc] sm:$0x3]
  %v4161 = vlaneseq
  %v4162 = vshrl.u32 %v4161, 7
  %v4163 = vsub.s32 0, %v4162
  %v4164 = vrot.slane %v4159, %v4163
  %v4165 = vlaneseq
  %v4166 = vshrl.u32 %v4165, 7
  %v4167 = vsub.s32 1, %v4166
  %v4168 = vrot.slane %v4159, %v4167
  %4169 = vrot.lane.b32.xlu0 %v4164, 96
  %v4170 = vpop.permute.xlu0 %4169
  %4171 = vrot.lane.b32.xlu0 %v4168, 96
  %v4172 = vpop.permute.xlu0 %4171
  %v4173 = vsel %vm4112, %v4170, %v4172
  %v4175 = vmul.f32 %v4153, %v4173
  %v4176 = vmul.f32 %v4156, %v4173
  %4177 = vst [vmem:[%s13] sm:$0xff] %v4046
  %4178 = vst [vmem:[%s13 + $0x8] sm:$0xff] %v4050
  %v4179 = vadd.f32 %v4046, %v4175
  %v4180 = vadd.f32 %v4050, %v4176
  %4181 = vst [vmem:[%s14] sm:$0xff] %v4179
  %4182 = vst [vmem:[%s14 + $0x8] sm:$0xff] %v4180
  // Predicated region
  $region54: #{forward.3} parent=0 // pred_check
    _
  $region55: #{forward.3} parent=0 // pred_check_branch
    %4184 = sbr.rel (0) target = $region57
  $region56: #{forward.3} parent=0 // pred_region
    _
  $region57: #{forward.3} parent=0 // pred_fallthru
    _
  // Predicated region
  $region58: #{forward.3} parent=0 // pred_check
    _
  $region59: #{forward.3} parent=0 // pred_check_branch
    %4186 = sbr.rel (0) target = $region61
  $region60: #{forward.3} parent=0 // pred_region
    _
  $region61: #{forward.3} parent=0 // pred_fallthru
    _
  // Predicated region
  $region62: #{forward.3} parent=0 // pred_check
    _
  $region63: #{forward.3} parent=0 // pred_check_branch
    %4188 = sbr.rel (0) target = $region65
  $region64: #{forward.3} parent=0 // pred_region
    _
  $region65: #{forward.3} parent=0 // pred_fallthru
    _
  // Predicated region
  $region66: #{forward.3} parent=0 // pred_check
    _
  $region67: #{forward.3} parent=0 // pred_check_branch
    %4190 = sbr.rel (0) target = $region69
  $region68: #{forward.3} parent=0 // pred_region
    _
  $region69: #{forward.3} parent=0 // pred_fallthru
    _

</llo_original>
